<compile_context>
chip_gen: v7x
topology: tpu7x:2x2x1
jax: 0.10.0
libtpu: 0.0.40
codegen_flags: <defaults>
</compile_context>

<pallas_src>
import functools

import jax
import jax.numpy as jnp
from jax.experimental import pallas as pl
from jax.experimental.pallas import tpu as pltpu


# ----------------------------------------------------------------------------
# Fused BasicBlock kernel (one batch element per grid step)
# ----------------------------------------------------------------------------
def _basic_block_kernel(x_ref, w1_ref, s1_ref, w2_ref, s2_ref, o_ref,
                        xp_ref, mid_ref, panel_ref, *, H, W, Wp, C, TH):
    """Refs:
      x_ref    : (1, H, W, C)  bf16  input feature map (NHWC)
      w1_ref   : (9*C, C)      bf16  conv1 weight, BN1 scale folded in
      s1_ref   : (1, C)        f32   BN1 shift (+ conv1 bias)
      w2_ref   : (9*C, C)      bf16  conv2 weight, BN2 scale folded in
      s2_ref   : (1, C)        f32   BN2 shift (+ conv2 bias)
      o_ref    : (1, H*W, C)   bf16  output (row-major over H, W)
      xp_ref   : (H+2, Wp, C)  bf16  VMEM scratch: zero-padded input
      mid_ref  : (H+2, Wp, C)  bf16  VMEM scratch: zero-padded conv1 output
      panel_ref: (TH*W, 9*C)   bf16  VMEM scratch: im2col panel
    """
    n_tiles = H // TH

    # 1-pixel zero border for both padded images.  A full-buffer VMEM memset is
    # cheap next to the conv FLOPs; the interiors are overwritten below.
    xp_ref[...] = jnp.zeros(xp_ref.shape, xp_ref.dtype)
    mid_ref[...] = jnp.zeros(mid_ref.shape, mid_ref.dtype)

    # Place the input into the interior of the padded scratch (replaces the
    # HBM-level jnp.pad round trip of the previous version).
    xp_ref[1:1 + H, 1:1 + W, :] = x_ref[0]

    def build_panel(src_ref, r0):
        # im2col panel for output rows [r0, r0+TH): column block t = ky*3+kx
        # holds the (TH*W, C) tap of the padded image shifted by (ky, kx).
        for ky in range(3):
            for kx in range(3):
                t = ky * 3 + kx
                tap = src_ref[r0 + ky:r0 + ky + TH, kx:kx + W, :]
                panel_ref[:, t * C:(t + 1) * C] = tap.reshape(TH * W, C)

    # ---- conv1 (BN1 scale folded into w1) + shift + ReLU -> mid (padded) ----
    for r in range(n_tiles):
        r0 = r * TH
        build_panel(xp_ref, r0)
        y = jnp.dot(panel_ref[...], w1_ref[...],
                    preferred_element_type=jnp.float32)     # single big-K MXU dot
        y = jnp.maximum(y + s1_ref[...], 0.0)
        mid_ref[1 + r0:1 + r0 + TH, 1:1 + W, :] = (
            y.astype(mid_ref.dtype).reshape(TH, W, C))

    # ---- conv2 (BN2 scale folded into w2) + shift + residual + ReLU -> out --
    for r in range(n_tiles):
        r0 = r * TH
        build_panel(mid_ref, r0)
        y = jnp.dot(panel_ref[...], w2_ref[...],
                    preferred_element_type=jnp.float32)
        res = xp_ref[1 + r0:1 + r0 + TH, 1:1 + W, :].reshape(TH * W, C)
        y = jnp.maximum(y + s2_ref[...] + res.astype(jnp.float32), 0.0)
        o_ref[0, r0 * W:(r0 + TH) * W, :] = y.astype(o_ref.dtype)


# ----------------------------------------------------------------------------
# Tiling helper
# ----------------------------------------------------------------------------
def _pick_tile_rows(h, w, k9c, max_panel_bytes=4 << 20, max_rows=2048):
    """Largest divisor th of h such that the (th*w, 9*C) bf16 im2col panel fits
    the VMEM budget and th*w is 16-aligned (bf16 store tile); falls back to
    8-aligned / any divisor."""
    divisors = [d for d in range(1, h + 1) if h % d == 0]
    for align in (16, 8, 1):
        fit = [d for d in divisors
               if (d * w) % align == 0
               and d * w <= max_rows
               and d * w * k9c * 2 <= max_panel_bytes]
        if fit:
            return max(fit)
    return 1


# ----------------------------------------------------------------------------
# Wrapper: fused BasicBlock forward (stride=1, downsample=None), NHWC layout
# ----------------------------------------------------------------------------
def basic_block(x_nhwc, params):
    """x_nhwc: (B, H, W, C) float (cast to bf16 internally).  Returns NHWC bf16.
    Within a backbone, activations should stay NHWC bf16 across blocks (no
    per-block NCHW transposes)."""
    B, H, W, C = x_nhwc.shape
    p1, p2 = params['conv1'], params['conv2']
    assert p1['w'].shape == (9 * C, C) and p2['w'].shape == (9 * C, C)

    x = x_nhwc.astype(jnp.bfloat16)
    Wp = ((W + 2 + 7) // 8) * 8            # stored padded width, sublane-aligned
    TH = _pick_tile_rows(H, W, 9 * C)

    kernel = functools.partial(_basic_block_kernel,
                               H=H, W=W, Wp=Wp, C=C, TH=TH)

    out = pl.pallas_call(
        kernel,
        out_shape=jax.ShapeDtypeStruct((B, H * W, C), jnp.bfloat16),
        grid_spec=pltpu.PrefetchScalarGridSpec(
            num_scalar_prefetch=0,
            grid=(B,),
            in_specs=[
                pl.BlockSpec((1, H, W, C), lambda b: (b, 0, 0, 0)),   # x
                pl.BlockSpec((9 * C, C), lambda b: (0, 0)),           # w1 (scale folded)
                pl.BlockSpec((1, C), lambda b: (0, 0)),               # shift1
                pl.BlockSpec((9 * C, C), lambda b: (0, 0)),           # w2 (scale folded)
                pl.BlockSpec((1, C), lambda b: (0, 0)),               # shift2
            ],
            out_specs=pl.BlockSpec((1, H * W, C), lambda b: (b, 0, 0)),
            scratch_shapes=[
                pltpu.VMEM((H + 2, Wp, C), jnp.bfloat16),    # padded input
                pltpu.VMEM((H + 2, Wp, C), jnp.bfloat16),    # padded conv1 output
                pltpu.VMEM((TH * W, 9 * C), jnp.bfloat16),   # im2col panel
            ],
        ),
        compiler_params=pltpu.CompilerParams(
            # Batch axis is the (only) parallel grid axis -> shards across the
            # two v7x TensorCores without duplicating image reads.
            dimension_semantics=("parallel",),
            # Demo shapes need ~2 MiB; raise toward 64-96 MiB on v5e/v6e for
            # large BEV maps (keep <= 32 MiB on v7x, whose VMEM is 64 MiB).
            vmem_limit_bytes=32 * 1024 * 1024,
        ),
    )(x, p1['w'], p1['shift'], p2['w'], p2['shift'])
    return out.reshape(B, H, W, C)


# ----------------------------------------------------------------------------
# Parameter construction (deterministic; eval-mode BN + conv bias folded:
# scale goes into the weight columns, shift absorbs bias/mean/beta)
# ----------------------------------------------------------------------------
def init_conv_bn_params(key, cin, cout, eps=1e-3):
    ks = jax.random.split(key, 6)
    # PyTorch conv weight layout (Cout, Cin, kh, kw); bias=True in BasicBlock.
    w_oihw = jax.random.normal(ks[0], (cout, cin, 3, 3), jnp.float32) \
        * (0.1 / (3.0 * (cin ** 0.5)))
    bias = 0.02 * jax.random.normal(ks[1], (cout,), jnp.float32)
    gamma = 1.0 + 0.05 * jax.random.normal(ks[2], (cout,), jnp.float32)
    beta = 0.02 * jax.random.normal(ks[3], (cout,), jnp.float32)
    rmean = 0.02 * jax.random.normal(ks[4], (cout,), jnp.float32)
    rvar = 1.0 + 0.05 * jnp.abs(jax.random.normal(ks[5], (cout,), jnp.float32))

    scale = gamma / jnp.sqrt(rvar + eps)
    shift = beta - rmean * scale + bias * scale        # conv bias folded in
    # (kh, kw, Cin, Cout) flattened so K index = (ky*3+kx)*Cin + c, then the BN
    # scale is folded into the weight columns in f32 before the bf16 cast.
    w_mat = jnp.transpose(w_oihw, (2, 3, 1, 0)).reshape(9 * cin, cout)
    w_mat = w_mat * scale[None, :]
    return {'w': w_mat.astype(jnp.bfloat16),
            'shift': shift.reshape(1, cout)}


def init_basic_block_params(key, planes):
    k1, k2 = jax.random.split(key)
    return {'conv1': init_conv_bn_params(k1, planes, planes),
            'conv2': init_conv_bn_params(k2, planes, planes)}


# ----------------------------------------------------------------------------
# Plain-JAX reference (same folded bf16 weights, f32 math, bf16 intermediate)
# ----------------------------------------------------------------------------
def _ref_conv3x3(x_f32, w_bf16, shift):
    B, H, W, Cin = x_f32.shape
    Cout = w_bf16.shape[1]
    w = w_bf16.astype(jnp.float32)
    xp = jnp.pad(x_f32, ((0, 0), (1, 1), (1, 1), (0, 0)))
    acc = jnp.zeros((B, H, W, Cout), jnp.float32)
    for ky in range(3):
        for kx in range(3):
            tap = xp[:, ky:ky + H, kx:kx + W, :]
            wk = w[(ky * 3 + kx) * Cin:(ky * 3 + kx + 1) * Cin, :]
            acc = acc + jnp.einsum('bhwc,cn->bhwn', tap, wk,
                                   precision=jax.lax.Precision.HIGHEST)
    return acc + shift.reshape(1, 1, 1, Cout)


def basic_block_reference(x_nhwc, params):
    x = x_nhwc.astype(jnp.bfloat16).astype(jnp.float32)
    p1, p2 = params['conv1'], params['conv2']
    h1 = jnp.maximum(_ref_conv3x3(x, p1['w'], p1['shift']), 0.0)
    h1 = h1.astype(jnp.bfloat16).astype(jnp.float32)   # kernel keeps mid in bf16
    out = jnp.maximum(_ref_conv3x3(h1, p2['w'], p2['shift']) + x, 0.0)
    return out.astype(jnp.bfloat16)


# ----------------------------------------------------------------------------
if __name__ == "__main__":
    key = jax.random.PRNGKey(0)
    kparams, kx = jax.random.split(key)

    # Small, lane-dense shapes consistent with BasicBlock usage in the 2D
    # backbone (planes=128, stride=1, downsample=None).  Layout is NHWC.
    B, H, W, C = 2, 16, 16, 128

    params = init_basic_block_params(kparams, C)
    x = jax.random.normal(kx, (B, H, W, C), jnp.float32)

    fwd = jax.jit(basic_block)
    out = jax.block_until_ready(fwd(x, params))
    assert out.shape == (B, H, W, C)

    ref = basic_block_reference(x, params).astype(jnp.float32)
    err = float(jnp.max(jnp.abs(out.astype(jnp.float32) - ref)))
    tol = 1e-2 + 5e-3 * float(jnp.max(jnp.abs(ref)))
    assert err < tol, f"max abs error vs reference: {err} (tol {tol})"

    print("KERNEL_OK")
</pallas_src>

<mosaic_0001>
module attributes {stable_mosaic.version = 11 : i64} {
  func.func @_basic_block_kernel(%arg0: i32, %arg1: memref<1x16x16x128xbf16, #tpu.memory_space<vmem>>, %arg2: memref<1152x128xbf16, #tpu.memory_space<vmem>>, %arg3: memref<1x128xf32, #tpu.memory_space<vmem>>, %arg4: memref<1152x128xbf16, #tpu.memory_space<vmem>>, %arg5: memref<1x128xf32, #tpu.memory_space<vmem>>, %arg6: memref<1x256x128xbf16, #tpu.memory_space<vmem>>, %arg7: memref<18x24x128xbf16, #tpu.memory_space<vmem>>, %arg8: memref<18x24x128xbf16, #tpu.memory_space<vmem>>, %arg9: memref<256x1152xbf16, #tpu.memory_space<vmem>>) attributes {dimension_semantics = [#tpu.dimension_semantics<parallel>], iteration_bounds = array<i64: 2>, scalar_prefetch = 0 : i64, scratch_operands = 3 : i64, tpu.core_type = #tpu.core_type<tc>, window_params = [{transform_indices = @transform_0, window_bounds = array<i64: 1, 16, 16, 128>}, {pipeline_mode = #tpu.pipeline_mode<synchronous>, transform_indices = @transform_1, window_bounds = array<i64: 1152, 128>}, {pipeline_mode = #tpu.pipeline_mode<synchronous>, transform_indices = @transform_2, window_bounds = array<i64: 1, 128>}, {pipeline_mode = #tpu.pipeline_mode<synchronous>, transform_indices = @transform_3, window_bounds = array<i64: 1152, 128>}, {pipeline_mode = #tpu.pipeline_mode<synchronous>, transform_indices = @transform_4, window_bounds = array<i64: 1, 128>}, {transform_indices = @transform_5, window_bounds = array<i64: 1, 256, 128>}]} {
    %cst = arith.constant 0.000000e+00 : bf16
    %0 = vector.broadcast %cst : bf16 to vector<18x24x128xbf16>
    %c0 = arith.constant 0 : index
    %c0_0 = arith.constant 0 : index
    %c0_1 = arith.constant 0 : index
    %1 = vector.load %arg7[%c0, %c0_0, %c0_1] : memref<18x24x128xbf16, #tpu.memory_space<vmem>>, vector<18x24x128xbf16>
    tpu.vector_store %arg7[%c0, %c0_0, %c0_1], %0 {strides = array<i32>} : memref<18x24x128xbf16, #tpu.memory_space<vmem>>, vector<18x24x128xbf16>,
    %cst_2 = arith.constant 0.000000e+00 : bf16
    %2 = vector.broadcast %cst_2 : bf16 to vector<18x24x128xbf16>
    %c0_3 = arith.constant 0 : index
    %c0_4 = arith.constant 0 : index
    %c0_5 = arith.constant 0 : index
    %3 = vector.load %arg8[%c0_3, %c0_4, %c0_5] : memref<18x24x128xbf16, #tpu.memory_space<vmem>>, vector<18x24x128xbf16>
    tpu.vector_store %arg8[%c0_3, %c0_4, %c0_5], %2 {strides = array<i32>} : memref<18x24x128xbf16, #tpu.memory_space<vmem>>, vector<18x24x128xbf16>,
    %c0_6 = arith.constant 0 : index
    %c0_7 = arith.constant 0 : index
    %c0_8 = arith.constant 0 : index
    %c0_9 = arith.constant 0 : index
    %4 = vector.load %arg1[%c0_6, %c0_7, %c0_8, %c0_9] : memref<1x16x16x128xbf16, #tpu.memory_space<vmem>>, vector<1x16x16x128xbf16>
    %5 = vector.shape_cast %4 : vector<1x16x16x128xbf16> to vector<16x16x128xbf16>
    %c1 = arith.constant 1 : index
    %c1_10 = arith.constant 1 : index
    %c0_11 = arith.constant 0 : index
    %6 = vector.load %arg7[%c1, %c1_10, %c0_11] : memref<18x24x128xbf16, #tpu.memory_space<vmem>>, vector<16x16x128xbf16>
    tpu.vector_store %arg7[%c1, %c1_10, %c0_11], %5 {strides = array<i32>} : memref<18x24x128xbf16, #tpu.memory_space<vmem>>, vector<16x16x128xbf16>,
    %c0_12 = arith.constant 0 : index
    %c0_13 = arith.constant 0 : index
    %c0_14 = arith.constant 0 : index
    %7 = vector.load %arg7[%c0_12, %c0_13, %c0_14] : memref<18x24x128xbf16, #tpu.memory_space<vmem>>, vector<16x16x128xbf16>
    %8 = vector.shape_cast %7 : vector<16x16x128xbf16> to vector<256x128xbf16>
    %c0_15 = arith.constant 0 : index
    %c0_16 = arith.constant 0 : index
    %9 = vector.load %arg9[%c0_15, %c0_16] : memref<256x1152xbf16, #tpu.memory_space<vmem>>, vector<256x128xbf16>
    tpu.vector_store %arg9[%c0_15, %c0_16], %8 {strides = array<i32>} : memref<256x1152xbf16, #tpu.memory_space<vmem>>, vector<256x128xbf16>,
    %c0_17 = arith.constant 0 : index
    %c1_18 = arith.constant 1 : index
    %c0_19 = arith.constant 0 : index
    %10 = vector.load %arg7[%c0_17, %c1_18, %c0_19] : memref<18x24x128xbf16, #tpu.memory_space<vmem>>, vector<16x16x128xbf16>
    %11 = vector.shape_cast %10 : vector<16x16x128xbf16> to vector<256x128xbf16>
    %c0_20 = arith.constant 0 : index
    %c128 = arith.constant 128 : index
    %12 = vector.load %arg9[%c0_20, %c128] : memref<256x1152xbf16, #tpu.memory_space<vmem>>, vector<256x128xbf16>
    tpu.vector_store %arg9[%c0_20, %c128], %11 {strides = array<i32>} : memref<256x1152xbf16, #tpu.memory_space<vmem>>, vector<256x128xbf16>,
    %c0_21 = arith.constant 0 : index
    %c2 = arith.constant 2 : index
    %c0_22 = arith.constant 0 : index
    %13 = vector.load %arg7[%c0_21, %c2, %c0_22] : memref<18x24x128xbf16, #tpu.memory_space<vmem>>, vector<16x16x128xbf16>
    %14 = vector.shape_cast %13 : vector<16x16x128xbf16> to vector<256x128xbf16>
    %c0_23 = arith.constant 0 : index
    %c256 = arith.constant 256 : index
    %15 = vector.load %arg9[%c0_23, %c256] : memref<256x1152xbf16, #tpu.memory_space<vmem>>, vector<256x128xbf16>
    tpu.vector_store %arg9[%c0_23, %c256], %14 {strides = array<i32>} : memref<256x1152xbf16, #tpu.memory_space<vmem>>, vector<256x128xbf16>,
    %c1_24 = arith.constant 1 : index
    %c0_25 = arith.constant 0 : index
    %c0_26 = arith.constant 0 : index
    %16 = vector.load %arg7[%c1_24, %c0_25, %c0_26] : memref<18x24x128xbf16, #tpu.memory_space<vmem>>, vector<16x16x128xbf16>
    %17 = vector.shape_cast %16 : vector<16x16x128xbf16> to vector<256x128xbf16>
    %c0_27 = arith.constant 0 : index
    %c384 = arith.constant 384 : index
    %18 = vector.load %arg9[%c0_27, %c384] : memref<256x1152xbf16, #tpu.memory_space<vmem>>, vector<256x128xbf16>
    tpu.vector_store %arg9[%c0_27, %c384], %17 {strides = array<i32>} : memref<256x1152xbf16, #tpu.memory_space<vmem>>, vector<256x128xbf16>,
    %c1_28 = arith.constant 1 : index
    %c1_29 = arith.constant 1 : index
    %c0_30 = arith.constant 0 : index
    %19 = vector.load %arg7[%c1_28, %c1_29, %c0_30] : memref<18x24x128xbf16, #tpu.memory_space<vmem>>, vector<16x16x128xbf16>
    %20 = vector.shape_cast %19 : vector<16x16x128xbf16> to vector<256x128xbf16>
    %c0_31 = arith.constant 0 : index
    %c512 = arith.constant 512 : index
    %21 = vector.load %arg9[%c0_31, %c512] : memref<256x1152xbf16, #tpu.memory_space<vmem>>, vector<256x128xbf16>
    tpu.vector_store %arg9[%c0_31, %c512], %20 {strides = array<i32>} : memref<256x1152xbf16, #tpu.memory_space<vmem>>, vector<256x128xbf16>,
    %c1_32 = arith.constant 1 : index
    %c2_33 = arith.constant 2 : index
    %c0_34 = arith.constant 0 : index
    %22 = vector.load %arg7[%c1_32, %c2_33, %c0_34] : memref<18x24x128xbf16, #tpu.memory_space<vmem>>, vector<16x16x128xbf16>
    %23 = vector.shape_cast %22 : vector<16x16x128xbf16> to vector<256x128xbf16>
    %c0_35 = arith.constant 0 : index
    %c640 = arith.constant 640 : index
    %24 = vector.load %arg9[%c0_35, %c640] : memref<256x1152xbf16, #tpu.memory_space<vmem>>, vector<256x128xbf16>
    tpu.vector_store %arg9[%c0_35, %c640], %23 {strides = array<i32>} : memref<256x1152xbf16, #tpu.memory_space<vmem>>, vector<256x128xbf16>,
    %c2_36 = arith.constant 2 : index
    %c0_37 = arith.constant 0 : index
    %c0_38 = arith.constant 0 : index
    %25 = vector.load %arg7[%c2_36, %c0_37, %c0_38] : memref<18x24x128xbf16, #tpu.memory_space<vmem>>, vector<16x16x128xbf16>
    %26 = vector.shape_cast %25 : vector<16x16x128xbf16> to vector<256x128xbf16>
    %c0_39 = arith.constant 0 : index
    %c768 = arith.constant 768 : index
    %27 = vector.load %arg9[%c0_39, %c768] : memref<256x1152xbf16, #tpu.memory_space<vmem>>, vector<256x128xbf16>
    tpu.vector_store %arg9[%c0_39, %c768], %26 {strides = array<i32>} : memref<256x1152xbf16, #tpu.memory_space<vmem>>, vector<256x128xbf16>,
    %c2_40 = arith.constant 2 : index
    %c1_41 = arith.constant 1 : index
    %c0_42 = arith.constant 0 : index
    %28 = vector.load %arg7[%c2_40, %c1_41, %c0_42] : memref<18x24x128xbf16, #tpu.memory_space<vmem>>, vector<16x16x128xbf16>
    %29 = vector.shape_cast %28 : vector<16x16x128xbf16> to vector<256x128xbf16>
    %c0_43 = arith.constant 0 : index
    %c896 = arith.constant 896 : index
    %30 = vector.load %arg9[%c0_43, %c896] : memref<256x1152xbf16, #tpu.memory_space<vmem>>, vector<256x128xbf16>
    tpu.vector_store %arg9[%c0_43, %c896], %29 {strides = array<i32>} : memref<256x1152xbf16, #tpu.memory_space<vmem>>, vector<256x128xbf16>,
    %c2_44 = arith.constant 2 : index
    %c2_45 = arith.constant 2 : index
    %c0_46 = arith.constant 0 : index
    %31 = vector.load %arg7[%c2_44, %c2_45, %c0_46] : memref<18x24x128xbf16, #tpu.memory_space<vmem>>, vector<16x16x128xbf16>
    %32 = vector.shape_cast %31 : vector<16x16x128xbf16> to vector<256x128xbf16>
    %c0_47 = arith.constant 0 : index
    %c1024 = arith.constant 1024 : index
    %33 = vector.load %arg9[%c0_47, %c1024] : memref<256x1152xbf16, #tpu.memory_space<vmem>>, vector<256x128xbf16>
    tpu.vector_store %arg9[%c0_47, %c1024], %32 {strides = array<i32>} : memref<256x1152xbf16, #tpu.memory_space<vmem>>, vector<256x128xbf16>,
    %c0_48 = arith.constant 0 : index
    %c0_49 = arith.constant 0 : index
    %34 = vector.load %arg9[%c0_48, %c0_49] : memref<256x1152xbf16, #tpu.memory_space<vmem>>, vector<256x1152xbf16>
    %c0_50 = arith.constant 0 : index
    %c0_51 = arith.constant 0 : index
    %35 = vector.load %arg2[%c0_50, %c0_51] : memref<1152x128xbf16, #tpu.memory_space<vmem>>, vector<1152x128xbf16>
    %cst_52 = arith.constant dense<0.000000e+00> : vector<256x128xf32>
    %36 = tpu.matmul %34, %35, %cst_52 {dimension_numbers = #tpu.dot_dimension_numbers<[1], [0], [0], [1], [0, 0, 1, 1], [], []>} : vector<256x1152xbf16>, vector<1152x128xbf16>, vector<256x128xf32> -> vector<256x128xf32>
    %c0_53 = arith.constant 0 : index
    %c0_54 = arith.constant 0 : index
    %37 = vector.load %arg3[%c0_53, %c0_54] : memref<1x128xf32, #tpu.memory_space<vmem>>, vector<1x128xf32>
    %38 = vector.broadcast %37 : vector<1x128xf32> to vector<256x128xf32>
    %39 = arith.addf %36, %38 : vector<256x128xf32>
    %cst_55 = arith.constant 0.000000e+00 : f32
    %40 = vector.broadcast %cst_55 : f32 to vector<256x128xf32>
    %41 = arith.maximumf %39, %40 : vector<256x128xf32>
    %42 = arith.truncf %41 : vector<256x128xf32> to vector<256x128xbf16>
    %43 = vector.shape_cast %42 : vector<256x128xbf16> to vector<16x16x128xbf16>
    %c1_56 = arith.constant 1 : index
    %c1_57 = arith.constant 1 : index
    %c0_58 = arith.constant 0 : index
    %44 = vector.load %arg8[%c1_56, %c1_57, %c0_58] : memref<18x24x128xbf16, #tpu.memory_space<vmem>>, vector<16x16x128xbf16>
    tpu.vector_store %arg8[%c1_56, %c1_57, %c0_58], %43 {strides = array<i32>} : memref<18x24x128xbf16, #tpu.memory_space<vmem>>, vector<16x16x128xbf16>,
    %c0_59 = arith.constant 0 : index
    %c0_60 = arith.constant 0 : index
    %c0_61 = arith.constant 0 : index
    %45 = vector.load %arg8[%c0_59, %c0_60, %c0_61] : memref<18x24x128xbf16, #tpu.memory_space<vmem>>, vector<16x16x128xbf16>
    %46 = vector.shape_cast %45 : vector<16x16x128xbf16> to vector<256x128xbf16>
    %c0_62 = arith.constant 0 : index
    %c0_63 = arith.constant 0 : index
    %47 = vector.load %arg9[%c0_62, %c0_63] : memref<256x1152xbf16, #tpu.memory_space<vmem>>, vector<256x128xbf16>
    tpu.vector_store %arg9[%c0_62, %c0_63], %46 {strides = array<i32>} : memref<256x1152xbf16, #tpu.memory_space<vmem>>, vector<256x128xbf16>,
    %c0_64 = arith.constant 0 : index
    %c1_65 = arith.constant 1 : index
    %c0_66 = arith.constant 0 : index
    %48 = vector.load %arg8[%c0_64, %c1_65, %c0_66] : memref<18x24x128xbf16, #tpu.memory_space<vmem>>, vector<16x16x128xbf16>
    %49 = vector.shape_cast %48 : vector<16x16x128xbf16> to vector<256x128xbf16>
    %c0_67 = arith.constant 0 : index
    %c128_68 = arith.constant 128 : index
    %50 = vector.load %arg9[%c0_67, %c128_68] : memref<256x1152xbf16, #tpu.memory_space<vmem>>, vector<256x128xbf16>
    tpu.vector_store %arg9[%c0_67, %c128_68], %49 {strides = array<i32>} : memref<256x1152xbf16, #tpu.memory_space<vmem>>, vector<256x128xbf16>,
    %c0_69 = arith.constant 0 : index
    %c2_70 = arith.constant 2 : index
    %c0_71 = arith.constant 0 : index
    %51 = vector.load %arg8[%c0_69, %c2_70, %c0_71] : memref<18x24x128xbf16, #tpu.memory_space<vmem>>, vector<16x16x128xbf16>
    %52 = vector.shape_cast %51 : vector<16x16x128xbf16> to vector<256x128xbf16>
    %c0_72 = arith.constant 0 : index
    %c256_73 = arith.constant 256 : index
    %53 = vector.load %arg9[%c0_72, %c256_73] : memref<256x1152xbf16, #tpu.memory_space<vmem>>, vector<256x128xbf16>
    tpu.vector_store %arg9[%c0_72, %c256_73], %52 {strides = array<i32>} : memref<256x1152xbf16, #tpu.memory_space<vmem>>, vector<256x128xbf16>,
    %c1_74 = arith.constant 1 : index
    %c0_75 = arith.constant 0 : index
    %c0_76 = arith.constant 0 : index
    %54 = vector.load %arg8[%c1_74, %c0_75, %c0_76] : memref<18x24x128xbf16, #tpu.memory_space<vmem>>, vector<16x16x128xbf16>
    %55 = vector.shape_cast %54 : vector<16x16x128xbf16> to vector<256x128xbf16>
    %c0_77 = arith.constant 0 : index
    %c384_78 = arith.constant 384 : index
    %56 = vector.load %arg9[%c0_77, %c384_78] : memref<256x1152xbf16, #tpu.memory_space<vmem>>, vector<256x128xbf16>
    tpu.vector_store %arg9[%c0_77, %c384_78], %55 {strides = array<i32>} : memref<256x1152xbf16, #tpu.memory_space<vmem>>, vector<256x128xbf16>,
    %c1_79 = arith.constant 1 : index
    %c1_80 = arith.constant 1 : index
    %c0_81 = arith.constant 0 : index
    %57 = vector.load %arg8[%c1_79, %c1_80, %c0_81] : memref<18x24x128xbf16, #tpu.memory_space<vmem>>, vector<16x16x128xbf16>
    %58 = vector.shape_cast %57 : vector<16x16x128xbf16> to vector<256x128xbf16>
    %c0_82 = arith.constant 0 : index
    %c512_83 = arith.constant 512 : index
    %59 = vector.load %arg9[%c0_82, %c512_83] : memref<256x1152xbf16, #tpu.memory_space<vmem>>, vector<256x128xbf16>
    tpu.vector_store %arg9[%c0_82, %c512_83], %58 {strides = array<i32>} : memref<256x1152xbf16, #tpu.memory_space<vmem>>, vector<256x128xbf16>,
    %c1_84 = arith.constant 1 : index
    %c2_85 = arith.constant 2 : index
    %c0_86 = arith.constant 0 : index
    %60 = vector.load %arg8[%c1_84, %c2_85, %c0_86] : memref<18x24x128xbf16, #tpu.memory_space<vmem>>, vector<16x16x128xbf16>
    %61 = vector.shape_cast %60 : vector<16x16x128xbf16> to vector<256x128xbf16>
    %c0_87 = arith.constant 0 : index
    %c640_88 = arith.constant 640 : index
    %62 = vector.load %arg9[%c0_87, %c640_88] : memref<256x1152xbf16, #tpu.memory_space<vmem>>, vector<256x128xbf16>
    tpu.vector_store %arg9[%c0_87, %c640_88], %61 {strides = array<i32>} : memref<256x1152xbf16, #tpu.memory_space<vmem>>, vector<256x128xbf16>,
    %c2_89 = arith.constant 2 : index
    %c0_90 = arith.constant 0 : index
    %c0_91 = arith.constant 0 : index
    %63 = vector.load %arg8[%c2_89, %c0_90, %c0_91] : memref<18x24x128xbf16, #tpu.memory_space<vmem>>, vector<16x16x128xbf16>
    %64 = vector.shape_cast %63 : vector<16x16x128xbf16> to vector<256x128xbf16>
    %c0_92 = arith.constant 0 : index
    %c768_93 = arith.constant 768 : index
    %65 = vector.load %arg9[%c0_92, %c768_93] : memref<256x1152xbf16, #tpu.memory_space<vmem>>, vector<256x128xbf16>
    tpu.vector_store %arg9[%c0_92, %c768_93], %64 {strides = array<i32>} : memref<256x1152xbf16, #tpu.memory_space<vmem>>, vector<256x128xbf16>,
    %c2_94 = arith.constant 2 : index
    %c1_95 = arith.constant 1 : index
    %c0_96 = arith.constant 0 : index
    %66 = vector.load %arg8[%c2_94, %c1_95, %c0_96] : memref<18x24x128xbf16, #tpu.memory_space<vmem>>, vector<16x16x128xbf16>
    %67 = vector.shape_cast %66 : vector<16x16x128xbf16> to vector<256x128xbf16>
    %c0_97 = arith.constant 0 : index
    %c896_98 = arith.constant 896 : index
    %68 = vector.load %arg9[%c0_97, %c896_98] : memref<256x1152xbf16, #tpu.memory_space<vmem>>, vector<256x128xbf16>
    tpu.vector_store %arg9[%c0_97, %c896_98], %67 {strides = array<i32>} : memref<256x1152xbf16, #tpu.memory_space<vmem>>, vector<256x128xbf16>,
    %c2_99 = arith.constant 2 : index
    %c2_100 = arith.constant 2 : index
    %c0_101 = arith.constant 0 : index
    %69 = vector.load %arg8[%c2_99, %c2_100, %c0_101] : memref<18x24x128xbf16, #tpu.memory_space<vmem>>, vector<16x16x128xbf16>
    %70 = vector.shape_cast %69 : vector<16x16x128xbf16> to vector<256x128xbf16>
    %c0_102 = arith.constant 0 : index
    %c1024_103 = arith.constant 1024 : index
    %71 = vector.load %arg9[%c0_102, %c1024_103] : memref<256x1152xbf16, #tpu.memory_space<vmem>>, vector<256x128xbf16>
    tpu.vector_store %arg9[%c0_102, %c1024_103], %70 {strides = array<i32>} : memref<256x1152xbf16, #tpu.memory_space<vmem>>, vector<256x128xbf16>,
    %c0_104 = arith.constant 0 : index
    %c0_105 = arith.constant 0 : index
    %72 = vector.load %arg9[%c0_104, %c0_105] : memref<256x1152xbf16, #tpu.memory_space<vmem>>, vector<256x1152xbf16>
    %c0_106 = arith.constant 0 : index
    %c0_107 = arith.constant 0 : index
    %73 = vector.load %arg4[%c0_106, %c0_107] : memref<1152x128xbf16, #tpu.memory_space<vmem>>, vector<1152x128xbf16>
    %cst_108 = arith.constant dense<0.000000e+00> : vector<256x128xf32>
    %74 = tpu.matmul %72, %73, %cst_108 {dimension_numbers = #tpu.dot_dimension_numbers<[1], [0], [0], [1], [0, 0, 1, 1], [], []>} : vector<256x1152xbf16>, vector<1152x128xbf16>, vector<256x128xf32> -> vector<256x128xf32>
    %c1_109 = arith.constant 1 : index
    %c1_110 = arith.constant 1 : index
    %c0_111 = arith.constant 0 : index
    %75 = vector.load %arg7[%c1_109, %c1_110, %c0_111] : memref<18x24x128xbf16, #tpu.memory_space<vmem>>, vector<16x16x128xbf16>
    %76 = vector.shape_cast %75 : vector<16x16x128xbf16> to vector<256x128xbf16>
    %c0_112 = arith.constant 0 : index
    %c0_113 = arith.constant 0 : index
    %77 = vector.load %arg5[%c0_112, %c0_113] : memref<1x128xf32, #tpu.memory_space<vmem>>, vector<1x128xf32>
    %78 = vector.broadcast %77 : vector<1x128xf32> to vector<256x128xf32>
    %79 = arith.addf %74, %78 : vector<256x128xf32>
    %80 = arith.extf %76 : vector<256x128xbf16> to vector<256x128xf32>
    %81 = arith.addf %79, %80 : vector<256x128xf32>
    %cst_114 = arith.constant 0.000000e+00 : f32
    %82 = vector.broadcast %cst_114 : f32 to vector<256x128xf32>
    %83 = arith.maximumf %81, %82 : vector<256x128xf32>
    %84 = arith.truncf %83 : vector<256x128xf32> to vector<256x128xbf16>
    %c0_115 = arith.constant 0 : index
    %c0_116 = arith.constant 0 : index
    %c0_117 = arith.constant 0 : index
    %85 = vector.load %arg6[%c0_115, %c0_116, %c0_117] : memref<1x256x128xbf16, #tpu.memory_space<vmem>>, vector<1x256x128xbf16>
    %86 = vector.shape_cast %85 : vector<1x256x128xbf16> to vector<256x128xbf16>
    %87 = vector.shape_cast %84 : vector<256x128xbf16> to vector<1x256x128xbf16>
    tpu.vector_store %arg6[%c0_115, %c0_116, %c0_117], %87 {strides = array<i32>} : memref<1x256x128xbf16, #tpu.memory_space<vmem>>, vector<1x256x128xbf16>,
    return
  }
  func.func @transform_0(%arg0: i32) -> (i32, i32, i32, i32) {
    %c0_i32 = arith.constant 0 : i32
    %c0_i32_0 = arith.constant 0 : i32
    %c0_i32_1 = arith.constant 0 : i32
    %c0_i32_2 = arith.constant 0 : i32
    return %arg0, %c0_i32, %c0_i32_0, %c0_i32_1 : i32, i32, i32, i32
  }
  func.func @transform_1(%arg0: i32) -> (i32, i32) {
    %c0_i32 = arith.constant 0 : i32
    %c0_i32_0 = arith.constant 0 : i32
    %c0_i32_1 = arith.constant 0 : i32
    return %c0_i32, %c0_i32_0 : i32, i32
  }
  func.func @transform_2(%arg0: i32) -> (i32, i32) {
    %c0_i32 = arith.constant 0 : i32
    %c0_i32_0 = arith.constant 0 : i32
    %c0_i32_1 = arith.constant 0 : i32
    return %c0_i32, %c0_i32_0 : i32, i32
  }
  func.func @transform_3(%arg0: i32) -> (i32, i32) {
    %c0_i32 = arith.constant 0 : i32
    %c0_i32_0 = arith.constant 0 : i32
    %c0_i32_1 = arith.constant 0 : i32
    return %c0_i32, %c0_i32_0 : i32, i32
  }
  func.func @transform_4(%arg0: i32) -> (i32, i32) {
    %c0_i32 = arith.constant 0 : i32
    %c0_i32_0 = arith.constant 0 : i32
    %c0_i32_1 = arith.constant 0 : i32
    return %c0_i32, %c0_i32_0 : i32, i32
  }
  func.func @transform_5(%arg0: i32) -> (i32, i32, i32) {
    %c0_i32 = arith.constant 0 : i32
    %c0_i32_0 = arith.constant 0 : i32
    %c0_i32_1 = arith.constant 0 : i32
    return %arg0, %c0_i32, %c0_i32_0 : i32, i32, i32
  }
}

</mosaic_0001>

<llo_original>
// kernel: basic_block.1
$region0: #{basic_block.1}
  #allocation0 [shape = 'u32[]', space=smem, size = 0x4, offset = 0x4, fixed_abs, tag = 'smem constant byte address 0x4 - core index']
  #allocation1 [shape = 'u32[144,128]{1,0:T(1,128)}', space=vmem, size = 0x12000, scoped, tag = 'internal scratch']
  #allocation2 [shape = 'bf16[18,24,128]{2,1,0:T(8,128)(2,1)}', space=vmem, size = 0x1b000, scoped, tag = 'scratch operand']
  #allocation3 [shape = 'bf16[18,24,128]{2,1,0:T(8,128)(2,1)}', space=vmem, size = 0x1b000, scoped, tag = 'scratch operand']
  #allocation4 [shape = 'bf16[256,1152]{1,0:T(16,128)(2,1)}', space=vmem, size = 0x90000, scoped, tag = 'scratch operand']
  %s0 = inlined_call_operand.vmem [shape: bf16[2,16,16,128], index: 0, kind: input, shape index: {}]
  %s1 = inlined_call_operand.vmem [shape: bf16[1152,128], index: 1, kind: input, shape index: {}]
  %s2 = inlined_call_operand.vmem [shape: f32[1,128], index: 2, kind: input, shape index: {}]
  %s3 = inlined_call_operand.hbm [shape: bf16[1152,128], index: 3, kind: input, shape index: {}]
  %s4 = inlined_call_operand.vmem [shape: f32[1,128], index: 4, kind: input, shape index: {}]
  %s5 = inlined_call_operand.hbm [shape: bf16[2,256,128], index: 5, kind: output, shape index: {}]
  %s6 = sld [smem:[#allocation0]]
  $region57: #{basic_block.1} parent=0
    _
  %s8 = ssub.s32 1, %s6
  %s9 = scalar_select 0, %s8, %s6
  $region1: #{basic_block.1} parent=0
    #allocation5 [shape = 'u8[294912]{0}', space=vmem, size = 0x48000, scoped, tag = 'input window, operand 3, single buffered']
    #allocation6 [shape = 's32[2]{0}', space=sflag, size = 0x8, scoped, tag = 'scoped memory for basic_block.1']
    #allocation7 [shape = 's32[2]{0}', space=sflag, size = 0x8, scoped, tag = 'scoped memory for basic_block.1']
    #allocation8 [shape = 'u8[131072]{0}', space=vmem, size = 0x20000, scoped, tag = 'output window, operand 0']
    %10 = vsyncpa [#allocation6], 0
    %11 = vsyncpa [#allocation7], 0
    %s12 = scalar_lea.sflag [#allocation7], 1
    %13 = vsyncpa %s12, 0
    loop: start=0, step=1, limit=4
    $region2: #{basic_block.1} parent=1 // loop_pre_header
      _
    $region3: #{basic_block.1} parent=1 // loop_header
      %s15 = sphi 0, %s19
      %p16 = scmp.ge.s32.totalorder %s15, 4
      %s25 = sphi 0, %s27
      %s28 = sphi 0, %s25
      %s29 = sphi 0, %s28
      %s45 = sphi 0, %s29
      %s49 = sphi 0, %s49
      %s51 = sphi 0, %s49
      %s52 = sphi 0, %s51
      %s66 = sphi 0, %s52
      %s70 = sphi 0, %s70
      %s72 = sphi 0, %s70
      %s73 = sphi 0, %s72
      %s87 = sphi 0, %s73
      %s91 = sphi 0, %s91
      %s93 = sphi 0, %s91
      %s94 = sphi 0, %s93
      %s108 = sphi 0, %s94
      %s112 = sphi 0, %s112
      %s114 = sphi 0, %s112
      %s115 = sphi 0, %s114
      %s129 = sphi 0, %s115
      %s135 = sphi 0, %s137
      %s138 = sphi 0, %s135
      %s139 = sphi 0, %s138
      %s155 = sphi 0, %s139
    $region4: #{basic_block.1} parent=1 // loop_header_branch
      %18 = sbr.rel (%p16) target = $region8
    $region5: #{basic_block.1} parent=1 // loop_body
      %s20 = ssub.s32 %s15, 1
      %s21 = ssub.s32 %s15, 2
      %s22 = sadd.s32 %s15, 1
      %s23 = ssub.s32 %s15, %s22
      %p24 = scmp.eq.s32.totalorder %s23, 0
      %s26 = sadd.s32 %s25, 1
      %s27 = scalar_select %p24, %s25, %s26
      %p30 = pneg %p24
      %p31 = scmp.eq.s32.totalorder %s15, 1
      %p32 = por %p30, %p31
      %p33 = scmp.ne.s32.totalorder %s25, %s28
      %p34 = scmp.eq.s32.totalorder %s15, 0
      %p35 = por %p33, %p34
      %p36 = scmp.ne.s32.totalorder %s25, %s28
      %p37 = scmp.eq.s32.totalorder %s20, 1
      %p38 = por %p36, %p37
      %p39 = scmp.ne.s32.totalorder %s28, %s29
      %p40 = scmp.eq.s32.totalorder %s20, 0
      %p41 = por %p39, %p40
      %p42 = scmp.ne.s32.totalorder %s28, %s29
      %p43 = scmp.eq.s32.totalorder %s21, 1
      %p44 = por %p42, %p43
      %p46 = scmp.ne.s32.totalorder %s29, %s45
      %p47 = scmp.eq.s32.totalorder %s21, 0
      %p48 = por %p46, %p47
      %s50 = sadd.s32 %s49, 1
      %p53 = scmp.eq.s32.totalorder %s15, 1
      %p54 = scmp.ne.s32.totalorder %s49, %s51
      %p55 = scmp.eq.s32.totalorder %s15, 0
      %p56 = por %p54, %p55
      %p57 = scmp.ne.s32.totalorder %s49, %s51
      %p58 = scmp.eq.s32.totalorder %s20, 1
      %p59 = por %p57, %p58
      %p60 = scmp.ne.s32.totalorder %s51, %s52
      %p61 = scmp.eq.s32.totalorder %s20, 0
      %p62 = por %p60, %p61
      %p63 = scmp.ne.s32.totalorder %s51, %s52
      %p64 = scmp.eq.s32.totalorder %s21, 1
      %p65 = por %p63, %p64
      %p67 = scmp.ne.s32.totalorder %s52, %s66
      %p68 = scmp.eq.s32.totalorder %s21, 0
      %p69 = por %p67, %p68
      %s71 = sadd.s32 %s70, 1
      %p74 = scmp.eq.s32.totalorder %s15, 1
      %p75 = scmp.ne.s32.totalorder %s70, %s72
      %p76 = scmp.eq.s32.totalorder %s15, 0
      %p77 = por %p75, %p76
      %p78 = scmp.ne.s32.totalorder %s70, %s72
      %p79 = scmp.eq.s32.totalorder %s20, 1
      %p80 = por %p78, %p79
      %p81 = scmp.ne.s32.totalorder %s72, %s73
      %p82 = scmp.eq.s32.totalorder %s20, 0
      %p83 = por %p81, %p82
      %p84 = scmp.ne.s32.totalorder %s72, %s73
      %p85 = scmp.eq.s32.totalorder %s21, 1
      %p86 = por %p84, %p85
      %p88 = scmp.ne.s32.totalorder %s73, %s87
      %p89 = scmp.eq.s32.totalorder %s21, 0
      %p90 = por %p88, %p89
      %s92 = sadd.s32 %s91, 1
      %p95 = scmp.eq.s32.totalorder %s15, 1
      %p96 = scmp.ne.s32.totalorder %s91, %s93
      %p97 = scmp.eq.s32.totalorder %s15, 0
      %p98 = por %p96, %p97
      %p99 = scmp.ne.s32.totalorder %s91, %s93
      %p100 = scmp.eq.s32.totalorder %s20, 1
      %p101 = por %p99, %p100
      %p102 = scmp.ne.s32.totalorder %s93, %s94
      %p103 = scmp.eq.s32.totalorder %s20, 0
      %p104 = por %p102, %p103
      %p105 = scmp.ne.s32.totalorder %s93, %s94
      %p106 = scmp.eq.s32.totalorder %s21, 1
      %p107 = por %p105, %p106
      %p109 = scmp.ne.s32.totalorder %s94, %s108
      %p110 = scmp.eq.s32.totalorder %s21, 0
      %p111 = por %p109, %p110
      %s113 = sadd.s32 %s112, 1
      %p116 = scmp.eq.s32.totalorder %s15, 1
      %p117 = scmp.ne.s32.totalorder %s112, %s114
      %p118 = scmp.eq.s32.totalorder %s15, 0
      %p119 = por %p117, %p118
      %p120 = scmp.ne.s32.totalorder %s112, %s114
      %p121 = scmp.eq.s32.totalorder %s20, 1
      %p122 = por %p120, %p121
      %p123 = scmp.ne.s32.totalorder %s114, %s115
      %p124 = scmp.eq.s32.totalorder %s20, 0
      %p125 = por %p123, %p124
      %p126 = scmp.ne.s32.totalorder %s114, %s115
      %p127 = scmp.eq.s32.totalorder %s21, 1
      %p128 = por %p126, %p127
      %p130 = scmp.ne.s32.totalorder %s115, %s129
      %p131 = scmp.eq.s32.totalorder %s21, 0
      %p132 = por %p130, %p131
      %s133 = ssub.s32 %s15, %s22
      %p134 = scmp.eq.s32.totalorder %s133, 0
      %s136 = sadd.s32 %s135, 1
      %s137 = scalar_select %p134, %s135, %s136
      %p140 = pneg %p134
      %p141 = scmp.eq.s32.totalorder %s15, 1
      %p142 = por %p140, %p141
      %p143 = scmp.ne.s32.totalorder %s135, %s138
      %p144 = scmp.eq.s32.totalorder %s15, 0
      %p145 = por %p143, %p144
      %p146 = scmp.ne.s32.totalorder %s135, %s138
      %p147 = scmp.eq.s32.totalorder %s20, 1
      %p148 = por %p146, %p147
      %p149 = scmp.ne.s32.totalorder %s138, %s139
      %p150 = scmp.eq.s32.totalorder %s20, 0
      %p151 = por %p149, %p150
      %p152 = scmp.ne.s32.totalorder %s138, %s139
      %p153 = scmp.eq.s32.totalorder %s21, 1
      %p154 = por %p152, %p153
      %p156 = scmp.ne.s32.totalorder %s139, %s155
      %p157 = scmp.eq.s32.totalorder %s21, 0
      %p158 = por %p156, %p157
      %p159 = scmp.le.s32.totalorder 1, %s15
      %p160 = scmp.lt.s32.totalorder %s15, 3
      %p161 = pnand %p159, %p160
      %p162 = pneg %p161
      // Predicated region
      $region9: #{basic_block.1} parent=5 // pred_check
        _
      $region10: #{basic_block.1} parent=5 // pred_check_branch
        %164 = sbr.rel (%p161) target = $region12
      $region11: #{basic_block.1} parent=5 // pred_region
        %s165 = ssub.s32 %s15, 1
        // Predicated region
        $region13: #{basic_block.1} parent=11 // pred_check
          %p166 = pneg %p62
        $region14: #{basic_block.1} parent=11 // pred_check_branch
          %168 = sbr.rel (%p166) target = $region16
        $region15: #{basic_block.1} parent=11 // pred_region
          _
        $region16: #{basic_block.1} parent=11 // pred_fallthru
          _
        // Predicated region
        $region17: #{basic_block.1} parent=11 // pred_check
          %p169 = pneg %p83
        $region18: #{basic_block.1} parent=11 // pred_check_branch
          %171 = sbr.rel (%p169) target = $region20
        $region19: #{basic_block.1} parent=11 // pred_region
          _
        $region20: #{basic_block.1} parent=11 // pred_fallthru
          _
        // Predicated region
        $region21: #{basic_block.1} parent=11 // pred_check
          %p172 = pneg %p104
        $region22: #{basic_block.1} parent=11 // pred_check_branch
          %174 = sbr.rel (%p172) target = $region24
        $region23: #{basic_block.1} parent=11 // pred_region
          %s176 = ssub.s32 9216, 9216
          %177 = vsyncadd [#allocation6], %s176
          %s178 = sshll.u32 [#allocation5], 4
          %s179 = int_to_ptr.vmem [resolvable:$true] %s178
          %184 = dma.hbm_to_vmem [thread:$0]  %s3, 9216, %s179, [#allocation6], 64, 64, 4
        $region24: #{basic_block.1} parent=11 // pred_fallthru
          _
        // Predicated region
        $region25: #{basic_block.1} parent=11 // pred_check
          %p185 = pneg %p125
        $region26: #{basic_block.1} parent=11 // pred_check_branch
          %187 = sbr.rel (%p185) target = $region28
        $region27: #{basic_block.1} parent=11 // pred_region
          _
        $region28: #{basic_block.1} parent=11 // pred_fallthru
          _
      $region12: #{basic_block.1} parent=5 // pred_fallthru
        _
      %p188 = scmp.lt.s32.totalorder %s15, 2
      // Predicated region
      $region29: #{basic_block.1} parent=5 // pred_check
        %p189 = pneg %p188
      $region30: #{basic_block.1} parent=5 // pred_check_branch
        %191 = sbr.rel (%p189) target = $region32
      $region31: #{basic_block.1} parent=5 // pred_region
        // Predicated region
        $region33: #{basic_block.1} parent=31 // pred_check
          %p192 = pneg %p35
        $region34: #{basic_block.1} parent=31 // pred_check_branch
          %194 = sbr.rel (%p192) target = $region36
        $region35: #{basic_block.1} parent=31 // pred_region
          %p195 = scmp.lt.s32.totalorder %s15, 1
          %s196 = scalar_select %p195, %s15, 1
          %s197 = smul.addr %s196, 32
          %s198 = smul.addr %s197, 4
          %s199 = scalar_lea.vmem %s0, %s198
        $region36: #{basic_block.1} parent=31 // pred_fallthru
          _
      $region32: #{basic_block.1} parent=5 // pred_fallthru
        _
      %p200 = scmp.le.s32.totalorder 1, %s15
      %p201 = scmp.lt.s32.totalorder %s15, 3
      %p202 = pnand %p200, %p201
      %p203 = pneg %p202
      // Predicated region
      $region37: #{basic_block.1} parent=5 // pred_check
        _
      $region38: #{basic_block.1} parent=5 // pred_check_branch
        %205 = sbr.rel (%p202) target = $region40
      $region39: #{basic_block.1} parent=5 // pred_region
        %s206 = ssub.s32 %s15, 1
        // Predicated region
        $region41: #{basic_block.1} parent=39 // pred_check
          %p207 = pneg %p104
        $region42: #{basic_block.1} parent=39 // pred_check_branch
          %209 = sbr.rel (%p207) target = $region44
        $region43: #{basic_block.1} parent=39 // pred_region
          %210 = dma.done [#allocation6], 9216
        $region44: #{basic_block.1} parent=39 // pred_fallthru
          _
        %p211 = scmp.lt.s32.totalorder %s20, 1
        %s212 = scalar_select %p211, %s20, 1
        %s213 = smul.addr %s212, 32
        %s214 = smul.addr %s213, 4
        %s215 = scalar_lea.vmem %s0, %s214
        %p216 = pneg %p41
        %p217 = pneg %p38
        %p218 = pneg %p62
        %p219 = pneg %p59
        %p220 = pneg %p83
        %p221 = pneg %p80
        %p222 = pneg %p104
        %p223 = pneg %p101
        %p224 = pneg %p125
        %p225 = pneg %p122
        %p226 = pneg %p151
        %p227 = pneg %p148
        %s228 = sand.u32 %s138, 1
        %s229 = scalar_lea.sflag [#allocation7], %s228
        %s230 = sand.u32 %s138, 1
        %s231 = smul.addr %s230, 128
        %s232 = scalar_lea.vmem [#allocation8], %s231
        %p233 = scmp.lt.s32.totalorder %s20, 1
        %s234 = scalar_select %p233, %s20, 1
        %s235 = smul.addr %s234, 32
        %s236 = smul.addr %s235, 4
        %s237 = scalar_lea.vmem %s0, %s236
        %239 = vst [vmem:[#allocation2] sm:$0xf] 0
        %240 = vst [vmem:[#allocation2 + $0x4] sm:$0xf] 0
        %241 = vst [vmem:[#allocation2 + $0x8] sm:$0xf] 0
        %242 = vst [vmem:[#allocation2 + $0xc] sm:$0xf] 0
        %243 = vst [vmem:[#allocation2 + $0x10] sm:$0xf] 0
        %244 = vst [vmem:[#allocation2 + $0x14] sm:$0xf] 0
        %245 = vst [vmem:[#allocation2 + $0x18] sm:$0xf] 0
        %246 = vst [vmem:[#allocation2 + $0x1c] sm:$0xf] 0
        %247 = vst [vmem:[#allocation2 + $0x20] sm:$0xf] 0
        %248 = vst [vmem:[#allocation2 + $0x24] sm:$0xf] 0
        %249 = vst [vmem:[#allocation2 + $0x28] sm:$0xf] 0
        %250 = vst [vmem:[#allocation2 + $0x2c] sm:$0xf] 0
        %251 = vst [vmem:[#allocation2 + $0x30] sm:$0xf] 0
        %252 = vst [vmem:[#allocation2 + $0x34] sm:$0xf] 0
        %253 = vst [vmem:[#allocation2 + $0x38] sm:$0xf] 0
        %254 = vst [vmem:[#allocation2 + $0x3c] sm:$0xf] 0
        %255 = vst [vmem:[#allocation2 + $0x40] sm:$0xf] 0
        %256 = vst [vmem:[#allocation2 + $0x44] sm:$0xf] 0
        %257 = vst [vmem:[#allocation2 + $0x48] sm:$0xf] 0
        %258 = vst [vmem:[#allocation2 + $0x4c] sm:$0xf] 0
        %259 = vst [vmem:[#allocation2 + $0x50] sm:$0xf] 0
        %260 = vst [vmem:[#allocation2 + $0x54] sm:$0xf] 0
        %261 = vst [vmem:[#allocation2 + $0x58] sm:$0xf] 0
        %262 = vst [vmem:[#allocation2 + $0x5c] sm:$0xf] 0
        %263 = vst [vmem:[#allocation2 + $0x60] sm:$0xf] 0
        %264 = vst [vmem:[#allocation2 + $0x64] sm:$0xf] 0
        %265 = vst [vmem:[#allocation2 + $0x68] sm:$0xf] 0
        %266 = vst [vmem:[#allocation2 + $0x6c] sm:$0xf] 0
        %267 = vst [vmem:[#allocation2 + $0x70] sm:$0xf] 0
        %268 = vst [vmem:[#allocation2 + $0x74] sm:$0xf] 0
        %269 = vst [vmem:[#allocation2 + $0x78] sm:$0xf] 0
        %270 = vst [vmem:[#allocation2 + $0x7c] sm:$0xf] 0
        %271 = vst [vmem:[#allocation2 + $0x80] sm:$0xf] 0
        %272 = vst [vmem:[#allocation2 + $0x84] sm:$0xf] 0
        %273 = vst [vmem:[#allocation2 + $0x88] sm:$0xf] 0
        %274 = vst [vmem:[#allocation2 + $0x8c] sm:$0xf] 0
        %275 = vst [vmem:[#allocation2 + $0x90] sm:$0xf] 0
        %276 = vst [vmem:[#allocation2 + $0x94] sm:$0xf] 0
        %277 = vst [vmem:[#allocation2 + $0x98] sm:$0xf] 0
        %278 = vst [vmem:[#allocation2 + $0x9c] sm:$0xf] 0
        %279 = vst [vmem:[#allocation2 + $0xa0] sm:$0xf] 0
        %280 = vst [vmem:[#allocation2 + $0xa4] sm:$0xf] 0
        %281 = vst [vmem:[#allocation2 + $0xa8] sm:$0xf] 0
        %282 = vst [vmem:[#allocation2 + $0xac] sm:$0xf] 0
        %283 = vst [vmem:[#allocation2 + $0xb0] sm:$0xf] 0
        %284 = vst [vmem:[#allocation2 + $0xb4] sm:$0xf] 0
        %285 = vst [vmem:[#allocation2 + $0xb8] sm:$0xf] 0
        %286 = vst [vmem:[#allocation2 + $0xbc] sm:$0xf] 0
        %287 = vst [vmem:[#allocation2 + $0xc0] sm:$0xf] 0
        %288 = vst [vmem:[#allocation2 + $0xc4] sm:$0xf] 0
        %289 = vst [vmem:[#allocation2 + $0xc8] sm:$0xf] 0
        %290 = vst [vmem:[#allocation2 + $0xcc] sm:$0xf] 0
        %291 = vst [vmem:[#allocation2 + $0xd0] sm:$0xf] 0
        %292 = vst [vmem:[#allocation2 + $0xd4] sm:$0xf] 0
        %293 = vst [vmem:[#allocation3] sm:$0xf] 0
        %294 = vst [vmem:[#allocation3 + $0x4] sm:$0xf] 0
        %295 = vst [vmem:[#allocation3 + $0x8] sm:$0xf] 0
        %296 = vst [vmem:[#allocation3 + $0xc] sm:$0xf] 0
        %297 = vst [vmem:[#allocation3 + $0x10] sm:$0xf] 0
        %298 = vst [vmem:[#allocation3 + $0x14] sm:$0xf] 0
        %299 = vst [vmem:[#allocation3 + $0x18] sm:$0xf] 0
        %300 = vst [vmem:[#allocation3 + $0x1c] sm:$0xf] 0
        %301 = vst [vmem:[#allocation3 + $0x20] sm:$0xf] 0
        %302 = vst [vmem:[#allocation3 + $0x24] sm:$0xf] 0
        %303 = vst [vmem:[#allocation3 + $0x28] sm:$0xf] 0
        %304 = vst [vmem:[#allocation3 + $0x2c] sm:$0xf] 0
        %305 = vst [vmem:[#allocation3 + $0x30] sm:$0xf] 0
        %306 = vst [vmem:[#allocation3 + $0x34] sm:$0xf] 0
        %307 = vst [vmem:[#allocation3 + $0x38] sm:$0xf] 0
        %308 = vst [vmem:[#allocation3 + $0x3c] sm:$0xf] 0
        %309 = vst [vmem:[#allocation3 + $0x40] sm:$0xf] 0
        %310 = vst [vmem:[#allocation3 + $0x44] sm:$0xf] 0
        %311 = vst [vmem:[#allocation3 + $0x48] sm:$0xf] 0
        %312 = vst [vmem:[#allocation3 + $0x4c] sm:$0xf] 0
        %313 = vst [vmem:[#allocation3 + $0x50] sm:$0xf] 0
        %314 = vst [vmem:[#allocation3 + $0x54] sm:$0xf] 0
        %315 = vst [vmem:[#allocation3 + $0x58] sm:$0xf] 0
        %316 = vst [vmem:[#allocation3 + $0x5c] sm:$0xf] 0
        %317 = vst [vmem:[#allocation3 + $0x60] sm:$0xf] 0
        %318 = vst [vmem:[#allocation3 + $0x64] sm:$0xf] 0
        %319 = vst [vmem:[#allocation3 + $0x68] sm:$0xf] 0
        %320 = vst [vmem:[#allocation3 + $0x6c] sm:$0xf] 0
        %321 = vst [vmem:[#allocation3 + $0x70] sm:$0xf] 0
        %322 = vst [vmem:[#allocation3 + $0x74] sm:$0xf] 0
        %323 = vst [vmem:[#allocation3 + $0x78] sm:$0xf] 0
        %324 = vst [vmem:[#allocation3 + $0x7c] sm:$0xf] 0
        %325 = vst [vmem:[#allocation3 + $0x80] sm:$0xf] 0
        %326 = vst [vmem:[#allocation3 + $0x84] sm:$0xf] 0
        %327 = vst [vmem:[#allocation3 + $0x88] sm:$0xf] 0
        %328 = vst [vmem:[#allocation3 + $0x8c] sm:$0xf] 0
        %329 = vst [vmem:[#allocation3 + $0x90] sm:$0xf] 0
        %330 = vst [vmem:[#allocation3 + $0x94] sm:$0xf] 0
        %331 = vst [vmem:[#allocation3 + $0x98] sm:$0xf] 0
        %332 = vst [vmem:[#allocation3 + $0x9c] sm:$0xf] 0
        %333 = vst [vmem:[#allocation3 + $0xa0] sm:$0xf] 0
        %334 = vst [vmem:[#allocation3 + $0xa4] sm:$0xf] 0
        %335 = vst [vmem:[#allocation3 + $0xa8] sm:$0xf] 0
        %336 = vst [vmem:[#allocation3 + $0xac] sm:$0xf] 0
        %337 = vst [vmem:[#allocation3 + $0xb0] sm:$0xf] 0
        %338 = vst [vmem:[#allocation3 + $0xb4] sm:$0xf] 0
        %339 = vst [vmem:[#allocation3 + $0xb8] sm:$0xf] 0
        %340 = vst [vmem:[#allocation3 + $0xbc] sm:$0xf] 0
        %341 = vst [vmem:[#allocation3 + $0xc0] sm:$0xf] 0
        %342 = vst [vmem:[#allocation3 + $0xc4] sm:$0xf] 0
        %343 = vst [vmem:[#allocation3 + $0xc8] sm:$0xf] 0
        %344 = vst [vmem:[#allocation3 + $0xcc] sm:$0xf] 0
        %345 = vst [vmem:[#allocation3 + $0xd0] sm:$0xf] 0
        %346 = vst [vmem:[#allocation3 + $0xd4] sm:$0xf] 0
        %v347 = vld [vmem:[%s237] sm:$0xf]
        %v348 = vld [vmem:[%s237 + $0x4] sm:$0xf]
        %v349 = vld [vmem:[%s237 + $0x8] sm:$0xf]
        %v350 = vld [vmem:[%s237 + $0xc] sm:$0xf]
        %v351 = vld [vmem:[%s237 + $0x10] sm:$0xf]
        %v352 = vld [vmem:[%s237 + $0x14] sm:$0xf]
        %v353 = vld [vmem:[%s237 + $0x18] sm:$0xf]
        %v354 = vld [vmem:[%s237 + $0x1c] sm:$0xf]
        %v355 = vld [vmem:[%s237 + $0x20] sm:$0xf]
        %v356 = vld [vmem:[%s237 + $0x24] sm:$0xf]
        %v357 = vld [vmem:[%s237 + $0x28] sm:$0xf]
        %v358 = vld [vmem:[%s237 + $0x2c] sm:$0xf]
        %v359 = vld [vmem:[%s237 + $0x30] sm:$0xf]
        %v360 = vld [vmem:[%s237 + $0x34] sm:$0xf]
        %v361 = vld [vmem:[%s237 + $0x38] sm:$0xf]
        %v362 = vld [vmem:[%s237 + $0x3c] sm:$0xf]
        %v363 = vld [vmem:[%s237 + $0x40] sm:$0xf]
        %v364 = vld [vmem:[%s237 + $0x44] sm:$0xf]
        %v365 = vld [vmem:[%s237 + $0x48] sm:$0xf]
        %v366 = vld [vmem:[%s237 + $0x4c] sm:$0xf]
        %v367 = vld [vmem:[%s237 + $0x50] sm:$0xf]
        %v368 = vld [vmem:[%s237 + $0x54] sm:$0xf]
        %v369 = vld [vmem:[%s237 + $0x58] sm:$0xf]
        %v370 = vld [vmem:[%s237 + $0x5c] sm:$0xf]
        %v371 = vld [vmem:[%s237 + $0x60] sm:$0xf]
        %v372 = vld [vmem:[%s237 + $0x64] sm:$0xf]
        %v373 = vld [vmem:[%s237 + $0x68] sm:$0xf]
        %v374 = vld [vmem:[%s237 + $0x6c] sm:$0xf]
        %v375 = vld [vmem:[%s237 + $0x70] sm:$0xf]
        %v376 = vld [vmem:[%s237 + $0x74] sm:$0xf]
        %v377 = vld [vmem:[%s237 + $0x78] sm:$0xf]
        %v378 = vld [vmem:[%s237 + $0x7c] sm:$0xf]
        %vm379 = vsmask.f32 256
        %vm380 = vsmask.f32 4368
        %vm381 = vmor %vm379, %vm380
        %v383 = vshrl.u32 %v347, 16
        %v385 = vrot.slane %v383, 7
        %v386 = vshll.u32 %v347, 16
        %v388 = vor.u32 %v385, %v386
        %v389 = vrot.slane %v385, 4
        %v391 = vshrl.u32 %v348, 16
        %v393 = vrot.slane %v391, 7
        %v394 = vshll.u32 %v348, 16
        %v396 = vor.u32 %v393, %v394
        %v397 = vsel %vm381, %v389, %v396
        %v398 = vrot.slane %v393, 4
        %v400 = vshrl.u32 %v349, 16
        %v402 = vrot.slane %v400, 7
        %v403 = vshll.u32 %v349, 16
        %v405 = vor.u32 %v402, %v403
        %v406 = vrot.slane %v402, 4
        %v408 = vshrl.u32 %v350, 16
        %v410 = vrot.slane %v408, 7
        %v411 = vshll.u32 %v350, 16
        %v413 = vor.u32 %v410, %v411
        %v414 = vsel %vm381, %v406, %v413
        %v415 = vrot.slane %v410, 4
        %v417 = vshrl.u32 %v351, 16
        %v419 = vrot.slane %v417, 7
        %v420 = vshll.u32 %v351, 16
        %v422 = vor.u32 %v419, %v420
        %v423 = vrot.slane %v419, 4
        %v425 = vshrl.u32 %v352, 16
        %v427 = vrot.slane %v425, 7
        %v428 = vshll.u32 %v352, 16
        %v430 = vor.u32 %v427, %v428
        %v431 = vsel %vm381, %v423, %v430
        %v432 = vrot.slane %v427, 4
        %v434 = vshrl.u32 %v353, 16
        %v436 = vrot.slane %v434, 7
        %v437 = vshll.u32 %v353, 16
        %v439 = vor.u32 %v436, %v437
        %v440 = vrot.slane %v436, 4
        %v442 = vshrl.u32 %v354, 16
        %v444 = vrot.slane %v442, 7
        %v445 = vshll.u32 %v354, 16
        %v447 = vor.u32 %v444, %v445
        %v448 = vsel %vm381, %v440, %v447
        %v449 = vrot.slane %v444, 4
        %v451 = vshrl.u32 %v355, 16
        %v453 = vrot.slane %v451, 7
        %v454 = vshll.u32 %v355, 16
        %v456 = vor.u32 %v453, %v454
        %v457 = vrot.slane %v453, 4
        %v459 = vshrl.u32 %v356, 16
        %v461 = vrot.slane %v459, 7
        %v462 = vshll.u32 %v356, 16
        %v464 = vor.u32 %v461, %v462
        %v465 = vsel %vm381, %v457, %v464
        %v466 = vrot.slane %v461, 4
        %v468 = vshrl.u32 %v357, 16
        %v470 = vrot.slane %v468, 7
        %v471 = vshll.u32 %v357, 16
        %v473 = vor.u32 %v470, %v471
        %v474 = vrot.slane %v470, 4
        %v476 = vshrl.u32 %v358, 16
        %v478 = vrot.slane %v476, 7
        %v479 = vshll.u32 %v358, 16
        %v481 = vor.u32 %v478, %v479
        %v482 = vsel %vm381, %v474, %v481
        %v483 = vrot.slane %v478, 4
        %v485 = vshrl.u32 %v359, 16
        %v487 = vrot.slane %v485, 7
        %v488 = vshll.u32 %v359, 16
        %v490 = vor.u32 %v487, %v488
        %v491 = vrot.slane %v487, 4
        %v493 = vshrl.u32 %v360, 16
        %v495 = vrot.slane %v493, 7
        %v496 = vshll.u32 %v360, 16
        %v498 = vor.u32 %v495, %v496
        %v499 = vsel %vm381, %v491, %v498
        %v500 = vrot.slane %v495, 4
        %v502 = vshrl.u32 %v361, 16
        %v504 = vrot.slane %v502, 7
        %v505 = vshll.u32 %v361, 16
        %v507 = vor.u32 %v504, %v505
        %v508 = vrot.slane %v504, 4
        %v510 = vshrl.u32 %v362, 16
        %v512 = vrot.slane %v510, 7
        %v513 = vshll.u32 %v362, 16
        %v515 = vor.u32 %v512, %v513
        %v516 = vsel %vm381, %v508, %v515
        %v517 = vrot.slane %v512, 4
        %v519 = vshrl.u32 %v363, 16
        %v521 = vrot.slane %v519, 7
        %v522 = vshll.u32 %v363, 16
        %v524 = vor.u32 %v521, %v522
        %v525 = vrot.slane %v521, 4
        %v527 = vshrl.u32 %v364, 16
        %v529 = vrot.slane %v527, 7
        %v530 = vshll.u32 %v364, 16
        %v532 = vor.u32 %v529, %v530
        %v533 = vsel %vm381, %v525, %v532
        %v534 = vrot.slane %v529, 4
        %v536 = vshrl.u32 %v365, 16
        %v538 = vrot.slane %v536, 7
        %v539 = vshll.u32 %v365, 16
        %v541 = vor.u32 %v538, %v539
        %v542 = vrot.slane %v538, 4
        %v544 = vshrl.u32 %v366, 16
        %v546 = vrot.slane %v544, 7
        %v547 = vshll.u32 %v366, 16
        %v549 = vor.u32 %v546, %v547
        %v550 = vsel %vm381, %v542, %v549
        %v551 = vrot.slane %v546, 4
        %v553 = vshrl.u32 %v367, 16
        %v555 = vrot.slane %v553, 7
        %v556 = vshll.u32 %v367, 16
        %v558 = vor.u32 %v555, %v556
        %v559 = vrot.slane %v555, 4
        %v561 = vshrl.u32 %v368, 16
        %v563 = vrot.slane %v561, 7
        %v564 = vshll.u32 %v368, 16
        %v566 = vor.u32 %v563, %v564
        %v567 = vsel %vm381, %v559, %v566
        %v568 = vrot.slane %v563, 4
        %v570 = vshrl.u32 %v369, 16
        %v572 = vrot.slane %v570, 7
        %v573 = vshll.u32 %v369, 16
        %v575 = vor.u32 %v572, %v573
        %v576 = vrot.slane %v572, 4
        %v578 = vshrl.u32 %v370, 16
        %v580 = vrot.slane %v578, 7
        %v581 = vshll.u32 %v370, 16
        %v583 = vor.u32 %v580, %v581
        %v584 = vsel %vm381, %v576, %v583
        %v585 = vrot.slane %v580, 4
        %v587 = vshrl.u32 %v371, 16
        %v589 = vrot.slane %v587, 7
        %v590 = vshll.u32 %v371, 16
        %v592 = vor.u32 %v589, %v590
        %v593 = vrot.slane %v589, 4
        %v595 = vshrl.u32 %v372, 16
        %v597 = vrot.slane %v595, 7
        %v598 = vshll.u32 %v372, 16
        %v600 = vor.u32 %v597, %v598
        %v601 = vsel %vm381, %v593, %v600
        %v602 = vrot.slane %v597, 4
        %v604 = vshrl.u32 %v373, 16
        %v606 = vrot.slane %v604, 7
        %v607 = vshll.u32 %v373, 16
        %v609 = vor.u32 %v606, %v607
        %v610 = vrot.slane %v606, 4
        %v612 = vshrl.u32 %v374, 16
        %v614 = vrot.slane %v612, 7
        %v615 = vshll.u32 %v374, 16
        %v617 = vor.u32 %v614, %v615
        %v618 = vsel %vm381, %v610, %v617
        %v619 = vrot.slane %v614, 4
        %v621 = vshrl.u32 %v375, 16
        %v623 = vrot.slane %v621, 7
        %v624 = vshll.u32 %v375, 16
        %v626 = vor.u32 %v623, %v624
        %v627 = vrot.slane %v623, 4
        %v629 = vshrl.u32 %v376, 16
        %v631 = vrot.slane %v629, 7
        %v632 = vshll.u32 %v376, 16
        %v634 = vor.u32 %v631, %v632
        %v635 = vsel %vm381, %v627, %v634
        %v636 = vrot.slane %v631, 4
        %v638 = vshrl.u32 %v377, 16
        %v640 = vrot.slane %v638, 7
        %v641 = vshll.u32 %v377, 16
        %v643 = vor.u32 %v640, %v641
        %v644 = vrot.slane %v640, 4
        %v646 = vshrl.u32 %v378, 16
        %v648 = vrot.slane %v646, 7
        %v649 = vshll.u32 %v378, 16
        %v651 = vor.u32 %v648, %v649
        %v652 = vsel %vm381, %v644, %v651
        %v653 = vrot.slane %v648, 4
        %s702 = scalar_lea.vmem [#allocation2], 12
        %vm703 = vcmask 1043456
        %vm704 = vsmask.f32 7938
        %vm705 = vmand %vm703, %vm704
        %v706 = vld [vmem:[%s702] sm:$0xf]
        %v707 = vsel %vm705, %v388, %v706
        %708 = vst [vmem:[%s702] sm:$0xf] %v707
        %709 = vst [vmem:[%s702 + $0x4] sm:$0xf] %v397
        %vm710 = vcmask 1040384
        %vm711 = vmand %vm710, %vm379
        %v712 = vld [vmem:[%s702 + $0x8] sm:$0x1]
        %v713 = vsel %vm711, %v398, %v712
        %714 = vst [vmem:[%s702 + $0x8] sm:$0x1] %v713
        %v715 = vld [vmem:[%s702 + $0xc] sm:$0xf]
        %v716 = vsel %vm705, %v405, %v715
        %717 = vst [vmem:[%s702 + $0xc] sm:$0xf] %v716
        %718 = vst [vmem:[%s702 + $0x10] sm:$0xf] %v414
        %v719 = vld [vmem:[%s702 + $0x14] sm:$0x1]
        %v720 = vsel %vm711, %v415, %v719
        %721 = vst [vmem:[%s702 + $0x14] sm:$0x1] %v720
        %v722 = vld [vmem:[%s702 + $0x18] sm:$0xf]
        %v723 = vsel %vm705, %v422, %v722
        %724 = vst [vmem:[%s702 + $0x18] sm:$0xf] %v723
        %725 = vst [vmem:[%s702 + $0x1c] sm:$0xf] %v431
        %v726 = vld [vmem:[%s702 + $0x20] sm:$0x1]
        %v727 = vsel %vm711, %v432, %v726
        %728 = vst [vmem:[%s702 + $0x20] sm:$0x1] %v727
        %v729 = vld [vmem:[%s702 + $0x24] sm:$0xf]
        %v730 = vsel %vm705, %v439, %v729
        %731 = vst [vmem:[%s702 + $0x24] sm:$0xf] %v730
        %732 = vst [vmem:[%s702 + $0x28] sm:$0xf] %v448
        %v733 = vld [vmem:[%s702 + $0x2c] sm:$0x1]
        %v734 = vsel %vm711, %v449, %v733
        %735 = vst [vmem:[%s702 + $0x2c] sm:$0x1] %v734
        %v736 = vld [vmem:[%s702 + $0x30] sm:$0xf]
        %v737 = vsel %vm705, %v456, %v736
        %738 = vst [vmem:[%s702 + $0x30] sm:$0xf] %v737
        %739 = vst [vmem:[%s702 + $0x34] sm:$0xf] %v465
        %v740 = vld [vmem:[%s702 + $0x38] sm:$0x1]
        %v741 = vsel %vm711, %v466, %v740
        %742 = vst [vmem:[%s702 + $0x38] sm:$0x1] %v741
        %v743 = vld [vmem:[%s702 + $0x3c] sm:$0xf]
        %v744 = vsel %vm705, %v473, %v743
        %745 = vst [vmem:[%s702 + $0x3c] sm:$0xf] %v744
        %746 = vst [vmem:[%s702 + $0x40] sm:$0xf] %v482
        %v747 = vld [vmem:[%s702 + $0x44] sm:$0x1]
        %v748 = vsel %vm711, %v483, %v747
        %749 = vst [vmem:[%s702 + $0x44] sm:$0x1] %v748
        %v750 = vld [vmem:[%s702 + $0x48] sm:$0xf]
        %v751 = vsel %vm705, %v490, %v750
        %752 = vst [vmem:[%s702 + $0x48] sm:$0xf] %v751
        %753 = vst [vmem:[%s702 + $0x4c] sm:$0xf] %v499
        %v754 = vld [vmem:[%s702 + $0x50] sm:$0x1]
        %v755 = vsel %vm711, %v500, %v754
        %756 = vst [vmem:[%s702 + $0x50] sm:$0x1] %v755
        %v757 = vld [vmem:[%s702 + $0x54] sm:$0xf]
        %v758 = vsel %vm705, %v507, %v757
        %759 = vst [vmem:[%s702 + $0x54] sm:$0xf] %v758
        %760 = vst [vmem:[%s702 + $0x58] sm:$0xf] %v516
        %v761 = vld [vmem:[%s702 + $0x5c] sm:$0x1]
        %v762 = vsel %vm711, %v517, %v761
        %763 = vst [vmem:[%s702 + $0x5c] sm:$0x1] %v762
        %v764 = vld [vmem:[%s702 + $0x60] sm:$0xf]
        %v765 = vsel %vm705, %v524, %v764
        %766 = vst [vmem:[%s702 + $0x60] sm:$0xf] %v765
        %767 = vst [vmem:[%s702 + $0x64] sm:$0xf] %v533
        %v768 = vld [vmem:[%s702 + $0x68] sm:$0x1]
        %v769 = vsel %vm711, %v534, %v768
        %770 = vst [vmem:[%s702 + $0x68] sm:$0x1] %v769
        %v771 = vld [vmem:[%s702 + $0x6c] sm:$0xf]
        %v772 = vsel %vm705, %v541, %v771
        %773 = vst [vmem:[%s702 + $0x6c] sm:$0xf] %v772
        %774 = vst [vmem:[%s702 + $0x70] sm:$0xf] %v550
        %v775 = vld [vmem:[%s702 + $0x74] sm:$0x1]
        %v776 = vsel %vm711, %v551, %v775
        %777 = vst [vmem:[%s702 + $0x74] sm:$0x1] %v776
        %v778 = vld [vmem:[%s702 + $0x78] sm:$0xf]
        %v779 = vsel %vm705, %v558, %v778
        %780 = vst [vmem:[%s702 + $0x78] sm:$0xf] %v779
        %781 = vst [vmem:[%s702 + $0x7c] sm:$0xf] %v567
        %v782 = vld [vmem:[%s702 + $0x80] sm:$0x1]
        %v783 = vsel %vm711, %v568, %v782
        %784 = vst [vmem:[%s702 + $0x80] sm:$0x1] %v783
        %v785 = vld [vmem:[%s702 + $0x84] sm:$0xf]
        %v786 = vsel %vm705, %v575, %v785
        %787 = vst [vmem:[%s702 + $0x84] sm:$0xf] %v786
        %788 = vst [vmem:[%s702 + $0x88] sm:$0xf] %v584
        %v789 = vld [vmem:[%s702 + $0x8c] sm:$0x1]
        %v790 = vsel %vm711, %v585, %v789
        %791 = vst [vmem:[%s702 + $0x8c] sm:$0x1] %v790
        %v792 = vld [vmem:[%s702 + $0x90] sm:$0xf]
        %v793 = vsel %vm705, %v592, %v792
        %794 = vst [vmem:[%s702 + $0x90] sm:$0xf] %v793
        %795 = vst [vmem:[%s702 + $0x94] sm:$0xf] %v601
        %v796 = vld [vmem:[%s702 + $0x98] sm:$0x1]
        %v797 = vsel %vm711, %v602, %v796
        %798 = vst [vmem:[%s702 + $0x98] sm:$0x1] %v797
        %v799 = vld [vmem:[%s702 + $0x9c] sm:$0xf]
        %v800 = vsel %vm705, %v609, %v799
        %801 = vst [vmem:[%s702 + $0x9c] sm:$0xf] %v800
        %802 = vst [vmem:[%s702 + $0xa0] sm:$0xf] %v618
        %v803 = vld [vmem:[%s702 + $0xa4] sm:$0x1]
        %v804 = vsel %vm711, %v619, %v803
        %805 = vst [vmem:[%s702 + $0xa4] sm:$0x1] %v804
        %v806 = vld [vmem:[%s702 + $0xa8] sm:$0xf]
        %v807 = vsel %vm705, %v626, %v806
        %808 = vst [vmem:[%s702 + $0xa8] sm:$0xf] %v807
        %809 = vst [vmem:[%s702 + $0xac] sm:$0xf] %v635
        %v810 = vld [vmem:[%s702 + $0xb0] sm:$0x1]
        %v811 = vsel %vm711, %v636, %v810
        %812 = vst [vmem:[%s702 + $0xb0] sm:$0x1] %v811
        %v813 = vld [vmem:[%s702 + $0xb4] sm:$0xf]
        %v814 = vsel %vm705, %v643, %v813
        %815 = vst [vmem:[%s702 + $0xb4] sm:$0xf] %v814
        %816 = vst [vmem:[%s702 + $0xb8] sm:$0xf] %v652
        %v817 = vld [vmem:[%s702 + $0xbc] sm:$0x1]
        %v818 = vsel %vm711, %v653, %v817
        %819 = vst [vmem:[%s702 + $0xbc] sm:$0x1] %v818
        %v820 = vld [vmem:[#allocation2] sm:$0xf]
        %v821 = vld [vmem:[#allocation2 + $0x4] sm:$0xf]
        %v822 = vld [vmem:[#allocation2 + $0xc] sm:$0xf]
        %v823 = vld [vmem:[#allocation2 + $0x10] sm:$0xf]
        %v824 = vld [vmem:[#allocation2 + $0x18] sm:$0xf]
        %v825 = vld [vmem:[#allocation2 + $0x1c] sm:$0xf]
        %v826 = vld [vmem:[#allocation2 + $0x24] sm:$0xf]
        %v827 = vld [vmem:[#allocation2 + $0x28] sm:$0xf]
        %v828 = vld [vmem:[#allocation2 + $0x30] sm:$0xf]
        %v829 = vld [vmem:[#allocation2 + $0x34] sm:$0xf]
        %v830 = vld [vmem:[#allocation2 + $0x3c] sm:$0xf]
        %v831 = vld [vmem:[#allocation2 + $0x40] sm:$0xf]
        %v832 = vld [vmem:[#allocation2 + $0x48] sm:$0xf]
        %v833 = vld [vmem:[#allocation2 + $0x4c] sm:$0xf]
        %v834 = vld [vmem:[#allocation2 + $0x54] sm:$0xf]
        %v835 = vld [vmem:[#allocation2 + $0x58] sm:$0xf]
        %v836 = vld [vmem:[#allocation2 + $0x60] sm:$0xf]
        %v837 = vld [vmem:[#allocation2 + $0x64] sm:$0xf]
        %v838 = vld [vmem:[#allocation2 + $0x6c] sm:$0xf]
        %v839 = vld [vmem:[#allocation2 + $0x70] sm:$0xf]
        %v840 = vld [vmem:[#allocation2 + $0x78] sm:$0xf]
        %v841 = vld [vmem:[#allocation2 + $0x7c] sm:$0xf]
        %v842 = vld [vmem:[#allocation2 + $0x84] sm:$0xf]
        %v843 = vld [vmem:[#allocation2 + $0x88] sm:$0xf]
        %v844 = vld [vmem:[#allocation2 + $0x90] sm:$0xf]
        %v845 = vld [vmem:[#allocation2 + $0x94] sm:$0xf]
        %v846 = vld [vmem:[#allocation2 + $0x9c] sm:$0xf]
        %v847 = vld [vmem:[#allocation2 + $0xa0] sm:$0xf]
        %v848 = vld [vmem:[#allocation2 + $0xa8] sm:$0xf]
        %v849 = vld [vmem:[#allocation2 + $0xac] sm:$0xf]
        %v850 = vld [vmem:[#allocation2 + $0xb4] sm:$0xf]
        %v851 = vld [vmem:[#allocation2 + $0xb8] sm:$0xf]
        %v884 = vunpack.c.l.b16 %v820
        %v885 = vunpack.c.l.b16 %v821
        %v886 = vunpack.c.l.b16 %v822
        %v887 = vunpack.c.l.b16 %v823
        %v888 = vunpack.c.l.b16 %v824
        %v889 = vunpack.c.l.b16 %v825
        %v890 = vunpack.c.l.b16 %v826
        %v891 = vunpack.c.l.b16 %v827
        %v892 = vunpack.c.l.b16 %v828
        %v893 = vunpack.c.l.b16 %v829
        %v894 = vunpack.c.l.b16 %v830
        %v895 = vunpack.c.l.b16 %v831
        %v896 = vunpack.c.l.b16 %v832
        %v897 = vunpack.c.l.b16 %v833
        %v898 = vunpack.c.l.b16 %v834
        %v899 = vunpack.c.l.b16 %v835
        %v900 = vunpack.c.l.b16 %v836
        %v901 = vunpack.c.l.b16 %v837
        %v902 = vunpack.c.l.b16 %v838
        %v903 = vunpack.c.l.b16 %v839
        %v904 = vunpack.c.l.b16 %v840
        %v905 = vunpack.c.l.b16 %v841
        %v906 = vunpack.c.l.b16 %v842
        %v907 = vunpack.c.l.b16 %v843
        %v908 = vunpack.c.l.b16 %v844
        %v909 = vunpack.c.l.b16 %v845
        %v910 = vunpack.c.l.b16 %v846
        %v911 = vunpack.c.l.b16 %v847
        %v912 = vunpack.c.l.b16 %v848
        %v913 = vunpack.c.l.b16 %v849
        %v914 = vunpack.c.l.b16 %v850
        %v915 = vunpack.c.l.b16 %v851
        %v916 = vpack.c.b16 %v885, %v884
        %v917 = vpack.c.b16 %v887, %v886
        %v918 = vpack.c.b16 %v889, %v888
        %v919 = vpack.c.b16 %v891, %v890
        %v920 = vpack.c.b16 %v893, %v892
        %v921 = vpack.c.b16 %v895, %v894
        %v922 = vpack.c.b16 %v897, %v896
        %v923 = vpack.c.b16 %v899, %v898
        %v924 = vpack.c.b16 %v901, %v900
        %v925 = vpack.c.b16 %v903, %v902
        %v926 = vpack.c.b16 %v905, %v904
        %v927 = vpack.c.b16 %v907, %v906
        %v928 = vpack.c.b16 %v909, %v908
        %v929 = vpack.c.b16 %v911, %v910
        %v930 = vpack.c.b16 %v913, %v912
        %v931 = vpack.c.b16 %v915, %v914
        %948 = vst [vmem:[#allocation4] sm:$0xff] %v916
        %949 = vst [vmem:[#allocation4 + $0x48] sm:$0xff] %v917
        %950 = vst [vmem:[#allocation4 + $0x90] sm:$0xff] %v918
        %951 = vst [vmem:[#allocation4 + $0xd8] sm:$0xff] %v919
        %952 = vst [vmem:[#allocation4 + $0x120] sm:$0xff] %v920
        %953 = vst [vmem:[#allocation4 + $0x168] sm:$0xff] %v921
        %954 = vst [vmem:[#allocation4 + $0x1b0] sm:$0xff] %v922
        %955 = vst [vmem:[#allocation4 + $0x1f8] sm:$0xff] %v923
        %956 = vst [vmem:[#allocation4 + $0x240] sm:$0xff] %v924
        %957 = vst [vmem:[#allocation4 + $0x288] sm:$0xff] %v925
        %958 = vst [vmem:[#allocation4 + $0x2d0] sm:$0xff] %v926
        %959 = vst [vmem:[#allocation4 + $0x318] sm:$0xff] %v927
        %960 = vst [vmem:[#allocation4 + $0x360] sm:$0xff] %v928
        %961 = vst [vmem:[#allocation4 + $0x3a8] sm:$0xff] %v929
        %962 = vst [vmem:[#allocation4 + $0x3f0] sm:$0xff] %v930
        %963 = vst [vmem:[#allocation4 + $0x438] sm:$0xff] %v931
        %v964 = vld [vmem:[#allocation2] sm:$0xf]
        %v965 = vld [vmem:[#allocation2 + $0x4] sm:$0xf]
        %v966 = vld [vmem:[#allocation2 + $0x8] sm:$0x1]
        %v967 = vld [vmem:[#allocation2 + $0xc] sm:$0xf]
        %v968 = vld [vmem:[#allocation2 + $0x10] sm:$0xf]
        %v969 = vld [vmem:[#allocation2 + $0x14] sm:$0x1]
        %v970 = vld [vmem:[#allocation2 + $0x18] sm:$0xf]
        %v971 = vld [vmem:[#allocation2 + $0x1c] sm:$0xf]
        %v972 = vld [vmem:[#allocation2 + $0x20] sm:$0x1]
        %v973 = vld [vmem:[#allocation2 + $0x24] sm:$0xf]
        %v974 = vld [vmem:[#allocation2 + $0x28] sm:$0xf]
        %v975 = vld [vmem:[#allocation2 + $0x2c] sm:$0x1]
        %v976 = vld [vmem:[#allocation2 + $0x30] sm:$0xf]
        %v977 = vld [vmem:[#allocation2 + $0x34] sm:$0xf]
        %v978 = vld [vmem:[#allocation2 + $0x38] sm:$0x1]
        %v979 = vld [vmem:[#allocation2 + $0x3c] sm:$0xf]
        %v980 = vld [vmem:[#allocation2 + $0x40] sm:$0xf]
        %v981 = vld [vmem:[#allocation2 + $0x44] sm:$0x1]
        %v982 = vld [vmem:[#allocation2 + $0x48] sm:$0xf]
        %v983 = vld [vmem:[#allocation2 + $0x4c] sm:$0xf]
        %v984 = vld [vmem:[#allocation2 + $0x50] sm:$0x1]
        %v985 = vld [vmem:[#allocation2 + $0x54] sm:$0xf]
        %v986 = vld [vmem:[#allocation2 + $0x58] sm:$0xf]
        %v987 = vld [vmem:[#allocation2 + $0x5c] sm:$0x1]
        %v988 = vld [vmem:[#allocation2 + $0x60] sm:$0xf]
        %v989 = vld [vmem:[#allocation2 + $0x64] sm:$0xf]
        %v990 = vld [vmem:[#allocation2 + $0x68] sm:$0x1]
        %v991 = vld [vmem:[#allocation2 + $0x6c] sm:$0xf]
        %v992 = vld [vmem:[#allocation2 + $0x70] sm:$0xf]
        %v993 = vld [vmem:[#allocation2 + $0x74] sm:$0x1]
        %v994 = vld [vmem:[#allocation2 + $0x78] sm:$0xf]
        %v995 = vld [vmem:[#allocation2 + $0x7c] sm:$0xf]
        %v996 = vld [vmem:[#allocation2 + $0x80] sm:$0x1]
        %v997 = vld [vmem:[#allocation2 + $0x84] sm:$0xf]
        %v998 = vld [vmem:[#allocation2 + $0x88] sm:$0xf]
        %v999 = vld [vmem:[#allocation2 + $0x8c] sm:$0x1]
        %v1000 = vld [vmem:[#allocation2 + $0x90] sm:$0xf]
        %v1001 = vld [vmem:[#allocation2 + $0x94] sm:$0xf]
        %v1002 = vld [vmem:[#allocation2 + $0x98] sm:$0x1]
        %v1003 = vld [vmem:[#allocation2 + $0x9c] sm:$0xf]
        %v1004 = vld [vmem:[#allocation2 + $0xa0] sm:$0xf]
        %v1005 = vld [vmem:[#allocation2 + $0xa4] sm:$0x1]
        %v1006 = vld [vmem:[#allocation2 + $0xa8] sm:$0xf]
        %v1007 = vld [vmem:[#allocation2 + $0xac] sm:$0xf]
        %v1008 = vld [vmem:[#allocation2 + $0xb0] sm:$0x1]
        %v1009 = vld [vmem:[#allocation2 + $0xb4] sm:$0xf]
        %v1010 = vld [vmem:[#allocation2 + $0xb8] sm:$0xf]
        %v1011 = vld [vmem:[#allocation2 + $0xbc] sm:$0x1]
        %vm1012 = vsmask.f32 3328
        %vm1013 = vsmask.f32 7440
        %vm1014 = vmor %vm1012, %vm1013
        %v1016 = vshrl.u32 %v964, 16
        %v1018 = vrot.slane %v1016, 4
        %v1019 = vshll.u32 %v964, 16
        %v1021 = vrot.slane %v1019, 5
        %v1022 = vor.u32 %v1018, %v1021
        %v1023 = vrot.slane %v1022, 4
        %v1025 = vshll.u32 %v965, 16
        %v1027 = vrot.slane %v1025, 5
        %v1028 = vsel %vm1014, %v1023, %v1027
        %v1029 = vshrl.u32 %v965, 16
        %v1031 = vrot.slane %v1029, 4
        %v1032 = vor.u32 %v1031, %v1027
        %v1033 = vrot.slane %v1032, 4
        %v1035 = vshll.u32 %v966, 16
        %v1037 = vrot.slane %v1035, 5
        %v1038 = vsel %vm1014, %v1033, %v1037
        %v1040 = vshrl.u32 %v967, 16
        %v1042 = vrot.slane %v1040, 4
        %v1043 = vshll.u32 %v967, 16
        %v1045 = vrot.slane %v1043, 5
        %v1046 = vor.u32 %v1042, %v1045
        %v1047 = vrot.slane %v1046, 4
        %v1049 = vshll.u32 %v968, 16
        %v1051 = vrot.slane %v1049, 5
        %v1052 = vsel %vm1014, %v1047, %v1051
        %v1053 = vshrl.u32 %v968, 16
        %v1055 = vrot.slane %v1053, 4
        %v1056 = vor.u32 %v1055, %v1051
        %v1057 = vrot.slane %v1056, 4
        %v1059 = vshll.u32 %v969, 16
        %v1061 = vrot.slane %v1059, 5
        %v1062 = vsel %vm1014, %v1057, %v1061
        %v1064 = vshrl.u32 %v970, 16
        %v1066 = vrot.slane %v1064, 4
        %v1067 = vshll.u32 %v970, 16
        %v1069 = vrot.slane %v1067, 5
        %v1070 = vor.u32 %v1066, %v1069
        %v1071 = vrot.slane %v1070, 4
        %v1073 = vshll.u32 %v971, 16
        %v1075 = vrot.slane %v1073, 5
        %v1076 = vsel %vm1014, %v1071, %v1075
        %v1077 = vshrl.u32 %v971, 16
        %v1079 = vrot.slane %v1077, 4
        %v1080 = vor.u32 %v1079, %v1075
        %v1081 = vrot.slane %v1080, 4
        %v1083 = vshll.u32 %v972, 16
        %v1085 = vrot.slane %v1083, 5
        %v1086 = vsel %vm1014, %v1081, %v1085
        %v1088 = vshrl.u32 %v973, 16
        %v1090 = vrot.slane %v1088, 4
        %v1091 = vshll.u32 %v973, 16
        %v1093 = vrot.slane %v1091, 5
        %v1094 = vor.u32 %v1090, %v1093
        %v1095 = vrot.slane %v1094, 4
        %v1097 = vshll.u32 %v974, 16
        %v1099 = vrot.slane %v1097, 5
        %v1100 = vsel %vm1014, %v1095, %v1099
        %v1101 = vshrl.u32 %v974, 16
        %v1103 = vrot.slane %v1101, 4
        %v1104 = vor.u32 %v1103, %v1099
        %v1105 = vrot.slane %v1104, 4
        %v1107 = vshll.u32 %v975, 16
        %v1109 = vrot.slane %v1107, 5
        %v1110 = vsel %vm1014, %v1105, %v1109
        %v1112 = vshrl.u32 %v976, 16
        %v1114 = vrot.slane %v1112, 4
        %v1115 = vshll.u32 %v976, 16
        %v1117 = vrot.slane %v1115, 5
        %v1118 = vor.u32 %v1114, %v1117
        %v1119 = vrot.slane %v1118, 4
        %v1121 = vshll.u32 %v977, 16
        %v1123 = vrot.slane %v1121, 5
        %v1124 = vsel %vm1014, %v1119, %v1123
        %v1125 = vshrl.u32 %v977, 16
        %v1127 = vrot.slane %v1125, 4
        %v1128 = vor.u32 %v1127, %v1123
        %v1129 = vrot.slane %v1128, 4
        %v1131 = vshll.u32 %v978, 16
        %v1133 = vrot.slane %v1131, 5
        %v1134 = vsel %vm1014, %v1129, %v1133
        %v1136 = vshrl.u32 %v979, 16
        %v1138 = vrot.slane %v1136, 4
        %v1139 = vshll.u32 %v979, 16
        %v1141 = vrot.slane %v1139, 5
        %v1142 = vor.u32 %v1138, %v1141
        %v1143 = vrot.slane %v1142, 4
        %v1145 = vshll.u32 %v980, 16
        %v1147 = vrot.slane %v1145, 5
        %v1148 = vsel %vm1014, %v1143, %v1147
        %v1149 = vshrl.u32 %v980, 16
        %v1151 = vrot.slane %v1149, 4
        %v1152 = vor.u32 %v1151, %v1147
        %v1153 = vrot.slane %v1152, 4
        %v1155 = vshll.u32 %v981, 16
        %v1157 = vrot.slane %v1155, 5
        %v1158 = vsel %vm1014, %v1153, %v1157
        %v1160 = vshrl.u32 %v982, 16
        %v1162 = vrot.slane %v1160, 4
        %v1163 = vshll.u32 %v982, 16
        %v1165 = vrot.slane %v1163, 5
        %v1166 = vor.u32 %v1162, %v1165
        %v1167 = vrot.slane %v1166, 4
        %v1169 = vshll.u32 %v983, 16
        %v1171 = vrot.slane %v1169, 5
        %v1172 = vsel %vm1014, %v1167, %v1171
        %v1173 = vshrl.u32 %v983, 16
        %v1175 = vrot.slane %v1173, 4
        %v1176 = vor.u32 %v1175, %v1171
        %v1177 = vrot.slane %v1176, 4
        %v1179 = vshll.u32 %v984, 16
        %v1181 = vrot.slane %v1179, 5
        %v1182 = vsel %vm1014, %v1177, %v1181
        %v1184 = vshrl.u32 %v985, 16
        %v1186 = vrot.slane %v1184, 4
        %v1187 = vshll.u32 %v985, 16
        %v1189 = vrot.slane %v1187, 5
        %v1190 = vor.u32 %v1186, %v1189
        %v1191 = vrot.slane %v1190, 4
        %v1193 = vshll.u32 %v986, 16
        %v1195 = vrot.slane %v1193, 5
        %v1196 = vsel %vm1014, %v1191, %v1195
        %v1197 = vshrl.u32 %v986, 16
        %v1199 = vrot.slane %v1197, 4
        %v1200 = vor.u32 %v1199, %v1195
        %v1201 = vrot.slane %v1200, 4
        %v1203 = vshll.u32 %v987, 16
        %v1205 = vrot.slane %v1203, 5
        %v1206 = vsel %vm1014, %v1201, %v1205
        %v1208 = vshrl.u32 %v988, 16
        %v1210 = vrot.slane %v1208, 4
        %v1211 = vshll.u32 %v988, 16
        %v1213 = vrot.slane %v1211, 5
        %v1214 = vor.u32 %v1210, %v1213
        %v1215 = vrot.slane %v1214, 4
        %v1217 = vshll.u32 %v989, 16
        %v1219 = vrot.slane %v1217, 5
        %v1220 = vsel %vm1014, %v1215, %v1219
        %v1221 = vshrl.u32 %v989, 16
        %v1223 = vrot.slane %v1221, 4
        %v1224 = vor.u32 %v1223, %v1219
        %v1225 = vrot.slane %v1224, 4
        %v1227 = vshll.u32 %v990, 16
        %v1229 = vrot.slane %v1227, 5
        %v1230 = vsel %vm1014, %v1225, %v1229
        %v1232 = vshrl.u32 %v991, 16
        %v1234 = vrot.slane %v1232, 4
        %v1235 = vshll.u32 %v991, 16
        %v1237 = vrot.slane %v1235, 5
        %v1238 = vor.u32 %v1234, %v1237
        %v1239 = vrot.slane %v1238, 4
        %v1241 = vshll.u32 %v992, 16
        %v1243 = vrot.slane %v1241, 5
        %v1244 = vsel %vm1014, %v1239, %v1243
        %v1245 = vshrl.u32 %v992, 16
        %v1247 = vrot.slane %v1245, 4
        %v1248 = vor.u32 %v1247, %v1243
        %v1249 = vrot.slane %v1248, 4
        %v1251 = vshll.u32 %v993, 16
        %v1253 = vrot.slane %v1251, 5
        %v1254 = vsel %vm1014, %v1249, %v1253
        %v1256 = vshrl.u32 %v994, 16
        %v1258 = vrot.slane %v1256, 4
        %v1259 = vshll.u32 %v994, 16
        %v1261 = vrot.slane %v1259, 5
        %v1262 = vor.u32 %v1258, %v1261
        %v1263 = vrot.slane %v1262, 4
        %v1265 = vshll.u32 %v995, 16
        %v1267 = vrot.slane %v1265, 5
        %v1268 = vsel %vm1014, %v1263, %v1267
        %v1269 = vshrl.u32 %v995, 16
        %v1271 = vrot.slane %v1269, 4
        %v1272 = vor.u32 %v1271, %v1267
        %v1273 = vrot.slane %v1272, 4
        %v1275 = vshll.u32 %v996, 16
        %v1277 = vrot.slane %v1275, 5
        %v1278 = vsel %vm1014, %v1273, %v1277
        %v1280 = vshrl.u32 %v997, 16
        %v1282 = vrot.slane %v1280, 4
        %v1283 = vshll.u32 %v997, 16
        %v1285 = vrot.slane %v1283, 5
        %v1286 = vor.u32 %v1282, %v1285
        %v1287 = vrot.slane %v1286, 4
        %v1289 = vshll.u32 %v998, 16
        %v1291 = vrot.slane %v1289, 5
        %v1292 = vsel %vm1014, %v1287, %v1291
        %v1293 = vshrl.u32 %v998, 16
        %v1295 = vrot.slane %v1293, 4
        %v1296 = vor.u32 %v1295, %v1291
        %v1297 = vrot.slane %v1296, 4
        %v1299 = vshll.u32 %v999, 16
        %v1301 = vrot.slane %v1299, 5
        %v1302 = vsel %vm1014, %v1297, %v1301
        %v1304 = vshrl.u32 %v1000, 16
        %v1306 = vrot.slane %v1304, 4
        %v1307 = vshll.u32 %v1000, 16
        %v1309 = vrot.slane %v1307, 5
        %v1310 = vor.u32 %v1306, %v1309
        %v1311 = vrot.slane %v1310, 4
        %v1313 = vshll.u32 %v1001, 16
        %v1315 = vrot.slane %v1313, 5
        %v1316 = vsel %vm1014, %v1311, %v1315
        %v1317 = vshrl.u32 %v1001, 16
        %v1319 = vrot.slane %v1317, 4
        %v1320 = vor.u32 %v1319, %v1315
        %v1321 = vrot.slane %v1320, 4
        %v1323 = vshll.u32 %v1002, 16
        %v1325 = vrot.slane %v1323, 5
        %v1326 = vsel %vm1014, %v1321, %v1325
        %v1328 = vshrl.u32 %v1003, 16
        %v1330 = vrot.slane %v1328, 4
        %v1331 = vshll.u32 %v1003, 16
        %v1333 = vrot.slane %v1331, 5
        %v1334 = vor.u32 %v1330, %v1333
        %v1335 = vrot.slane %v1334, 4
        %v1337 = vshll.u32 %v1004, 16
        %v1339 = vrot.slane %v1337, 5
        %v1340 = vsel %vm1014, %v1335, %v1339
        %v1341 = vshrl.u32 %v1004, 16
        %v1343 = vrot.slane %v1341, 4
        %v1344 = vor.u32 %v1343, %v1339
        %v1345 = vrot.slane %v1344, 4
        %v1347 = vshll.u32 %v1005, 16
        %v1349 = vrot.slane %v1347, 5
        %v1350 = vsel %vm1014, %v1345, %v1349
        %v1352 = vshrl.u32 %v1006, 16
        %v1354 = vrot.slane %v1352, 4
        %v1355 = vshll.u32 %v1006, 16
        %v1357 = vrot.slane %v1355, 5
        %v1358 = vor.u32 %v1354, %v1357
        %v1359 = vrot.slane %v1358, 4
        %v1361 = vshll.u32 %v1007, 16
        %v1363 = vrot.slane %v1361, 5
        %v1364 = vsel %vm1014, %v1359, %v1363
        %v1365 = vshrl.u32 %v1007, 16
        %v1367 = vrot.slane %v1365, 4
        %v1368 = vor.u32 %v1367, %v1363
        %v1369 = vrot.slane %v1368, 4
        %v1371 = vshll.u32 %v1008, 16
        %v1373 = vrot.slane %v1371, 5
        %v1374 = vsel %vm1014, %v1369, %v1373
        %v1376 = vshrl.u32 %v1009, 16
        %v1378 = vrot.slane %v1376, 4
        %v1379 = vshll.u32 %v1009, 16
        %v1381 = vrot.slane %v1379, 5
        %v1382 = vor.u32 %v1378, %v1381
        %v1383 = vrot.slane %v1382, 4
        %v1385 = vshll.u32 %v1010, 16
        %v1387 = vrot.slane %v1385, 5
        %v1388 = vsel %vm1014, %v1383, %v1387
        %v1389 = vshrl.u32 %v1010, 16
        %v1391 = vrot.slane %v1389, 4
        %v1392 = vor.u32 %v1391, %v1387
        %v1393 = vrot.slane %v1392, 4
        %v1395 = vshll.u32 %v1011, 16
        %v1397 = vrot.slane %v1395, 5
        %v1398 = vsel %vm1014, %v1393, %v1397
        %v1399 = vunpack.c.l.b16 %v1028
        %v1400 = vunpack.c.l.b16 %v1038
        %v1401 = vunpack.c.l.b16 %v1052
        %v1402 = vunpack.c.l.b16 %v1062
        %v1403 = vunpack.c.l.b16 %v1076
        %v1404 = vunpack.c.l.b16 %v1086
        %v1405 = vunpack.c.l.b16 %v1100
        %v1406 = vunpack.c.l.b16 %v1110
        %v1407 = vunpack.c.l.b16 %v1124
        %v1408 = vunpack.c.l.b16 %v1134
        %v1409 = vunpack.c.l.b16 %v1148
        %v1410 = vunpack.c.l.b16 %v1158
        %v1411 = vunpack.c.l.b16 %v1172
        %v1412 = vunpack.c.l.b16 %v1182
        %v1413 = vunpack.c.l.b16 %v1196
        %v1414 = vunpack.c.l.b16 %v1206
        %v1415 = vunpack.c.l.b16 %v1220
        %v1416 = vunpack.c.l.b16 %v1230
        %v1417 = vunpack.c.l.b16 %v1244
        %v1418 = vunpack.c.l.b16 %v1254
        %v1419 = vunpack.c.l.b16 %v1268
        %v1420 = vunpack.c.l.b16 %v1278
        %v1421 = vunpack.c.l.b16 %v1292
        %v1422 = vunpack.c.l.b16 %v1302
        %v1423 = vunpack.c.l.b16 %v1316
        %v1424 = vunpack.c.l.b16 %v1326
        %v1425 = vunpack.c.l.b16 %v1340
        %v1426 = vunpack.c.l.b16 %v1350
        %v1427 = vunpack.c.l.b16 %v1364
        %v1428 = vunpack.c.l.b16 %v1374
        %v1429 = vunpack.c.l.b16 %v1388
        %v1430 = vunpack.c.l.b16 %v1398
        %v1431 = vpack.c.b16 %v1400, %v1399
        %v1432 = vpack.c.b16 %v1402, %v1401
        %v1433 = vpack.c.b16 %v1404, %v1403
        %v1434 = vpack.c.b16 %v1406, %v1405
        %v1435 = vpack.c.b16 %v1408, %v1407
        %v1436 = vpack.c.b16 %v1410, %v1409
        %v1437 = vpack.c.b16 %v1412, %v1411
        %v1438 = vpack.c.b16 %v1414, %v1413
        %v1439 = vpack.c.b16 %v1416, %v1415
        %v1440 = vpack.c.b16 %v1418, %v1417
        %v1441 = vpack.c.b16 %v1420, %v1419
        %v1442 = vpack.c.b16 %v1422, %v1421
        %v1443 = vpack.c.b16 %v1424, %v1423
        %v1444 = vpack.c.b16 %v1426, %v1425
        %v1445 = vpack.c.b16 %v1428, %v1427
        %v1446 = vpack.c.b16 %v1430, %v1429
        %1463 = vst [vmem:[#allocation4 + $0x8] sm:$0xff] %v1431
        %1464 = vst [vmem:[#allocation4 + $0x50] sm:$0xff] %v1432
        %1465 = vst [vmem:[#allocation4 + $0x98] sm:$0xff] %v1433
        %1466 = vst [vmem:[#allocation4 + $0xe0] sm:$0xff] %v1434
        %1467 = vst [vmem:[#allocation4 + $0x128] sm:$0xff] %v1435
        %1468 = vst [vmem:[#allocation4 + $0x170] sm:$0xff] %v1436
        %1469 = vst [vmem:[#allocation4 + $0x1b8] sm:$0xff] %v1437
        %1470 = vst [vmem:[#allocation4 + $0x200] sm:$0xff] %v1438
        %1471 = vst [vmem:[#allocation4 + $0x248] sm:$0xff] %v1439
        %1472 = vst [vmem:[#allocation4 + $0x290] sm:$0xff] %v1440
        %1473 = vst [vmem:[#allocation4 + $0x2d8] sm:$0xff] %v1441
        %1474 = vst [vmem:[#allocation4 + $0x320] sm:$0xff] %v1442
        %1475 = vst [vmem:[#allocation4 + $0x368] sm:$0xff] %v1443
        %1476 = vst [vmem:[#allocation4 + $0x3b0] sm:$0xff] %v1444
        %1477 = vst [vmem:[#allocation4 + $0x3f8] sm:$0xff] %v1445
        %1478 = vst [vmem:[#allocation4 + $0x440] sm:$0xff] %v1446
        %v1479 = vld [vmem:[#allocation2] sm:$0xe]
        %v1480 = vld [vmem:[#allocation2 + $0x4] sm:$0xf]
        %v1481 = vld [vmem:[#allocation2 + $0x8] sm:$0x1]
        %v1482 = vld [vmem:[#allocation2 + $0xc] sm:$0xe]
        %v1483 = vld [vmem:[#allocation2 + $0x10] sm:$0xf]
        %v1484 = vld [vmem:[#allocation2 + $0x14] sm:$0x1]
        %v1485 = vld [vmem:[#allocation2 + $0x18] sm:$0xe]
        %v1486 = vld [vmem:[#allocation2 + $0x1c] sm:$0xf]
        %v1487 = vld [vmem:[#allocation2 + $0x20] sm:$0x1]
        %v1488 = vld [vmem:[#allocation2 + $0x24] sm:$0xe]
        %v1489 = vld [vmem:[#allocation2 + $0x28] sm:$0xf]
        %v1490 = vld [vmem:[#allocation2 + $0x2c] sm:$0x1]
        %v1491 = vld [vmem:[#allocation2 + $0x30] sm:$0xe]
        %v1492 = vld [vmem:[#allocation2 + $0x34] sm:$0xf]
        %v1493 = vld [vmem:[#allocation2 + $0x38] sm:$0x1]
        %v1494 = vld [vmem:[#allocation2 + $0x3c] sm:$0xe]
        %v1495 = vld [vmem:[#allocation2 + $0x40] sm:$0xf]
        %v1496 = vld [vmem:[#allocation2 + $0x44] sm:$0x1]
        %v1497 = vld [vmem:[#allocation2 + $0x48] sm:$0xe]
        %v1498 = vld [vmem:[#allocation2 + $0x4c] sm:$0xf]
        %v1499 = vld [vmem:[#allocation2 + $0x50] sm:$0x1]
        %v1500 = vld [vmem:[#allocation2 + $0x54] sm:$0xe]
        %v1501 = vld [vmem:[#allocation2 + $0x58] sm:$0xf]
        %v1502 = vld [vmem:[#allocation2 + $0x5c] sm:$0x1]
        %v1503 = vld [vmem:[#allocation2 + $0x60] sm:$0xe]
        %v1504 = vld [vmem:[#allocation2 + $0x64] sm:$0xf]
        %v1505 = vld [vmem:[#allocation2 + $0x68] sm:$0x1]
        %v1506 = vld [vmem:[#allocation2 + $0x6c] sm:$0xe]
        %v1507 = vld [vmem:[#allocation2 + $0x70] sm:$0xf]
        %v1508 = vld [vmem:[#allocation2 + $0x74] sm:$0x1]
        %v1509 = vld [vmem:[#allocation2 + $0x78] sm:$0xe]
        %v1510 = vld [vmem:[#allocation2 + $0x7c] sm:$0xf]
        %v1511 = vld [vmem:[#allocation2 + $0x80] sm:$0x1]
        %v1512 = vld [vmem:[#allocation2 + $0x84] sm:$0xe]
        %v1513 = vld [vmem:[#allocation2 + $0x88] sm:$0xf]
        %v1514 = vld [vmem:[#allocation2 + $0x8c] sm:$0x1]
        %v1515 = vld [vmem:[#allocation2 + $0x90] sm:$0xe]
        %v1516 = vld [vmem:[#allocation2 + $0x94] sm:$0xf]
        %v1517 = vld [vmem:[#allocation2 + $0x98] sm:$0x1]
        %v1518 = vld [vmem:[#allocation2 + $0x9c] sm:$0xe]
        %v1519 = vld [vmem:[#allocation2 + $0xa0] sm:$0xf]
        %v1520 = vld [vmem:[#allocation2 + $0xa4] sm:$0x1]
        %v1521 = vld [vmem:[#allocation2 + $0xa8] sm:$0xe]
        %v1522 = vld [vmem:[#allocation2 + $0xac] sm:$0xf]
        %v1523 = vld [vmem:[#allocation2 + $0xb0] sm:$0x1]
        %v1524 = vld [vmem:[#allocation2 + $0xb4] sm:$0xe]
        %v1525 = vld [vmem:[#allocation2 + $0xb8] sm:$0xf]
        %v1526 = vld [vmem:[#allocation2 + $0xbc] sm:$0x1]
        %vm1575 = vcmask 1042432
        %vm1576 = vcmask 1046532
        %vm1577 = vmor %vm1575, %vm1576
        %v1578 = vrot.slane %v1479, 5
        %v1579 = vrot.slane %v1578, 4
        %v1580 = vrot.slane %v1480, 5
        %v1581 = vsel %vm1577, %v1579, %v1580
        %v1582 = vrot.slane %v1580, 4
        %v1583 = vrot.slane %v1481, 5
        %v1584 = vsel %vm1577, %v1582, %v1583
        %v1585 = vrot.slane %v1482, 5
        %v1586 = vrot.slane %v1585, 4
        %v1587 = vrot.slane %v1483, 5
        %v1588 = vsel %vm1577, %v1586, %v1587
        %v1589 = vrot.slane %v1587, 4
        %v1590 = vrot.slane %v1484, 5
        %v1591 = vsel %vm1577, %v1589, %v1590
        %v1592 = vrot.slane %v1485, 5
        %v1593 = vrot.slane %v1592, 4
        %v1594 = vrot.slane %v1486, 5
        %v1595 = vsel %vm1577, %v1593, %v1594
        %v1596 = vrot.slane %v1594, 4
        %v1597 = vrot.slane %v1487, 5
        %v1598 = vsel %vm1577, %v1596, %v1597
        %v1599 = vrot.slane %v1488, 5
        %v1600 = vrot.slane %v1599, 4
        %v1601 = vrot.slane %v1489, 5
        %v1602 = vsel %vm1577, %v1600, %v1601
        %v1603 = vrot.slane %v1601, 4
        %v1604 = vrot.slane %v1490, 5
        %v1605 = vsel %vm1577, %v1603, %v1604
        %v1606 = vrot.slane %v1491, 5
        %v1607 = vrot.slane %v1606, 4
        %v1608 = vrot.slane %v1492, 5
        %v1609 = vsel %vm1577, %v1607, %v1608
        %v1610 = vrot.slane %v1608, 4
        %v1611 = vrot.slane %v1493, 5
        %v1612 = vsel %vm1577, %v1610, %v1611
        %v1613 = vrot.slane %v1494, 5
        %v1614 = vrot.slane %v1613, 4
        %v1615 = vrot.slane %v1495, 5
        %v1616 = vsel %vm1577, %v1614, %v1615
        %v1617 = vrot.slane %v1615, 4
        %v1618 = vrot.slane %v1496, 5
        %v1619 = vsel %vm1577, %v1617, %v1618
        %v1620 = vrot.slane %v1497, 5
        %v1621 = vrot.slane %v1620, 4
        %v1622 = vrot.slane %v1498, 5
        %v1623 = vsel %vm1577, %v1621, %v1622
        %v1624 = vrot.slane %v1622, 4
        %v1625 = vrot.slane %v1499, 5
        %v1626 = vsel %vm1577, %v1624, %v1625
        %v1627 = vrot.slane %v1500, 5
        %v1628 = vrot.slane %v1627, 4
        %v1629 = vrot.slane %v1501, 5
        %v1630 = vsel %vm1577, %v1628, %v1629
        %v1631 = vrot.slane %v1629, 4
        %v1632 = vrot.slane %v1502, 5
        %v1633 = vsel %vm1577, %v1631, %v1632
        %v1634 = vrot.slane %v1503, 5
        %v1635 = vrot.slane %v1634, 4
        %v1636 = vrot.slane %v1504, 5
        %v1637 = vsel %vm1577, %v1635, %v1636
        %v1638 = vrot.slane %v1636, 4
        %v1639 = vrot.slane %v1505, 5
        %v1640 = vsel %vm1577, %v1638, %v1639
        %v1641 = vrot.slane %v1506, 5
        %v1642 = vrot.slane %v1641, 4
        %v1643 = vrot.slane %v1507, 5
        %v1644 = vsel %vm1577, %v1642, %v1643
        %v1645 = vrot.slane %v1643, 4
        %v1646 = vrot.slane %v1508, 5
        %v1647 = vsel %vm1577, %v1645, %v1646
        %v1648 = vrot.slane %v1509, 5
        %v1649 = vrot.slane %v1648, 4
        %v1650 = vrot.slane %v1510, 5
        %v1651 = vsel %vm1577, %v1649, %v1650
        %v1652 = vrot.slane %v1650, 4
        %v1653 = vrot.slane %v1511, 5
        %v1654 = vsel %vm1577, %v1652, %v1653
        %v1655 = vrot.slane %v1512, 5
        %v1656 = vrot.slane %v1655, 4
        %v1657 = vrot.slane %v1513, 5
        %v1658 = vsel %vm1577, %v1656, %v1657
        %v1659 = vrot.slane %v1657, 4
        %v1660 = vrot.slane %v1514, 5
        %v1661 = vsel %vm1577, %v1659, %v1660
        %v1662 = vrot.slane %v1515, 5
        %v1663 = vrot.slane %v1662, 4
        %v1664 = vrot.slane %v1516, 5
        %v1665 = vsel %vm1577, %v1663, %v1664
        %v1666 = vrot.slane %v1664, 4
        %v1667 = vrot.slane %v1517, 5
        %v1668 = vsel %vm1577, %v1666, %v1667
        %v1669 = vrot.slane %v1518, 5
        %v1670 = vrot.slane %v1669, 4
        %v1671 = vrot.slane %v1519, 5
        %v1672 = vsel %vm1577, %v1670, %v1671
        %v1673 = vrot.slane %v1671, 4
        %v1674 = vrot.slane %v1520, 5
        %v1675 = vsel %vm1577, %v1673, %v1674
        %v1676 = vrot.slane %v1521, 5
        %v1677 = vrot.slane %v1676, 4
        %v1678 = vrot.slane %v1522, 5
        %v1679 = vsel %vm1577, %v1677, %v1678
        %v1680 = vrot.slane %v1678, 4
        %v1681 = vrot.slane %v1523, 5
        %v1682 = vsel %vm1577, %v1680, %v1681
        %v1683 = vrot.slane %v1524, 5
        %v1684 = vrot.slane %v1683, 4
        %v1685 = vrot.slane %v1525, 5
        %v1686 = vsel %vm1577, %v1684, %v1685
        %v1687 = vrot.slane %v1685, 4
        %v1688 = vrot.slane %v1526, 5
        %v1689 = vsel %vm1577, %v1687, %v1688
        %v1690 = vunpack.c.l.b16 %v1581
        %v1691 = vunpack.c.l.b16 %v1584
        %v1692 = vunpack.c.l.b16 %v1588
        %v1693 = vunpack.c.l.b16 %v1591
        %v1694 = vunpack.c.l.b16 %v1595
        %v1695 = vunpack.c.l.b16 %v1598
        %v1696 = vunpack.c.l.b16 %v1602
        %v1697 = vunpack.c.l.b16 %v1605
        %v1698 = vunpack.c.l.b16 %v1609
        %v1699 = vunpack.c.l.b16 %v1612
        %v1700 = vunpack.c.l.b16 %v1616
        %v1701 = vunpack.c.l.b16 %v1619
        %v1702 = vunpack.c.l.b16 %v1623
        %v1703 = vunpack.c.l.b16 %v1626
        %v1704 = vunpack.c.l.b16 %v1630
        %v1705 = vunpack.c.l.b16 %v1633
        %v1706 = vunpack.c.l.b16 %v1637
        %v1707 = vunpack.c.l.b16 %v1640
        %v1708 = vunpack.c.l.b16 %v1644
        %v1709 = vunpack.c.l.b16 %v1647
        %v1710 = vunpack.c.l.b16 %v1651
        %v1711 = vunpack.c.l.b16 %v1654
        %v1712 = vunpack.c.l.b16 %v1658
        %v1713 = vunpack.c.l.b16 %v1661
        %v1714 = vunpack.c.l.b16 %v1665
        %v1715 = vunpack.c.l.b16 %v1668
        %v1716 = vunpack.c.l.b16 %v1672
        %v1717 = vunpack.c.l.b16 %v1675
        %v1718 = vunpack.c.l.b16 %v1679
        %v1719 = vunpack.c.l.b16 %v1682
        %v1720 = vunpack.c.l.b16 %v1686
        %v1721 = vunpack.c.l.b16 %v1689
        %v1722 = vpack.c.b16 %v1691, %v1690
        %v1723 = vpack.c.b16 %v1693, %v1692
        %v1724 = vpack.c.b16 %v1695, %v1694
        %v1725 = vpack.c.b16 %v1697, %v1696
        %v1726 = vpack.c.b16 %v1699, %v1698
        %v1727 = vpack.c.b16 %v1701, %v1700
        %v1728 = vpack.c.b16 %v1703, %v1702
        %v1729 = vpack.c.b16 %v1705, %v1704
        %v1730 = vpack.c.b16 %v1707, %v1706
        %v1731 = vpack.c.b16 %v1709, %v1708
        %v1732 = vpack.c.b16 %v1711, %v1710
        %v1733 = vpack.c.b16 %v1713, %v1712
        %v1734 = vpack.c.b16 %v1715, %v1714
        %v1735 = vpack.c.b16 %v1717, %v1716
        %v1736 = vpack.c.b16 %v1719, %v1718
        %v1737 = vpack.c.b16 %v1721, %v1720
        %1754 = vst [vmem:[#allocation4 + $0x10] sm:$0xff] %v1722
        %1755 = vst [vmem:[#allocation4 + $0x58] sm:$0xff] %v1723
        %1756 = vst [vmem:[#allocation4 + $0xa0] sm:$0xff] %v1724
        %1757 = vst [vmem:[#allocation4 + $0xe8] sm:$0xff] %v1725
        %1758 = vst [vmem:[#allocation4 + $0x130] sm:$0xff] %v1726
        %1759 = vst [vmem:[#allocation4 + $0x178] sm:$0xff] %v1727
        %1760 = vst [vmem:[#allocation4 + $0x1c0] sm:$0xff] %v1728
        %1761 = vst [vmem:[#allocation4 + $0x208] sm:$0xff] %v1729
        %1762 = vst [vmem:[#allocation4 + $0x250] sm:$0xff] %v1730
        %1763 = vst [vmem:[#allocation4 + $0x298] sm:$0xff] %v1731
        %1764 = vst [vmem:[#allocation4 + $0x2e0] sm:$0xff] %v1732
        %1765 = vst [vmem:[#allocation4 + $0x328] sm:$0xff] %v1733
        %1766 = vst [vmem:[#allocation4 + $0x370] sm:$0xff] %v1734
        %1767 = vst [vmem:[#allocation4 + $0x3b8] sm:$0xff] %v1735
        %1768 = vst [vmem:[#allocation4 + $0x400] sm:$0xff] %v1736
        %1769 = vst [vmem:[#allocation4 + $0x448] sm:$0xff] %v1737
        %v1770 = vld [vmem:[%s702] sm:$0xf]
        %v1771 = vld [vmem:[%s702 + $0x4] sm:$0xf]
        %v1772 = vld [vmem:[%s702 + $0xc] sm:$0xf]
        %v1773 = vld [vmem:[%s702 + $0x10] sm:$0xf]
        %v1774 = vld [vmem:[%s702 + $0x18] sm:$0xf]
        %v1775 = vld [vmem:[%s702 + $0x1c] sm:$0xf]
        %v1776 = vld [vmem:[%s702 + $0x24] sm:$0xf]
        %v1777 = vld [vmem:[%s702 + $0x28] sm:$0xf]
        %v1778 = vld [vmem:[%s702 + $0x30] sm:$0xf]
        %v1779 = vld [vmem:[%s702 + $0x34] sm:$0xf]
        %v1780 = vld [vmem:[%s702 + $0x3c] sm:$0xf]
        %v1781 = vld [vmem:[%s702 + $0x40] sm:$0xf]
        %v1782 = vld [vmem:[%s702 + $0x48] sm:$0xf]
        %v1783 = vld [vmem:[%s702 + $0x4c] sm:$0xf]
        %v1784 = vld [vmem:[%s702 + $0x54] sm:$0xf]
        %v1785 = vld [vmem:[%s702 + $0x58] sm:$0xf]
        %v1786 = vld [vmem:[%s702 + $0x60] sm:$0xf]
        %v1787 = vld [vmem:[%s702 + $0x64] sm:$0xf]
        %v1788 = vld [vmem:[%s702 + $0x6c] sm:$0xf]
        %v1789 = vld [vmem:[%s702 + $0x70] sm:$0xf]
        %v1790 = vld [vmem:[%s702 + $0x78] sm:$0xf]
        %v1791 = vld [vmem:[%s702 + $0x7c] sm:$0xf]
        %v1792 = vld [vmem:[%s702 + $0x84] sm:$0xf]
        %v1793 = vld [vmem:[%s702 + $0x88] sm:$0xf]
        %v1794 = vld [vmem:[%s702 + $0x90] sm:$0xf]
        %v1795 = vld [vmem:[%s702 + $0x94] sm:$0xf]
        %v1796 = vld [vmem:[%s702 + $0x9c] sm:$0xf]
        %v1797 = vld [vmem:[%s702 + $0xa0] sm:$0xf]
        %v1798 = vld [vmem:[%s702 + $0xa8] sm:$0xf]
        %v1799 = vld [vmem:[%s702 + $0xac] sm:$0xf]
        %v1800 = vld [vmem:[%s702 + $0xb4] sm:$0xf]
        %v1801 = vld [vmem:[%s702 + $0xb8] sm:$0xf]
        %v1834 = vunpack.c.l.b16 %v1770
        %v1835 = vunpack.c.l.b16 %v1771
        %v1836 = vunpack.c.l.b16 %v1772
        %v1837 = vunpack.c.l.b16 %v1773
        %v1838 = vunpack.c.l.b16 %v1774
        %v1839 = vunpack.c.l.b16 %v1775
        %v1840 = vunpack.c.l.b16 %v1776
        %v1841 = vunpack.c.l.b16 %v1777
        %v1842 = vunpack.c.l.b16 %v1778
        %v1843 = vunpack.c.l.b16 %v1779
        %v1844 = vunpack.c.l.b16 %v1780
        %v1845 = vunpack.c.l.b16 %v1781
        %v1846 = vunpack.c.l.b16 %v1782
        %v1847 = vunpack.c.l.b16 %v1783
        %v1848 = vunpack.c.l.b16 %v1784
        %v1849 = vunpack.c.l.b16 %v1785
        %v1850 = vunpack.c.l.b16 %v1786
        %v1851 = vunpack.c.l.b16 %v1787
        %v1852 = vunpack.c.l.b16 %v1788
        %v1853 = vunpack.c.l.b16 %v1789
        %v1854 = vunpack.c.l.b16 %v1790
        %v1855 = vunpack.c.l.b16 %v1791
        %v1856 = vunpack.c.l.b16 %v1792
        %v1857 = vunpack.c.l.b16 %v1793
        %v1858 = vunpack.c.l.b16 %v1794
        %v1859 = vunpack.c.l.b16 %v1795
        %v1860 = vunpack.c.l.b16 %v1796
        %v1861 = vunpack.c.l.b16 %v1797
        %v1862 = vunpack.c.l.b16 %v1798
        %v1863 = vunpack.c.l.b16 %v1799
        %v1864 = vunpack.c.l.b16 %v1800
        %v1865 = vunpack.c.l.b16 %v1801
        %v1866 = vpack.c.b16 %v1835, %v1834
        %v1867 = vpack.c.b16 %v1837, %v1836
        %v1868 = vpack.c.b16 %v1839, %v1838
        %v1869 = vpack.c.b16 %v1841, %v1840
        %v1870 = vpack.c.b16 %v1843, %v1842
        %v1871 = vpack.c.b16 %v1845, %v1844
        %v1872 = vpack.c.b16 %v1847, %v1846
        %v1873 = vpack.c.b16 %v1849, %v1848
        %v1874 = vpack.c.b16 %v1851, %v1850
        %v1875 = vpack.c.b16 %v1853, %v1852
        %v1876 = vpack.c.b16 %v1855, %v1854
        %v1877 = vpack.c.b16 %v1857, %v1856
        %v1878 = vpack.c.b16 %v1859, %v1858
        %v1879 = vpack.c.b16 %v1861, %v1860
        %v1880 = vpack.c.b16 %v1863, %v1862
        %v1881 = vpack.c.b16 %v1865, %v1864
        %1898 = vst [vmem:[#allocation4 + $0x18] sm:$0xff] %v1866
        %1899 = vst [vmem:[#allocation4 + $0x60] sm:$0xff] %v1867
        %1900 = vst [vmem:[#allocation4 + $0xa8] sm:$0xff] %v1868
        %1901 = vst [vmem:[#allocation4 + $0xf0] sm:$0xff] %v1869
        %1902 = vst [vmem:[#allocation4 + $0x138] sm:$0xff] %v1870
        %1903 = vst [vmem:[#allocation4 + $0x180] sm:$0xff] %v1871
        %1904 = vst [vmem:[#allocation4 + $0x1c8] sm:$0xff] %v1872
        %1905 = vst [vmem:[#allocation4 + $0x210] sm:$0xff] %v1873
        %1906 = vst [vmem:[#allocation4 + $0x258] sm:$0xff] %v1874
        %1907 = vst [vmem:[#allocation4 + $0x2a0] sm:$0xff] %v1875
        %1908 = vst [vmem:[#allocation4 + $0x2e8] sm:$0xff] %v1876
        %1909 = vst [vmem:[#allocation4 + $0x330] sm:$0xff] %v1877
        %1910 = vst [vmem:[#allocation4 + $0x378] sm:$0xff] %v1878
        %1911 = vst [vmem:[#allocation4 + $0x3c0] sm:$0xff] %v1879
        %1912 = vst [vmem:[#allocation4 + $0x408] sm:$0xff] %v1880
        %1913 = vst [vmem:[#allocation4 + $0x450] sm:$0xff] %v1881
        %v1914 = vld [vmem:[%s702] sm:$0xf]
        %v1915 = vld [vmem:[%s702 + $0x4] sm:$0xf]
        %v1916 = vld [vmem:[%s702 + $0x8] sm:$0x1]
        %v1917 = vld [vmem:[%s702 + $0xc] sm:$0xf]
        %v1918 = vld [vmem:[%s702 + $0x10] sm:$0xf]
        %v1919 = vld [vmem:[%s702 + $0x14] sm:$0x1]
        %v1920 = vld [vmem:[%s702 + $0x18] sm:$0xf]
        %v1921 = vld [vmem:[%s702 + $0x1c] sm:$0xf]
        %v1922 = vld [vmem:[%s702 + $0x20] sm:$0x1]
        %v1923 = vld [vmem:[%s702 + $0x24] sm:$0xf]
        %v1924 = vld [vmem:[%s702 + $0x28] sm:$0xf]
        %v1925 = vld [vmem:[%s702 + $0x2c] sm:$0x1]
        %v1926 = vld [vmem:[%s702 + $0x30] sm:$0xf]
        %v1927 = vld [vmem:[%s702 + $0x34] sm:$0xf]
        %v1928 = vld [vmem:[%s702 + $0x38] sm:$0x1]
        %v1929 = vld [vmem:[%s702 + $0x3c] sm:$0xf]
        %v1930 = vld [vmem:[%s702 + $0x40] sm:$0xf]
        %v1931 = vld [vmem:[%s702 + $0x44] sm:$0x1]
        %v1932 = vld [vmem:[%s702 + $0x48] sm:$0xf]
        %v1933 = vld [vmem:[%s702 + $0x4c] sm:$0xf]
        %v1934 = vld [vmem:[%s702 + $0x50] sm:$0x1]
        %v1935 = vld [vmem:[%s702 + $0x54] sm:$0xf]
        %v1936 = vld [vmem:[%s702 + $0x58] sm:$0xf]
        %v1937 = vld [vmem:[%s702 + $0x5c] sm:$0x1]
        %v1938 = vld [vmem:[%s702 + $0x60] sm:$0xf]
        %v1939 = vld [vmem:[%s702 + $0x64] sm:$0xf]
        %v1940 = vld [vmem:[%s702 + $0x68] sm:$0x1]
        %v1941 = vld [vmem:[%s702 + $0x6c] sm:$0xf]
        %v1942 = vld [vmem:[%s702 + $0x70] sm:$0xf]
        %v1943 = vld [vmem:[%s702 + $0x74] sm:$0x1]
        %v1944 = vld [vmem:[%s702 + $0x78] sm:$0xf]
        %v1945 = vld [vmem:[%s702 + $0x7c] sm:$0xf]
        %v1946 = vld [vmem:[%s702 + $0x80] sm:$0x1]
        %v1947 = vld [vmem:[%s702 + $0x84] sm:$0xf]
        %v1948 = vld [vmem:[%s702 + $0x88] sm:$0xf]
        %v1949 = vld [vmem:[%s702 + $0x8c] sm:$0x1]
        %v1950 = vld [vmem:[%s702 + $0x90] sm:$0xf]
        %v1951 = vld [vmem:[%s702 + $0x94] sm:$0xf]
        %v1952 = vld [vmem:[%s702 + $0x98] sm:$0x1]
        %v1953 = vld [vmem:[%s702 + $0x9c] sm:$0xf]
        %v1954 = vld [vmem:[%s702 + $0xa0] sm:$0xf]
        %v1955 = vld [vmem:[%s702 + $0xa4] sm:$0x1]
        %v1956 = vld [vmem:[%s702 + $0xa8] sm:$0xf]
        %v1957 = vld [vmem:[%s702 + $0xac] sm:$0xf]
        %v1958 = vld [vmem:[%s702 + $0xb0] sm:$0x1]
        %v1959 = vld [vmem:[%s702 + $0xb4] sm:$0xf]
        %v1960 = vld [vmem:[%s702 + $0xb8] sm:$0xf]
        %v1961 = vld [vmem:[%s702 + $0xbc] sm:$0x1]
        %v1963 = vshrl.u32 %v1914, 16
        %v1965 = vrot.slane %v1963, 4
        %v1966 = vshll.u32 %v1914, 16
        %v1968 = vrot.slane %v1966, 5
        %v1969 = vor.u32 %v1965, %v1968
        %v1970 = vrot.slane %v1969, 4
        %v1972 = vshll.u32 %v1915, 16
        %v1974 = vrot.slane %v1972, 5
        %v1975 = vsel %vm1014, %v1970, %v1974
        %v1976 = vshrl.u32 %v1915, 16
        %v1978 = vrot.slane %v1976, 4
        %v1979 = vor.u32 %v1978, %v1974
        %v1980 = vrot.slane %v1979, 4
        %v1982 = vshll.u32 %v1916, 16
        %v1984 = vrot.slane %v1982, 5
        %v1985 = vsel %vm1014, %v1980, %v1984
        %v1987 = vshrl.u32 %v1917, 16
        %v1989 = vrot.slane %v1987, 4
        %v1990 = vshll.u32 %v1917, 16
        %v1992 = vrot.slane %v1990, 5
        %v1993 = vor.u32 %v1989, %v1992
        %v1994 = vrot.slane %v1993, 4
        %v1996 = vshll.u32 %v1918, 16
        %v1998 = vrot.slane %v1996, 5
        %v1999 = vsel %vm1014, %v1994, %v1998
        %v2000 = vshrl.u32 %v1918, 16
        %v2002 = vrot.slane %v2000, 4
        %v2003 = vor.u32 %v2002, %v1998
        %v2004 = vrot.slane %v2003, 4
        %v2006 = vshll.u32 %v1919, 16
        %v2008 = vrot.slane %v2006, 5
        %v2009 = vsel %vm1014, %v2004, %v2008
        %v2011 = vshrl.u32 %v1920, 16
        %v2013 = vrot.slane %v2011, 4
        %v2014 = vshll.u32 %v1920, 16
        %v2016 = vrot.slane %v2014, 5
        %v2017 = vor.u32 %v2013, %v2016
        %v2018 = vrot.slane %v2017, 4
        %v2020 = vshll.u32 %v1921, 16
        %v2022 = vrot.slane %v2020, 5
        %v2023 = vsel %vm1014, %v2018, %v2022
        %v2024 = vshrl.u32 %v1921, 16
        %v2026 = vrot.slane %v2024, 4
        %v2027 = vor.u32 %v2026, %v2022
        %v2028 = vrot.slane %v2027, 4
        %v2030 = vshll.u32 %v1922, 16
        %v2032 = vrot.slane %v2030, 5
        %v2033 = vsel %vm1014, %v2028, %v2032
        %v2035 = vshrl.u32 %v1923, 16
        %v2037 = vrot.slane %v2035, 4
        %v2038 = vshll.u32 %v1923, 16
        %v2040 = vrot.slane %v2038, 5
        %v2041 = vor.u32 %v2037, %v2040
        %v2042 = vrot.slane %v2041, 4
        %v2044 = vshll.u32 %v1924, 16
        %v2046 = vrot.slane %v2044, 5
        %v2047 = vsel %vm1014, %v2042, %v2046
        %v2048 = vshrl.u32 %v1924, 16
        %v2050 = vrot.slane %v2048, 4
        %v2051 = vor.u32 %v2050, %v2046
        %v2052 = vrot.slane %v2051, 4
        %v2054 = vshll.u32 %v1925, 16
        %v2056 = vrot.slane %v2054, 5
        %v2057 = vsel %vm1014, %v2052, %v2056
        %v2059 = vshrl.u32 %v1926, 16
        %v2061 = vrot.slane %v2059, 4
        %v2062 = vshll.u32 %v1926, 16
        %v2064 = vrot.slane %v2062, 5
        %v2065 = vor.u32 %v2061, %v2064
        %v2066 = vrot.slane %v2065, 4
        %v2068 = vshll.u32 %v1927, 16
        %v2070 = vrot.slane %v2068, 5
        %v2071 = vsel %vm1014, %v2066, %v2070
        %v2072 = vshrl.u32 %v1927, 16
        %v2074 = vrot.slane %v2072, 4
        %v2075 = vor.u32 %v2074, %v2070
        %v2076 = vrot.slane %v2075, 4
        %v2078 = vshll.u32 %v1928, 16
        %v2080 = vrot.slane %v2078, 5
        %v2081 = vsel %vm1014, %v2076, %v2080
        %v2083 = vshrl.u32 %v1929, 16
        %v2085 = vrot.slane %v2083, 4
        %v2086 = vshll.u32 %v1929, 16
        %v2088 = vrot.slane %v2086, 5
        %v2089 = vor.u32 %v2085, %v2088
        %v2090 = vrot.slane %v2089, 4
        %v2092 = vshll.u32 %v1930, 16
        %v2094 = vrot.slane %v2092, 5
        %v2095 = vsel %vm1014, %v2090, %v2094
        %v2096 = vshrl.u32 %v1930, 16
        %v2098 = vrot.slane %v2096, 4
        %v2099 = vor.u32 %v2098, %v2094
        %v2100 = vrot.slane %v2099, 4
        %v2102 = vshll.u32 %v1931, 16
        %v2104 = vrot.slane %v2102, 5
        %v2105 = vsel %vm1014, %v2100, %v2104
        %v2107 = vshrl.u32 %v1932, 16
        %v2109 = vrot.slane %v2107, 4
        %v2110 = vshll.u32 %v1932, 16
        %v2112 = vrot.slane %v2110, 5
        %v2113 = vor.u32 %v2109, %v2112
        %v2114 = vrot.slane %v2113, 4
        %v2116 = vshll.u32 %v1933, 16
        %v2118 = vrot.slane %v2116, 5
        %v2119 = vsel %vm1014, %v2114, %v2118
        %v2120 = vshrl.u32 %v1933, 16
        %v2122 = vrot.slane %v2120, 4
        %v2123 = vor.u32 %v2122, %v2118
        %v2124 = vrot.slane %v2123, 4
        %v2126 = vshll.u32 %v1934, 16
        %v2128 = vrot.slane %v2126, 5
        %v2129 = vsel %vm1014, %v2124, %v2128
        %v2131 = vshrl.u32 %v1935, 16
        %v2133 = vrot.slane %v2131, 4
        %v2134 = vshll.u32 %v1935, 16
        %v2136 = vrot.slane %v2134, 5
        %v2137 = vor.u32 %v2133, %v2136
        %v2138 = vrot.slane %v2137, 4
        %v2140 = vshll.u32 %v1936, 16
        %v2142 = vrot.slane %v2140, 5
        %v2143 = vsel %vm1014, %v2138, %v2142
        %v2144 = vshrl.u32 %v1936, 16
        %v2146 = vrot.slane %v2144, 4
        %v2147 = vor.u32 %v2146, %v2142
        %v2148 = vrot.slane %v2147, 4
        %v2150 = vshll.u32 %v1937, 16
        %v2152 = vrot.slane %v2150, 5
        %v2153 = vsel %vm1014, %v2148, %v2152
        %v2155 = vshrl.u32 %v1938, 16
        %v2157 = vrot.slane %v2155, 4
        %v2158 = vshll.u32 %v1938, 16
        %v2160 = vrot.slane %v2158, 5
        %v2161 = vor.u32 %v2157, %v2160
        %v2162 = vrot.slane %v2161, 4
        %v2164 = vshll.u32 %v1939, 16
        %v2166 = vrot.slane %v2164, 5
        %v2167 = vsel %vm1014, %v2162, %v2166
        %v2168 = vshrl.u32 %v1939, 16
        %v2170 = vrot.slane %v2168, 4
        %v2171 = vor.u32 %v2170, %v2166
        %v2172 = vrot.slane %v2171, 4
        %v2174 = vshll.u32 %v1940, 16
        %v2176 = vrot.slane %v2174, 5
        %v2177 = vsel %vm1014, %v2172, %v2176
        %v2179 = vshrl.u32 %v1941, 16
        %v2181 = vrot.slane %v2179, 4
        %v2182 = vshll.u32 %v1941, 16
        %v2184 = vrot.slane %v2182, 5
        %v2185 = vor.u32 %v2181, %v2184
        %v2186 = vrot.slane %v2185, 4
        %v2188 = vshll.u32 %v1942, 16
        %v2190 = vrot.slane %v2188, 5
        %v2191 = vsel %vm1014, %v2186, %v2190
        %v2192 = vshrl.u32 %v1942, 16
        %v2194 = vrot.slane %v2192, 4
        %v2195 = vor.u32 %v2194, %v2190
        %v2196 = vrot.slane %v2195, 4
        %v2198 = vshll.u32 %v1943, 16
        %v2200 = vrot.slane %v2198, 5
        %v2201 = vsel %vm1014, %v2196, %v2200
        %v2203 = vshrl.u32 %v1944, 16
        %v2205 = vrot.slane %v2203, 4
        %v2206 = vshll.u32 %v1944, 16
        %v2208 = vrot.slane %v2206, 5
        %v2209 = vor.u32 %v2205, %v2208
        %v2210 = vrot.slane %v2209, 4
        %v2212 = vshll.u32 %v1945, 16
        %v2214 = vrot.slane %v2212, 5
        %v2215 = vsel %vm1014, %v2210, %v2214
        %v2216 = vshrl.u32 %v1945, 16
        %v2218 = vrot.slane %v2216, 4
        %v2219 = vor.u32 %v2218, %v2214
        %v2220 = vrot.slane %v2219, 4
        %v2222 = vshll.u32 %v1946, 16
        %v2224 = vrot.slane %v2222, 5
        %v2225 = vsel %vm1014, %v2220, %v2224
        %v2227 = vshrl.u32 %v1947, 16
        %v2229 = vrot.slane %v2227, 4
        %v2230 = vshll.u32 %v1947, 16
        %v2232 = vrot.slane %v2230, 5
        %v2233 = vor.u32 %v2229, %v2232
        %v2234 = vrot.slane %v2233, 4
        %v2236 = vshll.u32 %v1948, 16
        %v2238 = vrot.slane %v2236, 5
        %v2239 = vsel %vm1014, %v2234, %v2238
        %v2240 = vshrl.u32 %v1948, 16
        %v2242 = vrot.slane %v2240, 4
        %v2243 = vor.u32 %v2242, %v2238
        %v2244 = vrot.slane %v2243, 4
        %v2246 = vshll.u32 %v1949, 16
        %v2248 = vrot.slane %v2246, 5
        %v2249 = vsel %vm1014, %v2244, %v2248
        %v2251 = vshrl.u32 %v1950, 16
        %v2253 = vrot.slane %v2251, 4
        %v2254 = vshll.u32 %v1950, 16
        %v2256 = vrot.slane %v2254, 5
        %v2257 = vor.u32 %v2253, %v2256
        %v2258 = vrot.slane %v2257, 4
        %v2260 = vshll.u32 %v1951, 16
        %v2262 = vrot.slane %v2260, 5
        %v2263 = vsel %vm1014, %v2258, %v2262
        %v2264 = vshrl.u32 %v1951, 16
        %v2266 = vrot.slane %v2264, 4
        %v2267 = vor.u32 %v2266, %v2262
        %v2268 = vrot.slane %v2267, 4
        %v2270 = vshll.u32 %v1952, 16
        %v2272 = vrot.slane %v2270, 5
        %v2273 = vsel %vm1014, %v2268, %v2272
        %v2275 = vshrl.u32 %v1953, 16
        %v2277 = vrot.slane %v2275, 4
        %v2278 = vshll.u32 %v1953, 16
        %v2280 = vrot.slane %v2278, 5
        %v2281 = vor.u32 %v2277, %v2280
        %v2282 = vrot.slane %v2281, 4
        %v2284 = vshll.u32 %v1954, 16
        %v2286 = vrot.slane %v2284, 5
        %v2287 = vsel %vm1014, %v2282, %v2286
        %v2288 = vshrl.u32 %v1954, 16
        %v2290 = vrot.slane %v2288, 4
        %v2291 = vor.u32 %v2290, %v2286
        %v2292 = vrot.slane %v2291, 4
        %v2294 = vshll.u32 %v1955, 16
        %v2296 = vrot.slane %v2294, 5
        %v2297 = vsel %vm1014, %v2292, %v2296
        %v2299 = vshrl.u32 %v1956, 16
        %v2301 = vrot.slane %v2299, 4
        %v2302 = vshll.u32 %v1956, 16
        %v2304 = vrot.slane %v2302, 5
        %v2305 = vor.u32 %v2301, %v2304
        %v2306 = vrot.slane %v2305, 4
        %v2308 = vshll.u32 %v1957, 16
        %v2310 = vrot.slane %v2308, 5
        %v2311 = vsel %vm1014, %v2306, %v2310
        %v2312 = vshrl.u32 %v1957, 16
        %v2314 = vrot.slane %v2312, 4
        %v2315 = vor.u32 %v2314, %v2310
        %v2316 = vrot.slane %v2315, 4
        %v2318 = vshll.u32 %v1958, 16
        %v2320 = vrot.slane %v2318, 5
        %v2321 = vsel %vm1014, %v2316, %v2320
        %v2323 = vshrl.u32 %v1959, 16
        %v2325 = vrot.slane %v2323, 4
        %v2326 = vshll.u32 %v1959, 16
        %v2328 = vrot.slane %v2326, 5
        %v2329 = vor.u32 %v2325, %v2328
        %v2330 = vrot.slane %v2329, 4
        %v2332 = vshll.u32 %v1960, 16
        %v2334 = vrot.slane %v2332, 5
        %v2335 = vsel %vm1014, %v2330, %v2334
        %v2336 = vshrl.u32 %v1960, 16
        %v2338 = vrot.slane %v2336, 4
        %v2339 = vor.u32 %v2338, %v2334
        %v2340 = vrot.slane %v2339, 4
        %v2342 = vshll.u32 %v1961, 16
        %v2344 = vrot.slane %v2342, 5
        %v2345 = vsel %vm1014, %v2340, %v2344
        %v2346 = vunpack.c.l.b16 %v1975
        %v2347 = vunpack.c.l.b16 %v1985
        %v2348 = vunpack.c.l.b16 %v1999
        %v2349 = vunpack.c.l.b16 %v2009
        %v2350 = vunpack.c.l.b16 %v2023
        %v2351 = vunpack.c.l.b16 %v2033
        %v2352 = vunpack.c.l.b16 %v2047
        %v2353 = vunpack.c.l.b16 %v2057
        %v2354 = vunpack.c.l.b16 %v2071
        %v2355 = vunpack.c.l.b16 %v2081
        %v2356 = vunpack.c.l.b16 %v2095
        %v2357 = vunpack.c.l.b16 %v2105
        %v2358 = vunpack.c.l.b16 %v2119
        %v2359 = vunpack.c.l.b16 %v2129
        %v2360 = vunpack.c.l.b16 %v2143
        %v2361 = vunpack.c.l.b16 %v2153
        %v2362 = vunpack.c.l.b16 %v2167
        %v2363 = vunpack.c.l.b16 %v2177
        %v2364 = vunpack.c.l.b16 %v2191
        %v2365 = vunpack.c.l.b16 %v2201
        %v2366 = vunpack.c.l.b16 %v2215
        %v2367 = vunpack.c.l.b16 %v2225
        %v2368 = vunpack.c.l.b16 %v2239
        %v2369 = vunpack.c.l.b16 %v2249
        %v2370 = vunpack.c.l.b16 %v2263
        %v2371 = vunpack.c.l.b16 %v2273
        %v2372 = vunpack.c.l.b16 %v2287
        %v2373 = vunpack.c.l.b16 %v2297
        %v2374 = vunpack.c.l.b16 %v2311
        %v2375 = vunpack.c.l.b16 %v2321
        %v2376 = vunpack.c.l.b16 %v2335
        %v2377 = vunpack.c.l.b16 %v2345
        %v2378 = vpack.c.b16 %v2347, %v2346
        %v2379 = vpack.c.b16 %v2349, %v2348
        %v2380 = vpack.c.b16 %v2351, %v2350
        %v2381 = vpack.c.b16 %v2353, %v2352
        %v2382 = vpack.c.b16 %v2355, %v2354
        %v2383 = vpack.c.b16 %v2357, %v2356
        %v2384 = vpack.c.b16 %v2359, %v2358
        %v2385 = vpack.c.b16 %v2361, %v2360
        %v2386 = vpack.c.b16 %v2363, %v2362
        %v2387 = vpack.c.b16 %v2365, %v2364
        %v2388 = vpack.c.b16 %v2367, %v2366
        %v2389 = vpack.c.b16 %v2369, %v2368
        %v2390 = vpack.c.b16 %v2371, %v2370
        %v2391 = vpack.c.b16 %v2373, %v2372
        %v2392 = vpack.c.b16 %v2375, %v2374
        %v2393 = vpack.c.b16 %v2377, %v2376
        %2410 = vst [vmem:[#allocation4 + $0x20] sm:$0xff] %v2378
        %2411 = vst [vmem:[#allocation4 + $0x68] sm:$0xff] %v2379
        %2412 = vst [vmem:[#allocation4 + $0xb0] sm:$0xff] %v2380
        %2413 = vst [vmem:[#allocation4 + $0xf8] sm:$0xff] %v2381
        %2414 = vst [vmem:[#allocation4 + $0x140] sm:$0xff] %v2382
        %2415 = vst [vmem:[#allocation4 + $0x188] sm:$0xff] %v2383
        %2416 = vst [vmem:[#allocation4 + $0x1d0] sm:$0xff] %v2384
        %2417 = vst [vmem:[#allocation4 + $0x218] sm:$0xff] %v2385
        %2418 = vst [vmem:[#allocation4 + $0x260] sm:$0xff] %v2386
        %2419 = vst [vmem:[#allocation4 + $0x2a8] sm:$0xff] %v2387
        %2420 = vst [vmem:[#allocation4 + $0x2f0] sm:$0xff] %v2388
        %2421 = vst [vmem:[#allocation4 + $0x338] sm:$0xff] %v2389
        %2422 = vst [vmem:[#allocation4 + $0x380] sm:$0xff] %v2390
        %2423 = vst [vmem:[#allocation4 + $0x3c8] sm:$0xff] %v2391
        %2424 = vst [vmem:[#allocation4 + $0x410] sm:$0xff] %v2392
        %2425 = vst [vmem:[#allocation4 + $0x458] sm:$0xff] %v2393
        %v2426 = vld [vmem:[%s702] sm:$0xe]
        %v2427 = vld [vmem:[%s702 + $0x4] sm:$0xf]
        %v2428 = vld [vmem:[%s702 + $0x8] sm:$0x1]
        %v2429 = vld [vmem:[%s702 + $0xc] sm:$0xe]
        %v2430 = vld [vmem:[%s702 + $0x10] sm:$0xf]
        %v2431 = vld [vmem:[%s702 + $0x14] sm:$0x1]
        %v2432 = vld [vmem:[%s702 + $0x18] sm:$0xe]
        %v2433 = vld [vmem:[%s702 + $0x1c] sm:$0xf]
        %v2434 = vld [vmem:[%s702 + $0x20] sm:$0x1]
        %v2435 = vld [vmem:[%s702 + $0x24] sm:$0xe]
        %v2436 = vld [vmem:[%s702 + $0x28] sm:$0xf]
        %v2437 = vld [vmem:[%s702 + $0x2c] sm:$0x1]
        %v2438 = vld [vmem:[%s702 + $0x30] sm:$0xe]
        %v2439 = vld [vmem:[%s702 + $0x34] sm:$0xf]
        %v2440 = vld [vmem:[%s702 + $0x38] sm:$0x1]
        %v2441 = vld [vmem:[%s702 + $0x3c] sm:$0xe]
        %v2442 = vld [vmem:[%s702 + $0x40] sm:$0xf]
        %v2443 = vld [vmem:[%s702 + $0x44] sm:$0x1]
        %v2444 = vld [vmem:[%s702 + $0x48] sm:$0xe]
        %v2445 = vld [vmem:[%s702 + $0x4c] sm:$0xf]
        %v2446 = vld [vmem:[%s702 + $0x50] sm:$0x1]
        %v2447 = vld [vmem:[%s702 + $0x54] sm:$0xe]
        %v2448 = vld [vmem:[%s702 + $0x58] sm:$0xf]
        %v2449 = vld [vmem:[%s702 + $0x5c] sm:$0x1]
        %v2450 = vld [vmem:[%s702 + $0x60] sm:$0xe]
        %v2451 = vld [vmem:[%s702 + $0x64] sm:$0xf]
        %v2452 = vld [vmem:[%s702 + $0x68] sm:$0x1]
        %v2453 = vld [vmem:[%s702 + $0x6c] sm:$0xe]
        %v2454 = vld [vmem:[%s702 + $0x70] sm:$0xf]
        %v2455 = vld [vmem:[%s702 + $0x74] sm:$0x1]
        %v2456 = vld [vmem:[%s702 + $0x78] sm:$0xe]
        %v2457 = vld [vmem:[%s702 + $0x7c] sm:$0xf]
        %v2458 = vld [vmem:[%s702 + $0x80] sm:$0x1]
        %v2459 = vld [vmem:[%s702 + $0x84] sm:$0xe]
        %v2460 = vld [vmem:[%s702 + $0x88] sm:$0xf]
        %v2461 = vld [vmem:[%s702 + $0x8c] sm:$0x1]
        %v2462 = vld [vmem:[%s702 + $0x90] sm:$0xe]
        %v2463 = vld [vmem:[%s702 + $0x94] sm:$0xf]
        %v2464 = vld [vmem:[%s702 + $0x98] sm:$0x1]
        %v2465 = vld [vmem:[%s702 + $0x9c] sm:$0xe]
        %v2466 = vld [vmem:[%s702 + $0xa0] sm:$0xf]
        %v2467 = vld [vmem:[%s702 + $0xa4] sm:$0x1]
        %v2468 = vld [vmem:[%s702 + $0xa8] sm:$0xe]
        %v2469 = vld [vmem:[%s702 + $0xac] sm:$0xf]
        %v2470 = vld [vmem:[%s702 + $0xb0] sm:$0x1]
        %v2471 = vld [vmem:[%s702 + $0xb4] sm:$0xe]
        %v2472 = vld [vmem:[%s702 + $0xb8] sm:$0xf]
        %v2473 = vld [vmem:[%s702 + $0xbc] sm:$0x1]
        %v2522 = vrot.slane %v2426, 5
        %v2523 = vrot.slane %v2522, 4
        %v2524 = vrot.slane %v2427, 5
        %v2525 = vsel %vm1577, %v2523, %v2524
        %v2526 = vrot.slane %v2524, 4
        %v2527 = vrot.slane %v2428, 5
        %v2528 = vsel %vm1577, %v2526, %v2527
        %v2529 = vrot.slane %v2429, 5
        %v2530 = vrot.slane %v2529, 4
        %v2531 = vrot.slane %v2430, 5
        %v2532 = vsel %vm1577, %v2530, %v2531
        %v2533 = vrot.slane %v2531, 4
        %v2534 = vrot.slane %v2431, 5
        %v2535 = vsel %vm1577, %v2533, %v2534
        %v2536 = vrot.slane %v2432, 5
        %v2537 = vrot.slane %v2536, 4
        %v2538 = vrot.slane %v2433, 5
        %v2539 = vsel %vm1577, %v2537, %v2538
        %v2540 = vrot.slane %v2538, 4
        %v2541 = vrot.slane %v2434, 5
        %v2542 = vsel %vm1577, %v2540, %v2541
        %v2543 = vrot.slane %v2435, 5
        %v2544 = vrot.slane %v2543, 4
        %v2545 = vrot.slane %v2436, 5
        %v2546 = vsel %vm1577, %v2544, %v2545
        %v2547 = vrot.slane %v2545, 4
        %v2548 = vrot.slane %v2437, 5
        %v2549 = vsel %vm1577, %v2547, %v2548
        %v2550 = vrot.slane %v2438, 5
        %v2551 = vrot.slane %v2550, 4
        %v2552 = vrot.slane %v2439, 5
        %v2553 = vsel %vm1577, %v2551, %v2552
        %v2554 = vrot.slane %v2552, 4
        %v2555 = vrot.slane %v2440, 5
        %v2556 = vsel %vm1577, %v2554, %v2555
        %v2557 = vrot.slane %v2441, 5
        %v2558 = vrot.slane %v2557, 4
        %v2559 = vrot.slane %v2442, 5
        %v2560 = vsel %vm1577, %v2558, %v2559
        %v2561 = vrot.slane %v2559, 4
        %v2562 = vrot.slane %v2443, 5
        %v2563 = vsel %vm1577, %v2561, %v2562
        %v2564 = vrot.slane %v2444, 5
        %v2565 = vrot.slane %v2564, 4
        %v2566 = vrot.slane %v2445, 5
        %v2567 = vsel %vm1577, %v2565, %v2566
        %v2568 = vrot.slane %v2566, 4
        %v2569 = vrot.slane %v2446, 5
        %v2570 = vsel %vm1577, %v2568, %v2569
        %v2571 = vrot.slane %v2447, 5
        %v2572 = vrot.slane %v2571, 4
        %v2573 = vrot.slane %v2448, 5
        %v2574 = vsel %vm1577, %v2572, %v2573
        %v2575 = vrot.slane %v2573, 4
        %v2576 = vrot.slane %v2449, 5
        %v2577 = vsel %vm1577, %v2575, %v2576
        %v2578 = vrot.slane %v2450, 5
        %v2579 = vrot.slane %v2578, 4
        %v2580 = vrot.slane %v2451, 5
        %v2581 = vsel %vm1577, %v2579, %v2580
        %v2582 = vrot.slane %v2580, 4
        %v2583 = vrot.slane %v2452, 5
        %v2584 = vsel %vm1577, %v2582, %v2583
        %v2585 = vrot.slane %v2453, 5
        %v2586 = vrot.slane %v2585, 4
        %v2587 = vrot.slane %v2454, 5
        %v2588 = vsel %vm1577, %v2586, %v2587
        %v2589 = vrot.slane %v2587, 4
        %v2590 = vrot.slane %v2455, 5
        %v2591 = vsel %vm1577, %v2589, %v2590
        %v2592 = vrot.slane %v2456, 5
        %v2593 = vrot.slane %v2592, 4
        %v2594 = vrot.slane %v2457, 5
        %v2595 = vsel %vm1577, %v2593, %v2594
        %v2596 = vrot.slane %v2594, 4
        %v2597 = vrot.slane %v2458, 5
        %v2598 = vsel %vm1577, %v2596, %v2597
        %v2599 = vrot.slane %v2459, 5
        %v2600 = vrot.slane %v2599, 4
        %v2601 = vrot.slane %v2460, 5
        %v2602 = vsel %vm1577, %v2600, %v2601
        %v2603 = vrot.slane %v2601, 4
        %v2604 = vrot.slane %v2461, 5
        %v2605 = vsel %vm1577, %v2603, %v2604
        %v2606 = vrot.slane %v2462, 5
        %v2607 = vrot.slane %v2606, 4
        %v2608 = vrot.slane %v2463, 5
        %v2609 = vsel %vm1577, %v2607, %v2608
        %v2610 = vrot.slane %v2608, 4
        %v2611 = vrot.slane %v2464, 5
        %v2612 = vsel %vm1577, %v2610, %v2611
        %v2613 = vrot.slane %v2465, 5
        %v2614 = vrot.slane %v2613, 4
        %v2615 = vrot.slane %v2466, 5
        %v2616 = vsel %vm1577, %v2614, %v2615
        %v2617 = vrot.slane %v2615, 4
        %v2618 = vrot.slane %v2467, 5
        %v2619 = vsel %vm1577, %v2617, %v2618
        %v2620 = vrot.slane %v2468, 5
        %v2621 = vrot.slane %v2620, 4
        %v2622 = vrot.slane %v2469, 5
        %v2623 = vsel %vm1577, %v2621, %v2622
        %v2624 = vrot.slane %v2622, 4
        %v2625 = vrot.slane %v2470, 5
        %v2626 = vsel %vm1577, %v2624, %v2625
        %v2627 = vrot.slane %v2471, 5
        %v2628 = vrot.slane %v2627, 4
        %v2629 = vrot.slane %v2472, 5
        %v2630 = vsel %vm1577, %v2628, %v2629
        %v2631 = vrot.slane %v2629, 4
        %v2632 = vrot.slane %v2473, 5
        %v2633 = vsel %vm1577, %v2631, %v2632
        %v2634 = vunpack.c.l.b16 %v2525
        %v2635 = vunpack.c.l.b16 %v2528
        %v2636 = vunpack.c.l.b16 %v2532
        %v2637 = vunpack.c.l.b16 %v2535
        %v2638 = vunpack.c.l.b16 %v2539
        %v2639 = vunpack.c.l.b16 %v2542
        %v2640 = vunpack.c.l.b16 %v2546
        %v2641 = vunpack.c.l.b16 %v2549
        %v2642 = vunpack.c.l.b16 %v2553
        %v2643 = vunpack.c.l.b16 %v2556
        %v2644 = vunpack.c.l.b16 %v2560
        %v2645 = vunpack.c.l.b16 %v2563
        %v2646 = vunpack.c.l.b16 %v2567
        %v2647 = vunpack.c.l.b16 %v2570
        %v2648 = vunpack.c.l.b16 %v2574
        %v2649 = vunpack.c.l.b16 %v2577
        %v2650 = vunpack.c.l.b16 %v2581
        %v2651 = vunpack.c.l.b16 %v2584
        %v2652 = vunpack.c.l.b16 %v2588
        %v2653 = vunpack.c.l.b16 %v2591
        %v2654 = vunpack.c.l.b16 %v2595
        %v2655 = vunpack.c.l.b16 %v2598
        %v2656 = vunpack.c.l.b16 %v2602
        %v2657 = vunpack.c.l.b16 %v2605
        %v2658 = vunpack.c.l.b16 %v2609
        %v2659 = vunpack.c.l.b16 %v2612
        %v2660 = vunpack.c.l.b16 %v2616
        %v2661 = vunpack.c.l.b16 %v2619
        %v2662 = vunpack.c.l.b16 %v2623
        %v2663 = vunpack.c.l.b16 %v2626
        %v2664 = vunpack.c.l.b16 %v2630
        %v2665 = vunpack.c.l.b16 %v2633
        %v2666 = vpack.c.b16 %v2635, %v2634
        %v2667 = vpack.c.b16 %v2637, %v2636
        %v2668 = vpack.c.b16 %v2639, %v2638
        %v2669 = vpack.c.b16 %v2641, %v2640
        %v2670 = vpack.c.b16 %v2643, %v2642
        %v2671 = vpack.c.b16 %v2645, %v2644
        %v2672 = vpack.c.b16 %v2647, %v2646
        %v2673 = vpack.c.b16 %v2649, %v2648
        %v2674 = vpack.c.b16 %v2651, %v2650
        %v2675 = vpack.c.b16 %v2653, %v2652
        %v2676 = vpack.c.b16 %v2655, %v2654
        %v2677 = vpack.c.b16 %v2657, %v2656
        %v2678 = vpack.c.b16 %v2659, %v2658
        %v2679 = vpack.c.b16 %v2661, %v2660
        %v2680 = vpack.c.b16 %v2663, %v2662
        %v2681 = vpack.c.b16 %v2665, %v2664
        %2698 = vst [vmem:[#allocation4 + $0x28] sm:$0xff] %v2666
        %2699 = vst [vmem:[#allocation4 + $0x70] sm:$0xff] %v2667
        %2700 = vst [vmem:[#allocation4 + $0xb8] sm:$0xff] %v2668
        %2701 = vst [vmem:[#allocation4 + $0x100] sm:$0xff] %v2669
        %2702 = vst [vmem:[#allocation4 + $0x148] sm:$0xff] %v2670
        %2703 = vst [vmem:[#allocation4 + $0x190] sm:$0xff] %v2671
        %2704 = vst [vmem:[#allocation4 + $0x1d8] sm:$0xff] %v2672
        %2705 = vst [vmem:[#allocation4 + $0x220] sm:$0xff] %v2673
        %2706 = vst [vmem:[#allocation4 + $0x268] sm:$0xff] %v2674
        %2707 = vst [vmem:[#allocation4 + $0x2b0] sm:$0xff] %v2675
        %2708 = vst [vmem:[#allocation4 + $0x2f8] sm:$0xff] %v2676
        %2709 = vst [vmem:[#allocation4 + $0x340] sm:$0xff] %v2677
        %2710 = vst [vmem:[#allocation4 + $0x388] sm:$0xff] %v2678
        %2711 = vst [vmem:[#allocation4 + $0x3d0] sm:$0xff] %v2679
        %2712 = vst [vmem:[#allocation4 + $0x418] sm:$0xff] %v2680
        %2713 = vst [vmem:[#allocation4 + $0x460] sm:$0xff] %v2681
        %s2714 = scalar_lea.vmem [#allocation2], 24
        %v2715 = vld [vmem:[%s2714] sm:$0xf]
        %v2716 = vld [vmem:[%s2714 + $0x4] sm:$0xf]
        %v2717 = vld [vmem:[%s2714 + $0xc] sm:$0xf]
        %v2718 = vld [vmem:[%s2714 + $0x10] sm:$0xf]
        %v2719 = vld [vmem:[%s2714 + $0x18] sm:$0xf]
        %v2720 = vld [vmem:[%s2714 + $0x1c] sm:$0xf]
        %v2721 = vld [vmem:[%s2714 + $0x24] sm:$0xf]
        %v2722 = vld [vmem:[%s2714 + $0x28] sm:$0xf]
        %v2723 = vld [vmem:[%s2714 + $0x30] sm:$0xf]
        %v2724 = vld [vmem:[%s2714 + $0x34] sm:$0xf]
        %v2725 = vld [vmem:[%s2714 + $0x3c] sm:$0xf]
        %v2726 = vld [vmem:[%s2714 + $0x40] sm:$0xf]
        %v2727 = vld [vmem:[%s2714 + $0x48] sm:$0xf]
        %v2728 = vld [vmem:[%s2714 + $0x4c] sm:$0xf]
        %v2729 = vld [vmem:[%s2714 + $0x54] sm:$0xf]
        %v2730 = vld [vmem:[%s2714 + $0x58] sm:$0xf]
        %v2731 = vld [vmem:[%s2714 + $0x60] sm:$0xf]
        %v2732 = vld [vmem:[%s2714 + $0x64] sm:$0xf]
        %v2733 = vld [vmem:[%s2714 + $0x6c] sm:$0xf]
        %v2734 = vld [vmem:[%s2714 + $0x70] sm:$0xf]
        %v2735 = vld [vmem:[%s2714 + $0x78] sm:$0xf]
        %v2736 = vld [vmem:[%s2714 + $0x7c] sm:$0xf]
        %v2737 = vld [vmem:[%s2714 + $0x84] sm:$0xf]
        %v2738 = vld [vmem:[%s2714 + $0x88] sm:$0xf]
        %v2739 = vld [vmem:[%s2714 + $0x90] sm:$0xf]
        %v2740 = vld [vmem:[%s2714 + $0x94] sm:$0xf]
        %v2741 = vld [vmem:[%s2714 + $0x9c] sm:$0xf]
        %v2742 = vld [vmem:[%s2714 + $0xa0] sm:$0xf]
        %v2743 = vld [vmem:[%s2714 + $0xa8] sm:$0xf]
        %v2744 = vld [vmem:[%s2714 + $0xac] sm:$0xf]
        %v2745 = vld [vmem:[%s2714 + $0xb4] sm:$0xf]
        %v2746 = vld [vmem:[%s2714 + $0xb8] sm:$0xf]
        %v2779 = vunpack.c.l.b16 %v2715
        %v2780 = vunpack.c.l.b16 %v2716
        %v2781 = vunpack.c.l.b16 %v2717
        %v2782 = vunpack.c.l.b16 %v2718
        %v2783 = vunpack.c.l.b16 %v2719
        %v2784 = vunpack.c.l.b16 %v2720
        %v2785 = vunpack.c.l.b16 %v2721
        %v2786 = vunpack.c.l.b16 %v2722
        %v2787 = vunpack.c.l.b16 %v2723
        %v2788 = vunpack.c.l.b16 %v2724
        %v2789 = vunpack.c.l.b16 %v2725
        %v2790 = vunpack.c.l.b16 %v2726
        %v2791 = vunpack.c.l.b16 %v2727
        %v2792 = vunpack.c.l.b16 %v2728
        %v2793 = vunpack.c.l.b16 %v2729
        %v2794 = vunpack.c.l.b16 %v2730
        %v2795 = vunpack.c.l.b16 %v2731
        %v2796 = vunpack.c.l.b16 %v2732
        %v2797 = vunpack.c.l.b16 %v2733
        %v2798 = vunpack.c.l.b16 %v2734
        %v2799 = vunpack.c.l.b16 %v2735
        %v2800 = vunpack.c.l.b16 %v2736
        %v2801 = vunpack.c.l.b16 %v2737
        %v2802 = vunpack.c.l.b16 %v2738
        %v2803 = vunpack.c.l.b16 %v2739
        %v2804 = vunpack.c.l.b16 %v2740
        %v2805 = vunpack.c.l.b16 %v2741
        %v2806 = vunpack.c.l.b16 %v2742
        %v2807 = vunpack.c.l.b16 %v2743
        %v2808 = vunpack.c.l.b16 %v2744
        %v2809 = vunpack.c.l.b16 %v2745
        %v2810 = vunpack.c.l.b16 %v2746
        %v2811 = vpack.c.b16 %v2780, %v2779
        %v2812 = vpack.c.b16 %v2782, %v2781
        %v2813 = vpack.c.b16 %v2784, %v2783
        %v2814 = vpack.c.b16 %v2786, %v2785
        %v2815 = vpack.c.b16 %v2788, %v2787
        %v2816 = vpack.c.b16 %v2790, %v2789
        %v2817 = vpack.c.b16 %v2792, %v2791
        %v2818 = vpack.c.b16 %v2794, %v2793
        %v2819 = vpack.c.b16 %v2796, %v2795
        %v2820 = vpack.c.b16 %v2798, %v2797
        %v2821 = vpack.c.b16 %v2800, %v2799
        %v2822 = vpack.c.b16 %v2802, %v2801
        %v2823 = vpack.c.b16 %v2804, %v2803
        %v2824 = vpack.c.b16 %v2806, %v2805
        %v2825 = vpack.c.b16 %v2808, %v2807
        %v2826 = vpack.c.b16 %v2810, %v2809
        %2843 = vst [vmem:[#allocation4 + $0x30] sm:$0xff] %v2811
        %2844 = vst [vmem:[#allocation4 + $0x78] sm:$0xff] %v2812
        %2845 = vst [vmem:[#allocation4 + $0xc0] sm:$0xff] %v2813
        %2846 = vst [vmem:[#allocation4 + $0x108] sm:$0xff] %v2814
        %2847 = vst [vmem:[#allocation4 + $0x150] sm:$0xff] %v2815
        %2848 = vst [vmem:[#allocation4 + $0x198] sm:$0xff] %v2816
        %2849 = vst [vmem:[#allocation4 + $0x1e0] sm:$0xff] %v2817
        %2850 = vst [vmem:[#allocation4 + $0x228] sm:$0xff] %v2818
        %2851 = vst [vmem:[#allocation4 + $0x270] sm:$0xff] %v2819
        %2852 = vst [vmem:[#allocation4 + $0x2b8] sm:$0xff] %v2820
        %2853 = vst [vmem:[#allocation4 + $0x300] sm:$0xff] %v2821
        %2854 = vst [vmem:[#allocation4 + $0x348] sm:$0xff] %v2822
        %2855 = vst [vmem:[#allocation4 + $0x390] sm:$0xff] %v2823
        %2856 = vst [vmem:[#allocation4 + $0x3d8] sm:$0xff] %v2824
        %2857 = vst [vmem:[#allocation4 + $0x420] sm:$0xff] %v2825
        %2858 = vst [vmem:[#allocation4 + $0x468] sm:$0xff] %v2826
        %v2859 = vld [vmem:[%s2714] sm:$0xf]
        %v2860 = vld [vmem:[%s2714 + $0x4] sm:$0xf]
        %v2861 = vld [vmem:[%s2714 + $0x8] sm:$0x1]
        %v2862 = vld [vmem:[%s2714 + $0xc] sm:$0xf]
        %v2863 = vld [vmem:[%s2714 + $0x10] sm:$0xf]
        %v2864 = vld [vmem:[%s2714 + $0x14] sm:$0x1]
        %v2865 = vld [vmem:[%s2714 + $0x18] sm:$0xf]
        %v2866 = vld [vmem:[%s2714 + $0x1c] sm:$0xf]
        %v2867 = vld [vmem:[%s2714 + $0x20] sm:$0x1]
        %v2868 = vld [vmem:[%s2714 + $0x24] sm:$0xf]
        %v2869 = vld [vmem:[%s2714 + $0x28] sm:$0xf]
        %v2870 = vld [vmem:[%s2714 + $0x2c] sm:$0x1]
        %v2871 = vld [vmem:[%s2714 + $0x30] sm:$0xf]
        %v2872 = vld [vmem:[%s2714 + $0x34] sm:$0xf]
        %v2873 = vld [vmem:[%s2714 + $0x38] sm:$0x1]
        %v2874 = vld [vmem:[%s2714 + $0x3c] sm:$0xf]
        %v2875 = vld [vmem:[%s2714 + $0x40] sm:$0xf]
        %v2876 = vld [vmem:[%s2714 + $0x44] sm:$0x1]
        %v2877 = vld [vmem:[%s2714 + $0x48] sm:$0xf]
        %v2878 = vld [vmem:[%s2714 + $0x4c] sm:$0xf]
        %v2879 = vld [vmem:[%s2714 + $0x50] sm:$0x1]
        %v2880 = vld [vmem:[%s2714 + $0x54] sm:$0xf]
        %v2881 = vld [vmem:[%s2714 + $0x58] sm:$0xf]
        %v2882 = vld [vmem:[%s2714 + $0x5c] sm:$0x1]
        %v2883 = vld [vmem:[%s2714 + $0x60] sm:$0xf]
        %v2884 = vld [vmem:[%s2714 + $0x64] sm:$0xf]
        %v2885 = vld [vmem:[%s2714 + $0x68] sm:$0x1]
        %v2886 = vld [vmem:[%s2714 + $0x6c] sm:$0xf]
        %v2887 = vld [vmem:[%s2714 + $0x70] sm:$0xf]
        %v2888 = vld [vmem:[%s2714 + $0x74] sm:$0x1]
        %v2889 = vld [vmem:[%s2714 + $0x78] sm:$0xf]
        %v2890 = vld [vmem:[%s2714 + $0x7c] sm:$0xf]
        %v2891 = vld [vmem:[%s2714 + $0x80] sm:$0x1]
        %v2892 = vld [vmem:[%s2714 + $0x84] sm:$0xf]
        %v2893 = vld [vmem:[%s2714 + $0x88] sm:$0xf]
        %v2894 = vld [vmem:[%s2714 + $0x8c] sm:$0x1]
        %v2895 = vld [vmem:[%s2714 + $0x90] sm:$0xf]
        %v2896 = vld [vmem:[%s2714 + $0x94] sm:$0xf]
        %v2897 = vld [vmem:[%s2714 + $0x98] sm:$0x1]
        %v2898 = vld [vmem:[%s2714 + $0x9c] sm:$0xf]
        %v2899 = vld [vmem:[%s2714 + $0xa0] sm:$0xf]
        %v2900 = vld [vmem:[%s2714 + $0xa4] sm:$0x1]
        %v2901 = vld [vmem:[%s2714 + $0xa8] sm:$0xf]
        %v2902 = vld [vmem:[%s2714 + $0xac] sm:$0xf]
        %v2903 = vld [vmem:[%s2714 + $0xb0] sm:$0x1]
        %v2904 = vld [vmem:[%s2714 + $0xb4] sm:$0xf]
        %v2905 = vld [vmem:[%s2714 + $0xb8] sm:$0xf]
        %v2906 = vld [vmem:[%s2714 + $0xbc] sm:$0x1]
        %v2908 = vshrl.u32 %v2859, 16
        %v2910 = vrot.slane %v2908, 4
        %v2911 = vshll.u32 %v2859, 16
        %v2913 = vrot.slane %v2911, 5
        %v2914 = vor.u32 %v2910, %v2913
        %v2915 = vrot.slane %v2914, 4
        %v2917 = vshll.u32 %v2860, 16
        %v2919 = vrot.slane %v2917, 5
        %v2920 = vsel %vm1014, %v2915, %v2919
        %v2921 = vshrl.u32 %v2860, 16
        %v2923 = vrot.slane %v2921, 4
        %v2924 = vor.u32 %v2923, %v2919
        %v2925 = vrot.slane %v2924, 4
        %v2927 = vshll.u32 %v2861, 16
        %v2929 = vrot.slane %v2927, 5
        %v2930 = vsel %vm1014, %v2925, %v2929
        %v2932 = vshrl.u32 %v2862, 16
        %v2934 = vrot.slane %v2932, 4
        %v2935 = vshll.u32 %v2862, 16
        %v2937 = vrot.slane %v2935, 5
        %v2938 = vor.u32 %v2934, %v2937
        %v2939 = vrot.slane %v2938, 4
        %v2941 = vshll.u32 %v2863, 16
        %v2943 = vrot.slane %v2941, 5
        %v2944 = vsel %vm1014, %v2939, %v2943
        %v2945 = vshrl.u32 %v2863, 16
        %v2947 = vrot.slane %v2945, 4
        %v2948 = vor.u32 %v2947, %v2943
        %v2949 = vrot.slane %v2948, 4
        %v2951 = vshll.u32 %v2864, 16
        %v2953 = vrot.slane %v2951, 5
        %v2954 = vsel %vm1014, %v2949, %v2953
        %v2956 = vshrl.u32 %v2865, 16
        %v2958 = vrot.slane %v2956, 4
        %v2959 = vshll.u32 %v2865, 16
        %v2961 = vrot.slane %v2959, 5
        %v2962 = vor.u32 %v2958, %v2961
        %v2963 = vrot.slane %v2962, 4
        %v2965 = vshll.u32 %v2866, 16
        %v2967 = vrot.slane %v2965, 5
        %v2968 = vsel %vm1014, %v2963, %v2967
        %v2969 = vshrl.u32 %v2866, 16
        %v2971 = vrot.slane %v2969, 4
        %v2972 = vor.u32 %v2971, %v2967
        %v2973 = vrot.slane %v2972, 4
        %v2975 = vshll.u32 %v2867, 16
        %v2977 = vrot.slane %v2975, 5
        %v2978 = vsel %vm1014, %v2973, %v2977
        %v2980 = vshrl.u32 %v2868, 16
        %v2982 = vrot.slane %v2980, 4
        %v2983 = vshll.u32 %v2868, 16
        %v2985 = vrot.slane %v2983, 5
        %v2986 = vor.u32 %v2982, %v2985
        %v2987 = vrot.slane %v2986, 4
        %v2989 = vshll.u32 %v2869, 16
        %v2991 = vrot.slane %v2989, 5
        %v2992 = vsel %vm1014, %v2987, %v2991
        %v2993 = vshrl.u32 %v2869, 16
        %v2995 = vrot.slane %v2993, 4
        %v2996 = vor.u32 %v2995, %v2991
        %v2997 = vrot.slane %v2996, 4
        %v2999 = vshll.u32 %v2870, 16
        %v3001 = vrot.slane %v2999, 5
        %v3002 = vsel %vm1014, %v2997, %v3001
        %v3004 = vshrl.u32 %v2871, 16
        %v3006 = vrot.slane %v3004, 4
        %v3007 = vshll.u32 %v2871, 16
        %v3009 = vrot.slane %v3007, 5
        %v3010 = vor.u32 %v3006, %v3009
        %v3011 = vrot.slane %v3010, 4
        %v3013 = vshll.u32 %v2872, 16
        %v3015 = vrot.slane %v3013, 5
        %v3016 = vsel %vm1014, %v3011, %v3015
        %v3017 = vshrl.u32 %v2872, 16
        %v3019 = vrot.slane %v3017, 4
        %v3020 = vor.u32 %v3019, %v3015
        %v3021 = vrot.slane %v3020, 4
        %v3023 = vshll.u32 %v2873, 16
        %v3025 = vrot.slane %v3023, 5
        %v3026 = vsel %vm1014, %v3021, %v3025
        %v3028 = vshrl.u32 %v2874, 16
        %v3030 = vrot.slane %v3028, 4
        %v3031 = vshll.u32 %v2874, 16
        %v3033 = vrot.slane %v3031, 5
        %v3034 = vor.u32 %v3030, %v3033
        %v3035 = vrot.slane %v3034, 4
        %v3037 = vshll.u32 %v2875, 16
        %v3039 = vrot.slane %v3037, 5
        %v3040 = vsel %vm1014, %v3035, %v3039
        %v3041 = vshrl.u32 %v2875, 16
        %v3043 = vrot.slane %v3041, 4
        %v3044 = vor.u32 %v3043, %v3039
        %v3045 = vrot.slane %v3044, 4
        %v3047 = vshll.u32 %v2876, 16
        %v3049 = vrot.slane %v3047, 5
        %v3050 = vsel %vm1014, %v3045, %v3049
        %v3052 = vshrl.u32 %v2877, 16
        %v3054 = vrot.slane %v3052, 4
        %v3055 = vshll.u32 %v2877, 16
        %v3057 = vrot.slane %v3055, 5
        %v3058 = vor.u32 %v3054, %v3057
        %v3059 = vrot.slane %v3058, 4
        %v3061 = vshll.u32 %v2878, 16
        %v3063 = vrot.slane %v3061, 5
        %v3064 = vsel %vm1014, %v3059, %v3063
        %v3065 = vshrl.u32 %v2878, 16
        %v3067 = vrot.slane %v3065, 4
        %v3068 = vor.u32 %v3067, %v3063
        %v3069 = vrot.slane %v3068, 4
        %v3071 = vshll.u32 %v2879, 16
        %v3073 = vrot.slane %v3071, 5
        %v3074 = vsel %vm1014, %v3069, %v3073
        %v3076 = vshrl.u32 %v2880, 16
        %v3078 = vrot.slane %v3076, 4
        %v3079 = vshll.u32 %v2880, 16
        %v3081 = vrot.slane %v3079, 5
        %v3082 = vor.u32 %v3078, %v3081
        %v3083 = vrot.slane %v3082, 4
        %v3085 = vshll.u32 %v2881, 16
        %v3087 = vrot.slane %v3085, 5
        %v3088 = vsel %vm1014, %v3083, %v3087
        %v3089 = vshrl.u32 %v2881, 16
        %v3091 = vrot.slane %v3089, 4
        %v3092 = vor.u32 %v3091, %v3087
        %v3093 = vrot.slane %v3092, 4
        %v3095 = vshll.u32 %v2882, 16
        %v3097 = vrot.slane %v3095, 5
        %v3098 = vsel %vm1014, %v3093, %v3097
        %v3100 = vshrl.u32 %v2883, 16
        %v3102 = vrot.slane %v3100, 4
        %v3103 = vshll.u32 %v2883, 16
        %v3105 = vrot.slane %v3103, 5
        %v3106 = vor.u32 %v3102, %v3105
        %v3107 = vrot.slane %v3106, 4
        %v3109 = vshll.u32 %v2884, 16
        %v3111 = vrot.slane %v3109, 5
        %v3112 = vsel %vm1014, %v3107, %v3111
        %v3113 = vshrl.u32 %v2884, 16
        %v3115 = vrot.slane %v3113, 4
        %v3116 = vor.u32 %v3115, %v3111
        %v3117 = vrot.slane %v3116, 4
        %v3119 = vshll.u32 %v2885, 16
        %v3121 = vrot.slane %v3119, 5
        %v3122 = vsel %vm1014, %v3117, %v3121
        %v3124 = vshrl.u32 %v2886, 16
        %v3126 = vrot.slane %v3124, 4
        %v3127 = vshll.u32 %v2886, 16
        %v3129 = vrot.slane %v3127, 5
        %v3130 = vor.u32 %v3126, %v3129
        %v3131 = vrot.slane %v3130, 4
        %v3133 = vshll.u32 %v2887, 16
        %v3135 = vrot.slane %v3133, 5
        %v3136 = vsel %vm1014, %v3131, %v3135
        %v3137 = vshrl.u32 %v2887, 16
        %v3139 = vrot.slane %v3137, 4
        %v3140 = vor.u32 %v3139, %v3135
        %v3141 = vrot.slane %v3140, 4
        %v3143 = vshll.u32 %v2888, 16
        %v3145 = vrot.slane %v3143, 5
        %v3146 = vsel %vm1014, %v3141, %v3145
        %v3148 = vshrl.u32 %v2889, 16
        %v3150 = vrot.slane %v3148, 4
        %v3151 = vshll.u32 %v2889, 16
        %v3153 = vrot.slane %v3151, 5
        %v3154 = vor.u32 %v3150, %v3153
        %v3155 = vrot.slane %v3154, 4
        %v3157 = vshll.u32 %v2890, 16
        %v3159 = vrot.slane %v3157, 5
        %v3160 = vsel %vm1014, %v3155, %v3159
        %v3161 = vshrl.u32 %v2890, 16
        %v3163 = vrot.slane %v3161, 4
        %v3164 = vor.u32 %v3163, %v3159
        %v3165 = vrot.slane %v3164, 4
        %v3167 = vshll.u32 %v2891, 16
        %v3169 = vrot.slane %v3167, 5
        %v3170 = vsel %vm1014, %v3165, %v3169
        %v3172 = vshrl.u32 %v2892, 16
        %v3174 = vrot.slane %v3172, 4
        %v3175 = vshll.u32 %v2892, 16
        %v3177 = vrot.slane %v3175, 5
        %v3178 = vor.u32 %v3174, %v3177
        %v3179 = vrot.slane %v3178, 4
        %v3181 = vshll.u32 %v2893, 16
        %v3183 = vrot.slane %v3181, 5
        %v3184 = vsel %vm1014, %v3179, %v3183
        %v3185 = vshrl.u32 %v2893, 16
        %v3187 = vrot.slane %v3185, 4
        %v3188 = vor.u32 %v3187, %v3183
        %v3189 = vrot.slane %v3188, 4
        %v3191 = vshll.u32 %v2894, 16
        %v3193 = vrot.slane %v3191, 5
        %v3194 = vsel %vm1014, %v3189, %v3193
        %v3196 = vshrl.u32 %v2895, 16
        %v3198 = vrot.slane %v3196, 4
        %v3199 = vshll.u32 %v2895, 16
        %v3201 = vrot.slane %v3199, 5
        %v3202 = vor.u32 %v3198, %v3201
        %v3203 = vrot.slane %v3202, 4
        %v3205 = vshll.u32 %v2896, 16
        %v3207 = vrot.slane %v3205, 5
        %v3208 = vsel %vm1014, %v3203, %v3207
        %v3209 = vshrl.u32 %v2896, 16
        %v3211 = vrot.slane %v3209, 4
        %v3212 = vor.u32 %v3211, %v3207
        %v3213 = vrot.slane %v3212, 4
        %v3215 = vshll.u32 %v2897, 16
        %v3217 = vrot.slane %v3215, 5
        %v3218 = vsel %vm1014, %v3213, %v3217
        %v3220 = vshrl.u32 %v2898, 16
        %v3222 = vrot.slane %v3220, 4
        %v3223 = vshll.u32 %v2898, 16
        %v3225 = vrot.slane %v3223, 5
        %v3226 = vor.u32 %v3222, %v3225
        %v3227 = vrot.slane %v3226, 4
        %v3229 = vshll.u32 %v2899, 16
        %v3231 = vrot.slane %v3229, 5
        %v3232 = vsel %vm1014, %v3227, %v3231
        %v3233 = vshrl.u32 %v2899, 16
        %v3235 = vrot.slane %v3233, 4
        %v3236 = vor.u32 %v3235, %v3231
        %v3237 = vrot.slane %v3236, 4
        %v3239 = vshll.u32 %v2900, 16
        %v3241 = vrot.slane %v3239, 5
        %v3242 = vsel %vm1014, %v3237, %v3241
        %v3244 = vshrl.u32 %v2901, 16
        %v3246 = vrot.slane %v3244, 4
        %v3247 = vshll.u32 %v2901, 16
        %v3249 = vrot.slane %v3247, 5
        %v3250 = vor.u32 %v3246, %v3249
        %v3251 = vrot.slane %v3250, 4
        %v3253 = vshll.u32 %v2902, 16
        %v3255 = vrot.slane %v3253, 5
        %v3256 = vsel %vm1014, %v3251, %v3255
        %v3257 = vshrl.u32 %v2902, 16
        %v3259 = vrot.slane %v3257, 4
        %v3260 = vor.u32 %v3259, %v3255
        %v3261 = vrot.slane %v3260, 4
        %v3263 = vshll.u32 %v2903, 16
        %v3265 = vrot.slane %v3263, 5
        %v3266 = vsel %vm1014, %v3261, %v3265
        %v3268 = vshrl.u32 %v2904, 16
        %v3270 = vrot.slane %v3268, 4
        %v3271 = vshll.u32 %v2904, 16
        %v3273 = vrot.slane %v3271, 5
        %v3274 = vor.u32 %v3270, %v3273
        %v3275 = vrot.slane %v3274, 4
        %v3277 = vshll.u32 %v2905, 16
        %v3279 = vrot.slane %v3277, 5
        %v3280 = vsel %vm1014, %v3275, %v3279
        %v3281 = vshrl.u32 %v2905, 16
        %v3283 = vrot.slane %v3281, 4
        %v3284 = vor.u32 %v3283, %v3279
        %v3285 = vrot.slane %v3284, 4
        %v3287 = vshll.u32 %v2906, 16
        %v3289 = vrot.slane %v3287, 5
        %v3290 = vsel %vm1014, %v3285, %v3289
        %v3291 = vunpack.c.l.b16 %v2920
        %v3292 = vunpack.c.l.b16 %v2930
        %v3293 = vunpack.c.l.b16 %v2944
        %v3294 = vunpack.c.l.b16 %v2954
        %v3295 = vunpack.c.l.b16 %v2968
        %v3296 = vunpack.c.l.b16 %v2978
        %v3297 = vunpack.c.l.b16 %v2992
        %v3298 = vunpack.c.l.b16 %v3002
        %v3299 = vunpack.c.l.b16 %v3016
        %v3300 = vunpack.c.l.b16 %v3026
        %v3301 = vunpack.c.l.b16 %v3040
        %v3302 = vunpack.c.l.b16 %v3050
        %v3303 = vunpack.c.l.b16 %v3064
        %v3304 = vunpack.c.l.b16 %v3074
        %v3305 = vunpack.c.l.b16 %v3088
        %v3306 = vunpack.c.l.b16 %v3098
        %v3307 = vunpack.c.l.b16 %v3112
        %v3308 = vunpack.c.l.b16 %v3122
        %v3309 = vunpack.c.l.b16 %v3136
        %v3310 = vunpack.c.l.b16 %v3146
        %v3311 = vunpack.c.l.b16 %v3160
        %v3312 = vunpack.c.l.b16 %v3170
        %v3313 = vunpack.c.l.b16 %v3184
        %v3314 = vunpack.c.l.b16 %v3194
        %v3315 = vunpack.c.l.b16 %v3208
        %v3316 = vunpack.c.l.b16 %v3218
        %v3317 = vunpack.c.l.b16 %v3232
        %v3318 = vunpack.c.l.b16 %v3242
        %v3319 = vunpack.c.l.b16 %v3256
        %v3320 = vunpack.c.l.b16 %v3266
        %v3321 = vunpack.c.l.b16 %v3280
        %v3322 = vunpack.c.l.b16 %v3290
        %v3323 = vpack.c.b16 %v3292, %v3291
        %v3324 = vpack.c.b16 %v3294, %v3293
        %v3325 = vpack.c.b16 %v3296, %v3295
        %v3326 = vpack.c.b16 %v3298, %v3297
        %v3327 = vpack.c.b16 %v3300, %v3299
        %v3328 = vpack.c.b16 %v3302, %v3301
        %v3329 = vpack.c.b16 %v3304, %v3303
        %v3330 = vpack.c.b16 %v3306, %v3305
        %v3331 = vpack.c.b16 %v3308, %v3307
        %v3332 = vpack.c.b16 %v3310, %v3309
        %v3333 = vpack.c.b16 %v3312, %v3311
        %v3334 = vpack.c.b16 %v3314, %v3313
        %v3335 = vpack.c.b16 %v3316, %v3315
        %v3336 = vpack.c.b16 %v3318, %v3317
        %v3337 = vpack.c.b16 %v3320, %v3319
        %v3338 = vpack.c.b16 %v3322, %v3321
        %3355 = vst [vmem:[#allocation4 + $0x38] sm:$0xff] %v3323
        %3356 = vst [vmem:[#allocation4 + $0x80] sm:$0xff] %v3324
        %3357 = vst [vmem:[#allocation4 + $0xc8] sm:$0xff] %v3325
        %3358 = vst [vmem:[#allocation4 + $0x110] sm:$0xff] %v3326
        %3359 = vst [vmem:[#allocation4 + $0x158] sm:$0xff] %v3327
        %3360 = vst [vmem:[#allocation4 + $0x1a0] sm:$0xff] %v3328
        %3361 = vst [vmem:[#allocation4 + $0x1e8] sm:$0xff] %v3329
        %3362 = vst [vmem:[#allocation4 + $0x230] sm:$0xff] %v3330
        %3363 = vst [vmem:[#allocation4 + $0x278] sm:$0xff] %v3331
        %3364 = vst [vmem:[#allocation4 + $0x2c0] sm:$0xff] %v3332
        %3365 = vst [vmem:[#allocation4 + $0x308] sm:$0xff] %v3333
        %3366 = vst [vmem:[#allocation4 + $0x350] sm:$0xff] %v3334
        %3367 = vst [vmem:[#allocation4 + $0x398] sm:$0xff] %v3335
        %3368 = vst [vmem:[#allocation4 + $0x3e0] sm:$0xff] %v3336
        %3369 = vst [vmem:[#allocation4 + $0x428] sm:$0xff] %v3337
        %3370 = vst [vmem:[#allocation4 + $0x470] sm:$0xff] %v3338
        %v3371 = vld [vmem:[%s2714] sm:$0xe]
        %v3372 = vld [vmem:[%s2714 + $0x4] sm:$0xf]
        %v3373 = vld [vmem:[%s2714 + $0x8] sm:$0x1]
        %v3374 = vld [vmem:[%s2714 + $0xc] sm:$0xe]
        %v3375 = vld [vmem:[%s2714 + $0x10] sm:$0xf]
        %v3376 = vld [vmem:[%s2714 + $0x14] sm:$0x1]
        %v3377 = vld [vmem:[%s2714 + $0x18] sm:$0xe]
        %v3378 = vld [vmem:[%s2714 + $0x1c] sm:$0xf]
        %v3379 = vld [vmem:[%s2714 + $0x20] sm:$0x1]
        %v3380 = vld [vmem:[%s2714 + $0x24] sm:$0xe]
        %v3381 = vld [vmem:[%s2714 + $0x28] sm:$0xf]
        %v3382 = vld [vmem:[%s2714 + $0x2c] sm:$0x1]
        %v3383 = vld [vmem:[%s2714 + $0x30] sm:$0xe]
        %v3384 = vld [vmem:[%s2714 + $0x34] sm:$0xf]
        %v3385 = vld [vmem:[%s2714 + $0x38] sm:$0x1]
        %v3386 = vld [vmem:[%s2714 + $0x3c] sm:$0xe]
        %v3387 = vld [vmem:[%s2714 + $0x40] sm:$0xf]
        %v3388 = vld [vmem:[%s2714 + $0x44] sm:$0x1]
        %v3389 = vld [vmem:[%s2714 + $0x48] sm:$0xe]
        %v3390 = vld [vmem:[%s2714 + $0x4c] sm:$0xf]
        %v3391 = vld [vmem:[%s2714 + $0x50] sm:$0x1]
        %v3392 = vld [vmem:[%s2714 + $0x54] sm:$0xe]
        %v3393 = vld [vmem:[%s2714 + $0x58] sm:$0xf]
        %v3394 = vld [vmem:[%s2714 + $0x5c] sm:$0x1]
        %v3395 = vld [vmem:[%s2714 + $0x60] sm:$0xe]
        %v3396 = vld [vmem:[%s2714 + $0x64] sm:$0xf]
        %v3397 = vld [vmem:[%s2714 + $0x68] sm:$0x1]
        %v3398 = vld [vmem:[%s2714 + $0x6c] sm:$0xe]
        %v3399 = vld [vmem:[%s2714 + $0x70] sm:$0xf]
        %v3400 = vld [vmem:[%s2714 + $0x74] sm:$0x1]
        %v3401 = vld [vmem:[%s2714 + $0x78] sm:$0xe]
        %v3402 = vld [vmem:[%s2714 + $0x7c] sm:$0xf]
        %v3403 = vld [vmem:[%s2714 + $0x80] sm:$0x1]
        %v3404 = vld [vmem:[%s2714 + $0x84] sm:$0xe]
        %v3405 = vld [vmem:[%s2714 + $0x88] sm:$0xf]
        %v3406 = vld [vmem:[%s2714 + $0x8c] sm:$0x1]
        %v3407 = vld [vmem:[%s2714 + $0x90] sm:$0xe]
        %v3408 = vld [vmem:[%s2714 + $0x94] sm:$0xf]
        %v3409 = vld [vmem:[%s2714 + $0x98] sm:$0x1]
        %v3410 = vld [vmem:[%s2714 + $0x9c] sm:$0xe]
        %v3411 = vld [vmem:[%s2714 + $0xa0] sm:$0xf]
        %v3412 = vld [vmem:[%s2714 + $0xa4] sm:$0x1]
        %v3413 = vld [vmem:[%s2714 + $0xa8] sm:$0xe]
        %v3414 = vld [vmem:[%s2714 + $0xac] sm:$0xf]
        %v3415 = vld [vmem:[%s2714 + $0xb0] sm:$0x1]
        %v3416 = vld [vmem:[%s2714 + $0xb4] sm:$0xe]
        %v3417 = vld [vmem:[%s2714 + $0xb8] sm:$0xf]
        %v3418 = vld [vmem:[%s2714 + $0xbc] sm:$0x1]
        %v3467 = vrot.slane %v3371, 5
        %v3468 = vrot.slane %v3467, 4
        %v3469 = vrot.slane %v3372, 5
        %v3470 = vsel %vm1577, %v3468, %v3469
        %v3471 = vrot.slane %v3469, 4
        %v3472 = vrot.slane %v3373, 5
        %v3473 = vsel %vm1577, %v3471, %v3472
        %v3474 = vrot.slane %v3374, 5
        %v3475 = vrot.slane %v3474, 4
        %v3476 = vrot.slane %v3375, 5
        %v3477 = vsel %vm1577, %v3475, %v3476
        %v3478 = vrot.slane %v3476, 4
        %v3479 = vrot.slane %v3376, 5
        %v3480 = vsel %vm1577, %v3478, %v3479
        %v3481 = vrot.slane %v3377, 5
        %v3482 = vrot.slane %v3481, 4
        %v3483 = vrot.slane %v3378, 5
        %v3484 = vsel %vm1577, %v3482, %v3483
        %v3485 = vrot.slane %v3483, 4
        %v3486 = vrot.slane %v3379, 5
        %v3487 = vsel %vm1577, %v3485, %v3486
        %v3488 = vrot.slane %v3380, 5
        %v3489 = vrot.slane %v3488, 4
        %v3490 = vrot.slane %v3381, 5
        %v3491 = vsel %vm1577, %v3489, %v3490
        %v3492 = vrot.slane %v3490, 4
        %v3493 = vrot.slane %v3382, 5
        %v3494 = vsel %vm1577, %v3492, %v3493
        %v3495 = vrot.slane %v3383, 5
        %v3496 = vrot.slane %v3495, 4
        %v3497 = vrot.slane %v3384, 5
        %v3498 = vsel %vm1577, %v3496, %v3497
        %v3499 = vrot.slane %v3497, 4
        %v3500 = vrot.slane %v3385, 5
        %v3501 = vsel %vm1577, %v3499, %v3500
        %v3502 = vrot.slane %v3386, 5
        %v3503 = vrot.slane %v3502, 4
        %v3504 = vrot.slane %v3387, 5
        %v3505 = vsel %vm1577, %v3503, %v3504
        %v3506 = vrot.slane %v3504, 4
        %v3507 = vrot.slane %v3388, 5
        %v3508 = vsel %vm1577, %v3506, %v3507
        %v3509 = vrot.slane %v3389, 5
        %v3510 = vrot.slane %v3509, 4
        %v3511 = vrot.slane %v3390, 5
        %v3512 = vsel %vm1577, %v3510, %v3511
        %v3513 = vrot.slane %v3511, 4
        %v3514 = vrot.slane %v3391, 5
        %v3515 = vsel %vm1577, %v3513, %v3514
        %v3516 = vrot.slane %v3392, 5
        %v3517 = vrot.slane %v3516, 4
        %v3518 = vrot.slane %v3393, 5
        %v3519 = vsel %vm1577, %v3517, %v3518
        %v3520 = vrot.slane %v3518, 4
        %v3521 = vrot.slane %v3394, 5
        %v3522 = vsel %vm1577, %v3520, %v3521
        %v3523 = vrot.slane %v3395, 5
        %v3524 = vrot.slane %v3523, 4
        %v3525 = vrot.slane %v3396, 5
        %v3526 = vsel %vm1577, %v3524, %v3525
        %v3527 = vrot.slane %v3525, 4
        %v3528 = vrot.slane %v3397, 5
        %v3529 = vsel %vm1577, %v3527, %v3528
        %v3530 = vrot.slane %v3398, 5
        %v3531 = vrot.slane %v3530, 4
        %v3532 = vrot.slane %v3399, 5
        %v3533 = vsel %vm1577, %v3531, %v3532
        %v3534 = vrot.slane %v3532, 4
        %v3535 = vrot.slane %v3400, 5
        %v3536 = vsel %vm1577, %v3534, %v3535
        %v3537 = vrot.slane %v3401, 5
        %v3538 = vrot.slane %v3537, 4
        %v3539 = vrot.slane %v3402, 5
        %v3540 = vsel %vm1577, %v3538, %v3539
        %v3541 = vrot.slane %v3539, 4
        %v3542 = vrot.slane %v3403, 5
        %v3543 = vsel %vm1577, %v3541, %v3542
        %v3544 = vrot.slane %v3404, 5
        %v3545 = vrot.slane %v3544, 4
        %v3546 = vrot.slane %v3405, 5
        %v3547 = vsel %vm1577, %v3545, %v3546
        %v3548 = vrot.slane %v3546, 4
        %v3549 = vrot.slane %v3406, 5
        %v3550 = vsel %vm1577, %v3548, %v3549
        %v3551 = vrot.slane %v3407, 5
        %v3552 = vrot.slane %v3551, 4
        %v3553 = vrot.slane %v3408, 5
        %v3554 = vsel %vm1577, %v3552, %v3553
        %v3555 = vrot.slane %v3553, 4
        %v3556 = vrot.slane %v3409, 5
        %v3557 = vsel %vm1577, %v3555, %v3556
        %v3558 = vrot.slane %v3410, 5
        %v3559 = vrot.slane %v3558, 4
        %v3560 = vrot.slane %v3411, 5
        %v3561 = vsel %vm1577, %v3559, %v3560
        %v3562 = vrot.slane %v3560, 4
        %v3563 = vrot.slane %v3412, 5
        %v3564 = vsel %vm1577, %v3562, %v3563
        %v3565 = vrot.slane %v3413, 5
        %v3566 = vrot.slane %v3565, 4
        %v3567 = vrot.slane %v3414, 5
        %v3568 = vsel %vm1577, %v3566, %v3567
        %v3569 = vrot.slane %v3567, 4
        %v3570 = vrot.slane %v3415, 5
        %v3571 = vsel %vm1577, %v3569, %v3570
        %v3572 = vrot.slane %v3416, 5
        %v3573 = vrot.slane %v3572, 4
        %v3574 = vrot.slane %v3417, 5
        %v3575 = vsel %vm1577, %v3573, %v3574
        %v3576 = vrot.slane %v3574, 4
        %v3577 = vrot.slane %v3418, 5
        %v3578 = vsel %vm1577, %v3576, %v3577
        %v3579 = vunpack.c.l.b16 %v3470
        %v3580 = vunpack.c.l.b16 %v3473
        %v3581 = vunpack.c.l.b16 %v3477
        %v3582 = vunpack.c.l.b16 %v3480
        %v3583 = vunpack.c.l.b16 %v3484
        %v3584 = vunpack.c.l.b16 %v3487
        %v3585 = vunpack.c.l.b16 %v3491
        %v3586 = vunpack.c.l.b16 %v3494
        %v3587 = vunpack.c.l.b16 %v3498
        %v3588 = vunpack.c.l.b16 %v3501
        %v3589 = vunpack.c.l.b16 %v3505
        %v3590 = vunpack.c.l.b16 %v3508
        %v3591 = vunpack.c.l.b16 %v3512
        %v3592 = vunpack.c.l.b16 %v3515
        %v3593 = vunpack.c.l.b16 %v3519
        %v3594 = vunpack.c.l.b16 %v3522
        %v3595 = vunpack.c.l.b16 %v3526
        %v3596 = vunpack.c.l.b16 %v3529
        %v3597 = vunpack.c.l.b16 %v3533
        %v3598 = vunpack.c.l.b16 %v3536
        %v3599 = vunpack.c.l.b16 %v3540
        %v3600 = vunpack.c.l.b16 %v3543
        %v3601 = vunpack.c.l.b16 %v3547
        %v3602 = vunpack.c.l.b16 %v3550
        %v3603 = vunpack.c.l.b16 %v3554
        %v3604 = vunpack.c.l.b16 %v3557
        %v3605 = vunpack.c.l.b16 %v3561
        %v3606 = vunpack.c.l.b16 %v3564
        %v3607 = vunpack.c.l.b16 %v3568
        %v3608 = vunpack.c.l.b16 %v3571
        %v3609 = vunpack.c.l.b16 %v3575
        %v3610 = vunpack.c.l.b16 %v3578
        %v3611 = vpack.c.b16 %v3580, %v3579
        %v3612 = vpack.c.b16 %v3582, %v3581
        %v3613 = vpack.c.b16 %v3584, %v3583
        %v3614 = vpack.c.b16 %v3586, %v3585
        %v3615 = vpack.c.b16 %v3588, %v3587
        %v3616 = vpack.c.b16 %v3590, %v3589
        %v3617 = vpack.c.b16 %v3592, %v3591
        %v3618 = vpack.c.b16 %v3594, %v3593
        %v3619 = vpack.c.b16 %v3596, %v3595
        %v3620 = vpack.c.b16 %v3598, %v3597
        %v3621 = vpack.c.b16 %v3600, %v3599
        %v3622 = vpack.c.b16 %v3602, %v3601
        %v3623 = vpack.c.b16 %v3604, %v3603
        %v3624 = vpack.c.b16 %v3606, %v3605
        %v3625 = vpack.c.b16 %v3608, %v3607
        %v3626 = vpack.c.b16 %v3610, %v3609
        %3643 = vst [vmem:[#allocation4 + $0x40] sm:$0xff] %v3611
        %3644 = vst [vmem:[#allocation4 + $0x88] sm:$0xff] %v3612
        %3645 = vst [vmem:[#allocation4 + $0xd0] sm:$0xff] %v3613
        %3646 = vst [vmem:[#allocation4 + $0x118] sm:$0xff] %v3614
        %3647 = vst [vmem:[#allocation4 + $0x160] sm:$0xff] %v3615
        %3648 = vst [vmem:[#allocation4 + $0x1a8] sm:$0xff] %v3616
        %3649 = vst [vmem:[#allocation4 + $0x1f0] sm:$0xff] %v3617
        %3650 = vst [vmem:[#allocation4 + $0x238] sm:$0xff] %v3618
        %3651 = vst [vmem:[#allocation4 + $0x280] sm:$0xff] %v3619
        %3652 = vst [vmem:[#allocation4 + $0x2c8] sm:$0xff] %v3620
        %3653 = vst [vmem:[#allocation4 + $0x310] sm:$0xff] %v3621
        %3654 = vst [vmem:[#allocation4 + $0x358] sm:$0xff] %v3622
        %3655 = vst [vmem:[#allocation4 + $0x3a0] sm:$0xff] %v3623
        %3656 = vst [vmem:[#allocation4 + $0x3e8] sm:$0xff] %v3624
        %3657 = vst [vmem:[#allocation4 + $0x430] sm:$0xff] %v3625
        %3658 = vst [vmem:[#allocation4 + $0x478] sm:$0xff] %v3626
        %v3659 = vld [vmem:[#allocation4] sm:$0xff]
        %v3660 = vld [vmem:[#allocation4 + $0x8] sm:$0xff]
        %v3661 = vld [vmem:[#allocation4 + $0x10] sm:$0xff]
        %v3662 = vld [vmem:[#allocation4 + $0x18] sm:$0xff]
        %v3663 = vld [vmem:[#allocation4 + $0x20] sm:$0xff]
        %v3664 = vld [vmem:[#allocation4 + $0x28] sm:$0xff]
        %v3665 = vld [vmem:[#allocation4 + $0x30] sm:$0xff]
        %v3666 = vld [vmem:[#allocation4 + $0x38] sm:$0xff]
        %v3667 = vld [vmem:[#allocation4 + $0x40] sm:$0xff]
        %v3668 = vld [vmem:[#allocation4 + $0x48] sm:$0xff]
        %v3669 = vld [vmem:[#allocation4 + $0x50] sm:$0xff]
        %v3670 = vld [vmem:[#allocation4 + $0x58] sm:$0xff]
        %v3671 = vld [vmem:[#allocation4 + $0x60] sm:$0xff]
        %v3672 = vld [vmem:[#allocation4 + $0x68] sm:$0xff]
        %v3673 = vld [vmem:[#allocation4 + $0x70] sm:$0xff]
        %v3674 = vld [vmem:[#allocation4 + $0x78] sm:$0xff]
        %v3675 = vld [vmem:[#allocation4 + $0x80] sm:$0xff]
        %v3676 = vld [vmem:[#allocation4 + $0x88] sm:$0xff]
        %v3677 = vld [vmem:[#allocation4 + $0x90] sm:$0xff]
        %v3678 = vld [vmem:[#allocation4 + $0x98] sm:$0xff]
        %v3679 = vld [vmem:[#allocation4 + $0xa0] sm:$0xff]
        %v3680 = vld [vmem:[#allocation4 + $0xa8] sm:$0xff]
        %v3681 = vld [vmem:[#allocation4 + $0xb0] sm:$0xff]
        %v3682 = vld [vmem:[#allocation4 + $0xb8] sm:$0xff]
        %v3683 = vld [vmem:[#allocation4 + $0xc0] sm:$0xff]
        %v3684 = vld [vmem:[#allocation4 + $0xc8] sm:$0xff]
        %v3685 = vld [vmem:[#allocation4 + $0xd0] sm:$0xff]
        %v3686 = vld [vmem:[#allocation4 + $0xd8] sm:$0xff]
        %v3687 = vld [vmem:[#allocation4 + $0xe0] sm:$0xff]
        %v3688 = vld [vmem:[#allocation4 + $0xe8] sm:$0xff]
        %v3689 = vld [vmem:[#allocation4 + $0xf0] sm:$0xff]
        %v3690 = vld [vmem:[#allocation4 + $0xf8] sm:$0xff]
        %v3691 = vld [vmem:[#allocation4 + $0x100] sm:$0xff]
        %v3692 = vld [vmem:[#allocation4 + $0x108] sm:$0xff]
        %v3693 = vld [vmem:[#allocation4 + $0x110] sm:$0xff]
        %v3694 = vld [vmem:[#allocation4 + $0x118] sm:$0xff]
        %v3695 = vld [vmem:[#allocation4 + $0x120] sm:$0xff]
        %v3696 = vld [vmem:[#allocation4 + $0x128] sm:$0xff]
        %v3697 = vld [vmem:[#allocation4 + $0x130] sm:$0xff]
        %v3698 = vld [vmem:[#allocation4 + $0x138] sm:$0xff]
        %v3699 = vld [vmem:[#allocation4 + $0x140] sm:$0xff]
        %v3700 = vld [vmem:[#allocation4 + $0x148] sm:$0xff]
        %v3701 = vld [vmem:[#allocation4 + $0x150] sm:$0xff]
        %v3702 = vld [vmem:[#allocation4 + $0x158] sm:$0xff]
        %v3703 = vld [vmem:[#allocation4 + $0x160] sm:$0xff]
        %v3704 = vld [vmem:[#allocation4 + $0x168] sm:$0xff]
        %v3705 = vld [vmem:[#allocation4 + $0x170] sm:$0xff]
        %v3706 = vld [vmem:[#allocation4 + $0x178] sm:$0xff]
        %v3707 = vld [vmem:[#allocation4 + $0x180] sm:$0xff]
        %v3708 = vld [vmem:[#allocation4 + $0x188] sm:$0xff]
        %v3709 = vld [vmem:[#allocation4 + $0x190] sm:$0xff]
        %v3710 = vld [vmem:[#allocation4 + $0x198] sm:$0xff]
        %v3711 = vld [vmem:[#allocation4 + $0x1a0] sm:$0xff]
        %v3712 = vld [vmem:[#allocation4 + $0x1a8] sm:$0xff]
        %v3713 = vld [vmem:[#allocation4 + $0x1b0] sm:$0xff]
        %v3714 = vld [vmem:[#allocation4 + $0x1b8] sm:$0xff]
        %v3715 = vld [vmem:[#allocation4 + $0x1c0] sm:$0xff]
        %v3716 = vld [vmem:[#allocation4 + $0x1c8] sm:$0xff]
        %v3717 = vld [vmem:[#allocation4 + $0x1d0] sm:$0xff]
        %v3718 = vld [vmem:[#allocation4 + $0x1d8] sm:$0xff]
        %v3719 = vld [vmem:[#allocation4 + $0x1e0] sm:$0xff]
        %v3720 = vld [vmem:[#allocation4 + $0x1e8] sm:$0xff]
        %v3721 = vld [vmem:[#allocation4 + $0x1f0] sm:$0xff]
        %v3722 = vld [vmem:[#allocation4 + $0x1f8] sm:$0xff]
        %v3723 = vld [vmem:[#allocation4 + $0x200] sm:$0xff]
        %v3724 = vld [vmem:[#allocation4 + $0x208] sm:$0xff]
        %v3725 = vld [vmem:[#allocation4 + $0x210] sm:$0xff]
        %v3726 = vld [vmem:[#allocation4 + $0x218] sm:$0xff]
        %v3727 = vld [vmem:[#allocation4 + $0x220] sm:$0xff]
        %v3728 = vld [vmem:[#allocation4 + $0x228] sm:$0xff]
        %v3729 = vld [vmem:[#allocation4 + $0x230] sm:$0xff]
        %v3730 = vld [vmem:[#allocation4 + $0x238] sm:$0xff]
        %v3731 = vld [vmem:[#allocation4 + $0x240] sm:$0xff]
        %v3732 = vld [vmem:[#allocation4 + $0x248] sm:$0xff]
        %v3733 = vld [vmem:[#allocation4 + $0x250] sm:$0xff]
        %v3734 = vld [vmem:[#allocation4 + $0x258] sm:$0xff]
        %v3735 = vld [vmem:[#allocation4 + $0x260] sm:$0xff]
        %v3736 = vld [vmem:[#allocation4 + $0x268] sm:$0xff]
        %v3737 = vld [vmem:[#allocation4 + $0x270] sm:$0xff]
        %v3738 = vld [vmem:[#allocation4 + $0x278] sm:$0xff]
        %v3739 = vld [vmem:[#allocation4 + $0x280] sm:$0xff]
        %v3740 = vld [vmem:[#allocation4 + $0x288] sm:$0xff]
        %v3741 = vld [vmem:[#allocation4 + $0x290] sm:$0xff]
        %v3742 = vld [vmem:[#allocation4 + $0x298] sm:$0xff]
        %v3743 = vld [vmem:[#allocation4 + $0x2a0] sm:$0xff]
        %v3744 = vld [vmem:[#allocation4 + $0x2a8] sm:$0xff]
        %v3745 = vld [vmem:[#allocation4 + $0x2b0] sm:$0xff]
        %v3746 = vld [vmem:[#allocation4 + $0x2b8] sm:$0xff]
        %v3747 = vld [vmem:[#allocation4 + $0x2c0] sm:$0xff]
        %v3748 = vld [vmem:[#allocation4 + $0x2c8] sm:$0xff]
        %v3749 = vld [vmem:[#allocation4 + $0x2d0] sm:$0xff]
        %v3750 = vld [vmem:[#allocation4 + $0x2d8] sm:$0xff]
        %v3751 = vld [vmem:[#allocation4 + $0x2e0] sm:$0xff]
        %v3752 = vld [vmem:[#allocation4 + $0x2e8] sm:$0xff]
        %v3753 = vld [vmem:[#allocation4 + $0x2f0] sm:$0xff]
        %v3754 = vld [vmem:[#allocation4 + $0x2f8] sm:$0xff]
        %v3755 = vld [vmem:[#allocation4 + $0x300] sm:$0xff]
        %v3756 = vld [vmem:[#allocation4 + $0x308] sm:$0xff]
        %v3757 = vld [vmem:[#allocation4 + $0x310] sm:$0xff]
        %v3758 = vld [vmem:[#allocation4 + $0x318] sm:$0xff]
        %v3759 = vld [vmem:[#allocation4 + $0x320] sm:$0xff]
        %v3760 = vld [vmem:[#allocation4 + $0x328] sm:$0xff]
        %v3761 = vld [vmem:[#allocation4 + $0x330] sm:$0xff]
        %v3762 = vld [vmem:[#allocation4 + $0x338] sm:$0xff]
        %v3763 = vld [vmem:[#allocation4 + $0x340] sm:$0xff]
        %v3764 = vld [vmem:[#allocation4 + $0x348] sm:$0xff]
        %v3765 = vld [vmem:[#allocation4 + $0x350] sm:$0xff]
        %v3766 = vld [vmem:[#allocation4 + $0x358] sm:$0xff]
        %v3767 = vld [vmem:[#allocation4 + $0x360] sm:$0xff]
        %v3768 = vld [vmem:[#allocation4 + $0x368] sm:$0xff]
        %v3769 = vld [vmem:[#allocation4 + $0x370] sm:$0xff]
        %v3770 = vld [vmem:[#allocation4 + $0x378] sm:$0xff]
        %v3771 = vld [vmem:[#allocation4 + $0x380] sm:$0xff]
        %v3772 = vld [vmem:[#allocation4 + $0x388] sm:$0xff]
        %v3773 = vld [vmem:[#allocation4 + $0x390] sm:$0xff]
        %v3774 = vld [vmem:[#allocation4 + $0x398] sm:$0xff]
        %v3775 = vld [vmem:[#allocation4 + $0x3a0] sm:$0xff]
        %v3776 = vld [vmem:[#allocation4 + $0x3a8] sm:$0xff]
        %v3777 = vld [vmem:[#allocation4 + $0x3b0] sm:$0xff]
        %v3778 = vld [vmem:[#allocation4 + $0x3b8] sm:$0xff]
        %v3779 = vld [vmem:[#allocation4 + $0x3c0] sm:$0xff]
        %v3780 = vld [vmem:[#allocation4 + $0x3c8] sm:$0xff]
        %v3781 = vld [vmem:[#allocation4 + $0x3d0] sm:$0xff]
        %v3782 = vld [vmem:[#allocation4 + $0x3d8] sm:$0xff]
        %v3783 = vld [vmem:[#allocation4 + $0x3e0] sm:$0xff]
        %v3784 = vld [vmem:[#allocation4 + $0x3e8] sm:$0xff]
        %v3785 = vld [vmem:[#allocation4 + $0x3f0] sm:$0xff]
        %v3786 = vld [vmem:[#allocation4 + $0x3f8] sm:$0xff]
        %v3787 = vld [vmem:[#allocation4 + $0x400] sm:$0xff]
        %v3788 = vld [vmem:[#allocation4 + $0x408] sm:$0xff]
        %v3789 = vld [vmem:[#allocation4 + $0x410] sm:$0xff]
        %v3790 = vld [vmem:[#allocation4 + $0x418] sm:$0xff]
        %v3791 = vld [vmem:[#allocation4 + $0x420] sm:$0xff]
        %v3792 = vld [vmem:[#allocation4 + $0x428] sm:$0xff]
        %v3793 = vld [vmem:[#allocation4 + $0x430] sm:$0xff]
        %v3794 = vld [vmem:[#allocation4 + $0x438] sm:$0xff]
        %v3795 = vld [vmem:[#allocation4 + $0x440] sm:$0xff]
        %v3796 = vld [vmem:[#allocation4 + $0x448] sm:$0xff]
        %v3797 = vld [vmem:[#allocation4 + $0x450] sm:$0xff]
        %v3798 = vld [vmem:[#allocation4 + $0x458] sm:$0xff]
        %v3799 = vld [vmem:[#allocation4 + $0x460] sm:$0xff]
        %v3800 = vld [vmem:[#allocation4 + $0x468] sm:$0xff]
        %v3801 = vld [vmem:[#allocation4 + $0x470] sm:$0xff]
        %v3802 = vld [vmem:[#allocation4 + $0x478] sm:$0xff]
        %v3803 = vld [vmem:[%s1] sm:$0xf]
        %v3804 = vld [vmem:[%s1 + $0x4] sm:$0xf]
        %v3805 = vld [vmem:[%s1 + $0x8] sm:$0xf]
        %v3806 = vld [vmem:[%s1 + $0xc] sm:$0xf]
        %v3807 = vld [vmem:[%s1 + $0x10] sm:$0xf]
        %v3808 = vld [vmem:[%s1 + $0x14] sm:$0xf]
        %v3809 = vld [vmem:[%s1 + $0x18] sm:$0xf]
        %v3810 = vld [vmem:[%s1 + $0x1c] sm:$0xf]
        %v3811 = vld [vmem:[%s1 + $0x20] sm:$0xf]
        %v3812 = vld [vmem:[%s1 + $0x24] sm:$0xf]
        %v3813 = vld [vmem:[%s1 + $0x28] sm:$0xf]
        %v3814 = vld [vmem:[%s1 + $0x2c] sm:$0xf]
        %v3815 = vld [vmem:[%s1 + $0x30] sm:$0xf]
        %v3816 = vld [vmem:[%s1 + $0x34] sm:$0xf]
        %v3817 = vld [vmem:[%s1 + $0x38] sm:$0xf]
        %v3818 = vld [vmem:[%s1 + $0x3c] sm:$0xf]
        %v3819 = vld [vmem:[%s1 + $0x40] sm:$0xf]
        %v3820 = vld [vmem:[%s1 + $0x44] sm:$0xf]
        %v3821 = vld [vmem:[%s1 + $0x48] sm:$0xf]
        %v3822 = vld [vmem:[%s1 + $0x4c] sm:$0xf]
        %v3823 = vld [vmem:[%s1 + $0x50] sm:$0xf]
        %v3824 = vld [vmem:[%s1 + $0x54] sm:$0xf]
        %v3825 = vld [vmem:[%s1 + $0x58] sm:$0xf]
        %v3826 = vld [vmem:[%s1 + $0x5c] sm:$0xf]
        %v3827 = vld [vmem:[%s1 + $0x60] sm:$0xf]
        %v3828 = vld [vmem:[%s1 + $0x64] sm:$0xf]
        %v3829 = vld [vmem:[%s1 + $0x68] sm:$0xf]
        %v3830 = vld [vmem:[%s1 + $0x6c] sm:$0xf]
        %v3831 = vld [vmem:[%s1 + $0x70] sm:$0xf]
        %v3832 = vld [vmem:[%s1 + $0x74] sm:$0xf]
        %v3833 = vld [vmem:[%s1 + $0x78] sm:$0xf]
        %v3834 = vld [vmem:[%s1 + $0x7c] sm:$0xf]
        %v3835 = vld [vmem:[%s1 + $0x80] sm:$0xf]
        %v3836 = vld [vmem:[%s1 + $0x84] sm:$0xf]
        %v3837 = vld [vmem:[%s1 + $0x88] sm:$0xf]
        %v3838 = vld [vmem:[%s1 + $0x8c] sm:$0xf]
        %v3839 = vld [vmem:[%s1 + $0x90] sm:$0xf]
        %v3840 = vld [vmem:[%s1 + $0x94] sm:$0xf]
        %v3841 = vld [vmem:[%s1 + $0x98] sm:$0xf]
        %v3842 = vld [vmem:[%s1 + $0x9c] sm:$0xf]
        %v3843 = vld [vmem:[%s1 + $0xa0] sm:$0xf]
        %v3844 = vld [vmem:[%s1 + $0xa4] sm:$0xf]
        %v3845 = vld [vmem:[%s1 + $0xa8] sm:$0xf]
        %v3846 = vld [vmem:[%s1 + $0xac] sm:$0xf]
        %v3847 = vld [vmem:[%s1 + $0xb0] sm:$0xf]
        %v3848 = vld [vmem:[%s1 + $0xb4] sm:$0xf]
        %v3849 = vld [vmem:[%s1 + $0xb8] sm:$0xf]
        %v3850 = vld [vmem:[%s1 + $0xbc] sm:$0xf]
        %v3851 = vld [vmem:[%s1 + $0xc0] sm:$0xf]
        %v3852 = vld [vmem:[%s1 + $0xc4] sm:$0xf]
        %v3853 = vld [vmem:[%s1 + $0xc8] sm:$0xf]
        %v3854 = vld [vmem:[%s1 + $0xcc] sm:$0xf]
        %v3855 = vld [vmem:[%s1 + $0xd0] sm:$0xf]
        %v3856 = vld [vmem:[%s1 + $0xd4] sm:$0xf]
        %v3857 = vld [vmem:[%s1 + $0xd8] sm:$0xf]
        %v3858 = vld [vmem:[%s1 + $0xdc] sm:$0xf]
        %v3859 = vld [vmem:[%s1 + $0xe0] sm:$0xf]
        %v3860 = vld [vmem:[%s1 + $0xe4] sm:$0xf]
        %v3861 = vld [vmem:[%s1 + $0xe8] sm:$0xf]
        %v3862 = vld [vmem:[%s1 + $0xec] sm:$0xf]
        %v3863 = vld [vmem:[%s1 + $0xf0] sm:$0xf]
        %v3864 = vld [vmem:[%s1 + $0xf4] sm:$0xf]
        %v3865 = vld [vmem:[%s1 + $0xf8] sm:$0xf]
        %v3866 = vld [vmem:[%s1 + $0xfc] sm:$0xf]
        %v3867 = vld [vmem:[%s1 + $0x100] sm:$0xf]
        %v3868 = vld [vmem:[%s1 + $0x104] sm:$0xf]
        %v3869 = vld [vmem:[%s1 + $0x108] sm:$0xf]
        %v3870 = vld [vmem:[%s1 + $0x10c] sm:$0xf]
        %v3871 = vld [vmem:[%s1 + $0x110] sm:$0xf]
        %v3872 = vld [vmem:[%s1 + $0x114] sm:$0xf]
        %v3873 = vld [vmem:[%s1 + $0x118] sm:$0xf]
        %v3874 = vld [vmem:[%s1 + $0x11c] sm:$0xf]
        %v3875 = vld [vmem:[%s1 + $0x120] sm:$0xf]
        %v3876 = vld [vmem:[%s1 + $0x124] sm:$0xf]
        %v3877 = vld [vmem:[%s1 + $0x128] sm:$0xf]
        %v3878 = vld [vmem:[%s1 + $0x12c] sm:$0xf]
        %v3879 = vld [vmem:[%s1 + $0x130] sm:$0xf]
        %v3880 = vld [vmem:[%s1 + $0x134] sm:$0xf]
        %v3881 = vld [vmem:[%s1 + $0x138] sm:$0xf]
        %v3882 = vld [vmem:[%s1 + $0x13c] sm:$0xf]
        %v3883 = vld [vmem:[%s1 + $0x140] sm:$0xf]
        %v3884 = vld [vmem:[%s1 + $0x144] sm:$0xf]
        %v3885 = vld [vmem:[%s1 + $0x148] sm:$0xf]
        %v3886 = vld [vmem:[%s1 + $0x14c] sm:$0xf]
        %v3887 = vld [vmem:[%s1 + $0x150] sm:$0xf]
        %v3888 = vld [vmem:[%s1 + $0x154] sm:$0xf]
        %v3889 = vld [vmem:[%s1 + $0x158] sm:$0xf]
        %v3890 = vld [vmem:[%s1 + $0x15c] sm:$0xf]
        %v3891 = vld [vmem:[%s1 + $0x160] sm:$0xf]
        %v3892 = vld [vmem:[%s1 + $0x164] sm:$0xf]
        %v3893 = vld [vmem:[%s1 + $0x168] sm:$0xf]
        %v3894 = vld [vmem:[%s1 + $0x16c] sm:$0xf]
        %v3895 = vld [vmem:[%s1 + $0x170] sm:$0xf]
        %v3896 = vld [vmem:[%s1 + $0x174] sm:$0xf]
        %v3897 = vld [vmem:[%s1 + $0x178] sm:$0xf]
        %v3898 = vld [vmem:[%s1 + $0x17c] sm:$0xf]
        %v3899 = vld [vmem:[%s1 + $0x180] sm:$0xf]
        %v3900 = vld [vmem:[%s1 + $0x184] sm:$0xf]
        %v3901 = vld [vmem:[%s1 + $0x188] sm:$0xf]
        %v3902 = vld [vmem:[%s1 + $0x18c] sm:$0xf]
        %v3903 = vld [vmem:[%s1 + $0x190] sm:$0xf]
        %v3904 = vld [vmem:[%s1 + $0x194] sm:$0xf]
        %v3905 = vld [vmem:[%s1 + $0x198] sm:$0xf]
        %v3906 = vld [vmem:[%s1 + $0x19c] sm:$0xf]
        %v3907 = vld [vmem:[%s1 + $0x1a0] sm:$0xf]
        %v3908 = vld [vmem:[%s1 + $0x1a4] sm:$0xf]
        %v3909 = vld [vmem:[%s1 + $0x1a8] sm:$0xf]
        %v3910 = vld [vmem:[%s1 + $0x1ac] sm:$0xf]
        %v3911 = vld [vmem:[%s1 + $0x1b0] sm:$0xf]
        %v3912 = vld [vmem:[%s1 + $0x1b4] sm:$0xf]
        %v3913 = vld [vmem:[%s1 + $0x1b8] sm:$0xf]
        %v3914 = vld [vmem:[%s1 + $0x1bc] sm:$0xf]
        %v3915 = vld [vmem:[%s1 + $0x1c0] sm:$0xf]
        %v3916 = vld [vmem:[%s1 + $0x1c4] sm:$0xf]
        %v3917 = vld [vmem:[%s1 + $0x1c8] sm:$0xf]
        %v3918 = vld [vmem:[%s1 + $0x1cc] sm:$0xf]
        %v3919 = vld [vmem:[%s1 + $0x1d0] sm:$0xf]
        %v3920 = vld [vmem:[%s1 + $0x1d4] sm:$0xf]
        %v3921 = vld [vmem:[%s1 + $0x1d8] sm:$0xf]
        %v3922 = vld [vmem:[%s1 + $0x1dc] sm:$0xf]
        %v3923 = vld [vmem:[%s1 + $0x1e0] sm:$0xf]
        %v3924 = vld [vmem:[%s1 + $0x1e4] sm:$0xf]
        %v3925 = vld [vmem:[%s1 + $0x1e8] sm:$0xf]
        %v3926 = vld [vmem:[%s1 + $0x1ec] sm:$0xf]
        %v3927 = vld [vmem:[%s1 + $0x1f0] sm:$0xf]
        %v3928 = vld [vmem:[%s1 + $0x1f4] sm:$0xf]
        %v3929 = vld [vmem:[%s1 + $0x1f8] sm:$0xf]
        %v3930 = vld [vmem:[%s1 + $0x1fc] sm:$0xf]
        %v3931 = vld [vmem:[%s1 + $0x200] sm:$0xf]
        %v3932 = vld [vmem:[%s1 + $0x204] sm:$0xf]
        %v3933 = vld [vmem:[%s1 + $0x208] sm:$0xf]
        %v3934 = vld [vmem:[%s1 + $0x20c] sm:$0xf]
        %v3935 = vld [vmem:[%s1 + $0x210] sm:$0xf]
        %v3936 = vld [vmem:[%s1 + $0x214] sm:$0xf]
        %v3937 = vld [vmem:[%s1 + $0x218] sm:$0xf]
        %v3938 = vld [vmem:[%s1 + $0x21c] sm:$0xf]
        %v3939 = vld [vmem:[%s1 + $0x220] sm:$0xf]
        %v3940 = vld [vmem:[%s1 + $0x224] sm:$0xf]
        %v3941 = vld [vmem:[%s1 + $0x228] sm:$0xf]
        %v3942 = vld [vmem:[%s1 + $0x22c] sm:$0xf]
        %v3943 = vld [vmem:[%s1 + $0x230] sm:$0xf]
        %v3944 = vld [vmem:[%s1 + $0x234] sm:$0xf]
        %v3945 = vld [vmem:[%s1 + $0x238] sm:$0xf]
        %v3946 = vld [vmem:[%s1 + $0x23c] sm:$0xf]
        %v3947 = vld [vmem:[%s2] sm:$0x1]
        %v3949 = vlaneseq
        %v3950 = vshrl.u32 %v3949, 7
        %v3951 = vsub.s32 0, %v3950
        %v3952 = vrot.slane %v3947, %v3951
        %v4098 = vunpack.c.l.b16 %v3803
        %v4099 = vunpack.c.l.b16 %v3804
        %v4100 = vunpack.c.l.b16 %v3805
        %v4101 = vunpack.c.l.b16 %v3806
        %v4102 = vunpack.c.l.b16 %v3807
        %v4103 = vunpack.c.l.b16 %v3808
        %v4104 = vunpack.c.l.b16 %v3809
        %v4105 = vunpack.c.l.b16 %v3810
        %v4106 = vunpack.c.l.b16 %v3811
        %v4107 = vunpack.c.l.b16 %v3812
        %v4108 = vunpack.c.l.b16 %v3813
        %v4109 = vunpack.c.l.b16 %v3814
        %v4110 = vunpack.c.l.b16 %v3815
        %v4111 = vunpack.c.l.b16 %v3816
        %v4112 = vunpack.c.l.b16 %v3817
        %v4113 = vunpack.c.l.b16 %v3818
        %v4114 = vunpack.c.l.b16 %v3819
        %v4115 = vunpack.c.l.b16 %v3820
        %v4116 = vunpack.c.l.b16 %v3821
        %v4117 = vunpack.c.l.b16 %v3822
        %v4118 = vunpack.c.l.b16 %v3823
        %v4119 = vunpack.c.l.b16 %v3824
        %v4120 = vunpack.c.l.b16 %v3825
        %v4121 = vunpack.c.l.b16 %v3826
        %v4122 = vunpack.c.l.b16 %v3827
        %v4123 = vunpack.c.l.b16 %v3828
        %v4124 = vunpack.c.l.b16 %v3829
        %v4125 = vunpack.c.l.b16 %v3830
        %v4126 = vunpack.c.l.b16 %v3831
        %v4127 = vunpack.c.l.b16 %v3832
        %v4128 = vunpack.c.l.b16 %v3833
        %v4129 = vunpack.c.l.b16 %v3834
        %v4130 = vunpack.c.l.b16 %v3835
        %v4131 = vunpack.c.l.b16 %v3836
        %v4132 = vunpack.c.l.b16 %v3837
        %v4133 = vunpack.c.l.b16 %v3838
        %v4134 = vunpack.c.l.b16 %v3839
        %v4135 = vunpack.c.l.b16 %v3840
        %v4136 = vunpack.c.l.b16 %v3841
        %v4137 = vunpack.c.l.b16 %v3842
        %v4138 = vunpack.c.l.b16 %v3843
        %v4139 = vunpack.c.l.b16 %v3844
        %v4140 = vunpack.c.l.b16 %v3845
        %v4141 = vunpack.c.l.b16 %v3846
        %v4142 = vunpack.c.l.b16 %v3847
        %v4143 = vunpack.c.l.b16 %v3848
        %v4144 = vunpack.c.l.b16 %v3849
        %v4145 = vunpack.c.l.b16 %v3850
        %v4146 = vunpack.c.l.b16 %v3851
        %v4147 = vunpack.c.l.b16 %v3852
        %v4148 = vunpack.c.l.b16 %v3853
        %v4149 = vunpack.c.l.b16 %v3854
        %v4150 = vunpack.c.l.b16 %v3855
        %v4151 = vunpack.c.l.b16 %v3856
        %v4152 = vunpack.c.l.b16 %v3857
        %v4153 = vunpack.c.l.b16 %v3858
        %v4154 = vunpack.c.l.b16 %v3859
        %v4155 = vunpack.c.l.b16 %v3860
        %v4156 = vunpack.c.l.b16 %v3861
        %v4157 = vunpack.c.l.b16 %v3862
        %v4158 = vunpack.c.l.b16 %v3863
        %v4159 = vunpack.c.l.b16 %v3864
        %v4160 = vunpack.c.l.b16 %v3865
        %v4161 = vunpack.c.l.b16 %v3866
        %v4162 = vunpack.c.l.b16 %v3867
        %v4163 = vunpack.c.l.b16 %v3868
        %v4164 = vunpack.c.l.b16 %v3869
        %v4165 = vunpack.c.l.b16 %v3870
        %v4166 = vunpack.c.l.b16 %v3871
        %v4167 = vunpack.c.l.b16 %v3872
        %v4168 = vunpack.c.l.b16 %v3873
        %v4169 = vunpack.c.l.b16 %v3874
        %v4170 = vunpack.c.l.b16 %v3875
        %v4171 = vunpack.c.l.b16 %v3876
        %v4172 = vunpack.c.l.b16 %v3877
        %v4173 = vunpack.c.l.b16 %v3878
        %v4174 = vunpack.c.l.b16 %v3879
        %v4175 = vunpack.c.l.b16 %v3880
        %v4176 = vunpack.c.l.b16 %v3881
        %v4177 = vunpack.c.l.b16 %v3882
        %v4178 = vunpack.c.l.b16 %v3883
        %v4179 = vunpack.c.l.b16 %v3884
        %v4180 = vunpack.c.l.b16 %v3885
        %v4181 = vunpack.c.l.b16 %v3886
        %v4182 = vunpack.c.l.b16 %v3887
        %v4183 = vunpack.c.l.b16 %v3888
        %v4184 = vunpack.c.l.b16 %v3889
        %v4185 = vunpack.c.l.b16 %v3890
        %v4186 = vunpack.c.l.b16 %v3891
        %v4187 = vunpack.c.l.b16 %v3892
        %v4188 = vunpack.c.l.b16 %v3893
        %v4189 = vunpack.c.l.b16 %v3894
        %v4190 = vunpack.c.l.b16 %v3895
        %v4191 = vunpack.c.l.b16 %v3896
        %v4192 = vunpack.c.l.b16 %v3897
        %v4193 = vunpack.c.l.b16 %v3898
        %v4194 = vunpack.c.l.b16 %v3899
        %v4195 = vunpack.c.l.b16 %v3900
        %v4196 = vunpack.c.l.b16 %v3901
        %v4197 = vunpack.c.l.b16 %v3902
        %v4198 = vunpack.c.l.b16 %v3903
        %v4199 = vunpack.c.l.b16 %v3904
        %v4200 = vunpack.c.l.b16 %v3905
        %v4201 = vunpack.c.l.b16 %v3906
        %v4202 = vunpack.c.l.b16 %v3907
        %v4203 = vunpack.c.l.b16 %v3908
        %v4204 = vunpack.c.l.b16 %v3909
        %v4205 = vunpack.c.l.b16 %v3910
        %v4206 = vunpack.c.l.b16 %v3911
        %v4207 = vunpack.c.l.b16 %v3912
        %v4208 = vunpack.c.l.b16 %v3913
        %v4209 = vunpack.c.l.b16 %v3914
        %v4210 = vunpack.c.l.b16 %v3915
        %v4211 = vunpack.c.l.b16 %v3916
        %v4212 = vunpack.c.l.b16 %v3917
        %v4213 = vunpack.c.l.b16 %v3918
        %v4214 = vunpack.c.l.b16 %v3919
        %v4215 = vunpack.c.l.b16 %v3920
        %v4216 = vunpack.c.l.b16 %v3921
        %v4217 = vunpack.c.l.b16 %v3922
        %v4218 = vunpack.c.l.b16 %v3923
        %v4219 = vunpack.c.l.b16 %v3924
        %v4220 = vunpack.c.l.b16 %v3925
        %v4221 = vunpack.c.l.b16 %v3926
        %v4222 = vunpack.c.l.b16 %v3927
        %v4223 = vunpack.c.l.b16 %v3928
        %v4224 = vunpack.c.l.b16 %v3929
        %v4225 = vunpack.c.l.b16 %v3930
        %v4226 = vunpack.c.l.b16 %v3931
        %v4227 = vunpack.c.l.b16 %v3932
        %v4228 = vunpack.c.l.b16 %v3933
        %v4229 = vunpack.c.l.b16 %v3934
        %v4230 = vunpack.c.l.b16 %v3935
        %v4231 = vunpack.c.l.b16 %v3936
        %v4232 = vunpack.c.l.b16 %v3937
        %v4233 = vunpack.c.l.b16 %v3938
        %v4234 = vunpack.c.l.b16 %v3939
        %v4235 = vunpack.c.l.b16 %v3940
        %v4236 = vunpack.c.l.b16 %v3941
        %v4237 = vunpack.c.l.b16 %v3942
        %v4238 = vunpack.c.l.b16 %v3943
        %v4239 = vunpack.c.l.b16 %v3944
        %v4240 = vunpack.c.l.b16 %v3945
        %v4241 = vunpack.c.l.b16 %v3946
        %v4242 = vpack.c.b16 %v4099, %v4098
        %v4243 = vpack.c.b16 %v4101, %v4100
        %v4244 = vpack.c.b16 %v4103, %v4102
        %v4245 = vpack.c.b16 %v4105, %v4104
        %v4246 = vpack.c.b16 %v4107, %v4106
        %v4247 = vpack.c.b16 %v4109, %v4108
        %v4248 = vpack.c.b16 %v4111, %v4110
        %v4249 = vpack.c.b16 %v4113, %v4112
        %v4250 = vpack.c.b16 %v4115, %v4114
        %v4251 = vpack.c.b16 %v4117, %v4116
        %v4252 = vpack.c.b16 %v4119, %v4118
        %v4253 = vpack.c.b16 %v4121, %v4120
        %v4254 = vpack.c.b16 %v4123, %v4122
        %v4255 = vpack.c.b16 %v4125, %v4124
        %v4256 = vpack.c.b16 %v4127, %v4126
        %v4257 = vpack.c.b16 %v4129, %v4128
        %v4258 = vpack.c.b16 %v4131, %v4130
        %v4259 = vpack.c.b16 %v4133, %v4132
        %v4260 = vpack.c.b16 %v4135, %v4134
        %v4261 = vpack.c.b16 %v4137, %v4136
        %v4262 = vpack.c.b16 %v4139, %v4138
        %v4263 = vpack.c.b16 %v4141, %v4140
        %v4264 = vpack.c.b16 %v4143, %v4142
        %v4265 = vpack.c.b16 %v4145, %v4144
        %v4266 = vpack.c.b16 %v4147, %v4146
        %v4267 = vpack.c.b16 %v4149, %v4148
        %v4268 = vpack.c.b16 %v4151, %v4150
        %v4269 = vpack.c.b16 %v4153, %v4152
        %v4270 = vpack.c.b16 %v4155, %v4154
        %v4271 = vpack.c.b16 %v4157, %v4156
        %v4272 = vpack.c.b16 %v4159, %v4158
        %v4273 = vpack.c.b16 %v4161, %v4160
        %v4274 = vpack.c.b16 %v4163, %v4162
        %v4275 = vpack.c.b16 %v4165, %v4164
        %v4276 = vpack.c.b16 %v4167, %v4166
        %v4277 = vpack.c.b16 %v4169, %v4168
        %v4278 = vpack.c.b16 %v4171, %v4170
        %v4279 = vpack.c.b16 %v4173, %v4172
        %v4280 = vpack.c.b16 %v4175, %v4174
        %v4281 = vpack.c.b16 %v4177, %v4176
        %v4282 = vpack.c.b16 %v4179, %v4178
        %v4283 = vpack.c.b16 %v4181, %v4180
        %v4284 = vpack.c.b16 %v4183, %v4182
        %v4285 = vpack.c.b16 %v4185, %v4184
        %v4286 = vpack.c.b16 %v4187, %v4186
        %v4287 = vpack.c.b16 %v4189, %v4188
        %v4288 = vpack.c.b16 %v4191, %v4190
        %v4289 = vpack.c.b16 %v4193, %v4192
        %v4290 = vpack.c.b16 %v4195, %v4194
        %v4291 = vpack.c.b16 %v4197, %v4196
        %v4292 = vpack.c.b16 %v4199, %v4198
        %v4293 = vpack.c.b16 %v4201, %v4200
        %v4294 = vpack.c.b16 %v4203, %v4202
        %v4295 = vpack.c.b16 %v4205, %v4204
        %v4296 = vpack.c.b16 %v4207, %v4206
        %v4297 = vpack.c.b16 %v4209, %v4208
        %v4298 = vpack.c.b16 %v4211, %v4210
        %v4299 = vpack.c.b16 %v4213, %v4212
        %v4300 = vpack.c.b16 %v4215, %v4214
        %v4301 = vpack.c.b16 %v4217, %v4216
        %v4302 = vpack.c.b16 %v4219, %v4218
        %v4303 = vpack.c.b16 %v4221, %v4220
        %v4304 = vpack.c.b16 %v4223, %v4222
        %v4305 = vpack.c.b16 %v4225, %v4224
        %v4306 = vpack.c.b16 %v4227, %v4226
        %v4307 = vpack.c.b16 %v4229, %v4228
        %v4308 = vpack.c.b16 %v4231, %v4230
        %v4309 = vpack.c.b16 %v4233, %v4232
        %v4310 = vpack.c.b16 %v4235, %v4234
        %v4311 = vpack.c.b16 %v4237, %v4236
        %v4312 = vpack.c.b16 %v4239, %v4238
        %v4313 = vpack.c.b16 %v4241, %v4240
        %4386 = vmatprep.subr.bf16.mxu0 0
        %4387 = vmatpush1.bf16.msra.mxu0 %v4242
        %4388 = vmatprep.subr.bf16.mxu0 0
        %4389 = vmatpush1.bf16.msra.mxu0 %v4243
        %4390 = vmatprep.subr.bf16.mxu0 0
        %4391 = vmatpush1.bf16.msra.mxu0 %v4244
        %4392 = vmatprep.subr.bf16.mxu0 0
        %4393 = vmatpush1.bf16.msra.mxu0 %v4245
        %4394 = vmatprep.subr.bf16.mxu0 0
        %4395 = vmatpush1.bf16.msra.mxu0 %v4246
        %4396 = vmatprep.subr.bf16.mxu0 0
        %4397 = vmatpush1.bf16.msra.mxu0 %v4247
        %4398 = vmatprep.subr.bf16.mxu0 0
        %4399 = vmatpush1.bf16.msra.mxu0 %v4248
        %4400 = vmatprep.subr.bf16.mxu0 0
        %4401 = vmatpush1.bf16.msra.mxu0 %v4249
        %4402 = vmatprep.subr.bf16.mxu0 0
        %4403 = vmatpush1.bf16.msra.mxu0 %v4250
        %4404 = vmatprep.subr.bf16.mxu0 0
        %4405 = vmatpush1.bf16.msra.mxu0 %v4251
        %4406 = vmatprep.subr.bf16.mxu0 0
        %4407 = vmatpush1.bf16.msra.mxu0 %v4252
        %4408 = vmatprep.subr.bf16.mxu0 0
        %4409 = vmatpush1.bf16.msra.mxu0 %v4253
        %4410 = vmatprep.subr.bf16.mxu0 0
        %4411 = vmatpush1.bf16.msra.mxu0 %v4254
        %4412 = vmatprep.subr.bf16.mxu0 0
        %4413 = vmatpush1.bf16.msra.mxu0 %v4255
        %4414 = vmatprep.subr.bf16.mxu0 0
        %4415 = vmatpush1.bf16.msra.mxu0 %v4256
        %4416 = vmatprep.subr.bf16.mxu0 0
        %4417 = vmatpush1.bf16.msra.mxu0 %v4257
        %4418 = vmatprep.mubr.bf16.mxu0 %v3660
        %4419 = vmatmul.mubr.bf16.gmra.mrb[0].mxu0 %v3659
        %v4420 = vpop.f32.mrb[0].mxu0
        %v4421 = vadd.f32 %v3952, %v4420
        %v4422 = vpop.f32.mrb[0].mxu0
        %v4423 = vpop.f32.mrb[0].mxu0
        %v4424 = vadd.f32 %v3952, %v4423
        %v4425 = vpop.f32.mrb[0].mxu0
        %4426 = vmatprep.mubr.bf16.mxu0 %v3669
        %4427 = vmatmul.mubr.bf16.gmra.mrb[0].mxu0 %v3668
        %v4428 = vpop.f32.mrb[0].mxu0
        %v4429 = vadd.f32 %v3952, %v4428
        %v4430 = vpop.f32.mrb[0].mxu0
        %v4431 = vpop.f32.mrb[0].mxu0
        %v4432 = vadd.f32 %v3952, %v4431
        %v4433 = vpop.f32.mrb[0].mxu0
        %4434 = vmatprep.mubr.bf16.mxu0 %v3678
        %4435 = vmatmul.mubr.bf16.gmra.mrb[0].mxu0 %v3677
        %v4436 = vpop.f32.mrb[0].mxu0
        %v4437 = vadd.f32 %v3952, %v4436
        %v4438 = vpop.f32.mrb[0].mxu0
        %v4439 = vpop.f32.mrb[0].mxu0
        %v4440 = vadd.f32 %v3952, %v4439
        %v4441 = vpop.f32.mrb[0].mxu0
        %4442 = vmatprep.mubr.bf16.mxu0 %v3687
        %4443 = vmatmul.mubr.bf16.gmra.mrb[0].mxu0 %v3686
        %v4444 = vpop.f32.mrb[0].mxu0
        %v4445 = vadd.f32 %v3952, %v4444
        %v4446 = vpop.f32.mrb[0].mxu0
        %v4447 = vpop.f32.mrb[0].mxu0
        %v4448 = vadd.f32 %v3952, %v4447
        %v4449 = vpop.f32.mrb[0].mxu0
        %4450 = vmatprep.mubr.bf16.mxu0 %v3696
        %4451 = vmatmul.mubr.bf16.gmra.mrb[0].mxu0 %v3695
        %v4452 = vpop.f32.mrb[0].mxu0
        %v4453 = vadd.f32 %v3952, %v4452
        %v4454 = vpop.f32.mrb[0].mxu0
        %v4455 = vpop.f32.mrb[0].mxu0
        %v4456 = vadd.f32 %v3952, %v4455
        %v4457 = vpop.f32.mrb[0].mxu0
        %4458 = vmatprep.mubr.bf16.mxu0 %v3705
        %4459 = vmatmul.mubr.bf16.gmra.mrb[0].mxu0 %v3704
        %v4460 = vpop.f32.mrb[0].mxu0
        %v4461 = vadd.f32 %v3952, %v4460
        %v4462 = vpop.f32.mrb[0].mxu0
        %v4463 = vpop.f32.mrb[0].mxu0
        %v4464 = vadd.f32 %v3952, %v4463
        %v4465 = vpop.f32.mrb[0].mxu0
        %4466 = vmatprep.mubr.bf16.mxu0 %v3714
        %4467 = vmatmul.mubr.bf16.gmra.mrb[0].mxu0 %v3713
        %v4468 = vpop.f32.mrb[0].mxu0
        %v4469 = vadd.f32 %v3952, %v4468
        %v4470 = vpop.f32.mrb[0].mxu0
        %v4471 = vpop.f32.mrb[0].mxu0
        %v4472 = vadd.f32 %v3952, %v4471
        %v4473 = vpop.f32.mrb[0].mxu0
        %4474 = vmatprep.mubr.bf16.mxu0 %v3723
        %4475 = vmatmul.mubr.bf16.gmra.mrb[0].mxu0 %v3722
        %v4476 = vpop.f32.mrb[0].mxu0
        %v4477 = vadd.f32 %v3952, %v4476
        %v4478 = vpop.f32.mrb[0].mxu0
        %v4479 = vpop.f32.mrb[0].mxu0
        %v4480 = vadd.f32 %v3952, %v4479
        %v4481 = vpop.f32.mrb[0].mxu0
        %4482 = vmatprep.mubr.bf16.mxu0 %v3732
        %4483 = vmatmul.mubr.bf16.gmra.mrb[0].mxu0 %v3731
        %v4484 = vpop.f32.mrb[0].mxu0
        %v4485 = vadd.f32 %v3952, %v4484
        %v4486 = vpop.f32.mrb[0].mxu0
        %v4487 = vpop.f32.mrb[0].mxu0
        %v4488 = vadd.f32 %v3952, %v4487
        %v4489 = vpop.f32.mrb[0].mxu0
        %4490 = vmatprep.mubr.bf16.mxu0 %v3741
        %4491 = vmatmul.mubr.bf16.gmra.mrb[0].mxu0 %v3740
        %v4492 = vpop.f32.mrb[0].mxu0
        %v4493 = vadd.f32 %v3952, %v4492
        %v4494 = vpop.f32.mrb[0].mxu0
        %v4495 = vpop.f32.mrb[0].mxu0
        %v4496 = vadd.f32 %v3952, %v4495
        %v4497 = vpop.f32.mrb[0].mxu0
        %4498 = vmatprep.mubr.bf16.mxu0 %v3750
        %4499 = vmatmul.mubr.bf16.gmra.mrb[0].mxu0 %v3749
        %v4500 = vpop.f32.mrb[0].mxu0
        %v4501 = vadd.f32 %v3952, %v4500
        %v4502 = vpop.f32.mrb[0].mxu0
        %v4503 = vpop.f32.mrb[0].mxu0
        %v4504 = vadd.f32 %v3952, %v4503
        %v4505 = vpop.f32.mrb[0].mxu0
        %4506 = vmatprep.mubr.bf16.mxu0 %v3759
        %4507 = vmatmul.mubr.bf16.gmra.mrb[0].mxu0 %v3758
        %v4508 = vpop.f32.mrb[0].mxu0
        %v4509 = vadd.f32 %v3952, %v4508
        %v4510 = vpop.f32.mrb[0].mxu0
        %v4511 = vpop.f32.mrb[0].mxu0
        %v4512 = vadd.f32 %v3952, %v4511
        %v4513 = vpop.f32.mrb[0].mxu0
        %4514 = vmatprep.mubr.bf16.mxu0 %v3768
        %4515 = vmatmul.mubr.bf16.gmra.mrb[0].mxu0 %v3767
        %v4516 = vpop.f32.mrb[0].mxu0
        %v4517 = vadd.f32 %v3952, %v4516
        %v4518 = vpop.f32.mrb[0].mxu0
        %v4519 = vpop.f32.mrb[0].mxu0
        %v4520 = vadd.f32 %v3952, %v4519
        %v4521 = vpop.f32.mrb[0].mxu0
        %4522 = vmatprep.mubr.bf16.mxu0 %v3777
        %4523 = vmatmul.mubr.bf16.gmra.mrb[0].mxu0 %v3776
        %v4524 = vpop.f32.mrb[0].mxu0
        %v4525 = vadd.f32 %v3952, %v4524
        %v4526 = vpop.f32.mrb[0].mxu0
        %v4527 = vpop.f32.mrb[0].mxu0
        %v4528 = vadd.f32 %v3952, %v4527
        %v4529 = vpop.f32.mrb[0].mxu0
        %4530 = vmatprep.mubr.bf16.mxu0 %v3786
        %4531 = vmatmul.mubr.bf16.gmra.mrb[0].mxu0 %v3785
        %v4532 = vpop.f32.mrb[0].mxu0
        %v4533 = vadd.f32 %v3952, %v4532
        %v4534 = vpop.f32.mrb[0].mxu0
        %v4535 = vpop.f32.mrb[0].mxu0
        %v4536 = vadd.f32 %v3952, %v4535
        %v4537 = vpop.f32.mrb[0].mxu0
        %4538 = vmatprep.mubr.bf16.mxu0 %v3795
        %4539 = vmatmul.mubr.bf16.gmra.mrb[0].mxu0 %v3794
        %v4540 = vpop.f32.mrb[0].mxu0
        %v4541 = vadd.f32 %v3952, %v4540
        %v4542 = vpop.f32.mrb[0].mxu0
        %v4543 = vpop.f32.mrb[0].mxu0
        %v4544 = vadd.f32 %v3952, %v4543
        %v4545 = vpop.f32.mrb[0].mxu0
        %4546 = vdwg.mxu0
        %4547 = vmatprep.subr.bf16.mxu0 0
        %4548 = vmatpush1.bf16.msra.mxu0 %v4258
        %4549 = vmatprep.subr.bf16.mxu0 0
        %4550 = vmatpush1.bf16.msra.mxu0 %v4259
        %4551 = vmatprep.subr.bf16.mxu0 0
        %4552 = vmatpush1.bf16.msra.mxu0 %v4260
        %4553 = vmatprep.subr.bf16.mxu0 0
        %4554 = vmatpush1.bf16.msra.mxu0 %v4261
        %4555 = vmatprep.subr.bf16.mxu0 0
        %4556 = vmatpush1.bf16.msra.mxu0 %v4262
        %4557 = vmatprep.subr.bf16.mxu0 0
        %4558 = vmatpush1.bf16.msra.mxu0 %v4263
        %4559 = vmatprep.subr.bf16.mxu0 0
        %4560 = vmatpush1.bf16.msra.mxu0 %v4264
        %4561 = vmatprep.subr.bf16.mxu0 0
        %4562 = vmatpush1.bf16.msra.mxu0 %v4265
        %4563 = vmatprep.subr.bf16.mxu0 0
        %4564 = vmatpush1.bf16.msra.mxu0 %v4266
        %4565 = vmatprep.subr.bf16.mxu0 0
        %4566 = vmatpush1.bf16.msra.mxu0 %v4267
        %4567 = vmatprep.subr.bf16.mxu0 0
        %4568 = vmatpush1.bf16.msra.mxu0 %v4268
        %4569 = vmatprep.subr.bf16.mxu0 0
        %4570 = vmatpush1.bf16.msra.mxu0 %v4269
        %4571 = vmatprep.subr.bf16.mxu0 0
        %4572 = vmatpush1.bf16.msra.mxu0 %v4270
        %4573 = vmatprep.subr.bf16.mxu0 0
        %4574 = vmatpush1.bf16.msra.mxu0 %v4271
        %4575 = vmatprep.subr.bf16.mxu0 0
        %4576 = vmatpush1.bf16.msra.mxu0 %v4272
        %4577 = vmatprep.subr.bf16.mxu0 0
        %4578 = vmatpush1.bf16.msra.mxu0 %v4273
        %4579 = vmatprep.mubr.bf16.mxu0 %v3662
        %4580 = vmatmul.mubr.bf16.gmra.mrb[0].mxu0 %v3661
        %v4581 = vpop.f32.mrb[0].mxu0
        %v4582 = vadd.f32 %v4421, %v4581
        %v4583 = vpop.f32.mrb[0].mxu0
        %v4584 = vpop.f32.mrb[0].mxu0
        %v4585 = vadd.f32 %v4424, %v4584
        %v4586 = vpop.f32.mrb[0].mxu0
        %4587 = vmatprep.mubr.bf16.mxu0 %v3671
        %4588 = vmatmul.mubr.bf16.gmra.mrb[0].mxu0 %v3670
        %v4589 = vpop.f32.mrb[0].mxu0
        %v4590 = vadd.f32 %v4429, %v4589
        %v4591 = vpop.f32.mrb[0].mxu0
        %v4592 = vpop.f32.mrb[0].mxu0
        %v4593 = vadd.f32 %v4432, %v4592
        %v4594 = vpop.f32.mrb[0].mxu0
        %4595 = vmatprep.mubr.bf16.mxu0 %v3680
        %4596 = vmatmul.mubr.bf16.gmra.mrb[0].mxu0 %v3679
        %v4597 = vpop.f32.mrb[0].mxu0
        %v4598 = vadd.f32 %v4437, %v4597
        %v4599 = vpop.f32.mrb[0].mxu0
        %v4600 = vpop.f32.mrb[0].mxu0
        %v4601 = vadd.f32 %v4440, %v4600
        %v4602 = vpop.f32.mrb[0].mxu0
        %4603 = vmatprep.mubr.bf16.mxu0 %v3689
        %4604 = vmatmul.mubr.bf16.gmra.mrb[0].mxu0 %v3688
        %v4605 = vpop.f32.mrb[0].mxu0
        %v4606 = vadd.f32 %v4445, %v4605
        %v4607 = vpop.f32.mrb[0].mxu0
        %v4608 = vpop.f32.mrb[0].mxu0
        %v4609 = vadd.f32 %v4448, %v4608
        %v4610 = vpop.f32.mrb[0].mxu0
        %4611 = vmatprep.mubr.bf16.mxu0 %v3698
        %4612 = vmatmul.mubr.bf16.gmra.mrb[0].mxu0 %v3697
        %v4613 = vpop.f32.mrb[0].mxu0
        %v4614 = vadd.f32 %v4453, %v4613
        %v4615 = vpop.f32.mrb[0].mxu0
        %v4616 = vpop.f32.mrb[0].mxu0
        %v4617 = vadd.f32 %v4456, %v4616
        %v4618 = vpop.f32.mrb[0].mxu0
        %4619 = vmatprep.mubr.bf16.mxu0 %v3707
        %4620 = vmatmul.mubr.bf16.gmra.mrb[0].mxu0 %v3706
        %v4621 = vpop.f32.mrb[0].mxu0
        %v4622 = vadd.f32 %v4461, %v4621
        %v4623 = vpop.f32.mrb[0].mxu0
        %v4624 = vpop.f32.mrb[0].mxu0
        %v4625 = vadd.f32 %v4464, %v4624
        %v4626 = vpop.f32.mrb[0].mxu0
        %4627 = vmatprep.mubr.bf16.mxu0 %v3716
        %4628 = vmatmul.mubr.bf16.gmra.mrb[0].mxu0 %v3715
        %v4629 = vpop.f32.mrb[0].mxu0
        %v4630 = vadd.f32 %v4469, %v4629
        %v4631 = vpop.f32.mrb[0].mxu0
        %v4632 = vpop.f32.mrb[0].mxu0
        %v4633 = vadd.f32 %v4472, %v4632
        %v4634 = vpop.f32.mrb[0].mxu0
        %4635 = vmatprep.mubr.bf16.mxu0 %v3725
        %4636 = vmatmul.mubr.bf16.gmra.mrb[0].mxu0 %v3724
        %v4637 = vpop.f32.mrb[0].mxu0
        %v4638 = vadd.f32 %v4477, %v4637
        %v4639 = vpop.f32.mrb[0].mxu0
        %v4640 = vpop.f32.mrb[0].mxu0
        %v4641 = vadd.f32 %v4480, %v4640
        %v4642 = vpop.f32.mrb[0].mxu0
        %4643 = vmatprep.mubr.bf16.mxu0 %v3734
        %4644 = vmatmul.mubr.bf16.gmra.mrb[0].mxu0 %v3733
        %v4645 = vpop.f32.mrb[0].mxu0
        %v4646 = vadd.f32 %v4485, %v4645
        %v4647 = vpop.f32.mrb[0].mxu0
        %v4648 = vpop.f32.mrb[0].mxu0
        %v4649 = vadd.f32 %v4488, %v4648
        %v4650 = vpop.f32.mrb[0].mxu0
        %4651 = vmatprep.mubr.bf16.mxu0 %v3743
        %4652 = vmatmul.mubr.bf16.gmra.mrb[0].mxu0 %v3742
        %v4653 = vpop.f32.mrb[0].mxu0
        %v4654 = vadd.f32 %v4493, %v4653
        %v4655 = vpop.f32.mrb[0].mxu0
        %v4656 = vpop.f32.mrb[0].mxu0
        %v4657 = vadd.f32 %v4496, %v4656
        %v4658 = vpop.f32.mrb[0].mxu0
        %4659 = vmatprep.mubr.bf16.mxu0 %v3752
        %4660 = vmatmul.mubr.bf16.gmra.mrb[0].mxu0 %v3751
        %v4661 = vpop.f32.mrb[0].mxu0
        %v4662 = vadd.f32 %v4501, %v4661
        %v4663 = vpop.f32.mrb[0].mxu0
        %v4664 = vpop.f32.mrb[0].mxu0
        %v4665 = vadd.f32 %v4504, %v4664
        %v4666 = vpop.f32.mrb[0].mxu0
        %4667 = vmatprep.mubr.bf16.mxu0 %v3761
        %4668 = vmatmul.mubr.bf16.gmra.mrb[0].mxu0 %v3760
        %v4669 = vpop.f32.mrb[0].mxu0
        %v4670 = vadd.f32 %v4509, %v4669
        %v4671 = vpop.f32.mrb[0].mxu0
        %v4672 = vpop.f32.mrb[0].mxu0
        %v4673 = vadd.f32 %v4512, %v4672
        %v4674 = vpop.f32.mrb[0].mxu0
        %4675 = vmatprep.mubr.bf16.mxu0 %v3770
        %4676 = vmatmul.mubr.bf16.gmra.mrb[0].mxu0 %v3769
        %v4677 = vpop.f32.mrb[0].mxu0
        %v4678 = vadd.f32 %v4517, %v4677
        %v4679 = vpop.f32.mrb[0].mxu0
        %v4680 = vpop.f32.mrb[0].mxu0
        %v4681 = vadd.f32 %v4520, %v4680
        %v4682 = vpop.f32.mrb[0].mxu0
        %4683 = vmatprep.mubr.bf16.mxu0 %v3779
        %4684 = vmatmul.mubr.bf16.gmra.mrb[0].mxu0 %v3778
        %v4685 = vpop.f32.mrb[0].mxu0
        %v4686 = vadd.f32 %v4525, %v4685
        %v4687 = vpop.f32.mrb[0].mxu0
        %v4688 = vpop.f32.mrb[0].mxu0
        %v4689 = vadd.f32 %v4528, %v4688
        %v4690 = vpop.f32.mrb[0].mxu0
        %4691 = vmatprep.mubr.bf16.mxu0 %v3788
        %4692 = vmatmul.mubr.bf16.gmra.mrb[0].mxu0 %v3787
        %v4693 = vpop.f32.mrb[0].mxu0
        %v4694 = vadd.f32 %v4533, %v4693
        %v4695 = vpop.f32.mrb[0].mxu0
        %v4696 = vpop.f32.mrb[0].mxu0
        %v4697 = vadd.f32 %v4536, %v4696
        %v4698 = vpop.f32.mrb[0].mxu0
        %4699 = vmatprep.mubr.bf16.mxu0 %v3797
        %4700 = vmatmul.mubr.bf16.gmra.mrb[0].mxu0 %v3796
        %v4701 = vpop.f32.mrb[0].mxu0
        %v4702 = vadd.f32 %v4541, %v4701
        %v4703 = vpop.f32.mrb[0].mxu0
        %v4704 = vpop.f32.mrb[0].mxu0
        %v4705 = vadd.f32 %v4544, %v4704
        %v4706 = vpop.f32.mrb[0].mxu0
        %4707 = vdwg.mxu0
        %4708 = vmatprep.subr.bf16.mxu0 0
        %4709 = vmatpush1.bf16.msra.mxu0 %v4274
        %4710 = vmatprep.subr.bf16.mxu0 0
        %4711 = vmatpush1.bf16.msra.mxu0 %v4275
        %4712 = vmatprep.subr.bf16.mxu0 0
        %4713 = vmatpush1.bf16.msra.mxu0 %v4276
        %4714 = vmatprep.subr.bf16.mxu0 0
        %4715 = vmatpush1.bf16.msra.mxu0 %v4277
        %4716 = vmatprep.subr.bf16.mxu0 0
        %4717 = vmatpush1.bf16.msra.mxu0 %v4278
        %4718 = vmatprep.subr.bf16.mxu0 0
        %4719 = vmatpush1.bf16.msra.mxu0 %v4279
        %4720 = vmatprep.subr.bf16.mxu0 0
        %4721 = vmatpush1.bf16.msra.mxu0 %v4280
        %4722 = vmatprep.subr.bf16.mxu0 0
        %4723 = vmatpush1.bf16.msra.mxu0 %v4281
        %4724 = vmatprep.subr.bf16.mxu0 0
        %4725 = vmatpush1.bf16.msra.mxu0 %v4282
        %4726 = vmatprep.subr.bf16.mxu0 0
        %4727 = vmatpush1.bf16.msra.mxu0 %v4283
        %4728 = vmatprep.subr.bf16.mxu0 0
        %4729 = vmatpush1.bf16.msra.mxu0 %v4284
        %4730 = vmatprep.subr.bf16.mxu0 0
        %4731 = vmatpush1.bf16.msra.mxu0 %v4285
        %4732 = vmatprep.subr.bf16.mxu0 0
        %4733 = vmatpush1.bf16.msra.mxu0 %v4286
        %4734 = vmatprep.subr.bf16.mxu0 0
        %4735 = vmatpush1.bf16.msra.mxu0 %v4287
        %4736 = vmatprep.subr.bf16.mxu0 0
        %4737 = vmatpush1.bf16.msra.mxu0 %v4288
        %4738 = vmatprep.subr.bf16.mxu0 0
        %4739 = vmatpush1.bf16.msra.mxu0 %v4289
        %4740 = vmatprep.mubr.bf16.mxu0 %v3664
        %4741 = vmatmul.mubr.bf16.gmra.mrb[0].mxu0 %v3663
        %v4742 = vpop.f32.mrb[0].mxu0
        %v4743 = vadd.f32 %v4582, %v4742
        %v4744 = vpop.f32.mrb[0].mxu0
        %v4745 = vpop.f32.mrb[0].mxu0
        %v4746 = vadd.f32 %v4585, %v4745
        %v4747 = vpop.f32.mrb[0].mxu0
        %4748 = vmatprep.mubr.bf16.mxu0 %v3673
        %4749 = vmatmul.mubr.bf16.gmra.mrb[0].mxu0 %v3672
        %v4750 = vpop.f32.mrb[0].mxu0
        %v4751 = vadd.f32 %v4590, %v4750
        %v4752 = vpop.f32.mrb[0].mxu0
        %v4753 = vpop.f32.mrb[0].mxu0
        %v4754 = vadd.f32 %v4593, %v4753
        %v4755 = vpop.f32.mrb[0].mxu0
        %4756 = vmatprep.mubr.bf16.mxu0 %v3682
        %4757 = vmatmul.mubr.bf16.gmra.mrb[0].mxu0 %v3681
        %v4758 = vpop.f32.mrb[0].mxu0
        %v4759 = vadd.f32 %v4598, %v4758
        %v4760 = vpop.f32.mrb[0].mxu0
        %v4761 = vpop.f32.mrb[0].mxu0
        %v4762 = vadd.f32 %v4601, %v4761
        %v4763 = vpop.f32.mrb[0].mxu0
        %4764 = vmatprep.mubr.bf16.mxu0 %v3691
        %4765 = vmatmul.mubr.bf16.gmra.mrb[0].mxu0 %v3690
        %v4766 = vpop.f32.mrb[0].mxu0
        %v4767 = vadd.f32 %v4606, %v4766
        %v4768 = vpop.f32.mrb[0].mxu0
        %v4769 = vpop.f32.mrb[0].mxu0
        %v4770 = vadd.f32 %v4609, %v4769
        %v4771 = vpop.f32.mrb[0].mxu0
        %4772 = vmatprep.mubr.bf16.mxu0 %v3700
        %4773 = vmatmul.mubr.bf16.gmra.mrb[0].mxu0 %v3699
        %v4774 = vpop.f32.mrb[0].mxu0
        %v4775 = vadd.f32 %v4614, %v4774
        %v4776 = vpop.f32.mrb[0].mxu0
        %v4777 = vpop.f32.mrb[0].mxu0
        %v4778 = vadd.f32 %v4617, %v4777
        %v4779 = vpop.f32.mrb[0].mxu0
        %4780 = vmatprep.mubr.bf16.mxu0 %v3709
        %4781 = vmatmul.mubr.bf16.gmra.mrb[0].mxu0 %v3708
        %v4782 = vpop.f32.mrb[0].mxu0
        %v4783 = vadd.f32 %v4622, %v4782
        %v4784 = vpop.f32.mrb[0].mxu0
        %v4785 = vpop.f32.mrb[0].mxu0
        %v4786 = vadd.f32 %v4625, %v4785
        %v4787 = vpop.f32.mrb[0].mxu0
        %4788 = vmatprep.mubr.bf16.mxu0 %v3718
        %4789 = vmatmul.mubr.bf16.gmra.mrb[0].mxu0 %v3717
        %v4790 = vpop.f32.mrb[0].mxu0
        %v4791 = vadd.f32 %v4630, %v4790
        %v4792 = vpop.f32.mrb[0].mxu0
        %v4793 = vpop.f32.mrb[0].mxu0
        %v4794 = vadd.f32 %v4633, %v4793
        %v4795 = vpop.f32.mrb[0].mxu0
        %4796 = vmatprep.mubr.bf16.mxu0 %v3727
        %4797 = vmatmul.mubr.bf16.gmra.mrb[0].mxu0 %v3726
        %v4798 = vpop.f32.mrb[0].mxu0
        %v4799 = vadd.f32 %v4638, %v4798
        %v4800 = vpop.f32.mrb[0].mxu0
        %v4801 = vpop.f32.mrb[0].mxu0
        %v4802 = vadd.f32 %v4641, %v4801
        %v4803 = vpop.f32.mrb[0].mxu0
        %4804 = vmatprep.mubr.bf16.mxu0 %v3736
        %4805 = vmatmul.mubr.bf16.gmra.mrb[0].mxu0 %v3735
        %v4806 = vpop.f32.mrb[0].mxu0
        %v4807 = vadd.f32 %v4646, %v4806
        %v4808 = vpop.f32.mrb[0].mxu0
        %v4809 = vpop.f32.mrb[0].mxu0
        %v4810 = vadd.f32 %v4649, %v4809
        %v4811 = vpop.f32.mrb[0].mxu0
        %4812 = vmatprep.mubr.bf16.mxu0 %v3745
        %4813 = vmatmul.mubr.bf16.gmra.mrb[0].mxu0 %v3744
        %v4814 = vpop.f32.mrb[0].mxu0
        %v4815 = vadd.f32 %v4654, %v4814
        %v4816 = vpop.f32.mrb[0].mxu0
        %v4817 = vpop.f32.mrb[0].mxu0
        %v4818 = vadd.f32 %v4657, %v4817
        %v4819 = vpop.f32.mrb[0].mxu0
        %4820 = vmatprep.mubr.bf16.mxu0 %v3754
        %4821 = vmatmul.mubr.bf16.gmra.mrb[0].mxu0 %v3753
        %v4822 = vpop.f32.mrb[0].mxu0
        %v4823 = vadd.f32 %v4662, %v4822
        %v4824 = vpop.f32.mrb[0].mxu0
        %v4825 = vpop.f32.mrb[0].mxu0
        %v4826 = vadd.f32 %v4665, %v4825
        %v4827 = vpop.f32.mrb[0].mxu0
        %4828 = vmatprep.mubr.bf16.mxu0 %v3763
        %4829 = vmatmul.mubr.bf16.gmra.mrb[0].mxu0 %v3762
        %v4830 = vpop.f32.mrb[0].mxu0
        %v4831 = vadd.f32 %v4670, %v4830
        %v4832 = vpop.f32.mrb[0].mxu0
        %v4833 = vpop.f32.mrb[0].mxu0
        %v4834 = vadd.f32 %v4673, %v4833
        %v4835 = vpop.f32.mrb[0].mxu0
        %4836 = vmatprep.mubr.bf16.mxu0 %v3772
        %4837 = vmatmul.mubr.bf16.gmra.mrb[0].mxu0 %v3771
        %v4838 = vpop.f32.mrb[0].mxu0
        %v4839 = vadd.f32 %v4678, %v4838
        %v4840 = vpop.f32.mrb[0].mxu0
        %v4841 = vpop.f32.mrb[0].mxu0
        %v4842 = vadd.f32 %v4681, %v4841
        %v4843 = vpop.f32.mrb[0].mxu0
        %4844 = vmatprep.mubr.bf16.mxu0 %v3781
        %4845 = vmatmul.mubr.bf16.gmra.mrb[0].mxu0 %v3780
        %v4846 = vpop.f32.mrb[0].mxu0
        %v4847 = vadd.f32 %v4686, %v4846
        %v4848 = vpop.f32.mrb[0].mxu0
        %v4849 = vpop.f32.mrb[0].mxu0
        %v4850 = vadd.f32 %v4689, %v4849
        %v4851 = vpop.f32.mrb[0].mxu0
        %4852 = vmatprep.mubr.bf16.mxu0 %v3790
        %4853 = vmatmul.mubr.bf16.gmra.mrb[0].mxu0 %v3789
        %v4854 = vpop.f32.mrb[0].mxu0
        %v4855 = vadd.f32 %v4694, %v4854
        %v4856 = vpop.f32.mrb[0].mxu0
        %v4857 = vpop.f32.mrb[0].mxu0
        %v4858 = vadd.f32 %v4697, %v4857
        %v4859 = vpop.f32.mrb[0].mxu0
        %4860 = vmatprep.mubr.bf16.mxu0 %v3799
        %4861 = vmatmul.mubr.bf16.gmra.mrb[0].mxu0 %v3798
        %v4862 = vpop.f32.mrb[0].mxu0
        %v4863 = vadd.f32 %v4702, %v4862
        %v4864 = vpop.f32.mrb[0].mxu0
        %v4865 = vpop.f32.mrb[0].mxu0
        %v4866 = vadd.f32 %v4705, %v4865
        %v4867 = vpop.f32.mrb[0].mxu0
        %4868 = vdwg.mxu0
        %4869 = vmatprep.subr.bf16.mxu0 0
        %4870 = vmatpush1.bf16.msra.mxu0 %v4290
        %4871 = vmatprep.subr.bf16.mxu0 0
        %4872 = vmatpush1.bf16.msra.mxu0 %v4291
        %4873 = vmatprep.subr.bf16.mxu0 0
        %4874 = vmatpush1.bf16.msra.mxu0 %v4292
        %4875 = vmatprep.subr.bf16.mxu0 0
        %4876 = vmatpush1.bf16.msra.mxu0 %v4293
        %4877 = vmatprep.subr.bf16.mxu0 0
        %4878 = vmatpush1.bf16.msra.mxu0 %v4294
        %4879 = vmatprep.subr.bf16.mxu0 0
        %4880 = vmatpush1.bf16.msra.mxu0 %v4295
        %4881 = vmatprep.subr.bf16.mxu0 0
        %4882 = vmatpush1.bf16.msra.mxu0 %v4296
        %4883 = vmatprep.subr.bf16.mxu0 0
        %4884 = vmatpush1.bf16.msra.mxu0 %v4297
        %4885 = vmatprep.subr.bf16.mxu0 0
        %4886 = vmatpush1.bf16.msra.mxu0 %v4298
        %4887 = vmatprep.subr.bf16.mxu0 0
        %4888 = vmatpush1.bf16.msra.mxu0 %v4299
        %4889 = vmatprep.subr.bf16.mxu0 0
        %4890 = vmatpush1.bf16.msra.mxu0 %v4300
        %4891 = vmatprep.subr.bf16.mxu0 0
        %4892 = vmatpush1.bf16.msra.mxu0 %v4301
        %4893 = vmatprep.subr.bf16.mxu0 0
        %4894 = vmatpush1.bf16.msra.mxu0 %v4302
        %4895 = vmatprep.subr.bf16.mxu0 0
        %4896 = vmatpush1.bf16.msra.mxu0 %v4303
        %4897 = vmatprep.subr.bf16.mxu0 0
        %4898 = vmatpush1.bf16.msra.mxu0 %v4304
        %4899 = vmatprep.subr.bf16.mxu0 0
        %4900 = vmatpush1.bf16.msra.mxu0 %v4305
        %4901 = vmatprep.mubr.bf16.mxu0 %v3666
        %4902 = vmatmul.mubr.bf16.gmra.mrb[0].mxu0 %v3665
        %v4903 = vpop.f32.mrb[0].mxu0
        %v4904 = vadd.f32 %v4743, %v4903
        %v4905 = vpop.f32.mrb[0].mxu0
        %v4906 = vpop.f32.mrb[0].mxu0
        %v4907 = vadd.f32 %v4746, %v4906
        %v4908 = vpop.f32.mrb[0].mxu0
        %4909 = vmatprep.mubr.bf16.mxu0 %v3675
        %4910 = vmatmul.mubr.bf16.gmra.mrb[0].mxu0 %v3674
        %v4911 = vpop.f32.mrb[0].mxu0
        %v4912 = vadd.f32 %v4751, %v4911
        %v4913 = vpop.f32.mrb[0].mxu0
        %v4914 = vpop.f32.mrb[0].mxu0
        %v4915 = vadd.f32 %v4754, %v4914
        %v4916 = vpop.f32.mrb[0].mxu0
        %4917 = vmatprep.mubr.bf16.mxu0 %v3684
        %4918 = vmatmul.mubr.bf16.gmra.mrb[0].mxu0 %v3683
        %v4919 = vpop.f32.mrb[0].mxu0
        %v4920 = vadd.f32 %v4759, %v4919
        %v4921 = vpop.f32.mrb[0].mxu0
        %v4922 = vpop.f32.mrb[0].mxu0
        %v4923 = vadd.f32 %v4762, %v4922
        %v4924 = vpop.f32.mrb[0].mxu0
        %4925 = vmatprep.mubr.bf16.mxu0 %v3693
        %4926 = vmatmul.mubr.bf16.gmra.mrb[0].mxu0 %v3692
        %v4927 = vpop.f32.mrb[0].mxu0
        %v4928 = vadd.f32 %v4767, %v4927
        %v4929 = vpop.f32.mrb[0].mxu0
        %v4930 = vpop.f32.mrb[0].mxu0
        %v4931 = vadd.f32 %v4770, %v4930
        %v4932 = vpop.f32.mrb[0].mxu0
        %4933 = vmatprep.mubr.bf16.mxu0 %v3702
        %4934 = vmatmul.mubr.bf16.gmra.mrb[0].mxu0 %v3701
        %v4935 = vpop.f32.mrb[0].mxu0
        %v4936 = vadd.f32 %v4775, %v4935
        %v4937 = vpop.f32.mrb[0].mxu0
        %v4938 = vpop.f32.mrb[0].mxu0
        %v4939 = vadd.f32 %v4778, %v4938
        %v4940 = vpop.f32.mrb[0].mxu0
        %4941 = vmatprep.mubr.bf16.mxu0 %v3711
        %4942 = vmatmul.mubr.bf16.gmra.mrb[0].mxu0 %v3710
        %v4943 = vpop.f32.mrb[0].mxu0
        %v4944 = vadd.f32 %v4783, %v4943
        %v4945 = vpop.f32.mrb[0].mxu0
        %v4946 = vpop.f32.mrb[0].mxu0
        %v4947 = vadd.f32 %v4786, %v4946
        %v4948 = vpop.f32.mrb[0].mxu0
        %4949 = vmatprep.mubr.bf16.mxu0 %v3720
        %4950 = vmatmul.mubr.bf16.gmra.mrb[0].mxu0 %v3719
        %v4951 = vpop.f32.mrb[0].mxu0
        %v4952 = vadd.f32 %v4791, %v4951
        %v4953 = vpop.f32.mrb[0].mxu0
        %v4954 = vpop.f32.mrb[0].mxu0
        %v4955 = vadd.f32 %v4794, %v4954
        %v4956 = vpop.f32.mrb[0].mxu0
        %4957 = vmatprep.mubr.bf16.mxu0 %v3729
        %4958 = vmatmul.mubr.bf16.gmra.mrb[0].mxu0 %v3728
        %v4959 = vpop.f32.mrb[0].mxu0
        %v4960 = vadd.f32 %v4799, %v4959
        %v4961 = vpop.f32.mrb[0].mxu0
        %v4962 = vpop.f32.mrb[0].mxu0
        %v4963 = vadd.f32 %v4802, %v4962
        %v4964 = vpop.f32.mrb[0].mxu0
        %4965 = vmatprep.mubr.bf16.mxu0 %v3738
        %4966 = vmatmul.mubr.bf16.gmra.mrb[0].mxu0 %v3737
        %v4967 = vpop.f32.mrb[0].mxu0
        %v4968 = vadd.f32 %v4807, %v4967
        %v4969 = vpop.f32.mrb[0].mxu0
        %v4970 = vpop.f32.mrb[0].mxu0
        %v4971 = vadd.f32 %v4810, %v4970
        %v4972 = vpop.f32.mrb[0].mxu0
        %4973 = vmatprep.mubr.bf16.mxu0 %v3747
        %4974 = vmatmul.mubr.bf16.gmra.mrb[0].mxu0 %v3746
        %v4975 = vpop.f32.mrb[0].mxu0
        %v4976 = vadd.f32 %v4815, %v4975
        %v4977 = vpop.f32.mrb[0].mxu0
        %v4978 = vpop.f32.mrb[0].mxu0
        %v4979 = vadd.f32 %v4818, %v4978
        %v4980 = vpop.f32.mrb[0].mxu0
        %4981 = vmatprep.mubr.bf16.mxu0 %v3756
        %4982 = vmatmul.mubr.bf16.gmra.mrb[0].mxu0 %v3755
        %v4983 = vpop.f32.mrb[0].mxu0
        %v4984 = vadd.f32 %v4823, %v4983
        %v4985 = vpop.f32.mrb[0].mxu0
        %v4986 = vpop.f32.mrb[0].mxu0
        %v4987 = vadd.f32 %v4826, %v4986
        %v4988 = vpop.f32.mrb[0].mxu0
        %4989 = vmatprep.mubr.bf16.mxu0 %v3765
        %4990 = vmatmul.mubr.bf16.gmra.mrb[0].mxu0 %v3764
        %v4991 = vpop.f32.mrb[0].mxu0
        %v4992 = vadd.f32 %v4831, %v4991
        %v4993 = vpop.f32.mrb[0].mxu0
        %v4994 = vpop.f32.mrb[0].mxu0
        %v4995 = vadd.f32 %v4834, %v4994
        %v4996 = vpop.f32.mrb[0].mxu0
        %4997 = vmatprep.mubr.bf16.mxu0 %v3774
        %4998 = vmatmul.mubr.bf16.gmra.mrb[0].mxu0 %v3773
        %v4999 = vpop.f32.mrb[0].mxu0
        %v5000 = vadd.f32 %v4839, %v4999
        %v5001 = vpop.f32.mrb[0].mxu0
        %v5002 = vpop.f32.mrb[0].mxu0
        %v5003 = vadd.f32 %v4842, %v5002
        %v5004 = vpop.f32.mrb[0].mxu0
        %5005 = vmatprep.mubr.bf16.mxu0 %v3783
        %5006 = vmatmul.mubr.bf16.gmra.mrb[0].mxu0 %v3782
        %v5007 = vpop.f32.mrb[0].mxu0
        %v5008 = vadd.f32 %v4847, %v5007
        %v5009 = vpop.f32.mrb[0].mxu0
        %v5010 = vpop.f32.mrb[0].mxu0
        %v5011 = vadd.f32 %v4850, %v5010
        %v5012 = vpop.f32.mrb[0].mxu0
        %5013 = vmatprep.mubr.bf16.mxu0 %v3792
        %5014 = vmatmul.mubr.bf16.gmra.mrb[0].mxu0 %v3791
        %v5015 = vpop.f32.mrb[0].mxu0
        %v5016 = vadd.f32 %v4855, %v5015
        %v5017 = vpop.f32.mrb[0].mxu0
        %v5018 = vpop.f32.mrb[0].mxu0
        %v5019 = vadd.f32 %v4858, %v5018
        %v5020 = vpop.f32.mrb[0].mxu0
        %5021 = vmatprep.mubr.bf16.mxu0 %v3801
        %5022 = vmatmul.mubr.bf16.gmra.mrb[0].mxu0 %v3800
        %v5023 = vpop.f32.mrb[0].mxu0
        %v5024 = vadd.f32 %v4863, %v5023
        %v5025 = vpop.f32.mrb[0].mxu0
        %v5026 = vpop.f32.mrb[0].mxu0
        %v5027 = vadd.f32 %v4866, %v5026
        %v5028 = vpop.f32.mrb[0].mxu0
        %5029 = vdwg.mxu0
        %5030 = vmatprep.subr.bf16.mxu0 0
        %5031 = vmatpush1.bf16.msra.mxu0 %v4306
        %5032 = vmatprep.subr.bf16.mxu0 0
        %5033 = vmatpush1.bf16.msra.mxu0 %v4307
        %5034 = vmatprep.subr.bf16.mxu0 0
        %5035 = vmatpush1.bf16.msra.mxu0 %v4308
        %5036 = vmatprep.subr.bf16.mxu0 0
        %5037 = vmatpush1.bf16.msra.mxu0 %v4309
        %5038 = vmatprep.subr.bf16.mxu0 0
        %5039 = vmatpush1.bf16.msra.mxu0 %v4310
        %5040 = vmatprep.subr.bf16.mxu0 0
        %5041 = vmatpush1.bf16.msra.mxu0 %v4311
        %5042 = vmatprep.subr.bf16.mxu0 0
        %5043 = vmatpush1.bf16.msra.mxu0 %v4312
        %5044 = vmatprep.subr.bf16.mxu0 0
        %5045 = vmatpush1.bf16.msra.mxu0 %v4313
        %5046 = vmatprep.subr.bf16.mxu0 0
        %5047 = vmatpush1.bf16.msra.mxu0 0
        %5048 = vmatprep.subr.bf16.mxu0 0
        %5049 = vmatpush1.bf16.msra.mxu0 0
        %5050 = vmatprep.subr.bf16.mxu0 0
        %5051 = vmatpush1.bf16.msra.mxu0 0
        %5052 = vmatprep.subr.bf16.mxu0 0
        %5053 = vmatpush1.bf16.msra.mxu0 0
        %5054 = vmatprep.subr.bf16.mxu0 0
        %5055 = vmatpush1.bf16.msra.mxu0 0
        %5056 = vmatprep.subr.bf16.mxu0 0
        %5057 = vmatpush1.bf16.msra.mxu0 0
        %5058 = vmatprep.subr.bf16.mxu0 0
        %5059 = vmatpush1.bf16.msra.mxu0 0
        %5060 = vmatprep.subr.bf16.mxu0 0
        %5061 = vmatpush1.bf16.msra.mxu0 0
        %5062 = vmatprep.mubr.bf16.mxu0 0
        %5063 = vmatmul.mubr.bf16.gmra.mrb[0].mxu0 %v3667
        %v5064 = vpop.f32.mrb[0].mxu0
        %v5065 = vadd.f32 %v4904, %v5064
        %v5066 = vpop.f32.mrb[0].mxu0
        %v5067 = vpop.f32.mrb[0].mxu0
        %v5068 = vadd.f32 %v4907, %v5067
        %v5069 = vpop.f32.mrb[0].mxu0
        %5070 = vmatprep.mubr.bf16.mxu0 0
        %5071 = vmatmul.mubr.bf16.gmra.mrb[0].mxu0 %v3676
        %v5072 = vpop.f32.mrb[0].mxu0
        %v5073 = vadd.f32 %v4912, %v5072
        %v5074 = vpop.f32.mrb[0].mxu0
        %v5075 = vpop.f32.mrb[0].mxu0
        %v5076 = vadd.f32 %v4915, %v5075
        %v5077 = vpop.f32.mrb[0].mxu0
        %5078 = vmatprep.mubr.bf16.mxu0 0
        %5079 = vmatmul.mubr.bf16.gmra.mrb[0].mxu0 %v3685
        %v5080 = vpop.f32.mrb[0].mxu0
        %v5081 = vadd.f32 %v4920, %v5080
        %v5082 = vpop.f32.mrb[0].mxu0
        %v5083 = vpop.f32.mrb[0].mxu0
        %v5084 = vadd.f32 %v4923, %v5083
        %v5085 = vpop.f32.mrb[0].mxu0
        %5086 = vmatprep.mubr.bf16.mxu0 0
        %5087 = vmatmul.mubr.bf16.gmra.mrb[0].mxu0 %v3694
        %v5088 = vpop.f32.mrb[0].mxu0
        %v5089 = vadd.f32 %v4928, %v5088
        %v5090 = vpop.f32.mrb[0].mxu0
        %v5091 = vpop.f32.mrb[0].mxu0
        %v5092 = vadd.f32 %v4931, %v5091
        %v5093 = vpop.f32.mrb[0].mxu0
        %5094 = vmatprep.mubr.bf16.mxu0 0
        %5095 = vmatmul.mubr.bf16.gmra.mrb[0].mxu0 %v3703
        %v5096 = vpop.f32.mrb[0].mxu0
        %v5097 = vadd.f32 %v4936, %v5096
        %v5098 = vpop.f32.mrb[0].mxu0
        %v5099 = vpop.f32.mrb[0].mxu0
        %v5100 = vadd.f32 %v4939, %v5099
        %v5101 = vpop.f32.mrb[0].mxu0
        %5102 = vmatprep.mubr.bf16.mxu0 0
        %5103 = vmatmul.mubr.bf16.gmra.mrb[0].mxu0 %v3712
        %v5104 = vpop.f32.mrb[0].mxu0
        %v5105 = vadd.f32 %v4944, %v5104
        %v5106 = vpop.f32.mrb[0].mxu0
        %v5107 = vpop.f32.mrb[0].mxu0
        %v5108 = vadd.f32 %v4947, %v5107
        %v5109 = vpop.f32.mrb[0].mxu0
        %5110 = vmatprep.mubr.bf16.mxu0 0
        %5111 = vmatmul.mubr.bf16.gmra.mrb[0].mxu0 %v3721
        %v5112 = vpop.f32.mrb[0].mxu0
        %v5113 = vadd.f32 %v4952, %v5112
        %v5114 = vpop.f32.mrb[0].mxu0
        %v5115 = vpop.f32.mrb[0].mxu0
        %v5116 = vadd.f32 %v4955, %v5115
        %v5117 = vpop.f32.mrb[0].mxu0
        %5118 = vmatprep.mubr.bf16.mxu0 0
        %5119 = vmatmul.mubr.bf16.gmra.mrb[0].mxu0 %v3730
        %v5120 = vpop.f32.mrb[0].mxu0
        %v5121 = vadd.f32 %v4960, %v5120
        %v5122 = vpop.f32.mrb[0].mxu0
        %v5123 = vpop.f32.mrb[0].mxu0
        %v5124 = vadd.f32 %v4963, %v5123
        %v5125 = vpop.f32.mrb[0].mxu0
        %5126 = vmatprep.mubr.bf16.mxu0 0
        %5127 = vmatmul.mubr.bf16.gmra.mrb[0].mxu0 %v3739
        %v5128 = vpop.f32.mrb[0].mxu0
        %v5129 = vadd.f32 %v4968, %v5128
        %v5130 = vpop.f32.mrb[0].mxu0
        %v5131 = vpop.f32.mrb[0].mxu0
        %v5132 = vadd.f32 %v4971, %v5131
        %v5133 = vpop.f32.mrb[0].mxu0
        %5134 = vmatprep.mubr.bf16.mxu0 0
        %5135 = vmatmul.mubr.bf16.gmra.mrb[0].mxu0 %v3748
        %v5136 = vpop.f32.mrb[0].mxu0
        %v5137 = vadd.f32 %v4976, %v5136
        %v5138 = vpop.f32.mrb[0].mxu0
        %v5139 = vpop.f32.mrb[0].mxu0
        %v5140 = vadd.f32 %v4979, %v5139
        %v5141 = vpop.f32.mrb[0].mxu0
        %5142 = vmatprep.mubr.bf16.mxu0 0
        %5143 = vmatmul.mubr.bf16.gmra.mrb[0].mxu0 %v3757
        %v5144 = vpop.f32.mrb[0].mxu0
        %v5145 = vadd.f32 %v4984, %v5144
        %v5146 = vpop.f32.mrb[0].mxu0
        %v5147 = vpop.f32.mrb[0].mxu0
        %v5148 = vadd.f32 %v4987, %v5147
        %v5149 = vpop.f32.mrb[0].mxu0
        %5150 = vmatprep.mubr.bf16.mxu0 0
        %5151 = vmatmul.mubr.bf16.gmra.mrb[0].mxu0 %v3766
        %v5152 = vpop.f32.mrb[0].mxu0
        %v5153 = vadd.f32 %v4992, %v5152
        %v5154 = vpop.f32.mrb[0].mxu0
        %v5155 = vpop.f32.mrb[0].mxu0
        %v5156 = vadd.f32 %v4995, %v5155
        %v5157 = vpop.f32.mrb[0].mxu0
        %5158 = vmatprep.mubr.bf16.mxu0 0
        %5159 = vmatmul.mubr.bf16.gmra.mrb[0].mxu0 %v3775
        %v5160 = vpop.f32.mrb[0].mxu0
        %v5161 = vadd.f32 %v5000, %v5160
        %v5162 = vpop.f32.mrb[0].mxu0
        %v5163 = vpop.f32.mrb[0].mxu0
        %v5164 = vadd.f32 %v5003, %v5163
        %v5165 = vpop.f32.mrb[0].mxu0
        %5166 = vmatprep.mubr.bf16.mxu0 0
        %5167 = vmatmul.mubr.bf16.gmra.mrb[0].mxu0 %v3784
        %v5168 = vpop.f32.mrb[0].mxu0
        %v5169 = vadd.f32 %v5008, %v5168
        %v5170 = vpop.f32.mrb[0].mxu0
        %v5171 = vpop.f32.mrb[0].mxu0
        %v5172 = vadd.f32 %v5011, %v5171
        %v5173 = vpop.f32.mrb[0].mxu0
        %5174 = vmatprep.mubr.bf16.mxu0 0
        %5175 = vmatmul.mubr.bf16.gmra.mrb[0].mxu0 %v3793
        %v5176 = vpop.f32.mrb[0].mxu0
        %v5177 = vadd.f32 %v5016, %v5176
        %v5178 = vpop.f32.mrb[0].mxu0
        %v5179 = vpop.f32.mrb[0].mxu0
        %v5180 = vadd.f32 %v5019, %v5179
        %v5181 = vpop.f32.mrb[0].mxu0
        %5182 = vmatprep.mubr.bf16.mxu0 0
        %5183 = vmatmul.mubr.bf16.gmra.mrb[0].mxu0 %v3802
        %v5184 = vpop.f32.mrb[0].mxu0
        %v5185 = vadd.f32 %v5024, %v5184
        %v5186 = vpop.f32.mrb[0].mxu0
        %v5187 = vpop.f32.mrb[0].mxu0
        %v5188 = vadd.f32 %v5027, %v5187
        %v5189 = vpop.f32.mrb[0].mxu0
        %5190 = vdwg.mxu0
        %v5191 = vmax.f32 %v5065, 0.0
        %v5192 = vmax.f32 %v5068, 0.0
        %v5193 = vmax.f32 %v5073, 0.0
        %v5194 = vmax.f32 %v5076, 0.0
        %v5195 = vmax.f32 %v5081, 0.0
        %v5196 = vmax.f32 %v5084, 0.0
        %v5197 = vmax.f32 %v5089, 0.0
        %v5198 = vmax.f32 %v5092, 0.0
        %v5199 = vmax.f32 %v5097, 0.0
        %v5200 = vmax.f32 %v5100, 0.0
        %v5201 = vmax.f32 %v5105, 0.0
        %v5202 = vmax.f32 %v5108, 0.0
        %v5203 = vmax.f32 %v5113, 0.0
        %v5204 = vmax.f32 %v5116, 0.0
        %v5205 = vmax.f32 %v5121, 0.0
        %v5206 = vmax.f32 %v5124, 0.0
        %v5207 = vmax.f32 %v5129, 0.0
        %v5208 = vmax.f32 %v5132, 0.0
        %v5209 = vmax.f32 %v5137, 0.0
        %v5210 = vmax.f32 %v5140, 0.0
        %v5211 = vmax.f32 %v5145, 0.0
        %v5212 = vmax.f32 %v5148, 0.0
        %v5213 = vmax.f32 %v5153, 0.0
        %v5214 = vmax.f32 %v5156, 0.0
        %v5215 = vmax.f32 %v5161, 0.0
        %v5216 = vmax.f32 %v5164, 0.0
        %v5217 = vmax.f32 %v5169, 0.0
        %v5218 = vmax.f32 %v5172, 0.0
        %v5219 = vmax.f32 %v5177, 0.0
        %v5220 = vmax.f32 %v5180, 0.0
        %v5221 = vmax.f32 %v5185, 0.0
        %v5222 = vmax.f32 %v5188, 0.0
        %v5223 = vpack.c.bf16 %v5192, %v5191
        %v5224 = vpack.c.bf16 %v5194, %v5193
        %v5225 = vpack.c.bf16 %v5196, %v5195
        %v5226 = vpack.c.bf16 %v5198, %v5197
        %v5227 = vpack.c.bf16 %v5200, %v5199
        %v5228 = vpack.c.bf16 %v5202, %v5201
        %v5229 = vpack.c.bf16 %v5204, %v5203
        %v5230 = vpack.c.bf16 %v5206, %v5205
        %v5231 = vpack.c.bf16 %v5208, %v5207
        %v5232 = vpack.c.bf16 %v5210, %v5209
        %v5233 = vpack.c.bf16 %v5212, %v5211
        %v5234 = vpack.c.bf16 %v5214, %v5213
        %v5235 = vpack.c.bf16 %v5216, %v5215
        %v5236 = vpack.c.bf16 %v5218, %v5217
        %v5237 = vpack.c.bf16 %v5220, %v5219
        %v5238 = vpack.c.bf16 %v5222, %v5221
        %v5255 = vunpack.c.l.b16 %v5223
        %v5256 = vunpack.c.h.b16 %v5223
        %v5257 = vunpack.c.l.b16 %v5224
        %v5258 = vunpack.c.h.b16 %v5224
        %v5259 = vunpack.c.l.b16 %v5225
        %v5260 = vunpack.c.h.b16 %v5225
        %v5261 = vunpack.c.l.b16 %v5226
        %v5262 = vunpack.c.h.b16 %v5226
        %v5263 = vunpack.c.l.b16 %v5227
        %v5264 = vunpack.c.h.b16 %v5227
        %v5265 = vunpack.c.l.b16 %v5228
        %v5266 = vunpack.c.h.b16 %v5228
        %v5267 = vunpack.c.l.b16 %v5229
        %v5268 = vunpack.c.h.b16 %v5229
        %v5269 = vunpack.c.l.b16 %v5230
        %v5270 = vunpack.c.h.b16 %v5230
        %v5271 = vunpack.c.l.b16 %v5231
        %v5272 = vunpack.c.h.b16 %v5231
        %v5273 = vunpack.c.l.b16 %v5232
        %v5274 = vunpack.c.h.b16 %v5232
        %v5275 = vunpack.c.l.b16 %v5233
        %v5276 = vunpack.c.h.b16 %v5233
        %v5277 = vunpack.c.l.b16 %v5234
        %v5278 = vunpack.c.h.b16 %v5234
        %v5279 = vunpack.c.l.b16 %v5235
        %v5280 = vunpack.c.h.b16 %v5235
        %v5281 = vunpack.c.l.b16 %v5236
        %v5282 = vunpack.c.h.b16 %v5236
        %v5283 = vunpack.c.l.b16 %v5237
        %v5284 = vunpack.c.h.b16 %v5237
        %v5285 = vunpack.c.l.b16 %v5238
        %v5286 = vunpack.c.h.b16 %v5238
        %v5287 = vpack.c.b16 %v5255, %v5255
        %v5288 = vpack.c.b16 %v5256, %v5256
        %v5289 = vpack.c.b16 %v5257, %v5257
        %v5290 = vpack.c.b16 %v5258, %v5258
        %v5291 = vpack.c.b16 %v5259, %v5259
        %v5292 = vpack.c.b16 %v5260, %v5260
        %v5293 = vpack.c.b16 %v5261, %v5261
        %v5294 = vpack.c.b16 %v5262, %v5262
        %v5295 = vpack.c.b16 %v5263, %v5263
        %v5296 = vpack.c.b16 %v5264, %v5264
        %v5297 = vpack.c.b16 %v5265, %v5265
        %v5298 = vpack.c.b16 %v5266, %v5266
        %v5299 = vpack.c.b16 %v5267, %v5267
        %v5300 = vpack.c.b16 %v5268, %v5268
        %v5301 = vpack.c.b16 %v5269, %v5269
        %v5302 = vpack.c.b16 %v5270, %v5270
        %v5303 = vpack.c.b16 %v5271, %v5271
        %v5304 = vpack.c.b16 %v5272, %v5272
        %v5305 = vpack.c.b16 %v5273, %v5273
        %v5306 = vpack.c.b16 %v5274, %v5274
        %v5307 = vpack.c.b16 %v5275, %v5275
        %v5308 = vpack.c.b16 %v5276, %v5276
        %v5309 = vpack.c.b16 %v5277, %v5277
        %v5310 = vpack.c.b16 %v5278, %v5278
        %v5311 = vpack.c.b16 %v5279, %v5279
        %v5312 = vpack.c.b16 %v5280, %v5280
        %v5313 = vpack.c.b16 %v5281, %v5281
        %v5314 = vpack.c.b16 %v5282, %v5282
        %v5315 = vpack.c.b16 %v5283, %v5283
        %v5316 = vpack.c.b16 %v5284, %v5284
        %v5317 = vpack.c.b16 %v5285, %v5285
        %v5318 = vpack.c.b16 %v5286, %v5286
        %v5320 = vshrl.u32 %v5287, 16
        %v5322 = vrot.slane %v5320, 7
        %v5323 = vshll.u32 %v5287, 16
        %v5325 = vor.u32 %v5322, %v5323
        %v5326 = vrot.slane %v5322, 4
        %v5328 = vshrl.u32 %v5288, 16
        %v5330 = vrot.slane %v5328, 7
        %v5331 = vshll.u32 %v5288, 16
        %v5333 = vor.u32 %v5330, %v5331
        %v5334 = vsel %vm381, %v5326, %v5333
        %v5335 = vrot.slane %v5330, 4
        %v5337 = vshrl.u32 %v5289, 16
        %v5339 = vrot.slane %v5337, 7
        %v5340 = vshll.u32 %v5289, 16
        %v5342 = vor.u32 %v5339, %v5340
        %v5343 = vrot.slane %v5339, 4
        %v5345 = vshrl.u32 %v5290, 16
        %v5347 = vrot.slane %v5345, 7
        %v5348 = vshll.u32 %v5290, 16
        %v5350 = vor.u32 %v5347, %v5348
        %v5351 = vsel %vm381, %v5343, %v5350
        %v5352 = vrot.slane %v5347, 4
        %v5354 = vshrl.u32 %v5291, 16
        %v5356 = vrot.slane %v5354, 7
        %v5357 = vshll.u32 %v5291, 16
        %v5359 = vor.u32 %v5356, %v5357
        %v5360 = vrot.slane %v5356, 4
        %v5362 = vshrl.u32 %v5292, 16
        %v5364 = vrot.slane %v5362, 7
        %v5365 = vshll.u32 %v5292, 16
        %v5367 = vor.u32 %v5364, %v5365
        %v5368 = vsel %vm381, %v5360, %v5367
        %v5369 = vrot.slane %v5364, 4
        %v5371 = vshrl.u32 %v5293, 16
        %v5373 = vrot.slane %v5371, 7
        %v5374 = vshll.u32 %v5293, 16
        %v5376 = vor.u32 %v5373, %v5374
        %v5377 = vrot.slane %v5373, 4
        %v5379 = vshrl.u32 %v5294, 16
        %v5381 = vrot.slane %v5379, 7
        %v5382 = vshll.u32 %v5294, 16
        %v5384 = vor.u32 %v5381, %v5382
        %v5385 = vsel %vm381, %v5377, %v5384
        %v5386 = vrot.slane %v5381, 4
        %v5388 = vshrl.u32 %v5295, 16
        %v5390 = vrot.slane %v5388, 7
        %v5391 = vshll.u32 %v5295, 16
        %v5393 = vor.u32 %v5390, %v5391
        %v5394 = vrot.slane %v5390, 4
        %v5396 = vshrl.u32 %v5296, 16
        %v5398 = vrot.slane %v5396, 7
        %v5399 = vshll.u32 %v5296, 16
        %v5401 = vor.u32 %v5398, %v5399
        %v5402 = vsel %vm381, %v5394, %v5401
        %v5403 = vrot.slane %v5398, 4
        %v5405 = vshrl.u32 %v5297, 16
        %v5407 = vrot.slane %v5405, 7
        %v5408 = vshll.u32 %v5297, 16
        %v5410 = vor.u32 %v5407, %v5408
        %v5411 = vrot.slane %v5407, 4
        %v5413 = vshrl.u32 %v5298, 16
        %v5415 = vrot.slane %v5413, 7
        %v5416 = vshll.u32 %v5298, 16
        %v5418 = vor.u32 %v5415, %v5416
        %v5419 = vsel %vm381, %v5411, %v5418
        %v5420 = vrot.slane %v5415, 4
        %v5422 = vshrl.u32 %v5299, 16
        %v5424 = vrot.slane %v5422, 7
        %v5425 = vshll.u32 %v5299, 16
        %v5427 = vor.u32 %v5424, %v5425
        %v5428 = vrot.slane %v5424, 4
        %v5430 = vshrl.u32 %v5300, 16
        %v5432 = vrot.slane %v5430, 7
        %v5433 = vshll.u32 %v5300, 16
        %v5435 = vor.u32 %v5432, %v5433
        %v5436 = vsel %vm381, %v5428, %v5435
        %v5437 = vrot.slane %v5432, 4
        %v5439 = vshrl.u32 %v5301, 16
        %v5441 = vrot.slane %v5439, 7
        %v5442 = vshll.u32 %v5301, 16
        %v5444 = vor.u32 %v5441, %v5442
        %v5445 = vrot.slane %v5441, 4
        %v5447 = vshrl.u32 %v5302, 16
        %v5449 = vrot.slane %v5447, 7
        %v5450 = vshll.u32 %v5302, 16
        %v5452 = vor.u32 %v5449, %v5450
        %v5453 = vsel %vm381, %v5445, %v5452
        %v5454 = vrot.slane %v5449, 4
        %v5456 = vshrl.u32 %v5303, 16
        %v5458 = vrot.slane %v5456, 7
        %v5459 = vshll.u32 %v5303, 16
        %v5461 = vor.u32 %v5458, %v5459
        %v5462 = vrot.slane %v5458, 4
        %v5464 = vshrl.u32 %v5304, 16
        %v5466 = vrot.slane %v5464, 7
        %v5467 = vshll.u32 %v5304, 16
        %v5469 = vor.u32 %v5466, %v5467
        %v5470 = vsel %vm381, %v5462, %v5469
        %v5471 = vrot.slane %v5466, 4
        %v5473 = vshrl.u32 %v5305, 16
        %v5475 = vrot.slane %v5473, 7
        %v5476 = vshll.u32 %v5305, 16
        %v5478 = vor.u32 %v5475, %v5476
        %v5479 = vrot.slane %v5475, 4
        %v5481 = vshrl.u32 %v5306, 16
        %v5483 = vrot.slane %v5481, 7
        %v5484 = vshll.u32 %v5306, 16
        %v5486 = vor.u32 %v5483, %v5484
        %v5487 = vsel %vm381, %v5479, %v5486
        %v5488 = vrot.slane %v5483, 4
        %v5490 = vshrl.u32 %v5307, 16
        %v5492 = vrot.slane %v5490, 7
        %v5493 = vshll.u32 %v5307, 16
        %v5495 = vor.u32 %v5492, %v5493
        %v5496 = vrot.slane %v5492, 4
        %v5498 = vshrl.u32 %v5308, 16
        %v5500 = vrot.slane %v5498, 7
        %v5501 = vshll.u32 %v5308, 16
        %v5503 = vor.u32 %v5500, %v5501
        %v5504 = vsel %vm381, %v5496, %v5503
        %v5505 = vrot.slane %v5500, 4
        %v5507 = vshrl.u32 %v5309, 16
        %v5509 = vrot.slane %v5507, 7
        %v5510 = vshll.u32 %v5309, 16
        %v5512 = vor.u32 %v5509, %v5510
        %v5513 = vrot.slane %v5509, 4
        %v5515 = vshrl.u32 %v5310, 16
        %v5517 = vrot.slane %v5515, 7
        %v5518 = vshll.u32 %v5310, 16
        %v5520 = vor.u32 %v5517, %v5518
        %v5521 = vsel %vm381, %v5513, %v5520
        %v5522 = vrot.slane %v5517, 4
        %v5524 = vshrl.u32 %v5311, 16
        %v5526 = vrot.slane %v5524, 7
        %v5527 = vshll.u32 %v5311, 16
        %v5529 = vor.u32 %v5526, %v5527
        %v5530 = vrot.slane %v5526, 4
        %v5532 = vshrl.u32 %v5312, 16
        %v5534 = vrot.slane %v5532, 7
        %v5535 = vshll.u32 %v5312, 16
        %v5537 = vor.u32 %v5534, %v5535
        %v5538 = vsel %vm381, %v5530, %v5537
        %v5539 = vrot.slane %v5534, 4
        %v5541 = vshrl.u32 %v5313, 16
        %v5543 = vrot.slane %v5541, 7
        %v5544 = vshll.u32 %v5313, 16
        %v5546 = vor.u32 %v5543, %v5544
        %v5547 = vrot.slane %v5543, 4
        %v5549 = vshrl.u32 %v5314, 16
        %v5551 = vrot.slane %v5549, 7
        %v5552 = vshll.u32 %v5314, 16
        %v5554 = vor.u32 %v5551, %v5552
        %v5555 = vsel %vm381, %v5547, %v5554
        %v5556 = vrot.slane %v5551, 4
        %v5558 = vshrl.u32 %v5315, 16
        %v5560 = vrot.slane %v5558, 7
        %v5561 = vshll.u32 %v5315, 16
        %v5563 = vor.u32 %v5560, %v5561
        %v5564 = vrot.slane %v5560, 4
        %v5566 = vshrl.u32 %v5316, 16
        %v5568 = vrot.slane %v5566, 7
        %v5569 = vshll.u32 %v5316, 16
        %v5571 = vor.u32 %v5568, %v5569
        %v5572 = vsel %vm381, %v5564, %v5571
        %v5573 = vrot.slane %v5568, 4
        %v5575 = vshrl.u32 %v5317, 16
        %v5577 = vrot.slane %v5575, 7
        %v5578 = vshll.u32 %v5317, 16
        %v5580 = vor.u32 %v5577, %v5578
        %v5581 = vrot.slane %v5577, 4
        %v5583 = vshrl.u32 %v5318, 16
        %v5585 = vrot.slane %v5583, 7
        %v5586 = vshll.u32 %v5318, 16
        %v5588 = vor.u32 %v5585, %v5586
        %v5589 = vsel %vm381, %v5581, %v5588
        %v5590 = vrot.slane %v5585, 4
        %s5639 = scalar_lea.vmem [#allocation3], 12
        %v5640 = vld [vmem:[%s5639] sm:$0xf]
        %v5641 = vsel %vm705, %v5325, %v5640
        %5642 = vst [vmem:[%s5639] sm:$0xf] %v5641
        %5643 = vst [vmem:[%s5639 + $0x4] sm:$0xf] %v5334
        %v5644 = vld [vmem:[%s5639 + $0x8] sm:$0x1]
        %v5645 = vsel %vm711, %v5335, %v5644
        %5646 = vst [vmem:[%s5639 + $0x8] sm:$0x1] %v5645
        %v5647 = vld [vmem:[%s5639 + $0xc] sm:$0xf]
        %v5648 = vsel %vm705, %v5342, %v5647
        %5649 = vst [vmem:[%s5639 + $0xc] sm:$0xf] %v5648
        %5650 = vst [vmem:[%s5639 + $0x10] sm:$0xf] %v5351
        %v5651 = vld [vmem:[%s5639 + $0x14] sm:$0x1]
        %v5652 = vsel %vm711, %v5352, %v5651
        %5653 = vst [vmem:[%s5639 + $0x14] sm:$0x1] %v5652
        %v5654 = vld [vmem:[%s5639 + $0x18] sm:$0xf]
        %v5655 = vsel %vm705, %v5359, %v5654
        %5656 = vst [vmem:[%s5639 + $0x18] sm:$0xf] %v5655
        %5657 = vst [vmem:[%s5639 + $0x1c] sm:$0xf] %v5368
        %v5658 = vld [vmem:[%s5639 + $0x20] sm:$0x1]
        %v5659 = vsel %vm711, %v5369, %v5658
        %5660 = vst [vmem:[%s5639 + $0x20] sm:$0x1] %v5659
        %v5661 = vld [vmem:[%s5639 + $0x24] sm:$0xf]
        %v5662 = vsel %vm705, %v5376, %v5661
        %5663 = vst [vmem:[%s5639 + $0x24] sm:$0xf] %v5662
        %5664 = vst [vmem:[%s5639 + $0x28] sm:$0xf] %v5385
        %v5665 = vld [vmem:[%s5639 + $0x2c] sm:$0x1]
        %v5666 = vsel %vm711, %v5386, %v5665
        %5667 = vst [vmem:[%s5639 + $0x2c] sm:$0x1] %v5666
        %v5668 = vld [vmem:[%s5639 + $0x30] sm:$0xf]
        %v5669 = vsel %vm705, %v5393, %v5668
        %5670 = vst [vmem:[%s5639 + $0x30] sm:$0xf] %v5669
        %5671 = vst [vmem:[%s5639 + $0x34] sm:$0xf] %v5402
        %v5672 = vld [vmem:[%s5639 + $0x38] sm:$0x1]
        %v5673 = vsel %vm711, %v5403, %v5672
        %5674 = vst [vmem:[%s5639 + $0x38] sm:$0x1] %v5673
        %v5675 = vld [vmem:[%s5639 + $0x3c] sm:$0xf]
        %v5676 = vsel %vm705, %v5410, %v5675
        %5677 = vst [vmem:[%s5639 + $0x3c] sm:$0xf] %v5676
        %5678 = vst [vmem:[%s5639 + $0x40] sm:$0xf] %v5419
        %v5679 = vld [vmem:[%s5639 + $0x44] sm:$0x1]
        %v5680 = vsel %vm711, %v5420, %v5679
        %5681 = vst [vmem:[%s5639 + $0x44] sm:$0x1] %v5680
        %v5682 = vld [vmem:[%s5639 + $0x48] sm:$0xf]
        %v5683 = vsel %vm705, %v5427, %v5682
        %5684 = vst [vmem:[%s5639 + $0x48] sm:$0xf] %v5683
        %5685 = vst [vmem:[%s5639 + $0x4c] sm:$0xf] %v5436
        %v5686 = vld [vmem:[%s5639 + $0x50] sm:$0x1]
        %v5687 = vsel %vm711, %v5437, %v5686
        %5688 = vst [vmem:[%s5639 + $0x50] sm:$0x1] %v5687
        %v5689 = vld [vmem:[%s5639 + $0x54] sm:$0xf]
        %v5690 = vsel %vm705, %v5444, %v5689
        %5691 = vst [vmem:[%s5639 + $0x54] sm:$0xf] %v5690
        %5692 = vst [vmem:[%s5639 + $0x58] sm:$0xf] %v5453
        %v5693 = vld [vmem:[%s5639 + $0x5c] sm:$0x1]
        %v5694 = vsel %vm711, %v5454, %v5693
        %5695 = vst [vmem:[%s5639 + $0x5c] sm:$0x1] %v5694
        %v5696 = vld [vmem:[%s5639 + $0x60] sm:$0xf]
        %v5697 = vsel %vm705, %v5461, %v5696
        %5698 = vst [vmem:[%s5639 + $0x60] sm:$0xf] %v5697
        %5699 = vst [vmem:[%s5639 + $0x64] sm:$0xf] %v5470
        %v5700 = vld [vmem:[%s5639 + $0x68] sm:$0x1]
        %v5701 = vsel %vm711, %v5471, %v5700
        %5702 = vst [vmem:[%s5639 + $0x68] sm:$0x1] %v5701
        %v5703 = vld [vmem:[%s5639 + $0x6c] sm:$0xf]
        %v5704 = vsel %vm705, %v5478, %v5703
        %5705 = vst [vmem:[%s5639 + $0x6c] sm:$0xf] %v5704
        %5706 = vst [vmem:[%s5639 + $0x70] sm:$0xf] %v5487
        %v5707 = vld [vmem:[%s5639 + $0x74] sm:$0x1]
        %v5708 = vsel %vm711, %v5488, %v5707
        %5709 = vst [vmem:[%s5639 + $0x74] sm:$0x1] %v5708
        %v5710 = vld [vmem:[%s5639 + $0x78] sm:$0xf]
        %v5711 = vsel %vm705, %v5495, %v5710
        %5712 = vst [vmem:[%s5639 + $0x78] sm:$0xf] %v5711
        %5713 = vst [vmem:[%s5639 + $0x7c] sm:$0xf] %v5504
        %v5714 = vld [vmem:[%s5639 + $0x80] sm:$0x1]
        %v5715 = vsel %vm711, %v5505, %v5714
        %5716 = vst [vmem:[%s5639 + $0x80] sm:$0x1] %v5715
        %v5717 = vld [vmem:[%s5639 + $0x84] sm:$0xf]
        %v5718 = vsel %vm705, %v5512, %v5717
        %5719 = vst [vmem:[%s5639 + $0x84] sm:$0xf] %v5718
        %5720 = vst [vmem:[%s5639 + $0x88] sm:$0xf] %v5521
        %v5721 = vld [vmem:[%s5639 + $0x8c] sm:$0x1]
        %v5722 = vsel %vm711, %v5522, %v5721
        %5723 = vst [vmem:[%s5639 + $0x8c] sm:$0x1] %v5722
        %v5724 = vld [vmem:[%s5639 + $0x90] sm:$0xf]
        %v5725 = vsel %vm705, %v5529, %v5724
        %5726 = vst [vmem:[%s5639 + $0x90] sm:$0xf] %v5725
        %5727 = vst [vmem:[%s5639 + $0x94] sm:$0xf] %v5538
        %v5728 = vld [vmem:[%s5639 + $0x98] sm:$0x1]
        %v5729 = vsel %vm711, %v5539, %v5728
        %5730 = vst [vmem:[%s5639 + $0x98] sm:$0x1] %v5729
        %v5731 = vld [vmem:[%s5639 + $0x9c] sm:$0xf]
        %v5732 = vsel %vm705, %v5546, %v5731
        %5733 = vst [vmem:[%s5639 + $0x9c] sm:$0xf] %v5732
        %5734 = vst [vmem:[%s5639 + $0xa0] sm:$0xf] %v5555
        %v5735 = vld [vmem:[%s5639 + $0xa4] sm:$0x1]
        %v5736 = vsel %vm711, %v5556, %v5735
        %5737 = vst [vmem:[%s5639 + $0xa4] sm:$0x1] %v5736
        %v5738 = vld [vmem:[%s5639 + $0xa8] sm:$0xf]
        %v5739 = vsel %vm705, %v5563, %v5738
        %5740 = vst [vmem:[%s5639 + $0xa8] sm:$0xf] %v5739
        %5741 = vst [vmem:[%s5639 + $0xac] sm:$0xf] %v5572
        %v5742 = vld [vmem:[%s5639 + $0xb0] sm:$0x1]
        %v5743 = vsel %vm711, %v5573, %v5742
        %5744 = vst [vmem:[%s5639 + $0xb0] sm:$0x1] %v5743
        %v5745 = vld [vmem:[%s5639 + $0xb4] sm:$0xf]
        %v5746 = vsel %vm705, %v5580, %v5745
        %5747 = vst [vmem:[%s5639 + $0xb4] sm:$0xf] %v5746
        %5748 = vst [vmem:[%s5639 + $0xb8] sm:$0xf] %v5589
        %v5749 = vld [vmem:[%s5639 + $0xbc] sm:$0x1]
        %v5750 = vsel %vm711, %v5590, %v5749
        %5751 = vst [vmem:[%s5639 + $0xbc] sm:$0x1] %v5750
        %v5752 = vld [vmem:[#allocation3] sm:$0xf]
        %v5753 = vld [vmem:[#allocation3 + $0x4] sm:$0xf]
        %v5754 = vld [vmem:[#allocation3 + $0xc] sm:$0xf]
        %v5755 = vld [vmem:[#allocation3 + $0x10] sm:$0xf]
        %v5756 = vld [vmem:[#allocation3 + $0x18] sm:$0xf]
        %v5757 = vld [vmem:[#allocation3 + $0x1c] sm:$0xf]
        %v5758 = vld [vmem:[#allocation3 + $0x24] sm:$0xf]
        %v5759 = vld [vmem:[#allocation3 + $0x28] sm:$0xf]
        %v5760 = vld [vmem:[#allocation3 + $0x30] sm:$0xf]
        %v5761 = vld [vmem:[#allocation3 + $0x34] sm:$0xf]
        %v5762 = vld [vmem:[#allocation3 + $0x3c] sm:$0xf]
        %v5763 = vld [vmem:[#allocation3 + $0x40] sm:$0xf]
        %v5764 = vld [vmem:[#allocation3 + $0x48] sm:$0xf]
        %v5765 = vld [vmem:[#allocation3 + $0x4c] sm:$0xf]
        %v5766 = vld [vmem:[#allocation3 + $0x54] sm:$0xf]
        %v5767 = vld [vmem:[#allocation3 + $0x58] sm:$0xf]
        %v5768 = vld [vmem:[#allocation3 + $0x60] sm:$0xf]
        %v5769 = vld [vmem:[#allocation3 + $0x64] sm:$0xf]
        %v5770 = vld [vmem:[#allocation3 + $0x6c] sm:$0xf]
        %v5771 = vld [vmem:[#allocation3 + $0x70] sm:$0xf]
        %v5772 = vld [vmem:[#allocation3 + $0x78] sm:$0xf]
        %v5773 = vld [vmem:[#allocation3 + $0x7c] sm:$0xf]
        %v5774 = vld [vmem:[#allocation3 + $0x84] sm:$0xf]
        %v5775 = vld [vmem:[#allocation3 + $0x88] sm:$0xf]
        %v5776 = vld [vmem:[#allocation3 + $0x90] sm:$0xf]
        %v5777 = vld [vmem:[#allocation3 + $0x94] sm:$0xf]
        %v5778 = vld [vmem:[#allocation3 + $0x9c] sm:$0xf]
        %v5779 = vld [vmem:[#allocation3 + $0xa0] sm:$0xf]
        %v5780 = vld [vmem:[#allocation3 + $0xa8] sm:$0xf]
        %v5781 = vld [vmem:[#allocation3 + $0xac] sm:$0xf]
        %v5782 = vld [vmem:[#allocation3 + $0xb4] sm:$0xf]
        %v5783 = vld [vmem:[#allocation3 + $0xb8] sm:$0xf]
        %v5816 = vunpack.c.l.b16 %v5752
        %v5817 = vunpack.c.l.b16 %v5753
        %v5818 = vunpack.c.l.b16 %v5754
        %v5819 = vunpack.c.l.b16 %v5755
        %v5820 = vunpack.c.l.b16 %v5756
        %v5821 = vunpack.c.l.b16 %v5757
        %v5822 = vunpack.c.l.b16 %v5758
        %v5823 = vunpack.c.l.b16 %v5759
        %v5824 = vunpack.c.l.b16 %v5760
        %v5825 = vunpack.c.l.b16 %v5761
        %v5826 = vunpack.c.l.b16 %v5762
        %v5827 = vunpack.c.l.b16 %v5763
        %v5828 = vunpack.c.l.b16 %v5764
        %v5829 = vunpack.c.l.b16 %v5765
        %v5830 = vunpack.c.l.b16 %v5766
        %v5831 = vunpack.c.l.b16 %v5767
        %v5832 = vunpack.c.l.b16 %v5768
        %v5833 = vunpack.c.l.b16 %v5769
        %v5834 = vunpack.c.l.b16 %v5770
        %v5835 = vunpack.c.l.b16 %v5771
        %v5836 = vunpack.c.l.b16 %v5772
        %v5837 = vunpack.c.l.b16 %v5773
        %v5838 = vunpack.c.l.b16 %v5774
        %v5839 = vunpack.c.l.b16 %v5775
        %v5840 = vunpack.c.l.b16 %v5776
        %v5841 = vunpack.c.l.b16 %v5777
        %v5842 = vunpack.c.l.b16 %v5778
        %v5843 = vunpack.c.l.b16 %v5779
        %v5844 = vunpack.c.l.b16 %v5780
        %v5845 = vunpack.c.l.b16 %v5781
        %v5846 = vunpack.c.l.b16 %v5782
        %v5847 = vunpack.c.l.b16 %v5783
        %v5848 = vpack.c.b16 %v5817, %v5816
        %v5849 = vpack.c.b16 %v5819, %v5818
        %v5850 = vpack.c.b16 %v5821, %v5820
        %v5851 = vpack.c.b16 %v5823, %v5822
        %v5852 = vpack.c.b16 %v5825, %v5824
        %v5853 = vpack.c.b16 %v5827, %v5826
        %v5854 = vpack.c.b16 %v5829, %v5828
        %v5855 = vpack.c.b16 %v5831, %v5830
        %v5856 = vpack.c.b16 %v5833, %v5832
        %v5857 = vpack.c.b16 %v5835, %v5834
        %v5858 = vpack.c.b16 %v5837, %v5836
        %v5859 = vpack.c.b16 %v5839, %v5838
        %v5860 = vpack.c.b16 %v5841, %v5840
        %v5861 = vpack.c.b16 %v5843, %v5842
        %v5862 = vpack.c.b16 %v5845, %v5844
        %v5863 = vpack.c.b16 %v5847, %v5846
        %5880 = vst [vmem:[#allocation4] sm:$0xff] %v5848
        %5881 = vst [vmem:[#allocation4 + $0x48] sm:$0xff] %v5849
        %5882 = vst [vmem:[#allocation4 + $0x90] sm:$0xff] %v5850
        %5883 = vst [vmem:[#allocation4 + $0xd8] sm:$0xff] %v5851
        %5884 = vst [vmem:[#allocation4 + $0x120] sm:$0xff] %v5852
        %5885 = vst [vmem:[#allocation4 + $0x168] sm:$0xff] %v5853
        %5886 = vst [vmem:[#allocation4 + $0x1b0] sm:$0xff] %v5854
        %5887 = vst [vmem:[#allocation4 + $0x1f8] sm:$0xff] %v5855
        %5888 = vst [vmem:[#allocation4 + $0x240] sm:$0xff] %v5856
        %5889 = vst [vmem:[#allocation4 + $0x288] sm:$0xff] %v5857
        %5890 = vst [vmem:[#allocation4 + $0x2d0] sm:$0xff] %v5858
        %5891 = vst [vmem:[#allocation4 + $0x318] sm:$0xff] %v5859
        %5892 = vst [vmem:[#allocation4 + $0x360] sm:$0xff] %v5860
        %5893 = vst [vmem:[#allocation4 + $0x3a8] sm:$0xff] %v5861
        %5894 = vst [vmem:[#allocation4 + $0x3f0] sm:$0xff] %v5862
        %5895 = vst [vmem:[#allocation4 + $0x438] sm:$0xff] %v5863
        %v5896 = vld [vmem:[#allocation3] sm:$0xf]
        %v5897 = vld [vmem:[#allocation3 + $0x4] sm:$0xf]
        %v5898 = vld [vmem:[#allocation3 + $0x8] sm:$0x1]
        %v5899 = vld [vmem:[#allocation3 + $0xc] sm:$0xf]
        %v5900 = vld [vmem:[#allocation3 + $0x10] sm:$0xf]
        %v5901 = vld [vmem:[#allocation3 + $0x14] sm:$0x1]
        %v5902 = vld [vmem:[#allocation3 + $0x18] sm:$0xf]
        %v5903 = vld [vmem:[#allocation3 + $0x1c] sm:$0xf]
        %v5904 = vld [vmem:[#allocation3 + $0x20] sm:$0x1]
        %v5905 = vld [vmem:[#allocation3 + $0x24] sm:$0xf]
        %v5906 = vld [vmem:[#allocation3 + $0x28] sm:$0xf]
        %v5907 = vld [vmem:[#allocation3 + $0x2c] sm:$0x1]
        %v5908 = vld [vmem:[#allocation3 + $0x30] sm:$0xf]
        %v5909 = vld [vmem:[#allocation3 + $0x34] sm:$0xf]
        %v5910 = vld [vmem:[#allocation3 + $0x38] sm:$0x1]
        %v5911 = vld [vmem:[#allocation3 + $0x3c] sm:$0xf]
        %v5912 = vld [vmem:[#allocation3 + $0x40] sm:$0xf]
        %v5913 = vld [vmem:[#allocation3 + $0x44] sm:$0x1]
        %v5914 = vld [vmem:[#allocation3 + $0x48] sm:$0xf]
        %v5915 = vld [vmem:[#allocation3 + $0x4c] sm:$0xf]
        %v5916 = vld [vmem:[#allocation3 + $0x50] sm:$0x1]
        %v5917 = vld [vmem:[#allocation3 + $0x54] sm:$0xf]
        %v5918 = vld [vmem:[#allocation3 + $0x58] sm:$0xf]
        %v5919 = vld [vmem:[#allocation3 + $0x5c] sm:$0x1]
        %v5920 = vld [vmem:[#allocation3 + $0x60] sm:$0xf]
        %v5921 = vld [vmem:[#allocation3 + $0x64] sm:$0xf]
        %v5922 = vld [vmem:[#allocation3 + $0x68] sm:$0x1]
        %v5923 = vld [vmem:[#allocation3 + $0x6c] sm:$0xf]
        %v5924 = vld [vmem:[#allocation3 + $0x70] sm:$0xf]
        %v5925 = vld [vmem:[#allocation3 + $0x74] sm:$0x1]
        %v5926 = vld [vmem:[#allocation3 + $0x78] sm:$0xf]
        %v5927 = vld [vmem:[#allocation3 + $0x7c] sm:$0xf]
        %v5928 = vld [vmem:[#allocation3 + $0x80] sm:$0x1]
        %v5929 = vld [vmem:[#allocation3 + $0x84] sm:$0xf]
        %v5930 = vld [vmem:[#allocation3 + $0x88] sm:$0xf]
        %v5931 = vld [vmem:[#allocation3 + $0x8c] sm:$0x1]
        %v5932 = vld [vmem:[#allocation3 + $0x90] sm:$0xf]
        %v5933 = vld [vmem:[#allocation3 + $0x94] sm:$0xf]
        %v5934 = vld [vmem:[#allocation3 + $0x98] sm:$0x1]
        %v5935 = vld [vmem:[#allocation3 + $0x9c] sm:$0xf]
        %v5936 = vld [vmem:[#allocation3 + $0xa0] sm:$0xf]
        %v5937 = vld [vmem:[#allocation3 + $0xa4] sm:$0x1]
        %v5938 = vld [vmem:[#allocation3 + $0xa8] sm:$0xf]
        %v5939 = vld [vmem:[#allocation3 + $0xac] sm:$0xf]
        %v5940 = vld [vmem:[#allocation3 + $0xb0] sm:$0x1]
        %v5941 = vld [vmem:[#allocation3 + $0xb4] sm:$0xf]
        %v5942 = vld [vmem:[#allocation3 + $0xb8] sm:$0xf]
        %v5943 = vld [vmem:[#allocation3 + $0xbc] sm:$0x1]
        %v5945 = vshrl.u32 %v5896, 16
        %v5947 = vrot.slane %v5945, 4
        %v5948 = vshll.u32 %v5896, 16
        %v5950 = vrot.slane %v5948, 5
        %v5951 = vor.u32 %v5947, %v5950
        %v5952 = vrot.slane %v5951, 4
        %v5954 = vshll.u32 %v5897, 16
        %v5956 = vrot.slane %v5954, 5
        %v5957 = vsel %vm1014, %v5952, %v5956
        %v5958 = vshrl.u32 %v5897, 16
        %v5960 = vrot.slane %v5958, 4
        %v5961 = vor.u32 %v5960, %v5956
        %v5962 = vrot.slane %v5961, 4
        %v5964 = vshll.u32 %v5898, 16
        %v5966 = vrot.slane %v5964, 5
        %v5967 = vsel %vm1014, %v5962, %v5966
        %v5969 = vshrl.u32 %v5899, 16
        %v5971 = vrot.slane %v5969, 4
        %v5972 = vshll.u32 %v5899, 16
        %v5974 = vrot.slane %v5972, 5
        %v5975 = vor.u32 %v5971, %v5974
        %v5976 = vrot.slane %v5975, 4
        %v5978 = vshll.u32 %v5900, 16
        %v5980 = vrot.slane %v5978, 5
        %v5981 = vsel %vm1014, %v5976, %v5980
        %v5982 = vshrl.u32 %v5900, 16
        %v5984 = vrot.slane %v5982, 4
        %v5985 = vor.u32 %v5984, %v5980
        %v5986 = vrot.slane %v5985, 4
        %v5988 = vshll.u32 %v5901, 16
        %v5990 = vrot.slane %v5988, 5
        %v5991 = vsel %vm1014, %v5986, %v5990
        %v5993 = vshrl.u32 %v5902, 16
        %v5995 = vrot.slane %v5993, 4
        %v5996 = vshll.u32 %v5902, 16
        %v5998 = vrot.slane %v5996, 5
        %v5999 = vor.u32 %v5995, %v5998
        %v6000 = vrot.slane %v5999, 4
        %v6002 = vshll.u32 %v5903, 16
        %v6004 = vrot.slane %v6002, 5
        %v6005 = vsel %vm1014, %v6000, %v6004
        %v6006 = vshrl.u32 %v5903, 16
        %v6008 = vrot.slane %v6006, 4
        %v6009 = vor.u32 %v6008, %v6004
        %v6010 = vrot.slane %v6009, 4
        %v6012 = vshll.u32 %v5904, 16
        %v6014 = vrot.slane %v6012, 5
        %v6015 = vsel %vm1014, %v6010, %v6014
        %v6017 = vshrl.u32 %v5905, 16
        %v6019 = vrot.slane %v6017, 4
        %v6020 = vshll.u32 %v5905, 16
        %v6022 = vrot.slane %v6020, 5
        %v6023 = vor.u32 %v6019, %v6022
        %v6024 = vrot.slane %v6023, 4
        %v6026 = vshll.u32 %v5906, 16
        %v6028 = vrot.slane %v6026, 5
        %v6029 = vsel %vm1014, %v6024, %v6028
        %v6030 = vshrl.u32 %v5906, 16
        %v6032 = vrot.slane %v6030, 4
        %v6033 = vor.u32 %v6032, %v6028
        %v6034 = vrot.slane %v6033, 4
        %v6036 = vshll.u32 %v5907, 16
        %v6038 = vrot.slane %v6036, 5
        %v6039 = vsel %vm1014, %v6034, %v6038
        %v6041 = vshrl.u32 %v5908, 16
        %v6043 = vrot.slane %v6041, 4
        %v6044 = vshll.u32 %v5908, 16
        %v6046 = vrot.slane %v6044, 5
        %v6047 = vor.u32 %v6043, %v6046
        %v6048 = vrot.slane %v6047, 4
        %v6050 = vshll.u32 %v5909, 16
        %v6052 = vrot.slane %v6050, 5
        %v6053 = vsel %vm1014, %v6048, %v6052
        %v6054 = vshrl.u32 %v5909, 16
        %v6056 = vrot.slane %v6054, 4
        %v6057 = vor.u32 %v6056, %v6052
        %v6058 = vrot.slane %v6057, 4
        %v6060 = vshll.u32 %v5910, 16
        %v6062 = vrot.slane %v6060, 5
        %v6063 = vsel %vm1014, %v6058, %v6062
        %v6065 = vshrl.u32 %v5911, 16
        %v6067 = vrot.slane %v6065, 4
        %v6068 = vshll.u32 %v5911, 16
        %v6070 = vrot.slane %v6068, 5
        %v6071 = vor.u32 %v6067, %v6070
        %v6072 = vrot.slane %v6071, 4
        %v6074 = vshll.u32 %v5912, 16
        %v6076 = vrot.slane %v6074, 5
        %v6077 = vsel %vm1014, %v6072, %v6076
        %v6078 = vshrl.u32 %v5912, 16
        %v6080 = vrot.slane %v6078, 4
        %v6081 = vor.u32 %v6080, %v6076
        %v6082 = vrot.slane %v6081, 4
        %v6084 = vshll.u32 %v5913, 16
        %v6086 = vrot.slane %v6084, 5
        %v6087 = vsel %vm1014, %v6082, %v6086
        %v6089 = vshrl.u32 %v5914, 16
        %v6091 = vrot.slane %v6089, 4
        %v6092 = vshll.u32 %v5914, 16
        %v6094 = vrot.slane %v6092, 5
        %v6095 = vor.u32 %v6091, %v6094
        %v6096 = vrot.slane %v6095, 4
        %v6098 = vshll.u32 %v5915, 16
        %v6100 = vrot.slane %v6098, 5
        %v6101 = vsel %vm1014, %v6096, %v6100
        %v6102 = vshrl.u32 %v5915, 16
        %v6104 = vrot.slane %v6102, 4
        %v6105 = vor.u32 %v6104, %v6100
        %v6106 = vrot.slane %v6105, 4
        %v6108 = vshll.u32 %v5916, 16
        %v6110 = vrot.slane %v6108, 5
        %v6111 = vsel %vm1014, %v6106, %v6110
        %v6113 = vshrl.u32 %v5917, 16
        %v6115 = vrot.slane %v6113, 4
        %v6116 = vshll.u32 %v5917, 16
        %v6118 = vrot.slane %v6116, 5
        %v6119 = vor.u32 %v6115, %v6118
        %v6120 = vrot.slane %v6119, 4
        %v6122 = vshll.u32 %v5918, 16
        %v6124 = vrot.slane %v6122, 5
        %v6125 = vsel %vm1014, %v6120, %v6124
        %v6126 = vshrl.u32 %v5918, 16
        %v6128 = vrot.slane %v6126, 4
        %v6129 = vor.u32 %v6128, %v6124
        %v6130 = vrot.slane %v6129, 4
        %v6132 = vshll.u32 %v5919, 16
        %v6134 = vrot.slane %v6132, 5
        %v6135 = vsel %vm1014, %v6130, %v6134
        %v6137 = vshrl.u32 %v5920, 16
        %v6139 = vrot.slane %v6137, 4
        %v6140 = vshll.u32 %v5920, 16
        %v6142 = vrot.slane %v6140, 5
        %v6143 = vor.u32 %v6139, %v6142
        %v6144 = vrot.slane %v6143, 4
        %v6146 = vshll.u32 %v5921, 16
        %v6148 = vrot.slane %v6146, 5
        %v6149 = vsel %vm1014, %v6144, %v6148
        %v6150 = vshrl.u32 %v5921, 16
        %v6152 = vrot.slane %v6150, 4
        %v6153 = vor.u32 %v6152, %v6148
        %v6154 = vrot.slane %v6153, 4
        %v6156 = vshll.u32 %v5922, 16
        %v6158 = vrot.slane %v6156, 5
        %v6159 = vsel %vm1014, %v6154, %v6158
        %v6161 = vshrl.u32 %v5923, 16
        %v6163 = vrot.slane %v6161, 4
        %v6164 = vshll.u32 %v5923, 16
        %v6166 = vrot.slane %v6164, 5
        %v6167 = vor.u32 %v6163, %v6166
        %v6168 = vrot.slane %v6167, 4
        %v6170 = vshll.u32 %v5924, 16
        %v6172 = vrot.slane %v6170, 5
        %v6173 = vsel %vm1014, %v6168, %v6172
        %v6174 = vshrl.u32 %v5924, 16
        %v6176 = vrot.slane %v6174, 4
        %v6177 = vor.u32 %v6176, %v6172
        %v6178 = vrot.slane %v6177, 4
        %v6180 = vshll.u32 %v5925, 16
        %v6182 = vrot.slane %v6180, 5
        %v6183 = vsel %vm1014, %v6178, %v6182
        %v6185 = vshrl.u32 %v5926, 16
        %v6187 = vrot.slane %v6185, 4
        %v6188 = vshll.u32 %v5926, 16
        %v6190 = vrot.slane %v6188, 5
        %v6191 = vor.u32 %v6187, %v6190
        %v6192 = vrot.slane %v6191, 4
        %v6194 = vshll.u32 %v5927, 16
        %v6196 = vrot.slane %v6194, 5
        %v6197 = vsel %vm1014, %v6192, %v6196
        %v6198 = vshrl.u32 %v5927, 16
        %v6200 = vrot.slane %v6198, 4
        %v6201 = vor.u32 %v6200, %v6196
        %v6202 = vrot.slane %v6201, 4
        %v6204 = vshll.u32 %v5928, 16
        %v6206 = vrot.slane %v6204, 5
        %v6207 = vsel %vm1014, %v6202, %v6206
        %v6209 = vshrl.u32 %v5929, 16
        %v6211 = vrot.slane %v6209, 4
        %v6212 = vshll.u32 %v5929, 16
        %v6214 = vrot.slane %v6212, 5
        %v6215 = vor.u32 %v6211, %v6214
        %v6216 = vrot.slane %v6215, 4
        %v6218 = vshll.u32 %v5930, 16
        %v6220 = vrot.slane %v6218, 5
        %v6221 = vsel %vm1014, %v6216, %v6220
        %v6222 = vshrl.u32 %v5930, 16
        %v6224 = vrot.slane %v6222, 4
        %v6225 = vor.u32 %v6224, %v6220
        %v6226 = vrot.slane %v6225, 4
        %v6228 = vshll.u32 %v5931, 16
        %v6230 = vrot.slane %v6228, 5
        %v6231 = vsel %vm1014, %v6226, %v6230
        %v6233 = vshrl.u32 %v5932, 16
        %v6235 = vrot.slane %v6233, 4
        %v6236 = vshll.u32 %v5932, 16
        %v6238 = vrot.slane %v6236, 5
        %v6239 = vor.u32 %v6235, %v6238
        %v6240 = vrot.slane %v6239, 4
        %v6242 = vshll.u32 %v5933, 16
        %v6244 = vrot.slane %v6242, 5
        %v6245 = vsel %vm1014, %v6240, %v6244
        %v6246 = vshrl.u32 %v5933, 16
        %v6248 = vrot.slane %v6246, 4
        %v6249 = vor.u32 %v6248, %v6244
        %v6250 = vrot.slane %v6249, 4
        %v6252 = vshll.u32 %v5934, 16
        %v6254 = vrot.slane %v6252, 5
        %v6255 = vsel %vm1014, %v6250, %v6254
        %v6257 = vshrl.u32 %v5935, 16
        %v6259 = vrot.slane %v6257, 4
        %v6260 = vshll.u32 %v5935, 16
        %v6262 = vrot.slane %v6260, 5
        %v6263 = vor.u32 %v6259, %v6262
        %v6264 = vrot.slane %v6263, 4
        %v6266 = vshll.u32 %v5936, 16
        %v6268 = vrot.slane %v6266, 5
        %v6269 = vsel %vm1014, %v6264, %v6268
        %v6270 = vshrl.u32 %v5936, 16
        %v6272 = vrot.slane %v6270, 4
        %v6273 = vor.u32 %v6272, %v6268
        %v6274 = vrot.slane %v6273, 4
        %v6276 = vshll.u32 %v5937, 16
        %v6278 = vrot.slane %v6276, 5
        %v6279 = vsel %vm1014, %v6274, %v6278
        %v6281 = vshrl.u32 %v5938, 16
        %v6283 = vrot.slane %v6281, 4
        %v6284 = vshll.u32 %v5938, 16
        %v6286 = vrot.slane %v6284, 5
        %v6287 = vor.u32 %v6283, %v6286
        %v6288 = vrot.slane %v6287, 4
        %v6290 = vshll.u32 %v5939, 16
        %v6292 = vrot.slane %v6290, 5
        %v6293 = vsel %vm1014, %v6288, %v6292
        %v6294 = vshrl.u32 %v5939, 16
        %v6296 = vrot.slane %v6294, 4
        %v6297 = vor.u32 %v6296, %v6292
        %v6298 = vrot.slane %v6297, 4
        %v6300 = vshll.u32 %v5940, 16
        %v6302 = vrot.slane %v6300, 5
        %v6303 = vsel %vm1014, %v6298, %v6302
        %v6305 = vshrl.u32 %v5941, 16
        %v6307 = vrot.slane %v6305, 4
        %v6308 = vshll.u32 %v5941, 16
        %v6310 = vrot.slane %v6308, 5
        %v6311 = vor.u32 %v6307, %v6310
        %v6312 = vrot.slane %v6311, 4
        %v6314 = vshll.u32 %v5942, 16
        %v6316 = vrot.slane %v6314, 5
        %v6317 = vsel %vm1014, %v6312, %v6316
        %v6318 = vshrl.u32 %v5942, 16
        %v6320 = vrot.slane %v6318, 4
        %v6321 = vor.u32 %v6320, %v6316
        %v6322 = vrot.slane %v6321, 4
        %v6324 = vshll.u32 %v5943, 16
        %v6326 = vrot.slane %v6324, 5
        %v6327 = vsel %vm1014, %v6322, %v6326
        %v6328 = vunpack.c.l.b16 %v5957
        %v6329 = vunpack.c.l.b16 %v5967
        %v6330 = vunpack.c.l.b16 %v5981
        %v6331 = vunpack.c.l.b16 %v5991
        %v6332 = vunpack.c.l.b16 %v6005
        %v6333 = vunpack.c.l.b16 %v6015
        %v6334 = vunpack.c.l.b16 %v6029
        %v6335 = vunpack.c.l.b16 %v6039
        %v6336 = vunpack.c.l.b16 %v6053
        %v6337 = vunpack.c.l.b16 %v6063
        %v6338 = vunpack.c.l.b16 %v6077
        %v6339 = vunpack.c.l.b16 %v6087
        %v6340 = vunpack.c.l.b16 %v6101
        %v6341 = vunpack.c.l.b16 %v6111
        %v6342 = vunpack.c.l.b16 %v6125
        %v6343 = vunpack.c.l.b16 %v6135
        %v6344 = vunpack.c.l.b16 %v6149
        %v6345 = vunpack.c.l.b16 %v6159
        %v6346 = vunpack.c.l.b16 %v6173
        %v6347 = vunpack.c.l.b16 %v6183
        %v6348 = vunpack.c.l.b16 %v6197
        %v6349 = vunpack.c.l.b16 %v6207
        %v6350 = vunpack.c.l.b16 %v6221
        %v6351 = vunpack.c.l.b16 %v6231
        %v6352 = vunpack.c.l.b16 %v6245
        %v6353 = vunpack.c.l.b16 %v6255
        %v6354 = vunpack.c.l.b16 %v6269
        %v6355 = vunpack.c.l.b16 %v6279
        %v6356 = vunpack.c.l.b16 %v6293
        %v6357 = vunpack.c.l.b16 %v6303
        %v6358 = vunpack.c.l.b16 %v6317
        %v6359 = vunpack.c.l.b16 %v6327
        %v6360 = vpack.c.b16 %v6329, %v6328
        %v6361 = vpack.c.b16 %v6331, %v6330
        %v6362 = vpack.c.b16 %v6333, %v6332
        %v6363 = vpack.c.b16 %v6335, %v6334
        %v6364 = vpack.c.b16 %v6337, %v6336
        %v6365 = vpack.c.b16 %v6339, %v6338
        %v6366 = vpack.c.b16 %v6341, %v6340
        %v6367 = vpack.c.b16 %v6343, %v6342
        %v6368 = vpack.c.b16 %v6345, %v6344
        %v6369 = vpack.c.b16 %v6347, %v6346
        %v6370 = vpack.c.b16 %v6349, %v6348
        %v6371 = vpack.c.b16 %v6351, %v6350
        %v6372 = vpack.c.b16 %v6353, %v6352
        %v6373 = vpack.c.b16 %v6355, %v6354
        %v6374 = vpack.c.b16 %v6357, %v6356
        %v6375 = vpack.c.b16 %v6359, %v6358
        %6392 = vst [vmem:[#allocation4 + $0x8] sm:$0xff] %v6360
        %6393 = vst [vmem:[#allocation4 + $0x50] sm:$0xff] %v6361
        %6394 = vst [vmem:[#allocation4 + $0x98] sm:$0xff] %v6362
        %6395 = vst [vmem:[#allocation4 + $0xe0] sm:$0xff] %v6363
        %6396 = vst [vmem:[#allocation4 + $0x128] sm:$0xff] %v6364
        %6397 = vst [vmem:[#allocation4 + $0x170] sm:$0xff] %v6365
        %6398 = vst [vmem:[#allocation4 + $0x1b8] sm:$0xff] %v6366
        %6399 = vst [vmem:[#allocation4 + $0x200] sm:$0xff] %v6367
        %6400 = vst [vmem:[#allocation4 + $0x248] sm:$0xff] %v6368
        %6401 = vst [vmem:[#allocation4 + $0x290] sm:$0xff] %v6369
        %6402 = vst [vmem:[#allocation4 + $0x2d8] sm:$0xff] %v6370
        %6403 = vst [vmem:[#allocation4 + $0x320] sm:$0xff] %v6371
        %6404 = vst [vmem:[#allocation4 + $0x368] sm:$0xff] %v6372
        %6405 = vst [vmem:[#allocation4 + $0x3b0] sm:$0xff] %v6373
        %6406 = vst [vmem:[#allocation4 + $0x3f8] sm:$0xff] %v6374
        %6407 = vst [vmem:[#allocation4 + $0x440] sm:$0xff] %v6375
        %v6408 = vld [vmem:[#allocation3] sm:$0xe]
        %v6409 = vld [vmem:[#allocation3 + $0x4] sm:$0xf]
        %v6410 = vld [vmem:[#allocation3 + $0x8] sm:$0x1]
        %v6411 = vld [vmem:[#allocation3 + $0xc] sm:$0xe]
        %v6412 = vld [vmem:[#allocation3 + $0x10] sm:$0xf]
        %v6413 = vld [vmem:[#allocation3 + $0x14] sm:$0x1]
        %v6414 = vld [vmem:[#allocation3 + $0x18] sm:$0xe]
        %v6415 = vld [vmem:[#allocation3 + $0x1c] sm:$0xf]
        %v6416 = vld [vmem:[#allocation3 + $0x20] sm:$0x1]
        %v6417 = vld [vmem:[#allocation3 + $0x24] sm:$0xe]
        %v6418 = vld [vmem:[#allocation3 + $0x28] sm:$0xf]
        %v6419 = vld [vmem:[#allocation3 + $0x2c] sm:$0x1]
        %v6420 = vld [vmem:[#allocation3 + $0x30] sm:$0xe]
        %v6421 = vld [vmem:[#allocation3 + $0x34] sm:$0xf]
        %v6422 = vld [vmem:[#allocation3 + $0x38] sm:$0x1]
        %v6423 = vld [vmem:[#allocation3 + $0x3c] sm:$0xe]
        %v6424 = vld [vmem:[#allocation3 + $0x40] sm:$0xf]
        %v6425 = vld [vmem:[#allocation3 + $0x44] sm:$0x1]
        %v6426 = vld [vmem:[#allocation3 + $0x48] sm:$0xe]
        %v6427 = vld [vmem:[#allocation3 + $0x4c] sm:$0xf]
        %v6428 = vld [vmem:[#allocation3 + $0x50] sm:$0x1]
        %v6429 = vld [vmem:[#allocation3 + $0x54] sm:$0xe]
        %v6430 = vld [vmem:[#allocation3 + $0x58] sm:$0xf]
        %v6431 = vld [vmem:[#allocation3 + $0x5c] sm:$0x1]
        %v6432 = vld [vmem:[#allocation3 + $0x60] sm:$0xe]
        %v6433 = vld [vmem:[#allocation3 + $0x64] sm:$0xf]
        %v6434 = vld [vmem:[#allocation3 + $0x68] sm:$0x1]
        %v6435 = vld [vmem:[#allocation3 + $0x6c] sm:$0xe]
        %v6436 = vld [vmem:[#allocation3 + $0x70] sm:$0xf]
        %v6437 = vld [vmem:[#allocation3 + $0x74] sm:$0x1]
        %v6438 = vld [vmem:[#allocation3 + $0x78] sm:$0xe]
        %v6439 = vld [vmem:[#allocation3 + $0x7c] sm:$0xf]
        %v6440 = vld [vmem:[#allocation3 + $0x80] sm:$0x1]
        %v6441 = vld [vmem:[#allocation3 + $0x84] sm:$0xe]
        %v6442 = vld [vmem:[#allocation3 + $0x88] sm:$0xf]
        %v6443 = vld [vmem:[#allocation3 + $0x8c] sm:$0x1]
        %v6444 = vld [vmem:[#allocation3 + $0x90] sm:$0xe]
        %v6445 = vld [vmem:[#allocation3 + $0x94] sm:$0xf]
        %v6446 = vld [vmem:[#allocation3 + $0x98] sm:$0x1]
        %v6447 = vld [vmem:[#allocation3 + $0x9c] sm:$0xe]
        %v6448 = vld [vmem:[#allocation3 + $0xa0] sm:$0xf]
        %v6449 = vld [vmem:[#allocation3 + $0xa4] sm:$0x1]
        %v6450 = vld [vmem:[#allocation3 + $0xa8] sm:$0xe]
        %v6451 = vld [vmem:[#allocation3 + $0xac] sm:$0xf]
        %v6452 = vld [vmem:[#allocation3 + $0xb0] sm:$0x1]
        %v6453 = vld [vmem:[#allocation3 + $0xb4] sm:$0xe]
        %v6454 = vld [vmem:[#allocation3 + $0xb8] sm:$0xf]
        %v6455 = vld [vmem:[#allocation3 + $0xbc] sm:$0x1]
        %v6504 = vrot.slane %v6408, 5
        %v6505 = vrot.slane %v6504, 4
        %v6506 = vrot.slane %v6409, 5
        %v6507 = vsel %vm1577, %v6505, %v6506
        %v6508 = vrot.slane %v6506, 4
        %v6509 = vrot.slane %v6410, 5
        %v6510 = vsel %vm1577, %v6508, %v6509
        %v6511 = vrot.slane %v6411, 5
        %v6512 = vrot.slane %v6511, 4
        %v6513 = vrot.slane %v6412, 5
        %v6514 = vsel %vm1577, %v6512, %v6513
        %v6515 = vrot.slane %v6513, 4
        %v6516 = vrot.slane %v6413, 5
        %v6517 = vsel %vm1577, %v6515, %v6516
        %v6518 = vrot.slane %v6414, 5
        %v6519 = vrot.slane %v6518, 4
        %v6520 = vrot.slane %v6415, 5
        %v6521 = vsel %vm1577, %v6519, %v6520
        %v6522 = vrot.slane %v6520, 4
        %v6523 = vrot.slane %v6416, 5
        %v6524 = vsel %vm1577, %v6522, %v6523
        %v6525 = vrot.slane %v6417, 5
        %v6526 = vrot.slane %v6525, 4
        %v6527 = vrot.slane %v6418, 5
        %v6528 = vsel %vm1577, %v6526, %v6527
        %v6529 = vrot.slane %v6527, 4
        %v6530 = vrot.slane %v6419, 5
        %v6531 = vsel %vm1577, %v6529, %v6530
        %v6532 = vrot.slane %v6420, 5
        %v6533 = vrot.slane %v6532, 4
        %v6534 = vrot.slane %v6421, 5
        %v6535 = vsel %vm1577, %v6533, %v6534
        %v6536 = vrot.slane %v6534, 4
        %v6537 = vrot.slane %v6422, 5
        %v6538 = vsel %vm1577, %v6536, %v6537
        %v6539 = vrot.slane %v6423, 5
        %v6540 = vrot.slane %v6539, 4
        %v6541 = vrot.slane %v6424, 5
        %v6542 = vsel %vm1577, %v6540, %v6541
        %v6543 = vrot.slane %v6541, 4
        %v6544 = vrot.slane %v6425, 5
        %v6545 = vsel %vm1577, %v6543, %v6544
        %v6546 = vrot.slane %v6426, 5
        %v6547 = vrot.slane %v6546, 4
        %v6548 = vrot.slane %v6427, 5
        %v6549 = vsel %vm1577, %v6547, %v6548
        %v6550 = vrot.slane %v6548, 4
        %v6551 = vrot.slane %v6428, 5
        %v6552 = vsel %vm1577, %v6550, %v6551
        %v6553 = vrot.slane %v6429, 5
        %v6554 = vrot.slane %v6553, 4
        %v6555 = vrot.slane %v6430, 5
        %v6556 = vsel %vm1577, %v6554, %v6555
        %v6557 = vrot.slane %v6555, 4
        %v6558 = vrot.slane %v6431, 5
        %v6559 = vsel %vm1577, %v6557, %v6558
        %v6560 = vrot.slane %v6432, 5
        %v6561 = vrot.slane %v6560, 4
        %v6562 = vrot.slane %v6433, 5
        %v6563 = vsel %vm1577, %v6561, %v6562
        %v6564 = vrot.slane %v6562, 4
        %v6565 = vrot.slane %v6434, 5
        %v6566 = vsel %vm1577, %v6564, %v6565
        %v6567 = vrot.slane %v6435, 5
        %v6568 = vrot.slane %v6567, 4
        %v6569 = vrot.slane %v6436, 5
        %v6570 = vsel %vm1577, %v6568, %v6569
        %v6571 = vrot.slane %v6569, 4
        %v6572 = vrot.slane %v6437, 5
        %v6573 = vsel %vm1577, %v6571, %v6572
        %v6574 = vrot.slane %v6438, 5
        %v6575 = vrot.slane %v6574, 4
        %v6576 = vrot.slane %v6439, 5
        %v6577 = vsel %vm1577, %v6575, %v6576
        %v6578 = vrot.slane %v6576, 4
        %v6579 = vrot.slane %v6440, 5
        %v6580 = vsel %vm1577, %v6578, %v6579
        %v6581 = vrot.slane %v6441, 5
        %v6582 = vrot.slane %v6581, 4
        %v6583 = vrot.slane %v6442, 5
        %v6584 = vsel %vm1577, %v6582, %v6583
        %v6585 = vrot.slane %v6583, 4
        %v6586 = vrot.slane %v6443, 5
        %v6587 = vsel %vm1577, %v6585, %v6586
        %v6588 = vrot.slane %v6444, 5
        %v6589 = vrot.slane %v6588, 4
        %v6590 = vrot.slane %v6445, 5
        %v6591 = vsel %vm1577, %v6589, %v6590
        %v6592 = vrot.slane %v6590, 4
        %v6593 = vrot.slane %v6446, 5
        %v6594 = vsel %vm1577, %v6592, %v6593
        %v6595 = vrot.slane %v6447, 5
        %v6596 = vrot.slane %v6595, 4
        %v6597 = vrot.slane %v6448, 5
        %v6598 = vsel %vm1577, %v6596, %v6597
        %v6599 = vrot.slane %v6597, 4
        %v6600 = vrot.slane %v6449, 5
        %v6601 = vsel %vm1577, %v6599, %v6600
        %v6602 = vrot.slane %v6450, 5
        %v6603 = vrot.slane %v6602, 4
        %v6604 = vrot.slane %v6451, 5
        %v6605 = vsel %vm1577, %v6603, %v6604
        %v6606 = vrot.slane %v6604, 4
        %v6607 = vrot.slane %v6452, 5
        %v6608 = vsel %vm1577, %v6606, %v6607
        %v6609 = vrot.slane %v6453, 5
        %v6610 = vrot.slane %v6609, 4
        %v6611 = vrot.slane %v6454, 5
        %v6612 = vsel %vm1577, %v6610, %v6611
        %v6613 = vrot.slane %v6611, 4
        %v6614 = vrot.slane %v6455, 5
        %v6615 = vsel %vm1577, %v6613, %v6614
        %v6616 = vunpack.c.l.b16 %v6507
        %v6617 = vunpack.c.l.b16 %v6510
        %v6618 = vunpack.c.l.b16 %v6514
        %v6619 = vunpack.c.l.b16 %v6517
        %v6620 = vunpack.c.l.b16 %v6521
        %v6621 = vunpack.c.l.b16 %v6524
        %v6622 = vunpack.c.l.b16 %v6528
        %v6623 = vunpack.c.l.b16 %v6531
        %v6624 = vunpack.c.l.b16 %v6535
        %v6625 = vunpack.c.l.b16 %v6538
        %v6626 = vunpack.c.l.b16 %v6542
        %v6627 = vunpack.c.l.b16 %v6545
        %v6628 = vunpack.c.l.b16 %v6549
        %v6629 = vunpack.c.l.b16 %v6552
        %v6630 = vunpack.c.l.b16 %v6556
        %v6631 = vunpack.c.l.b16 %v6559
        %v6632 = vunpack.c.l.b16 %v6563
        %v6633 = vunpack.c.l.b16 %v6566
        %v6634 = vunpack.c.l.b16 %v6570
        %v6635 = vunpack.c.l.b16 %v6573
        %v6636 = vunpack.c.l.b16 %v6577
        %v6637 = vunpack.c.l.b16 %v6580
        %v6638 = vunpack.c.l.b16 %v6584
        %v6639 = vunpack.c.l.b16 %v6587
        %v6640 = vunpack.c.l.b16 %v6591
        %v6641 = vunpack.c.l.b16 %v6594
        %v6642 = vunpack.c.l.b16 %v6598
        %v6643 = vunpack.c.l.b16 %v6601
        %v6644 = vunpack.c.l.b16 %v6605
        %v6645 = vunpack.c.l.b16 %v6608
        %v6646 = vunpack.c.l.b16 %v6612
        %v6647 = vunpack.c.l.b16 %v6615
        %v6648 = vpack.c.b16 %v6617, %v6616
        %v6649 = vpack.c.b16 %v6619, %v6618
        %v6650 = vpack.c.b16 %v6621, %v6620
        %v6651 = vpack.c.b16 %v6623, %v6622
        %v6652 = vpack.c.b16 %v6625, %v6624
        %v6653 = vpack.c.b16 %v6627, %v6626
        %v6654 = vpack.c.b16 %v6629, %v6628
        %v6655 = vpack.c.b16 %v6631, %v6630
        %v6656 = vpack.c.b16 %v6633, %v6632
        %v6657 = vpack.c.b16 %v6635, %v6634
        %v6658 = vpack.c.b16 %v6637, %v6636
        %v6659 = vpack.c.b16 %v6639, %v6638
        %v6660 = vpack.c.b16 %v6641, %v6640
        %v6661 = vpack.c.b16 %v6643, %v6642
        %v6662 = vpack.c.b16 %v6645, %v6644
        %v6663 = vpack.c.b16 %v6647, %v6646
        %6680 = vst [vmem:[#allocation4 + $0x10] sm:$0xff] %v6648
        %6681 = vst [vmem:[#allocation4 + $0x58] sm:$0xff] %v6649
        %6682 = vst [vmem:[#allocation4 + $0xa0] sm:$0xff] %v6650
        %6683 = vst [vmem:[#allocation4 + $0xe8] sm:$0xff] %v6651
        %6684 = vst [vmem:[#allocation4 + $0x130] sm:$0xff] %v6652
        %6685 = vst [vmem:[#allocation4 + $0x178] sm:$0xff] %v6653
        %6686 = vst [vmem:[#allocation4 + $0x1c0] sm:$0xff] %v6654
        %6687 = vst [vmem:[#allocation4 + $0x208] sm:$0xff] %v6655
        %6688 = vst [vmem:[#allocation4 + $0x250] sm:$0xff] %v6656
        %6689 = vst [vmem:[#allocation4 + $0x298] sm:$0xff] %v6657
        %6690 = vst [vmem:[#allocation4 + $0x2e0] sm:$0xff] %v6658
        %6691 = vst [vmem:[#allocation4 + $0x328] sm:$0xff] %v6659
        %6692 = vst [vmem:[#allocation4 + $0x370] sm:$0xff] %v6660
        %6693 = vst [vmem:[#allocation4 + $0x3b8] sm:$0xff] %v6661
        %6694 = vst [vmem:[#allocation4 + $0x400] sm:$0xff] %v6662
        %6695 = vst [vmem:[#allocation4 + $0x448] sm:$0xff] %v6663
        %v6696 = vld [vmem:[%s5639] sm:$0xf]
        %v6697 = vld [vmem:[%s5639 + $0x4] sm:$0xf]
        %v6698 = vld [vmem:[%s5639 + $0xc] sm:$0xf]
        %v6699 = vld [vmem:[%s5639 + $0x10] sm:$0xf]
        %v6700 = vld [vmem:[%s5639 + $0x18] sm:$0xf]
        %v6701 = vld [vmem:[%s5639 + $0x1c] sm:$0xf]
        %v6702 = vld [vmem:[%s5639 + $0x24] sm:$0xf]
        %v6703 = vld [vmem:[%s5639 + $0x28] sm:$0xf]
        %v6704 = vld [vmem:[%s5639 + $0x30] sm:$0xf]
        %v6705 = vld [vmem:[%s5639 + $0x34] sm:$0xf]
        %v6706 = vld [vmem:[%s5639 + $0x3c] sm:$0xf]
        %v6707 = vld [vmem:[%s5639 + $0x40] sm:$0xf]
        %v6708 = vld [vmem:[%s5639 + $0x48] sm:$0xf]
        %v6709 = vld [vmem:[%s5639 + $0x4c] sm:$0xf]
        %v6710 = vld [vmem:[%s5639 + $0x54] sm:$0xf]
        %v6711 = vld [vmem:[%s5639 + $0x58] sm:$0xf]
        %v6712 = vld [vmem:[%s5639 + $0x60] sm:$0xf]
        %v6713 = vld [vmem:[%s5639 + $0x64] sm:$0xf]
        %v6714 = vld [vmem:[%s5639 + $0x6c] sm:$0xf]
        %v6715 = vld [vmem:[%s5639 + $0x70] sm:$0xf]
        %v6716 = vld [vmem:[%s5639 + $0x78] sm:$0xf]
        %v6717 = vld [vmem:[%s5639 + $0x7c] sm:$0xf]
        %v6718 = vld [vmem:[%s5639 + $0x84] sm:$0xf]
        %v6719 = vld [vmem:[%s5639 + $0x88] sm:$0xf]
        %v6720 = vld [vmem:[%s5639 + $0x90] sm:$0xf]
        %v6721 = vld [vmem:[%s5639 + $0x94] sm:$0xf]
        %v6722 = vld [vmem:[%s5639 + $0x9c] sm:$0xf]
        %v6723 = vld [vmem:[%s5639 + $0xa0] sm:$0xf]
        %v6724 = vld [vmem:[%s5639 + $0xa8] sm:$0xf]
        %v6725 = vld [vmem:[%s5639 + $0xac] sm:$0xf]
        %v6726 = vld [vmem:[%s5639 + $0xb4] sm:$0xf]
        %v6727 = vld [vmem:[%s5639 + $0xb8] sm:$0xf]
        %v6760 = vunpack.c.l.b16 %v6696
        %v6761 = vunpack.c.l.b16 %v6697
        %v6762 = vunpack.c.l.b16 %v6698
        %v6763 = vunpack.c.l.b16 %v6699
        %v6764 = vunpack.c.l.b16 %v6700
        %v6765 = vunpack.c.l.b16 %v6701
        %v6766 = vunpack.c.l.b16 %v6702
        %v6767 = vunpack.c.l.b16 %v6703
        %v6768 = vunpack.c.l.b16 %v6704
        %v6769 = vunpack.c.l.b16 %v6705
        %v6770 = vunpack.c.l.b16 %v6706
        %v6771 = vunpack.c.l.b16 %v6707
        %v6772 = vunpack.c.l.b16 %v6708
        %v6773 = vunpack.c.l.b16 %v6709
        %v6774 = vunpack.c.l.b16 %v6710
        %v6775 = vunpack.c.l.b16 %v6711
        %v6776 = vunpack.c.l.b16 %v6712
        %v6777 = vunpack.c.l.b16 %v6713
        %v6778 = vunpack.c.l.b16 %v6714
        %v6779 = vunpack.c.l.b16 %v6715
        %v6780 = vunpack.c.l.b16 %v6716
        %v6781 = vunpack.c.l.b16 %v6717
        %v6782 = vunpack.c.l.b16 %v6718
        %v6783 = vunpack.c.l.b16 %v6719
        %v6784 = vunpack.c.l.b16 %v6720
        %v6785 = vunpack.c.l.b16 %v6721
        %v6786 = vunpack.c.l.b16 %v6722
        %v6787 = vunpack.c.l.b16 %v6723
        %v6788 = vunpack.c.l.b16 %v6724
        %v6789 = vunpack.c.l.b16 %v6725
        %v6790 = vunpack.c.l.b16 %v6726
        %v6791 = vunpack.c.l.b16 %v6727
        %v6792 = vpack.c.b16 %v6761, %v6760
        %v6793 = vpack.c.b16 %v6763, %v6762
        %v6794 = vpack.c.b16 %v6765, %v6764
        %v6795 = vpack.c.b16 %v6767, %v6766
        %v6796 = vpack.c.b16 %v6769, %v6768
        %v6797 = vpack.c.b16 %v6771, %v6770
        %v6798 = vpack.c.b16 %v6773, %v6772
        %v6799 = vpack.c.b16 %v6775, %v6774
        %v6800 = vpack.c.b16 %v6777, %v6776
        %v6801 = vpack.c.b16 %v6779, %v6778
        %v6802 = vpack.c.b16 %v6781, %v6780
        %v6803 = vpack.c.b16 %v6783, %v6782
        %v6804 = vpack.c.b16 %v6785, %v6784
        %v6805 = vpack.c.b16 %v6787, %v6786
        %v6806 = vpack.c.b16 %v6789, %v6788
        %v6807 = vpack.c.b16 %v6791, %v6790
        %6824 = vst [vmem:[#allocation4 + $0x18] sm:$0xff] %v6792
        %6825 = vst [vmem:[#allocation4 + $0x60] sm:$0xff] %v6793
        %6826 = vst [vmem:[#allocation4 + $0xa8] sm:$0xff] %v6794
        %6827 = vst [vmem:[#allocation4 + $0xf0] sm:$0xff] %v6795
        %6828 = vst [vmem:[#allocation4 + $0x138] sm:$0xff] %v6796
        %6829 = vst [vmem:[#allocation4 + $0x180] sm:$0xff] %v6797
        %6830 = vst [vmem:[#allocation4 + $0x1c8] sm:$0xff] %v6798
        %6831 = vst [vmem:[#allocation4 + $0x210] sm:$0xff] %v6799
        %6832 = vst [vmem:[#allocation4 + $0x258] sm:$0xff] %v6800
        %6833 = vst [vmem:[#allocation4 + $0x2a0] sm:$0xff] %v6801
        %6834 = vst [vmem:[#allocation4 + $0x2e8] sm:$0xff] %v6802
        %6835 = vst [vmem:[#allocation4 + $0x330] sm:$0xff] %v6803
        %6836 = vst [vmem:[#allocation4 + $0x378] sm:$0xff] %v6804
        %6837 = vst [vmem:[#allocation4 + $0x3c0] sm:$0xff] %v6805
        %6838 = vst [vmem:[#allocation4 + $0x408] sm:$0xff] %v6806
        %6839 = vst [vmem:[#allocation4 + $0x450] sm:$0xff] %v6807
        %v6840 = vld [vmem:[%s5639] sm:$0xf]
        %v6841 = vld [vmem:[%s5639 + $0x4] sm:$0xf]
        %v6842 = vld [vmem:[%s5639 + $0x8] sm:$0x1]
        %v6843 = vld [vmem:[%s5639 + $0xc] sm:$0xf]
        %v6844 = vld [vmem:[%s5639 + $0x10] sm:$0xf]
        %v6845 = vld [vmem:[%s5639 + $0x14] sm:$0x1]
        %v6846 = vld [vmem:[%s5639 + $0x18] sm:$0xf]
        %v6847 = vld [vmem:[%s5639 + $0x1c] sm:$0xf]
        %v6848 = vld [vmem:[%s5639 + $0x20] sm:$0x1]
        %v6849 = vld [vmem:[%s5639 + $0x24] sm:$0xf]
        %v6850 = vld [vmem:[%s5639 + $0x28] sm:$0xf]
        %v6851 = vld [vmem:[%s5639 + $0x2c] sm:$0x1]
        %v6852 = vld [vmem:[%s5639 + $0x30] sm:$0xf]
        %v6853 = vld [vmem:[%s5639 + $0x34] sm:$0xf]
        %v6854 = vld [vmem:[%s5639 + $0x38] sm:$0x1]
        %v6855 = vld [vmem:[%s5639 + $0x3c] sm:$0xf]
        %v6856 = vld [vmem:[%s5639 + $0x40] sm:$0xf]
        %v6857 = vld [vmem:[%s5639 + $0x44] sm:$0x1]
        %v6858 = vld [vmem:[%s5639 + $0x48] sm:$0xf]
        %v6859 = vld [vmem:[%s5639 + $0x4c] sm:$0xf]
        %v6860 = vld [vmem:[%s5639 + $0x50] sm:$0x1]
        %v6861 = vld [vmem:[%s5639 + $0x54] sm:$0xf]
        %v6862 = vld [vmem:[%s5639 + $0x58] sm:$0xf]
        %v6863 = vld [vmem:[%s5639 + $0x5c] sm:$0x1]
        %v6864 = vld [vmem:[%s5639 + $0x60] sm:$0xf]
        %v6865 = vld [vmem:[%s5639 + $0x64] sm:$0xf]
        %v6866 = vld [vmem:[%s5639 + $0x68] sm:$0x1]
        %v6867 = vld [vmem:[%s5639 + $0x6c] sm:$0xf]
        %v6868 = vld [vmem:[%s5639 + $0x70] sm:$0xf]
        %v6869 = vld [vmem:[%s5639 + $0x74] sm:$0x1]
        %v6870 = vld [vmem:[%s5639 + $0x78] sm:$0xf]
        %v6871 = vld [vmem:[%s5639 + $0x7c] sm:$0xf]
        %v6872 = vld [vmem:[%s5639 + $0x80] sm:$0x1]
        %v6873 = vld [vmem:[%s5639 + $0x84] sm:$0xf]
        %v6874 = vld [vmem:[%s5639 + $0x88] sm:$0xf]
        %v6875 = vld [vmem:[%s5639 + $0x8c] sm:$0x1]
        %v6876 = vld [vmem:[%s5639 + $0x90] sm:$0xf]
        %v6877 = vld [vmem:[%s5639 + $0x94] sm:$0xf]
        %v6878 = vld [vmem:[%s5639 + $0x98] sm:$0x1]
        %v6879 = vld [vmem:[%s5639 + $0x9c] sm:$0xf]
        %v6880 = vld [vmem:[%s5639 + $0xa0] sm:$0xf]
        %v6881 = vld [vmem:[%s5639 + $0xa4] sm:$0x1]
        %v6882 = vld [vmem:[%s5639 + $0xa8] sm:$0xf]
        %v6883 = vld [vmem:[%s5639 + $0xac] sm:$0xf]
        %v6884 = vld [vmem:[%s5639 + $0xb0] sm:$0x1]
        %v6885 = vld [vmem:[%s5639 + $0xb4] sm:$0xf]
        %v6886 = vld [vmem:[%s5639 + $0xb8] sm:$0xf]
        %v6887 = vld [vmem:[%s5639 + $0xbc] sm:$0x1]
        %v6889 = vshrl.u32 %v6840, 16
        %v6891 = vrot.slane %v6889, 4
        %v6892 = vshll.u32 %v6840, 16
        %v6894 = vrot.slane %v6892, 5
        %v6895 = vor.u32 %v6891, %v6894
        %v6896 = vrot.slane %v6895, 4
        %v6898 = vshll.u32 %v6841, 16
        %v6900 = vrot.slane %v6898, 5
        %v6901 = vsel %vm1014, %v6896, %v6900
        %v6902 = vshrl.u32 %v6841, 16
        %v6904 = vrot.slane %v6902, 4
        %v6905 = vor.u32 %v6904, %v6900
        %v6906 = vrot.slane %v6905, 4
        %v6908 = vshll.u32 %v6842, 16
        %v6910 = vrot.slane %v6908, 5
        %v6911 = vsel %vm1014, %v6906, %v6910
        %v6913 = vshrl.u32 %v6843, 16
        %v6915 = vrot.slane %v6913, 4
        %v6916 = vshll.u32 %v6843, 16
        %v6918 = vrot.slane %v6916, 5
        %v6919 = vor.u32 %v6915, %v6918
        %v6920 = vrot.slane %v6919, 4
        %v6922 = vshll.u32 %v6844, 16
        %v6924 = vrot.slane %v6922, 5
        %v6925 = vsel %vm1014, %v6920, %v6924
        %v6926 = vshrl.u32 %v6844, 16
        %v6928 = vrot.slane %v6926, 4
        %v6929 = vor.u32 %v6928, %v6924
        %v6930 = vrot.slane %v6929, 4
        %v6932 = vshll.u32 %v6845, 16
        %v6934 = vrot.slane %v6932, 5
        %v6935 = vsel %vm1014, %v6930, %v6934
        %v6937 = vshrl.u32 %v6846, 16
        %v6939 = vrot.slane %v6937, 4
        %v6940 = vshll.u32 %v6846, 16
        %v6942 = vrot.slane %v6940, 5
        %v6943 = vor.u32 %v6939, %v6942
        %v6944 = vrot.slane %v6943, 4
        %v6946 = vshll.u32 %v6847, 16
        %v6948 = vrot.slane %v6946, 5
        %v6949 = vsel %vm1014, %v6944, %v6948
        %v6950 = vshrl.u32 %v6847, 16
        %v6952 = vrot.slane %v6950, 4
        %v6953 = vor.u32 %v6952, %v6948
        %v6954 = vrot.slane %v6953, 4
        %v6956 = vshll.u32 %v6848, 16
        %v6958 = vrot.slane %v6956, 5
        %v6959 = vsel %vm1014, %v6954, %v6958
        %v6961 = vshrl.u32 %v6849, 16
        %v6963 = vrot.slane %v6961, 4
        %v6964 = vshll.u32 %v6849, 16
        %v6966 = vrot.slane %v6964, 5
        %v6967 = vor.u32 %v6963, %v6966
        %v6968 = vrot.slane %v6967, 4
        %v6970 = vshll.u32 %v6850, 16
        %v6972 = vrot.slane %v6970, 5
        %v6973 = vsel %vm1014, %v6968, %v6972
        %v6974 = vshrl.u32 %v6850, 16
        %v6976 = vrot.slane %v6974, 4
        %v6977 = vor.u32 %v6976, %v6972
        %v6978 = vrot.slane %v6977, 4
        %v6980 = vshll.u32 %v6851, 16
        %v6982 = vrot.slane %v6980, 5
        %v6983 = vsel %vm1014, %v6978, %v6982
        %v6985 = vshrl.u32 %v6852, 16
        %v6987 = vrot.slane %v6985, 4
        %v6988 = vshll.u32 %v6852, 16
        %v6990 = vrot.slane %v6988, 5
        %v6991 = vor.u32 %v6987, %v6990
        %v6992 = vrot.slane %v6991, 4
        %v6994 = vshll.u32 %v6853, 16
        %v6996 = vrot.slane %v6994, 5
        %v6997 = vsel %vm1014, %v6992, %v6996
        %v6998 = vshrl.u32 %v6853, 16
        %v7000 = vrot.slane %v6998, 4
        %v7001 = vor.u32 %v7000, %v6996
        %v7002 = vrot.slane %v7001, 4
        %v7004 = vshll.u32 %v6854, 16
        %v7006 = vrot.slane %v7004, 5
        %v7007 = vsel %vm1014, %v7002, %v7006
        %v7009 = vshrl.u32 %v6855, 16
        %v7011 = vrot.slane %v7009, 4
        %v7012 = vshll.u32 %v6855, 16
        %v7014 = vrot.slane %v7012, 5
        %v7015 = vor.u32 %v7011, %v7014
        %v7016 = vrot.slane %v7015, 4
        %v7018 = vshll.u32 %v6856, 16
        %v7020 = vrot.slane %v7018, 5
        %v7021 = vsel %vm1014, %v7016, %v7020
        %v7022 = vshrl.u32 %v6856, 16
        %v7024 = vrot.slane %v7022, 4
        %v7025 = vor.u32 %v7024, %v7020
        %v7026 = vrot.slane %v7025, 4
        %v7028 = vshll.u32 %v6857, 16
        %v7030 = vrot.slane %v7028, 5
        %v7031 = vsel %vm1014, %v7026, %v7030
        %v7033 = vshrl.u32 %v6858, 16
        %v7035 = vrot.slane %v7033, 4
        %v7036 = vshll.u32 %v6858, 16
        %v7038 = vrot.slane %v7036, 5
        %v7039 = vor.u32 %v7035, %v7038
        %v7040 = vrot.slane %v7039, 4
        %v7042 = vshll.u32 %v6859, 16
        %v7044 = vrot.slane %v7042, 5
        %v7045 = vsel %vm1014, %v7040, %v7044
        %v7046 = vshrl.u32 %v6859, 16
        %v7048 = vrot.slane %v7046, 4
        %v7049 = vor.u32 %v7048, %v7044
        %v7050 = vrot.slane %v7049, 4
        %v7052 = vshll.u32 %v6860, 16
        %v7054 = vrot.slane %v7052, 5
        %v7055 = vsel %vm1014, %v7050, %v7054
        %v7057 = vshrl.u32 %v6861, 16
        %v7059 = vrot.slane %v7057, 4
        %v7060 = vshll.u32 %v6861, 16
        %v7062 = vrot.slane %v7060, 5
        %v7063 = vor.u32 %v7059, %v7062
        %v7064 = vrot.slane %v7063, 4
        %v7066 = vshll.u32 %v6862, 16
        %v7068 = vrot.slane %v7066, 5
        %v7069 = vsel %vm1014, %v7064, %v7068
        %v7070 = vshrl.u32 %v6862, 16
        %v7072 = vrot.slane %v7070, 4
        %v7073 = vor.u32 %v7072, %v7068
        %v7074 = vrot.slane %v7073, 4
        %v7076 = vshll.u32 %v6863, 16
        %v7078 = vrot.slane %v7076, 5
        %v7079 = vsel %vm1014, %v7074, %v7078
        %v7081 = vshrl.u32 %v6864, 16
        %v7083 = vrot.slane %v7081, 4
        %v7084 = vshll.u32 %v6864, 16
        %v7086 = vrot.slane %v7084, 5
        %v7087 = vor.u32 %v7083, %v7086
        %v7088 = vrot.slane %v7087, 4
        %v7090 = vshll.u32 %v6865, 16
        %v7092 = vrot.slane %v7090, 5
        %v7093 = vsel %vm1014, %v7088, %v7092
        %v7094 = vshrl.u32 %v6865, 16
        %v7096 = vrot.slane %v7094, 4
        %v7097 = vor.u32 %v7096, %v7092
        %v7098 = vrot.slane %v7097, 4
        %v7100 = vshll.u32 %v6866, 16
        %v7102 = vrot.slane %v7100, 5
        %v7103 = vsel %vm1014, %v7098, %v7102
        %v7105 = vshrl.u32 %v6867, 16
        %v7107 = vrot.slane %v7105, 4
        %v7108 = vshll.u32 %v6867, 16
        %v7110 = vrot.slane %v7108, 5
        %v7111 = vor.u32 %v7107, %v7110
        %v7112 = vrot.slane %v7111, 4
        %v7114 = vshll.u32 %v6868, 16
        %v7116 = vrot.slane %v7114, 5
        %v7117 = vsel %vm1014, %v7112, %v7116
        %v7118 = vshrl.u32 %v6868, 16
        %v7120 = vrot.slane %v7118, 4
        %v7121 = vor.u32 %v7120, %v7116
        %v7122 = vrot.slane %v7121, 4
        %v7124 = vshll.u32 %v6869, 16
        %v7126 = vrot.slane %v7124, 5
        %v7127 = vsel %vm1014, %v7122, %v7126
        %v7129 = vshrl.u32 %v6870, 16
        %v7131 = vrot.slane %v7129, 4
        %v7132 = vshll.u32 %v6870, 16
        %v7134 = vrot.slane %v7132, 5
        %v7135 = vor.u32 %v7131, %v7134
        %v7136 = vrot.slane %v7135, 4
        %v7138 = vshll.u32 %v6871, 16
        %v7140 = vrot.slane %v7138, 5
        %v7141 = vsel %vm1014, %v7136, %v7140
        %v7142 = vshrl.u32 %v6871, 16
        %v7144 = vrot.slane %v7142, 4
        %v7145 = vor.u32 %v7144, %v7140
        %v7146 = vrot.slane %v7145, 4
        %v7148 = vshll.u32 %v6872, 16
        %v7150 = vrot.slane %v7148, 5
        %v7151 = vsel %vm1014, %v7146, %v7150
        %v7153 = vshrl.u32 %v6873, 16
        %v7155 = vrot.slane %v7153, 4
        %v7156 = vshll.u32 %v6873, 16
        %v7158 = vrot.slane %v7156, 5
        %v7159 = vor.u32 %v7155, %v7158
        %v7160 = vrot.slane %v7159, 4
        %v7162 = vshll.u32 %v6874, 16
        %v7164 = vrot.slane %v7162, 5
        %v7165 = vsel %vm1014, %v7160, %v7164
        %v7166 = vshrl.u32 %v6874, 16
        %v7168 = vrot.slane %v7166, 4
        %v7169 = vor.u32 %v7168, %v7164
        %v7170 = vrot.slane %v7169, 4
        %v7172 = vshll.u32 %v6875, 16
        %v7174 = vrot.slane %v7172, 5
        %v7175 = vsel %vm1014, %v7170, %v7174
        %v7177 = vshrl.u32 %v6876, 16
        %v7179 = vrot.slane %v7177, 4
        %v7180 = vshll.u32 %v6876, 16
        %v7182 = vrot.slane %v7180, 5
        %v7183 = vor.u32 %v7179, %v7182
        %v7184 = vrot.slane %v7183, 4
        %v7186 = vshll.u32 %v6877, 16
        %v7188 = vrot.slane %v7186, 5
        %v7189 = vsel %vm1014, %v7184, %v7188
        %v7190 = vshrl.u32 %v6877, 16
        %v7192 = vrot.slane %v7190, 4
        %v7193 = vor.u32 %v7192, %v7188
        %v7194 = vrot.slane %v7193, 4
        %v7196 = vshll.u32 %v6878, 16
        %v7198 = vrot.slane %v7196, 5
        %v7199 = vsel %vm1014, %v7194, %v7198
        %v7201 = vshrl.u32 %v6879, 16
        %v7203 = vrot.slane %v7201, 4
        %v7204 = vshll.u32 %v6879, 16
        %v7206 = vrot.slane %v7204, 5
        %v7207 = vor.u32 %v7203, %v7206
        %v7208 = vrot.slane %v7207, 4
        %v7210 = vshll.u32 %v6880, 16
        %v7212 = vrot.slane %v7210, 5
        %v7213 = vsel %vm1014, %v7208, %v7212
        %v7214 = vshrl.u32 %v6880, 16
        %v7216 = vrot.slane %v7214, 4
        %v7217 = vor.u32 %v7216, %v7212
        %v7218 = vrot.slane %v7217, 4
        %v7220 = vshll.u32 %v6881, 16
        %v7222 = vrot.slane %v7220, 5
        %v7223 = vsel %vm1014, %v7218, %v7222
        %v7225 = vshrl.u32 %v6882, 16
        %v7227 = vrot.slane %v7225, 4
        %v7228 = vshll.u32 %v6882, 16
        %v7230 = vrot.slane %v7228, 5
        %v7231 = vor.u32 %v7227, %v7230
        %v7232 = vrot.slane %v7231, 4
        %v7234 = vshll.u32 %v6883, 16
        %v7236 = vrot.slane %v7234, 5
        %v7237 = vsel %vm1014, %v7232, %v7236
        %v7238 = vshrl.u32 %v6883, 16
        %v7240 = vrot.slane %v7238, 4
        %v7241 = vor.u32 %v7240, %v7236
        %v7242 = vrot.slane %v7241, 4
        %v7244 = vshll.u32 %v6884, 16
        %v7246 = vrot.slane %v7244, 5
        %v7247 = vsel %vm1014, %v7242, %v7246
        %v7249 = vshrl.u32 %v6885, 16
        %v7251 = vrot.slane %v7249, 4
        %v7252 = vshll.u32 %v6885, 16
        %v7254 = vrot.slane %v7252, 5
        %v7255 = vor.u32 %v7251, %v7254
        %v7256 = vrot.slane %v7255, 4
        %v7258 = vshll.u32 %v6886, 16
        %v7260 = vrot.slane %v7258, 5
        %v7261 = vsel %vm1014, %v7256, %v7260
        %v7262 = vshrl.u32 %v6886, 16
        %v7264 = vrot.slane %v7262, 4
        %v7265 = vor.u32 %v7264, %v7260
        %v7266 = vrot.slane %v7265, 4
        %v7268 = vshll.u32 %v6887, 16
        %v7270 = vrot.slane %v7268, 5
        %v7271 = vsel %vm1014, %v7266, %v7270
        %v7272 = vunpack.c.l.b16 %v6901
        %v7273 = vunpack.c.l.b16 %v6911
        %v7274 = vunpack.c.l.b16 %v6925
        %v7275 = vunpack.c.l.b16 %v6935
        %v7276 = vunpack.c.l.b16 %v6949
        %v7277 = vunpack.c.l.b16 %v6959
        %v7278 = vunpack.c.l.b16 %v6973
        %v7279 = vunpack.c.l.b16 %v6983
        %v7280 = vunpack.c.l.b16 %v6997
        %v7281 = vunpack.c.l.b16 %v7007
        %v7282 = vunpack.c.l.b16 %v7021
        %v7283 = vunpack.c.l.b16 %v7031
        %v7284 = vunpack.c.l.b16 %v7045
        %v7285 = vunpack.c.l.b16 %v7055
        %v7286 = vunpack.c.l.b16 %v7069
        %v7287 = vunpack.c.l.b16 %v7079
        %v7288 = vunpack.c.l.b16 %v7093
        %v7289 = vunpack.c.l.b16 %v7103
        %v7290 = vunpack.c.l.b16 %v7117
        %v7291 = vunpack.c.l.b16 %v7127
        %v7292 = vunpack.c.l.b16 %v7141
        %v7293 = vunpack.c.l.b16 %v7151
        %v7294 = vunpack.c.l.b16 %v7165
        %v7295 = vunpack.c.l.b16 %v7175
        %v7296 = vunpack.c.l.b16 %v7189
        %v7297 = vunpack.c.l.b16 %v7199
        %v7298 = vunpack.c.l.b16 %v7213
        %v7299 = vunpack.c.l.b16 %v7223
        %v7300 = vunpack.c.l.b16 %v7237
        %v7301 = vunpack.c.l.b16 %v7247
        %v7302 = vunpack.c.l.b16 %v7261
        %v7303 = vunpack.c.l.b16 %v7271
        %v7304 = vpack.c.b16 %v7273, %v7272
        %v7305 = vpack.c.b16 %v7275, %v7274
        %v7306 = vpack.c.b16 %v7277, %v7276
        %v7307 = vpack.c.b16 %v7279, %v7278
        %v7308 = vpack.c.b16 %v7281, %v7280
        %v7309 = vpack.c.b16 %v7283, %v7282
        %v7310 = vpack.c.b16 %v7285, %v7284
        %v7311 = vpack.c.b16 %v7287, %v7286
        %v7312 = vpack.c.b16 %v7289, %v7288
        %v7313 = vpack.c.b16 %v7291, %v7290
        %v7314 = vpack.c.b16 %v7293, %v7292
        %v7315 = vpack.c.b16 %v7295, %v7294
        %v7316 = vpack.c.b16 %v7297, %v7296
        %v7317 = vpack.c.b16 %v7299, %v7298
        %v7318 = vpack.c.b16 %v7301, %v7300
        %v7319 = vpack.c.b16 %v7303, %v7302
        %7336 = vst [vmem:[#allocation4 + $0x20] sm:$0xff] %v7304
        %7337 = vst [vmem:[#allocation4 + $0x68] sm:$0xff] %v7305
        %7338 = vst [vmem:[#allocation4 + $0xb0] sm:$0xff] %v7306
        %7339 = vst [vmem:[#allocation4 + $0xf8] sm:$0xff] %v7307
        %7340 = vst [vmem:[#allocation4 + $0x140] sm:$0xff] %v7308
        %7341 = vst [vmem:[#allocation4 + $0x188] sm:$0xff] %v7309
        %7342 = vst [vmem:[#allocation4 + $0x1d0] sm:$0xff] %v7310
        %7343 = vst [vmem:[#allocation4 + $0x218] sm:$0xff] %v7311
        %7344 = vst [vmem:[#allocation4 + $0x260] sm:$0xff] %v7312
        %7345 = vst [vmem:[#allocation4 + $0x2a8] sm:$0xff] %v7313
        %7346 = vst [vmem:[#allocation4 + $0x2f0] sm:$0xff] %v7314
        %7347 = vst [vmem:[#allocation4 + $0x338] sm:$0xff] %v7315
        %7348 = vst [vmem:[#allocation4 + $0x380] sm:$0xff] %v7316
        %7349 = vst [vmem:[#allocation4 + $0x3c8] sm:$0xff] %v7317
        %7350 = vst [vmem:[#allocation4 + $0x410] sm:$0xff] %v7318
        %7351 = vst [vmem:[#allocation4 + $0x458] sm:$0xff] %v7319
        %v7352 = vld [vmem:[%s5639] sm:$0xe]
        %v7353 = vld [vmem:[%s5639 + $0x4] sm:$0xf]
        %v7354 = vld [vmem:[%s5639 + $0x8] sm:$0x1]
        %v7355 = vld [vmem:[%s5639 + $0xc] sm:$0xe]
        %v7356 = vld [vmem:[%s5639 + $0x10] sm:$0xf]
        %v7357 = vld [vmem:[%s5639 + $0x14] sm:$0x1]
        %v7358 = vld [vmem:[%s5639 + $0x18] sm:$0xe]
        %v7359 = vld [vmem:[%s5639 + $0x1c] sm:$0xf]
        %v7360 = vld [vmem:[%s5639 + $0x20] sm:$0x1]
        %v7361 = vld [vmem:[%s5639 + $0x24] sm:$0xe]
        %v7362 = vld [vmem:[%s5639 + $0x28] sm:$0xf]
        %v7363 = vld [vmem:[%s5639 + $0x2c] sm:$0x1]
        %v7364 = vld [vmem:[%s5639 + $0x30] sm:$0xe]
        %v7365 = vld [vmem:[%s5639 + $0x34] sm:$0xf]
        %v7366 = vld [vmem:[%s5639 + $0x38] sm:$0x1]
        %v7367 = vld [vmem:[%s5639 + $0x3c] sm:$0xe]
        %v7368 = vld [vmem:[%s5639 + $0x40] sm:$0xf]
        %v7369 = vld [vmem:[%s5639 + $0x44] sm:$0x1]
        %v7370 = vld [vmem:[%s5639 + $0x48] sm:$0xe]
        %v7371 = vld [vmem:[%s5639 + $0x4c] sm:$0xf]
        %v7372 = vld [vmem:[%s5639 + $0x50] sm:$0x1]
        %v7373 = vld [vmem:[%s5639 + $0x54] sm:$0xe]
        %v7374 = vld [vmem:[%s5639 + $0x58] sm:$0xf]
        %v7375 = vld [vmem:[%s5639 + $0x5c] sm:$0x1]
        %v7376 = vld [vmem:[%s5639 + $0x60] sm:$0xe]
        %v7377 = vld [vmem:[%s5639 + $0x64] sm:$0xf]
        %v7378 = vld [vmem:[%s5639 + $0x68] sm:$0x1]
        %v7379 = vld [vmem:[%s5639 + $0x6c] sm:$0xe]
        %v7380 = vld [vmem:[%s5639 + $0x70] sm:$0xf]
        %v7381 = vld [vmem:[%s5639 + $0x74] sm:$0x1]
        %v7382 = vld [vmem:[%s5639 + $0x78] sm:$0xe]
        %v7383 = vld [vmem:[%s5639 + $0x7c] sm:$0xf]
        %v7384 = vld [vmem:[%s5639 + $0x80] sm:$0x1]
        %v7385 = vld [vmem:[%s5639 + $0x84] sm:$0xe]
        %v7386 = vld [vmem:[%s5639 + $0x88] sm:$0xf]
        %v7387 = vld [vmem:[%s5639 + $0x8c] sm:$0x1]
        %v7388 = vld [vmem:[%s5639 + $0x90] sm:$0xe]
        %v7389 = vld [vmem:[%s5639 + $0x94] sm:$0xf]
        %v7390 = vld [vmem:[%s5639 + $0x98] sm:$0x1]
        %v7391 = vld [vmem:[%s5639 + $0x9c] sm:$0xe]
        %v7392 = vld [vmem:[%s5639 + $0xa0] sm:$0xf]
        %v7393 = vld [vmem:[%s5639 + $0xa4] sm:$0x1]
        %v7394 = vld [vmem:[%s5639 + $0xa8] sm:$0xe]
        %v7395 = vld [vmem:[%s5639 + $0xac] sm:$0xf]
        %v7396 = vld [vmem:[%s5639 + $0xb0] sm:$0x1]
        %v7397 = vld [vmem:[%s5639 + $0xb4] sm:$0xe]
        %v7398 = vld [vmem:[%s5639 + $0xb8] sm:$0xf]
        %v7399 = vld [vmem:[%s5639 + $0xbc] sm:$0x1]
        %v7448 = vrot.slane %v7352, 5
        %v7449 = vrot.slane %v7448, 4
        %v7450 = vrot.slane %v7353, 5
        %v7451 = vsel %vm1577, %v7449, %v7450
        %v7452 = vrot.slane %v7450, 4
        %v7453 = vrot.slane %v7354, 5
        %v7454 = vsel %vm1577, %v7452, %v7453
        %v7455 = vrot.slane %v7355, 5
        %v7456 = vrot.slane %v7455, 4
        %v7457 = vrot.slane %v7356, 5
        %v7458 = vsel %vm1577, %v7456, %v7457
        %v7459 = vrot.slane %v7457, 4
        %v7460 = vrot.slane %v7357, 5
        %v7461 = vsel %vm1577, %v7459, %v7460
        %v7462 = vrot.slane %v7358, 5
        %v7463 = vrot.slane %v7462, 4
        %v7464 = vrot.slane %v7359, 5
        %v7465 = vsel %vm1577, %v7463, %v7464
        %v7466 = vrot.slane %v7464, 4
        %v7467 = vrot.slane %v7360, 5
        %v7468 = vsel %vm1577, %v7466, %v7467
        %v7469 = vrot.slane %v7361, 5
        %v7470 = vrot.slane %v7469, 4
        %v7471 = vrot.slane %v7362, 5
        %v7472 = vsel %vm1577, %v7470, %v7471
        %v7473 = vrot.slane %v7471, 4
        %v7474 = vrot.slane %v7363, 5
        %v7475 = vsel %vm1577, %v7473, %v7474
        %v7476 = vrot.slane %v7364, 5
        %v7477 = vrot.slane %v7476, 4
        %v7478 = vrot.slane %v7365, 5
        %v7479 = vsel %vm1577, %v7477, %v7478
        %v7480 = vrot.slane %v7478, 4
        %v7481 = vrot.slane %v7366, 5
        %v7482 = vsel %vm1577, %v7480, %v7481
        %v7483 = vrot.slane %v7367, 5
        %v7484 = vrot.slane %v7483, 4
        %v7485 = vrot.slane %v7368, 5
        %v7486 = vsel %vm1577, %v7484, %v7485
        %v7487 = vrot.slane %v7485, 4
        %v7488 = vrot.slane %v7369, 5
        %v7489 = vsel %vm1577, %v7487, %v7488
        %v7490 = vrot.slane %v7370, 5
        %v7491 = vrot.slane %v7490, 4
        %v7492 = vrot.slane %v7371, 5
        %v7493 = vsel %vm1577, %v7491, %v7492
        %v7494 = vrot.slane %v7492, 4
        %v7495 = vrot.slane %v7372, 5
        %v7496 = vsel %vm1577, %v7494, %v7495
        %v7497 = vrot.slane %v7373, 5
        %v7498 = vrot.slane %v7497, 4
        %v7499 = vrot.slane %v7374, 5
        %v7500 = vsel %vm1577, %v7498, %v7499
        %v7501 = vrot.slane %v7499, 4
        %v7502 = vrot.slane %v7375, 5
        %v7503 = vsel %vm1577, %v7501, %v7502
        %v7504 = vrot.slane %v7376, 5
        %v7505 = vrot.slane %v7504, 4
        %v7506 = vrot.slane %v7377, 5
        %v7507 = vsel %vm1577, %v7505, %v7506
        %v7508 = vrot.slane %v7506, 4
        %v7509 = vrot.slane %v7378, 5
        %v7510 = vsel %vm1577, %v7508, %v7509
        %v7511 = vrot.slane %v7379, 5
        %v7512 = vrot.slane %v7511, 4
        %v7513 = vrot.slane %v7380, 5
        %v7514 = vsel %vm1577, %v7512, %v7513
        %v7515 = vrot.slane %v7513, 4
        %v7516 = vrot.slane %v7381, 5
        %v7517 = vsel %vm1577, %v7515, %v7516
        %v7518 = vrot.slane %v7382, 5
        %v7519 = vrot.slane %v7518, 4
        %v7520 = vrot.slane %v7383, 5
        %v7521 = vsel %vm1577, %v7519, %v7520
        %v7522 = vrot.slane %v7520, 4
        %v7523 = vrot.slane %v7384, 5
        %v7524 = vsel %vm1577, %v7522, %v7523
        %v7525 = vrot.slane %v7385, 5
        %v7526 = vrot.slane %v7525, 4
        %v7527 = vrot.slane %v7386, 5
        %v7528 = vsel %vm1577, %v7526, %v7527
        %v7529 = vrot.slane %v7527, 4
        %v7530 = vrot.slane %v7387, 5
        %v7531 = vsel %vm1577, %v7529, %v7530
        %v7532 = vrot.slane %v7388, 5
        %v7533 = vrot.slane %v7532, 4
        %v7534 = vrot.slane %v7389, 5
        %v7535 = vsel %vm1577, %v7533, %v7534
        %v7536 = vrot.slane %v7534, 4
        %v7537 = vrot.slane %v7390, 5
        %v7538 = vsel %vm1577, %v7536, %v7537
        %v7539 = vrot.slane %v7391, 5
        %v7540 = vrot.slane %v7539, 4
        %v7541 = vrot.slane %v7392, 5
        %v7542 = vsel %vm1577, %v7540, %v7541
        %v7543 = vrot.slane %v7541, 4
        %v7544 = vrot.slane %v7393, 5
        %v7545 = vsel %vm1577, %v7543, %v7544
        %v7546 = vrot.slane %v7394, 5
        %v7547 = vrot.slane %v7546, 4
        %v7548 = vrot.slane %v7395, 5
        %v7549 = vsel %vm1577, %v7547, %v7548
        %v7550 = vrot.slane %v7548, 4
        %v7551 = vrot.slane %v7396, 5
        %v7552 = vsel %vm1577, %v7550, %v7551
        %v7553 = vrot.slane %v7397, 5
        %v7554 = vrot.slane %v7553, 4
        %v7555 = vrot.slane %v7398, 5
        %v7556 = vsel %vm1577, %v7554, %v7555
        %v7557 = vrot.slane %v7555, 4
        %v7558 = vrot.slane %v7399, 5
        %v7559 = vsel %vm1577, %v7557, %v7558
        %v7560 = vunpack.c.l.b16 %v7451
        %v7561 = vunpack.c.l.b16 %v7454
        %v7562 = vunpack.c.l.b16 %v7458
        %v7563 = vunpack.c.l.b16 %v7461
        %v7564 = vunpack.c.l.b16 %v7465
        %v7565 = vunpack.c.l.b16 %v7468
        %v7566 = vunpack.c.l.b16 %v7472
        %v7567 = vunpack.c.l.b16 %v7475
        %v7568 = vunpack.c.l.b16 %v7479
        %v7569 = vunpack.c.l.b16 %v7482
        %v7570 = vunpack.c.l.b16 %v7486
        %v7571 = vunpack.c.l.b16 %v7489
        %v7572 = vunpack.c.l.b16 %v7493
        %v7573 = vunpack.c.l.b16 %v7496
        %v7574 = vunpack.c.l.b16 %v7500
        %v7575 = vunpack.c.l.b16 %v7503
        %v7576 = vunpack.c.l.b16 %v7507
        %v7577 = vunpack.c.l.b16 %v7510
        %v7578 = vunpack.c.l.b16 %v7514
        %v7579 = vunpack.c.l.b16 %v7517
        %v7580 = vunpack.c.l.b16 %v7521
        %v7581 = vunpack.c.l.b16 %v7524
        %v7582 = vunpack.c.l.b16 %v7528
        %v7583 = vunpack.c.l.b16 %v7531
        %v7584 = vunpack.c.l.b16 %v7535
        %v7585 = vunpack.c.l.b16 %v7538
        %v7586 = vunpack.c.l.b16 %v7542
        %v7587 = vunpack.c.l.b16 %v7545
        %v7588 = vunpack.c.l.b16 %v7549
        %v7589 = vunpack.c.l.b16 %v7552
        %v7590 = vunpack.c.l.b16 %v7556
        %v7591 = vunpack.c.l.b16 %v7559
        %v7592 = vpack.c.b16 %v7561, %v7560
        %v7593 = vpack.c.b16 %v7563, %v7562
        %v7594 = vpack.c.b16 %v7565, %v7564
        %v7595 = vpack.c.b16 %v7567, %v7566
        %v7596 = vpack.c.b16 %v7569, %v7568
        %v7597 = vpack.c.b16 %v7571, %v7570
        %v7598 = vpack.c.b16 %v7573, %v7572
        %v7599 = vpack.c.b16 %v7575, %v7574
        %v7600 = vpack.c.b16 %v7577, %v7576
        %v7601 = vpack.c.b16 %v7579, %v7578
        %v7602 = vpack.c.b16 %v7581, %v7580
        %v7603 = vpack.c.b16 %v7583, %v7582
        %v7604 = vpack.c.b16 %v7585, %v7584
        %v7605 = vpack.c.b16 %v7587, %v7586
        %v7606 = vpack.c.b16 %v7589, %v7588
        %v7607 = vpack.c.b16 %v7591, %v7590
        %7624 = vst [vmem:[#allocation4 + $0x28] sm:$0xff] %v7592
        %7625 = vst [vmem:[#allocation4 + $0x70] sm:$0xff] %v7593
        %7626 = vst [vmem:[#allocation4 + $0xb8] sm:$0xff] %v7594
        %7627 = vst [vmem:[#allocation4 + $0x100] sm:$0xff] %v7595
        %7628 = vst [vmem:[#allocation4 + $0x148] sm:$0xff] %v7596
        %7629 = vst [vmem:[#allocation4 + $0x190] sm:$0xff] %v7597
        %7630 = vst [vmem:[#allocation4 + $0x1d8] sm:$0xff] %v7598
        %7631 = vst [vmem:[#allocation4 + $0x220] sm:$0xff] %v7599
        %7632 = vst [vmem:[#allocation4 + $0x268] sm:$0xff] %v7600
        %7633 = vst [vmem:[#allocation4 + $0x2b0] sm:$0xff] %v7601
        %7634 = vst [vmem:[#allocation4 + $0x2f8] sm:$0xff] %v7602
        %7635 = vst [vmem:[#allocation4 + $0x340] sm:$0xff] %v7603
        %7636 = vst [vmem:[#allocation4 + $0x388] sm:$0xff] %v7604
        %7637 = vst [vmem:[#allocation4 + $0x3d0] sm:$0xff] %v7605
        %7638 = vst [vmem:[#allocation4 + $0x418] sm:$0xff] %v7606
        %7639 = vst [vmem:[#allocation4 + $0x460] sm:$0xff] %v7607
        %s7640 = scalar_lea.vmem [#allocation3], 24
        %v7641 = vld [vmem:[%s7640] sm:$0xf]
        %v7642 = vld [vmem:[%s7640 + $0x4] sm:$0xf]
        %v7643 = vld [vmem:[%s7640 + $0xc] sm:$0xf]
        %v7644 = vld [vmem:[%s7640 + $0x10] sm:$0xf]
        %v7645 = vld [vmem:[%s7640 + $0x18] sm:$0xf]
        %v7646 = vld [vmem:[%s7640 + $0x1c] sm:$0xf]
        %v7647 = vld [vmem:[%s7640 + $0x24] sm:$0xf]
        %v7648 = vld [vmem:[%s7640 + $0x28] sm:$0xf]
        %v7649 = vld [vmem:[%s7640 + $0x30] sm:$0xf]
        %v7650 = vld [vmem:[%s7640 + $0x34] sm:$0xf]
        %v7651 = vld [vmem:[%s7640 + $0x3c] sm:$0xf]
        %v7652 = vld [vmem:[%s7640 + $0x40] sm:$0xf]
        %v7653 = vld [vmem:[%s7640 + $0x48] sm:$0xf]
        %v7654 = vld [vmem:[%s7640 + $0x4c] sm:$0xf]
        %v7655 = vld [vmem:[%s7640 + $0x54] sm:$0xf]
        %v7656 = vld [vmem:[%s7640 + $0x58] sm:$0xf]
        %v7657 = vld [vmem:[%s7640 + $0x60] sm:$0xf]
        %v7658 = vld [vmem:[%s7640 + $0x64] sm:$0xf]
        %v7659 = vld [vmem:[%s7640 + $0x6c] sm:$0xf]
        %v7660 = vld [vmem:[%s7640 + $0x70] sm:$0xf]
        %v7661 = vld [vmem:[%s7640 + $0x78] sm:$0xf]
        %v7662 = vld [vmem:[%s7640 + $0x7c] sm:$0xf]
        %v7663 = vld [vmem:[%s7640 + $0x84] sm:$0xf]
        %v7664 = vld [vmem:[%s7640 + $0x88] sm:$0xf]
        %v7665 = vld [vmem:[%s7640 + $0x90] sm:$0xf]
        %v7666 = vld [vmem:[%s7640 + $0x94] sm:$0xf]
        %v7667 = vld [vmem:[%s7640 + $0x9c] sm:$0xf]
        %v7668 = vld [vmem:[%s7640 + $0xa0] sm:$0xf]
        %v7669 = vld [vmem:[%s7640 + $0xa8] sm:$0xf]
        %v7670 = vld [vmem:[%s7640 + $0xac] sm:$0xf]
        %v7671 = vld [vmem:[%s7640 + $0xb4] sm:$0xf]
        %v7672 = vld [vmem:[%s7640 + $0xb8] sm:$0xf]
        %v7705 = vunpack.c.l.b16 %v7641
        %v7706 = vunpack.c.l.b16 %v7642
        %v7707 = vunpack.c.l.b16 %v7643
        %v7708 = vunpack.c.l.b16 %v7644
        %v7709 = vunpack.c.l.b16 %v7645
        %v7710 = vunpack.c.l.b16 %v7646
        %v7711 = vunpack.c.l.b16 %v7647
        %v7712 = vunpack.c.l.b16 %v7648
        %v7713 = vunpack.c.l.b16 %v7649
        %v7714 = vunpack.c.l.b16 %v7650
        %v7715 = vunpack.c.l.b16 %v7651
        %v7716 = vunpack.c.l.b16 %v7652
        %v7717 = vunpack.c.l.b16 %v7653
        %v7718 = vunpack.c.l.b16 %v7654
        %v7719 = vunpack.c.l.b16 %v7655
        %v7720 = vunpack.c.l.b16 %v7656
        %v7721 = vunpack.c.l.b16 %v7657
        %v7722 = vunpack.c.l.b16 %v7658
        %v7723 = vunpack.c.l.b16 %v7659
        %v7724 = vunpack.c.l.b16 %v7660
        %v7725 = vunpack.c.l.b16 %v7661
        %v7726 = vunpack.c.l.b16 %v7662
        %v7727 = vunpack.c.l.b16 %v7663
        %v7728 = vunpack.c.l.b16 %v7664
        %v7729 = vunpack.c.l.b16 %v7665
        %v7730 = vunpack.c.l.b16 %v7666
        %v7731 = vunpack.c.l.b16 %v7667
        %v7732 = vunpack.c.l.b16 %v7668
        %v7733 = vunpack.c.l.b16 %v7669
        %v7734 = vunpack.c.l.b16 %v7670
        %v7735 = vunpack.c.l.b16 %v7671
        %v7736 = vunpack.c.l.b16 %v7672
        %v7737 = vpack.c.b16 %v7706, %v7705
        %v7738 = vpack.c.b16 %v7708, %v7707
        %v7739 = vpack.c.b16 %v7710, %v7709
        %v7740 = vpack.c.b16 %v7712, %v7711
        %v7741 = vpack.c.b16 %v7714, %v7713
        %v7742 = vpack.c.b16 %v7716, %v7715
        %v7743 = vpack.c.b16 %v7718, %v7717
        %v7744 = vpack.c.b16 %v7720, %v7719
        %v7745 = vpack.c.b16 %v7722, %v7721
        %v7746 = vpack.c.b16 %v7724, %v7723
        %v7747 = vpack.c.b16 %v7726, %v7725
        %v7748 = vpack.c.b16 %v7728, %v7727
        %v7749 = vpack.c.b16 %v7730, %v7729
        %v7750 = vpack.c.b16 %v7732, %v7731
        %v7751 = vpack.c.b16 %v7734, %v7733
        %v7752 = vpack.c.b16 %v7736, %v7735
        %7769 = vst [vmem:[#allocation4 + $0x30] sm:$0xff] %v7737
        %7770 = vst [vmem:[#allocation4 + $0x78] sm:$0xff] %v7738
        %7771 = vst [vmem:[#allocation4 + $0xc0] sm:$0xff] %v7739
        %7772 = vst [vmem:[#allocation4 + $0x108] sm:$0xff] %v7740
        %7773 = vst [vmem:[#allocation4 + $0x150] sm:$0xff] %v7741
        %7774 = vst [vmem:[#allocation4 + $0x198] sm:$0xff] %v7742
        %7775 = vst [vmem:[#allocation4 + $0x1e0] sm:$0xff] %v7743
        %7776 = vst [vmem:[#allocation4 + $0x228] sm:$0xff] %v7744
        %7777 = vst [vmem:[#allocation4 + $0x270] sm:$0xff] %v7745
        %7778 = vst [vmem:[#allocation4 + $0x2b8] sm:$0xff] %v7746
        %7779 = vst [vmem:[#allocation4 + $0x300] sm:$0xff] %v7747
        %7780 = vst [vmem:[#allocation4 + $0x348] sm:$0xff] %v7748
        %7781 = vst [vmem:[#allocation4 + $0x390] sm:$0xff] %v7749
        %7782 = vst [vmem:[#allocation4 + $0x3d8] sm:$0xff] %v7750
        %7783 = vst [vmem:[#allocation4 + $0x420] sm:$0xff] %v7751
        %7784 = vst [vmem:[#allocation4 + $0x468] sm:$0xff] %v7752
        %v7785 = vld [vmem:[%s7640] sm:$0xf]
        %v7786 = vld [vmem:[%s7640 + $0x4] sm:$0xf]
        %v7787 = vld [vmem:[%s7640 + $0x8] sm:$0x1]
        %v7788 = vld [vmem:[%s7640 + $0xc] sm:$0xf]
        %v7789 = vld [vmem:[%s7640 + $0x10] sm:$0xf]
        %v7790 = vld [vmem:[%s7640 + $0x14] sm:$0x1]
        %v7791 = vld [vmem:[%s7640 + $0x18] sm:$0xf]
        %v7792 = vld [vmem:[%s7640 + $0x1c] sm:$0xf]
        %v7793 = vld [vmem:[%s7640 + $0x20] sm:$0x1]
        %v7794 = vld [vmem:[%s7640 + $0x24] sm:$0xf]
        %v7795 = vld [vmem:[%s7640 + $0x28] sm:$0xf]
        %v7796 = vld [vmem:[%s7640 + $0x2c] sm:$0x1]
        %v7797 = vld [vmem:[%s7640 + $0x30] sm:$0xf]
        %v7798 = vld [vmem:[%s7640 + $0x34] sm:$0xf]
        %v7799 = vld [vmem:[%s7640 + $0x38] sm:$0x1]
        %v7800 = vld [vmem:[%s7640 + $0x3c] sm:$0xf]
        %v7801 = vld [vmem:[%s7640 + $0x40] sm:$0xf]
        %v7802 = vld [vmem:[%s7640 + $0x44] sm:$0x1]
        %v7803 = vld [vmem:[%s7640 + $0x48] sm:$0xf]
        %v7804 = vld [vmem:[%s7640 + $0x4c] sm:$0xf]
        %v7805 = vld [vmem:[%s7640 + $0x50] sm:$0x1]
        %v7806 = vld [vmem:[%s7640 + $0x54] sm:$0xf]
        %v7807 = vld [vmem:[%s7640 + $0x58] sm:$0xf]
        %v7808 = vld [vmem:[%s7640 + $0x5c] sm:$0x1]
        %v7809 = vld [vmem:[%s7640 + $0x60] sm:$0xf]
        %v7810 = vld [vmem:[%s7640 + $0x64] sm:$0xf]
        %v7811 = vld [vmem:[%s7640 + $0x68] sm:$0x1]
        %v7812 = vld [vmem:[%s7640 + $0x6c] sm:$0xf]
        %v7813 = vld [vmem:[%s7640 + $0x70] sm:$0xf]
        %v7814 = vld [vmem:[%s7640 + $0x74] sm:$0x1]
        %v7815 = vld [vmem:[%s7640 + $0x78] sm:$0xf]
        %v7816 = vld [vmem:[%s7640 + $0x7c] sm:$0xf]
        %v7817 = vld [vmem:[%s7640 + $0x80] sm:$0x1]
        %v7818 = vld [vmem:[%s7640 + $0x84] sm:$0xf]
        %v7819 = vld [vmem:[%s7640 + $0x88] sm:$0xf]
        %v7820 = vld [vmem:[%s7640 + $0x8c] sm:$0x1]
        %v7821 = vld [vmem:[%s7640 + $0x90] sm:$0xf]
        %v7822 = vld [vmem:[%s7640 + $0x94] sm:$0xf]
        %v7823 = vld [vmem:[%s7640 + $0x98] sm:$0x1]
        %v7824 = vld [vmem:[%s7640 + $0x9c] sm:$0xf]
        %v7825 = vld [vmem:[%s7640 + $0xa0] sm:$0xf]
        %v7826 = vld [vmem:[%s7640 + $0xa4] sm:$0x1]
        %v7827 = vld [vmem:[%s7640 + $0xa8] sm:$0xf]
        %v7828 = vld [vmem:[%s7640 + $0xac] sm:$0xf]
        %v7829 = vld [vmem:[%s7640 + $0xb0] sm:$0x1]
        %v7830 = vld [vmem:[%s7640 + $0xb4] sm:$0xf]
        %v7831 = vld [vmem:[%s7640 + $0xb8] sm:$0xf]
        %v7832 = vld [vmem:[%s7640 + $0xbc] sm:$0x1]
        %v7834 = vshrl.u32 %v7785, 16
        %v7836 = vrot.slane %v7834, 4
        %v7837 = vshll.u32 %v7785, 16
        %v7839 = vrot.slane %v7837, 5
        %v7840 = vor.u32 %v7836, %v7839
        %v7841 = vrot.slane %v7840, 4
        %v7843 = vshll.u32 %v7786, 16
        %v7845 = vrot.slane %v7843, 5
        %v7846 = vsel %vm1014, %v7841, %v7845
        %v7847 = vshrl.u32 %v7786, 16
        %v7849 = vrot.slane %v7847, 4
        %v7850 = vor.u32 %v7849, %v7845
        %v7851 = vrot.slane %v7850, 4
        %v7853 = vshll.u32 %v7787, 16
        %v7855 = vrot.slane %v7853, 5
        %v7856 = vsel %vm1014, %v7851, %v7855
        %v7858 = vshrl.u32 %v7788, 16
        %v7860 = vrot.slane %v7858, 4
        %v7861 = vshll.u32 %v7788, 16
        %v7863 = vrot.slane %v7861, 5
        %v7864 = vor.u32 %v7860, %v7863
        %v7865 = vrot.slane %v7864, 4
        %v7867 = vshll.u32 %v7789, 16
        %v7869 = vrot.slane %v7867, 5
        %v7870 = vsel %vm1014, %v7865, %v7869
        %v7871 = vshrl.u32 %v7789, 16
        %v7873 = vrot.slane %v7871, 4
        %v7874 = vor.u32 %v7873, %v7869
        %v7875 = vrot.slane %v7874, 4
        %v7877 = vshll.u32 %v7790, 16
        %v7879 = vrot.slane %v7877, 5
        %v7880 = vsel %vm1014, %v7875, %v7879
        %v7882 = vshrl.u32 %v7791, 16
        %v7884 = vrot.slane %v7882, 4
        %v7885 = vshll.u32 %v7791, 16
        %v7887 = vrot.slane %v7885, 5
        %v7888 = vor.u32 %v7884, %v7887
        %v7889 = vrot.slane %v7888, 4
        %v7891 = vshll.u32 %v7792, 16
        %v7893 = vrot.slane %v7891, 5
        %v7894 = vsel %vm1014, %v7889, %v7893
        %v7895 = vshrl.u32 %v7792, 16
        %v7897 = vrot.slane %v7895, 4
        %v7898 = vor.u32 %v7897, %v7893
        %v7899 = vrot.slane %v7898, 4
        %v7901 = vshll.u32 %v7793, 16
        %v7903 = vrot.slane %v7901, 5
        %v7904 = vsel %vm1014, %v7899, %v7903
        %v7906 = vshrl.u32 %v7794, 16
        %v7908 = vrot.slane %v7906, 4
        %v7909 = vshll.u32 %v7794, 16
        %v7911 = vrot.slane %v7909, 5
        %v7912 = vor.u32 %v7908, %v7911
        %v7913 = vrot.slane %v7912, 4
        %v7915 = vshll.u32 %v7795, 16
        %v7917 = vrot.slane %v7915, 5
        %v7918 = vsel %vm1014, %v7913, %v7917
        %v7919 = vshrl.u32 %v7795, 16
        %v7921 = vrot.slane %v7919, 4
        %v7922 = vor.u32 %v7921, %v7917
        %v7923 = vrot.slane %v7922, 4
        %v7925 = vshll.u32 %v7796, 16
        %v7927 = vrot.slane %v7925, 5
        %v7928 = vsel %vm1014, %v7923, %v7927
        %v7930 = vshrl.u32 %v7797, 16
        %v7932 = vrot.slane %v7930, 4
        %v7933 = vshll.u32 %v7797, 16
        %v7935 = vrot.slane %v7933, 5
        %v7936 = vor.u32 %v7932, %v7935
        %v7937 = vrot.slane %v7936, 4
        %v7939 = vshll.u32 %v7798, 16
        %v7941 = vrot.slane %v7939, 5
        %v7942 = vsel %vm1014, %v7937, %v7941
        %v7943 = vshrl.u32 %v7798, 16
        %v7945 = vrot.slane %v7943, 4
        %v7946 = vor.u32 %v7945, %v7941
        %v7947 = vrot.slane %v7946, 4
        %v7949 = vshll.u32 %v7799, 16
        %v7951 = vrot.slane %v7949, 5
        %v7952 = vsel %vm1014, %v7947, %v7951
        %v7954 = vshrl.u32 %v7800, 16
        %v7956 = vrot.slane %v7954, 4
        %v7957 = vshll.u32 %v7800, 16
        %v7959 = vrot.slane %v7957, 5
        %v7960 = vor.u32 %v7956, %v7959
        %v7961 = vrot.slane %v7960, 4
        %v7963 = vshll.u32 %v7801, 16
        %v7965 = vrot.slane %v7963, 5
        %v7966 = vsel %vm1014, %v7961, %v7965
        %v7967 = vshrl.u32 %v7801, 16
        %v7969 = vrot.slane %v7967, 4
        %v7970 = vor.u32 %v7969, %v7965
        %v7971 = vrot.slane %v7970, 4
        %v7973 = vshll.u32 %v7802, 16
        %v7975 = vrot.slane %v7973, 5
        %v7976 = vsel %vm1014, %v7971, %v7975
        %v7978 = vshrl.u32 %v7803, 16
        %v7980 = vrot.slane %v7978, 4
        %v7981 = vshll.u32 %v7803, 16
        %v7983 = vrot.slane %v7981, 5
        %v7984 = vor.u32 %v7980, %v7983
        %v7985 = vrot.slane %v7984, 4
        %v7987 = vshll.u32 %v7804, 16
        %v7989 = vrot.slane %v7987, 5
        %v7990 = vsel %vm1014, %v7985, %v7989
        %v7991 = vshrl.u32 %v7804, 16
        %v7993 = vrot.slane %v7991, 4
        %v7994 = vor.u32 %v7993, %v7989
        %v7995 = vrot.slane %v7994, 4
        %v7997 = vshll.u32 %v7805, 16
        %v7999 = vrot.slane %v7997, 5
        %v8000 = vsel %vm1014, %v7995, %v7999
        %v8002 = vshrl.u32 %v7806, 16
        %v8004 = vrot.slane %v8002, 4
        %v8005 = vshll.u32 %v7806, 16
        %v8007 = vrot.slane %v8005, 5
        %v8008 = vor.u32 %v8004, %v8007
        %v8009 = vrot.slane %v8008, 4
        %v8011 = vshll.u32 %v7807, 16
        %v8013 = vrot.slane %v8011, 5
        %v8014 = vsel %vm1014, %v8009, %v8013
        %v8015 = vshrl.u32 %v7807, 16
        %v8017 = vrot.slane %v8015, 4
        %v8018 = vor.u32 %v8017, %v8013
        %v8019 = vrot.slane %v8018, 4
        %v8021 = vshll.u32 %v7808, 16
        %v8023 = vrot.slane %v8021, 5
        %v8024 = vsel %vm1014, %v8019, %v8023
        %v8026 = vshrl.u32 %v7809, 16
        %v8028 = vrot.slane %v8026, 4
        %v8029 = vshll.u32 %v7809, 16
        %v8031 = vrot.slane %v8029, 5
        %v8032 = vor.u32 %v8028, %v8031
        %v8033 = vrot.slane %v8032, 4
        %v8035 = vshll.u32 %v7810, 16
        %v8037 = vrot.slane %v8035, 5
        %v8038 = vsel %vm1014, %v8033, %v8037
        %v8039 = vshrl.u32 %v7810, 16
        %v8041 = vrot.slane %v8039, 4
        %v8042 = vor.u32 %v8041, %v8037
        %v8043 = vrot.slane %v8042, 4
        %v8045 = vshll.u32 %v7811, 16
        %v8047 = vrot.slane %v8045, 5
        %v8048 = vsel %vm1014, %v8043, %v8047
        %v8050 = vshrl.u32 %v7812, 16
        %v8052 = vrot.slane %v8050, 4
        %v8053 = vshll.u32 %v7812, 16
        %v8055 = vrot.slane %v8053, 5
        %v8056 = vor.u32 %v8052, %v8055
        %v8057 = vrot.slane %v8056, 4
        %v8059 = vshll.u32 %v7813, 16
        %v8061 = vrot.slane %v8059, 5
        %v8062 = vsel %vm1014, %v8057, %v8061
        %v8063 = vshrl.u32 %v7813, 16
        %v8065 = vrot.slane %v8063, 4
        %v8066 = vor.u32 %v8065, %v8061
        %v8067 = vrot.slane %v8066, 4
        %v8069 = vshll.u32 %v7814, 16
        %v8071 = vrot.slane %v8069, 5
        %v8072 = vsel %vm1014, %v8067, %v8071
        %v8074 = vshrl.u32 %v7815, 16
        %v8076 = vrot.slane %v8074, 4
        %v8077 = vshll.u32 %v7815, 16
        %v8079 = vrot.slane %v8077, 5
        %v8080 = vor.u32 %v8076, %v8079
        %v8081 = vrot.slane %v8080, 4
        %v8083 = vshll.u32 %v7816, 16
        %v8085 = vrot.slane %v8083, 5
        %v8086 = vsel %vm1014, %v8081, %v8085
        %v8087 = vshrl.u32 %v7816, 16
        %v8089 = vrot.slane %v8087, 4
        %v8090 = vor.u32 %v8089, %v8085
        %v8091 = vrot.slane %v8090, 4
        %v8093 = vshll.u32 %v7817, 16
        %v8095 = vrot.slane %v8093, 5
        %v8096 = vsel %vm1014, %v8091, %v8095
        %v8098 = vshrl.u32 %v7818, 16
        %v8100 = vrot.slane %v8098, 4
        %v8101 = vshll.u32 %v7818, 16
        %v8103 = vrot.slane %v8101, 5
        %v8104 = vor.u32 %v8100, %v8103
        %v8105 = vrot.slane %v8104, 4
        %v8107 = vshll.u32 %v7819, 16
        %v8109 = vrot.slane %v8107, 5
        %v8110 = vsel %vm1014, %v8105, %v8109
        %v8111 = vshrl.u32 %v7819, 16
        %v8113 = vrot.slane %v8111, 4
        %v8114 = vor.u32 %v8113, %v8109
        %v8115 = vrot.slane %v8114, 4
        %v8117 = vshll.u32 %v7820, 16
        %v8119 = vrot.slane %v8117, 5
        %v8120 = vsel %vm1014, %v8115, %v8119
        %v8122 = vshrl.u32 %v7821, 16
        %v8124 = vrot.slane %v8122, 4
        %v8125 = vshll.u32 %v7821, 16
        %v8127 = vrot.slane %v8125, 5
        %v8128 = vor.u32 %v8124, %v8127
        %v8129 = vrot.slane %v8128, 4
        %v8131 = vshll.u32 %v7822, 16
        %v8133 = vrot.slane %v8131, 5
        %v8134 = vsel %vm1014, %v8129, %v8133
        %v8135 = vshrl.u32 %v7822, 16
        %v8137 = vrot.slane %v8135, 4
        %v8138 = vor.u32 %v8137, %v8133
        %v8139 = vrot.slane %v8138, 4
        %v8141 = vshll.u32 %v7823, 16
        %v8143 = vrot.slane %v8141, 5
        %v8144 = vsel %vm1014, %v8139, %v8143
        %v8146 = vshrl.u32 %v7824, 16
        %v8148 = vrot.slane %v8146, 4
        %v8149 = vshll.u32 %v7824, 16
        %v8151 = vrot.slane %v8149, 5
        %v8152 = vor.u32 %v8148, %v8151
        %v8153 = vrot.slane %v8152, 4
        %v8155 = vshll.u32 %v7825, 16
        %v8157 = vrot.slane %v8155, 5
        %v8158 = vsel %vm1014, %v8153, %v8157
        %v8159 = vshrl.u32 %v7825, 16
        %v8161 = vrot.slane %v8159, 4
        %v8162 = vor.u32 %v8161, %v8157
        %v8163 = vrot.slane %v8162, 4
        %v8165 = vshll.u32 %v7826, 16
        %v8167 = vrot.slane %v8165, 5
        %v8168 = vsel %vm1014, %v8163, %v8167
        %v8170 = vshrl.u32 %v7827, 16
        %v8172 = vrot.slane %v8170, 4
        %v8173 = vshll.u32 %v7827, 16
        %v8175 = vrot.slane %v8173, 5
        %v8176 = vor.u32 %v8172, %v8175
        %v8177 = vrot.slane %v8176, 4
        %v8179 = vshll.u32 %v7828, 16
        %v8181 = vrot.slane %v8179, 5
        %v8182 = vsel %vm1014, %v8177, %v8181
        %v8183 = vshrl.u32 %v7828, 16
        %v8185 = vrot.slane %v8183, 4
        %v8186 = vor.u32 %v8185, %v8181
        %v8187 = vrot.slane %v8186, 4
        %v8189 = vshll.u32 %v7829, 16
        %v8191 = vrot.slane %v8189, 5
        %v8192 = vsel %vm1014, %v8187, %v8191
        %v8194 = vshrl.u32 %v7830, 16
        %v8196 = vrot.slane %v8194, 4
        %v8197 = vshll.u32 %v7830, 16
        %v8199 = vrot.slane %v8197, 5
        %v8200 = vor.u32 %v8196, %v8199
        %v8201 = vrot.slane %v8200, 4
        %v8203 = vshll.u32 %v7831, 16
        %v8205 = vrot.slane %v8203, 5
        %v8206 = vsel %vm1014, %v8201, %v8205
        %v8207 = vshrl.u32 %v7831, 16
        %v8209 = vrot.slane %v8207, 4
        %v8210 = vor.u32 %v8209, %v8205
        %v8211 = vrot.slane %v8210, 4
        %v8213 = vshll.u32 %v7832, 16
        %v8215 = vrot.slane %v8213, 5
        %v8216 = vsel %vm1014, %v8211, %v8215
        %v8217 = vunpack.c.l.b16 %v7846
        %v8218 = vunpack.c.l.b16 %v7856
        %v8219 = vunpack.c.l.b16 %v7870
        %v8220 = vunpack.c.l.b16 %v7880
        %v8221 = vunpack.c.l.b16 %v7894
        %v8222 = vunpack.c.l.b16 %v7904
        %v8223 = vunpack.c.l.b16 %v7918
        %v8224 = vunpack.c.l.b16 %v7928
        %v8225 = vunpack.c.l.b16 %v7942
        %v8226 = vunpack.c.l.b16 %v7952
        %v8227 = vunpack.c.l.b16 %v7966
        %v8228 = vunpack.c.l.b16 %v7976
        %v8229 = vunpack.c.l.b16 %v7990
        %v8230 = vunpack.c.l.b16 %v8000
        %v8231 = vunpack.c.l.b16 %v8014
        %v8232 = vunpack.c.l.b16 %v8024
        %v8233 = vunpack.c.l.b16 %v8038
        %v8234 = vunpack.c.l.b16 %v8048
        %v8235 = vunpack.c.l.b16 %v8062
        %v8236 = vunpack.c.l.b16 %v8072
        %v8237 = vunpack.c.l.b16 %v8086
        %v8238 = vunpack.c.l.b16 %v8096
        %v8239 = vunpack.c.l.b16 %v8110
        %v8240 = vunpack.c.l.b16 %v8120
        %v8241 = vunpack.c.l.b16 %v8134
        %v8242 = vunpack.c.l.b16 %v8144
        %v8243 = vunpack.c.l.b16 %v8158
        %v8244 = vunpack.c.l.b16 %v8168
        %v8245 = vunpack.c.l.b16 %v8182
        %v8246 = vunpack.c.l.b16 %v8192
        %v8247 = vunpack.c.l.b16 %v8206
        %v8248 = vunpack.c.l.b16 %v8216
        %v8249 = vpack.c.b16 %v8218, %v8217
        %v8250 = vpack.c.b16 %v8220, %v8219
        %v8251 = vpack.c.b16 %v8222, %v8221
        %v8252 = vpack.c.b16 %v8224, %v8223
        %v8253 = vpack.c.b16 %v8226, %v8225
        %v8254 = vpack.c.b16 %v8228, %v8227
        %v8255 = vpack.c.b16 %v8230, %v8229
        %v8256 = vpack.c.b16 %v8232, %v8231
        %v8257 = vpack.c.b16 %v8234, %v8233
        %v8258 = vpack.c.b16 %v8236, %v8235
        %v8259 = vpack.c.b16 %v8238, %v8237
        %v8260 = vpack.c.b16 %v8240, %v8239
        %v8261 = vpack.c.b16 %v8242, %v8241
        %v8262 = vpack.c.b16 %v8244, %v8243
        %v8263 = vpack.c.b16 %v8246, %v8245
        %v8264 = vpack.c.b16 %v8248, %v8247
        %8281 = vst [vmem:[#allocation4 + $0x38] sm:$0xff] %v8249
        %8282 = vst [vmem:[#allocation4 + $0x80] sm:$0xff] %v8250
        %8283 = vst [vmem:[#allocation4 + $0xc8] sm:$0xff] %v8251
        %8284 = vst [vmem:[#allocation4 + $0x110] sm:$0xff] %v8252
        %8285 = vst [vmem:[#allocation4 + $0x158] sm:$0xff] %v8253
        %8286 = vst [vmem:[#allocation4 + $0x1a0] sm:$0xff] %v8254
        %8287 = vst [vmem:[#allocation4 + $0x1e8] sm:$0xff] %v8255
        %8288 = vst [vmem:[#allocation4 + $0x230] sm:$0xff] %v8256
        %8289 = vst [vmem:[#allocation4 + $0x278] sm:$0xff] %v8257
        %8290 = vst [vmem:[#allocation4 + $0x2c0] sm:$0xff] %v8258
        %8291 = vst [vmem:[#allocation4 + $0x308] sm:$0xff] %v8259
        %8292 = vst [vmem:[#allocation4 + $0x350] sm:$0xff] %v8260
        %8293 = vst [vmem:[#allocation4 + $0x398] sm:$0xff] %v8261
        %8294 = vst [vmem:[#allocation4 + $0x3e0] sm:$0xff] %v8262
        %8295 = vst [vmem:[#allocation4 + $0x428] sm:$0xff] %v8263
        %8296 = vst [vmem:[#allocation4 + $0x470] sm:$0xff] %v8264
        %v8297 = vld [vmem:[%s7640] sm:$0xe]
        %v8298 = vld [vmem:[%s7640 + $0x4] sm:$0xf]
        %v8299 = vld [vmem:[%s7640 + $0x8] sm:$0x1]
        %v8300 = vld [vmem:[%s7640 + $0xc] sm:$0xe]
        %v8301 = vld [vmem:[%s7640 + $0x10] sm:$0xf]
        %v8302 = vld [vmem:[%s7640 + $0x14] sm:$0x1]
        %v8303 = vld [vmem:[%s7640 + $0x18] sm:$0xe]
        %v8304 = vld [vmem:[%s7640 + $0x1c] sm:$0xf]
        %v8305 = vld [vmem:[%s7640 + $0x20] sm:$0x1]
        %v8306 = vld [vmem:[%s7640 + $0x24] sm:$0xe]
        %v8307 = vld [vmem:[%s7640 + $0x28] sm:$0xf]
        %v8308 = vld [vmem:[%s7640 + $0x2c] sm:$0x1]
        %v8309 = vld [vmem:[%s7640 + $0x30] sm:$0xe]
        %v8310 = vld [vmem:[%s7640 + $0x34] sm:$0xf]
        %v8311 = vld [vmem:[%s7640 + $0x38] sm:$0x1]
        %v8312 = vld [vmem:[%s7640 + $0x3c] sm:$0xe]
        %v8313 = vld [vmem:[%s7640 + $0x40] sm:$0xf]
        %v8314 = vld [vmem:[%s7640 + $0x44] sm:$0x1]
        %v8315 = vld [vmem:[%s7640 + $0x48] sm:$0xe]
        %v8316 = vld [vmem:[%s7640 + $0x4c] sm:$0xf]
        %v8317 = vld [vmem:[%s7640 + $0x50] sm:$0x1]
        %v8318 = vld [vmem:[%s7640 + $0x54] sm:$0xe]
        %v8319 = vld [vmem:[%s7640 + $0x58] sm:$0xf]
        %v8320 = vld [vmem:[%s7640 + $0x5c] sm:$0x1]
        %v8321 = vld [vmem:[%s7640 + $0x60] sm:$0xe]
        %v8322 = vld [vmem:[%s7640 + $0x64] sm:$0xf]
        %v8323 = vld [vmem:[%s7640 + $0x68] sm:$0x1]
        %v8324 = vld [vmem:[%s7640 + $0x6c] sm:$0xe]
        %v8325 = vld [vmem:[%s7640 + $0x70] sm:$0xf]
        %v8326 = vld [vmem:[%s7640 + $0x74] sm:$0x1]
        %v8327 = vld [vmem:[%s7640 + $0x78] sm:$0xe]
        %v8328 = vld [vmem:[%s7640 + $0x7c] sm:$0xf]
        %v8329 = vld [vmem:[%s7640 + $0x80] sm:$0x1]
        %v8330 = vld [vmem:[%s7640 + $0x84] sm:$0xe]
        %v8331 = vld [vmem:[%s7640 + $0x88] sm:$0xf]
        %v8332 = vld [vmem:[%s7640 + $0x8c] sm:$0x1]
        %v8333 = vld [vmem:[%s7640 + $0x90] sm:$0xe]
        %v8334 = vld [vmem:[%s7640 + $0x94] sm:$0xf]
        %v8335 = vld [vmem:[%s7640 + $0x98] sm:$0x1]
        %v8336 = vld [vmem:[%s7640 + $0x9c] sm:$0xe]
        %v8337 = vld [vmem:[%s7640 + $0xa0] sm:$0xf]
        %v8338 = vld [vmem:[%s7640 + $0xa4] sm:$0x1]
        %v8339 = vld [vmem:[%s7640 + $0xa8] sm:$0xe]
        %v8340 = vld [vmem:[%s7640 + $0xac] sm:$0xf]
        %v8341 = vld [vmem:[%s7640 + $0xb0] sm:$0x1]
        %v8342 = vld [vmem:[%s7640 + $0xb4] sm:$0xe]
        %v8343 = vld [vmem:[%s7640 + $0xb8] sm:$0xf]
        %v8344 = vld [vmem:[%s7640 + $0xbc] sm:$0x1]
        %v8393 = vrot.slane %v8297, 5
        %v8394 = vrot.slane %v8393, 4
        %v8395 = vrot.slane %v8298, 5
        %v8396 = vsel %vm1577, %v8394, %v8395
        %v8397 = vrot.slane %v8395, 4
        %v8398 = vrot.slane %v8299, 5
        %v8399 = vsel %vm1577, %v8397, %v8398
        %v8400 = vrot.slane %v8300, 5
        %v8401 = vrot.slane %v8400, 4
        %v8402 = vrot.slane %v8301, 5
        %v8403 = vsel %vm1577, %v8401, %v8402
        %v8404 = vrot.slane %v8402, 4
        %v8405 = vrot.slane %v8302, 5
        %v8406 = vsel %vm1577, %v8404, %v8405
        %v8407 = vrot.slane %v8303, 5
        %v8408 = vrot.slane %v8407, 4
        %v8409 = vrot.slane %v8304, 5
        %v8410 = vsel %vm1577, %v8408, %v8409
        %v8411 = vrot.slane %v8409, 4
        %v8412 = vrot.slane %v8305, 5
        %v8413 = vsel %vm1577, %v8411, %v8412
        %v8414 = vrot.slane %v8306, 5
        %v8415 = vrot.slane %v8414, 4
        %v8416 = vrot.slane %v8307, 5
        %v8417 = vsel %vm1577, %v8415, %v8416
        %v8418 = vrot.slane %v8416, 4
        %v8419 = vrot.slane %v8308, 5
        %v8420 = vsel %vm1577, %v8418, %v8419
        %v8421 = vrot.slane %v8309, 5
        %v8422 = vrot.slane %v8421, 4
        %v8423 = vrot.slane %v8310, 5
        %v8424 = vsel %vm1577, %v8422, %v8423
        %v8425 = vrot.slane %v8423, 4
        %v8426 = vrot.slane %v8311, 5
        %v8427 = vsel %vm1577, %v8425, %v8426
        %v8428 = vrot.slane %v8312, 5
        %v8429 = vrot.slane %v8428, 4
        %v8430 = vrot.slane %v8313, 5
        %v8431 = vsel %vm1577, %v8429, %v8430
        %v8432 = vrot.slane %v8430, 4
        %v8433 = vrot.slane %v8314, 5
        %v8434 = vsel %vm1577, %v8432, %v8433
        %v8435 = vrot.slane %v8315, 5
        %v8436 = vrot.slane %v8435, 4
        %v8437 = vrot.slane %v8316, 5
        %v8438 = vsel %vm1577, %v8436, %v8437
        %v8439 = vrot.slane %v8437, 4
        %v8440 = vrot.slane %v8317, 5
        %v8441 = vsel %vm1577, %v8439, %v8440
        %v8442 = vrot.slane %v8318, 5
        %v8443 = vrot.slane %v8442, 4
        %v8444 = vrot.slane %v8319, 5
        %v8445 = vsel %vm1577, %v8443, %v8444
        %v8446 = vrot.slane %v8444, 4
        %v8447 = vrot.slane %v8320, 5
        %v8448 = vsel %vm1577, %v8446, %v8447
        %v8449 = vrot.slane %v8321, 5
        %v8450 = vrot.slane %v8449, 4
        %v8451 = vrot.slane %v8322, 5
        %v8452 = vsel %vm1577, %v8450, %v8451
        %v8453 = vrot.slane %v8451, 4
        %v8454 = vrot.slane %v8323, 5
        %v8455 = vsel %vm1577, %v8453, %v8454
        %v8456 = vrot.slane %v8324, 5
        %v8457 = vrot.slane %v8456, 4
        %v8458 = vrot.slane %v8325, 5
        %v8459 = vsel %vm1577, %v8457, %v8458
        %v8460 = vrot.slane %v8458, 4
        %v8461 = vrot.slane %v8326, 5
        %v8462 = vsel %vm1577, %v8460, %v8461
        %v8463 = vrot.slane %v8327, 5
        %v8464 = vrot.slane %v8463, 4
        %v8465 = vrot.slane %v8328, 5
        %v8466 = vsel %vm1577, %v8464, %v8465
        %v8467 = vrot.slane %v8465, 4
        %v8468 = vrot.slane %v8329, 5
        %v8469 = vsel %vm1577, %v8467, %v8468
        %v8470 = vrot.slane %v8330, 5
        %v8471 = vrot.slane %v8470, 4
        %v8472 = vrot.slane %v8331, 5
        %v8473 = vsel %vm1577, %v8471, %v8472
        %v8474 = vrot.slane %v8472, 4
        %v8475 = vrot.slane %v8332, 5
        %v8476 = vsel %vm1577, %v8474, %v8475
        %v8477 = vrot.slane %v8333, 5
        %v8478 = vrot.slane %v8477, 4
        %v8479 = vrot.slane %v8334, 5
        %v8480 = vsel %vm1577, %v8478, %v8479
        %v8481 = vrot.slane %v8479, 4
        %v8482 = vrot.slane %v8335, 5
        %v8483 = vsel %vm1577, %v8481, %v8482
        %v8484 = vrot.slane %v8336, 5
        %v8485 = vrot.slane %v8484, 4
        %v8486 = vrot.slane %v8337, 5
        %v8487 = vsel %vm1577, %v8485, %v8486
        %v8488 = vrot.slane %v8486, 4
        %v8489 = vrot.slane %v8338, 5
        %v8490 = vsel %vm1577, %v8488, %v8489
        %v8491 = vrot.slane %v8339, 5
        %v8492 = vrot.slane %v8491, 4
        %v8493 = vrot.slane %v8340, 5
        %v8494 = vsel %vm1577, %v8492, %v8493
        %v8495 = vrot.slane %v8493, 4
        %v8496 = vrot.slane %v8341, 5
        %v8497 = vsel %vm1577, %v8495, %v8496
        %v8498 = vrot.slane %v8342, 5
        %v8499 = vrot.slane %v8498, 4
        %v8500 = vrot.slane %v8343, 5
        %v8501 = vsel %vm1577, %v8499, %v8500
        %v8502 = vrot.slane %v8500, 4
        %v8503 = vrot.slane %v8344, 5
        %v8504 = vsel %vm1577, %v8502, %v8503
        %v8505 = vunpack.c.l.b16 %v8396
        %v8506 = vunpack.c.l.b16 %v8399
        %v8507 = vunpack.c.l.b16 %v8403
        %v8508 = vunpack.c.l.b16 %v8406
        %v8509 = vunpack.c.l.b16 %v8410
        %v8510 = vunpack.c.l.b16 %v8413
        %v8511 = vunpack.c.l.b16 %v8417
        %v8512 = vunpack.c.l.b16 %v8420
        %v8513 = vunpack.c.l.b16 %v8424
        %v8514 = vunpack.c.l.b16 %v8427
        %v8515 = vunpack.c.l.b16 %v8431
        %v8516 = vunpack.c.l.b16 %v8434
        %v8517 = vunpack.c.l.b16 %v8438
        %v8518 = vunpack.c.l.b16 %v8441
        %v8519 = vunpack.c.l.b16 %v8445
        %v8520 = vunpack.c.l.b16 %v8448
        %v8521 = vunpack.c.l.b16 %v8452
        %v8522 = vunpack.c.l.b16 %v8455
        %v8523 = vunpack.c.l.b16 %v8459
        %v8524 = vunpack.c.l.b16 %v8462
        %v8525 = vunpack.c.l.b16 %v8466
        %v8526 = vunpack.c.l.b16 %v8469
        %v8527 = vunpack.c.l.b16 %v8473
        %v8528 = vunpack.c.l.b16 %v8476
        %v8529 = vunpack.c.l.b16 %v8480
        %v8530 = vunpack.c.l.b16 %v8483
        %v8531 = vunpack.c.l.b16 %v8487
        %v8532 = vunpack.c.l.b16 %v8490
        %v8533 = vunpack.c.l.b16 %v8494
        %v8534 = vunpack.c.l.b16 %v8497
        %v8535 = vunpack.c.l.b16 %v8501
        %v8536 = vunpack.c.l.b16 %v8504
        %v8537 = vpack.c.b16 %v8506, %v8505
        %v8538 = vpack.c.b16 %v8508, %v8507
        %v8539 = vpack.c.b16 %v8510, %v8509
        %v8540 = vpack.c.b16 %v8512, %v8511
        %v8541 = vpack.c.b16 %v8514, %v8513
        %v8542 = vpack.c.b16 %v8516, %v8515
        %v8543 = vpack.c.b16 %v8518, %v8517
        %v8544 = vpack.c.b16 %v8520, %v8519
        %v8545 = vpack.c.b16 %v8522, %v8521
        %v8546 = vpack.c.b16 %v8524, %v8523
        %v8547 = vpack.c.b16 %v8526, %v8525
        %v8548 = vpack.c.b16 %v8528, %v8527
        %v8549 = vpack.c.b16 %v8530, %v8529
        %v8550 = vpack.c.b16 %v8532, %v8531
        %v8551 = vpack.c.b16 %v8534, %v8533
        %v8552 = vpack.c.b16 %v8536, %v8535
        %8569 = vst [vmem:[#allocation4 + $0x40] sm:$0xff] %v8537
        %8570 = vst [vmem:[#allocation4 + $0x88] sm:$0xff] %v8538
        %8571 = vst [vmem:[#allocation4 + $0xd0] sm:$0xff] %v8539
        %8572 = vst [vmem:[#allocation4 + $0x118] sm:$0xff] %v8540
        %8573 = vst [vmem:[#allocation4 + $0x160] sm:$0xff] %v8541
        %8574 = vst [vmem:[#allocation4 + $0x1a8] sm:$0xff] %v8542
        %8575 = vst [vmem:[#allocation4 + $0x1f0] sm:$0xff] %v8543
        %8576 = vst [vmem:[#allocation4 + $0x238] sm:$0xff] %v8544
        %8577 = vst [vmem:[#allocation4 + $0x280] sm:$0xff] %v8545
        %8578 = vst [vmem:[#allocation4 + $0x2c8] sm:$0xff] %v8546
        %8579 = vst [vmem:[#allocation4 + $0x310] sm:$0xff] %v8547
        %8580 = vst [vmem:[#allocation4 + $0x358] sm:$0xff] %v8548
        %8581 = vst [vmem:[#allocation4 + $0x3a0] sm:$0xff] %v8549
        %8582 = vst [vmem:[#allocation4 + $0x3e8] sm:$0xff] %v8550
        %8583 = vst [vmem:[#allocation4 + $0x430] sm:$0xff] %v8551
        %8584 = vst [vmem:[#allocation4 + $0x478] sm:$0xff] %v8552
        %v8585 = vld [vmem:[#allocation4] sm:$0xff]
        %v8586 = vld [vmem:[#allocation4 + $0x8] sm:$0xff]
        %v8587 = vld [vmem:[#allocation4 + $0x10] sm:$0xff]
        %v8588 = vld [vmem:[#allocation4 + $0x18] sm:$0xff]
        %v8589 = vld [vmem:[#allocation4 + $0x20] sm:$0xff]
        %v8590 = vld [vmem:[#allocation4 + $0x28] sm:$0xff]
        %v8591 = vld [vmem:[#allocation4 + $0x30] sm:$0xff]
        %v8592 = vld [vmem:[#allocation4 + $0x38] sm:$0xff]
        %v8593 = vld [vmem:[#allocation4 + $0x40] sm:$0xff]
        %v8594 = vld [vmem:[#allocation4 + $0x48] sm:$0xff]
        %v8595 = vld [vmem:[#allocation4 + $0x50] sm:$0xff]
        %v8596 = vld [vmem:[#allocation4 + $0x58] sm:$0xff]
        %v8597 = vld [vmem:[#allocation4 + $0x60] sm:$0xff]
        %v8598 = vld [vmem:[#allocation4 + $0x68] sm:$0xff]
        %v8599 = vld [vmem:[#allocation4 + $0x70] sm:$0xff]
        %v8600 = vld [vmem:[#allocation4 + $0x78] sm:$0xff]
        %v8601 = vld [vmem:[#allocation4 + $0x80] sm:$0xff]
        %v8602 = vld [vmem:[#allocation4 + $0x88] sm:$0xff]
        %v8603 = vld [vmem:[#allocation4 + $0x90] sm:$0xff]
        %v8604 = vld [vmem:[#allocation4 + $0x98] sm:$0xff]
        %v8605 = vld [vmem:[#allocation4 + $0xa0] sm:$0xff]
        %v8606 = vld [vmem:[#allocation4 + $0xa8] sm:$0xff]
        %v8607 = vld [vmem:[#allocation4 + $0xb0] sm:$0xff]
        %v8608 = vld [vmem:[#allocation4 + $0xb8] sm:$0xff]
        %v8609 = vld [vmem:[#allocation4 + $0xc0] sm:$0xff]
        %v8610 = vld [vmem:[#allocation4 + $0xc8] sm:$0xff]
        %v8611 = vld [vmem:[#allocation4 + $0xd0] sm:$0xff]
        %v8612 = vld [vmem:[#allocation4 + $0xd8] sm:$0xff]
        %v8613 = vld [vmem:[#allocation4 + $0xe0] sm:$0xff]
        %v8614 = vld [vmem:[#allocation4 + $0xe8] sm:$0xff]
        %v8615 = vld [vmem:[#allocation4 + $0xf0] sm:$0xff]
        %v8616 = vld [vmem:[#allocation4 + $0xf8] sm:$0xff]
        %v8617 = vld [vmem:[#allocation4 + $0x100] sm:$0xff]
        %v8618 = vld [vmem:[#allocation4 + $0x108] sm:$0xff]
        %v8619 = vld [vmem:[#allocation4 + $0x110] sm:$0xff]
        %v8620 = vld [vmem:[#allocation4 + $0x118] sm:$0xff]
        %v8621 = vld [vmem:[#allocation4 + $0x120] sm:$0xff]
        %v8622 = vld [vmem:[#allocation4 + $0x128] sm:$0xff]
        %v8623 = vld [vmem:[#allocation4 + $0x130] sm:$0xff]
        %v8624 = vld [vmem:[#allocation4 + $0x138] sm:$0xff]
        %v8625 = vld [vmem:[#allocation4 + $0x140] sm:$0xff]
        %v8626 = vld [vmem:[#allocation4 + $0x148] sm:$0xff]
        %v8627 = vld [vmem:[#allocation4 + $0x150] sm:$0xff]
        %v8628 = vld [vmem:[#allocation4 + $0x158] sm:$0xff]
        %v8629 = vld [vmem:[#allocation4 + $0x160] sm:$0xff]
        %v8630 = vld [vmem:[#allocation4 + $0x168] sm:$0xff]
        %v8631 = vld [vmem:[#allocation4 + $0x170] sm:$0xff]
        %v8632 = vld [vmem:[#allocation4 + $0x178] sm:$0xff]
        %v8633 = vld [vmem:[#allocation4 + $0x180] sm:$0xff]
        %v8634 = vld [vmem:[#allocation4 + $0x188] sm:$0xff]
        %v8635 = vld [vmem:[#allocation4 + $0x190] sm:$0xff]
        %v8636 = vld [vmem:[#allocation4 + $0x198] sm:$0xff]
        %v8637 = vld [vmem:[#allocation4 + $0x1a0] sm:$0xff]
        %v8638 = vld [vmem:[#allocation4 + $0x1a8] sm:$0xff]
        %v8639 = vld [vmem:[#allocation4 + $0x1b0] sm:$0xff]
        %v8640 = vld [vmem:[#allocation4 + $0x1b8] sm:$0xff]
        %v8641 = vld [vmem:[#allocation4 + $0x1c0] sm:$0xff]
        %v8642 = vld [vmem:[#allocation4 + $0x1c8] sm:$0xff]
        %v8643 = vld [vmem:[#allocation4 + $0x1d0] sm:$0xff]
        %v8644 = vld [vmem:[#allocation4 + $0x1d8] sm:$0xff]
        %v8645 = vld [vmem:[#allocation4 + $0x1e0] sm:$0xff]
        %v8646 = vld [vmem:[#allocation4 + $0x1e8] sm:$0xff]
        %v8647 = vld [vmem:[#allocation4 + $0x1f0] sm:$0xff]
        %v8648 = vld [vmem:[#allocation4 + $0x1f8] sm:$0xff]
        %v8649 = vld [vmem:[#allocation4 + $0x200] sm:$0xff]
        %v8650 = vld [vmem:[#allocation4 + $0x208] sm:$0xff]
        %v8651 = vld [vmem:[#allocation4 + $0x210] sm:$0xff]
        %v8652 = vld [vmem:[#allocation4 + $0x218] sm:$0xff]
        %v8653 = vld [vmem:[#allocation4 + $0x220] sm:$0xff]
        %v8654 = vld [vmem:[#allocation4 + $0x228] sm:$0xff]
        %v8655 = vld [vmem:[#allocation4 + $0x230] sm:$0xff]
        %v8656 = vld [vmem:[#allocation4 + $0x238] sm:$0xff]
        %v8657 = vld [vmem:[#allocation4 + $0x240] sm:$0xff]
        %v8658 = vld [vmem:[#allocation4 + $0x248] sm:$0xff]
        %v8659 = vld [vmem:[#allocation4 + $0x250] sm:$0xff]
        %v8660 = vld [vmem:[#allocation4 + $0x258] sm:$0xff]
        %v8661 = vld [vmem:[#allocation4 + $0x260] sm:$0xff]
        %v8662 = vld [vmem:[#allocation4 + $0x268] sm:$0xff]
        %v8663 = vld [vmem:[#allocation4 + $0x270] sm:$0xff]
        %v8664 = vld [vmem:[#allocation4 + $0x278] sm:$0xff]
        %v8665 = vld [vmem:[#allocation4 + $0x280] sm:$0xff]
        %v8666 = vld [vmem:[#allocation4 + $0x288] sm:$0xff]
        %v8667 = vld [vmem:[#allocation4 + $0x290] sm:$0xff]
        %v8668 = vld [vmem:[#allocation4 + $0x298] sm:$0xff]
        %v8669 = vld [vmem:[#allocation4 + $0x2a0] sm:$0xff]
        %v8670 = vld [vmem:[#allocation4 + $0x2a8] sm:$0xff]
        %v8671 = vld [vmem:[#allocation4 + $0x2b0] sm:$0xff]
        %v8672 = vld [vmem:[#allocation4 + $0x2b8] sm:$0xff]
        %v8673 = vld [vmem:[#allocation4 + $0x2c0] sm:$0xff]
        %v8674 = vld [vmem:[#allocation4 + $0x2c8] sm:$0xff]
        %v8675 = vld [vmem:[#allocation4 + $0x2d0] sm:$0xff]
        %v8676 = vld [vmem:[#allocation4 + $0x2d8] sm:$0xff]
        %v8677 = vld [vmem:[#allocation4 + $0x2e0] sm:$0xff]
        %v8678 = vld [vmem:[#allocation4 + $0x2e8] sm:$0xff]
        %v8679 = vld [vmem:[#allocation4 + $0x2f0] sm:$0xff]
        %v8680 = vld [vmem:[#allocation4 + $0x2f8] sm:$0xff]
        %v8681 = vld [vmem:[#allocation4 + $0x300] sm:$0xff]
        %v8682 = vld [vmem:[#allocation4 + $0x308] sm:$0xff]
        %v8683 = vld [vmem:[#allocation4 + $0x310] sm:$0xff]
        %v8684 = vld [vmem:[#allocation4 + $0x318] sm:$0xff]
        %v8685 = vld [vmem:[#allocation4 + $0x320] sm:$0xff]
        %v8686 = vld [vmem:[#allocation4 + $0x328] sm:$0xff]
        %v8687 = vld [vmem:[#allocation4 + $0x330] sm:$0xff]
        %v8688 = vld [vmem:[#allocation4 + $0x338] sm:$0xff]
        %v8689 = vld [vmem:[#allocation4 + $0x340] sm:$0xff]
        %v8690 = vld [vmem:[#allocation4 + $0x348] sm:$0xff]
        %v8691 = vld [vmem:[#allocation4 + $0x350] sm:$0xff]
        %v8692 = vld [vmem:[#allocation4 + $0x358] sm:$0xff]
        %v8693 = vld [vmem:[#allocation4 + $0x360] sm:$0xff]
        %v8694 = vld [vmem:[#allocation4 + $0x368] sm:$0xff]
        %v8695 = vld [vmem:[#allocation4 + $0x370] sm:$0xff]
        %v8696 = vld [vmem:[#allocation4 + $0x378] sm:$0xff]
        %v8697 = vld [vmem:[#allocation4 + $0x380] sm:$0xff]
        %v8698 = vld [vmem:[#allocation4 + $0x388] sm:$0xff]
        %v8699 = vld [vmem:[#allocation4 + $0x390] sm:$0xff]
        %v8700 = vld [vmem:[#allocation4 + $0x398] sm:$0xff]
        %v8701 = vld [vmem:[#allocation4 + $0x3a0] sm:$0xff]
        %v8702 = vld [vmem:[#allocation4 + $0x3a8] sm:$0xff]
        %v8703 = vld [vmem:[#allocation4 + $0x3b0] sm:$0xff]
        %v8704 = vld [vmem:[#allocation4 + $0x3b8] sm:$0xff]
        %v8705 = vld [vmem:[#allocation4 + $0x3c0] sm:$0xff]
        %v8706 = vld [vmem:[#allocation4 + $0x3c8] sm:$0xff]
        %v8707 = vld [vmem:[#allocation4 + $0x3d0] sm:$0xff]
        %v8708 = vld [vmem:[#allocation4 + $0x3d8] sm:$0xff]
        %v8709 = vld [vmem:[#allocation4 + $0x3e0] sm:$0xff]
        %v8710 = vld [vmem:[#allocation4 + $0x3e8] sm:$0xff]
        %v8711 = vld [vmem:[#allocation4 + $0x3f0] sm:$0xff]
        %v8712 = vld [vmem:[#allocation4 + $0x3f8] sm:$0xff]
        %v8713 = vld [vmem:[#allocation4 + $0x400] sm:$0xff]
        %v8714 = vld [vmem:[#allocation4 + $0x408] sm:$0xff]
        %v8715 = vld [vmem:[#allocation4 + $0x410] sm:$0xff]
        %v8716 = vld [vmem:[#allocation4 + $0x418] sm:$0xff]
        %v8717 = vld [vmem:[#allocation4 + $0x420] sm:$0xff]
        %v8718 = vld [vmem:[#allocation4 + $0x428] sm:$0xff]
        %v8719 = vld [vmem:[#allocation4 + $0x430] sm:$0xff]
        %v8720 = vld [vmem:[#allocation4 + $0x438] sm:$0xff]
        %v8721 = vld [vmem:[#allocation4 + $0x440] sm:$0xff]
        %v8722 = vld [vmem:[#allocation4 + $0x448] sm:$0xff]
        %v8723 = vld [vmem:[#allocation4 + $0x450] sm:$0xff]
        %v8724 = vld [vmem:[#allocation4 + $0x458] sm:$0xff]
        %v8725 = vld [vmem:[#allocation4 + $0x460] sm:$0xff]
        %v8726 = vld [vmem:[#allocation4 + $0x468] sm:$0xff]
        %v8727 = vld [vmem:[#allocation4 + $0x470] sm:$0xff]
        %v8728 = vld [vmem:[#allocation4 + $0x478] sm:$0xff]
        %v8729 = vld [vmem:[#allocation5] sm:$0xf]
        %v8730 = vld [vmem:[#allocation5 + $0x4] sm:$0xf]
        %v8731 = vld [vmem:[#allocation5 + $0x8] sm:$0xf]
        %v8732 = vld [vmem:[#allocation5 + $0xc] sm:$0xf]
        %v8733 = vld [vmem:[#allocation5 + $0x10] sm:$0xf]
        %v8734 = vld [vmem:[#allocation5 + $0x14] sm:$0xf]
        %v8735 = vld [vmem:[#allocation5 + $0x18] sm:$0xf]
        %v8736 = vld [vmem:[#allocation5 + $0x1c] sm:$0xf]
        %v8737 = vld [vmem:[#allocation5 + $0x20] sm:$0xf]
        %v8738 = vld [vmem:[#allocation5 + $0x24] sm:$0xf]
        %v8739 = vld [vmem:[#allocation5 + $0x28] sm:$0xf]
        %v8740 = vld [vmem:[#allocation5 + $0x2c] sm:$0xf]
        %v8741 = vld [vmem:[#allocation5 + $0x30] sm:$0xf]
        %v8742 = vld [vmem:[#allocation5 + $0x34] sm:$0xf]
        %v8743 = vld [vmem:[#allocation5 + $0x38] sm:$0xf]
        %v8744 = vld [vmem:[#allocation5 + $0x3c] sm:$0xf]
        %v8745 = vld [vmem:[#allocation5 + $0x40] sm:$0xf]
        %v8746 = vld [vmem:[#allocation5 + $0x44] sm:$0xf]
        %v8747 = vld [vmem:[#allocation5 + $0x48] sm:$0xf]
        %v8748 = vld [vmem:[#allocation5 + $0x4c] sm:$0xf]
        %v8749 = vld [vmem:[#allocation5 + $0x50] sm:$0xf]
        %v8750 = vld [vmem:[#allocation5 + $0x54] sm:$0xf]
        %v8751 = vld [vmem:[#allocation5 + $0x58] sm:$0xf]
        %v8752 = vld [vmem:[#allocation5 + $0x5c] sm:$0xf]
        %v8753 = vld [vmem:[#allocation5 + $0x60] sm:$0xf]
        %v8754 = vld [vmem:[#allocation5 + $0x64] sm:$0xf]
        %v8755 = vld [vmem:[#allocation5 + $0x68] sm:$0xf]
        %v8756 = vld [vmem:[#allocation5 + $0x6c] sm:$0xf]
        %v8757 = vld [vmem:[#allocation5 + $0x70] sm:$0xf]
        %v8758 = vld [vmem:[#allocation5 + $0x74] sm:$0xf]
        %v8759 = vld [vmem:[#allocation5 + $0x78] sm:$0xf]
        %v8760 = vld [vmem:[#allocation5 + $0x7c] sm:$0xf]
        %v8761 = vld [vmem:[#allocation5 + $0x80] sm:$0xf]
        %v8762 = vld [vmem:[#allocation5 + $0x84] sm:$0xf]
        %v8763 = vld [vmem:[#allocation5 + $0x88] sm:$0xf]
        %v8764 = vld [vmem:[#allocation5 + $0x8c] sm:$0xf]
        %v8765 = vld [vmem:[#allocation5 + $0x90] sm:$0xf]
        %v8766 = vld [vmem:[#allocation5 + $0x94] sm:$0xf]
        %v8767 = vld [vmem:[#allocation5 + $0x98] sm:$0xf]
        %v8768 = vld [vmem:[#allocation5 + $0x9c] sm:$0xf]
        %v8769 = vld [vmem:[#allocation5 + $0xa0] sm:$0xf]
        %v8770 = vld [vmem:[#allocation5 + $0xa4] sm:$0xf]
        %v8771 = vld [vmem:[#allocation5 + $0xa8] sm:$0xf]
        %v8772 = vld [vmem:[#allocation5 + $0xac] sm:$0xf]
        %v8773 = vld [vmem:[#allocation5 + $0xb0] sm:$0xf]
        %v8774 = vld [vmem:[#allocation5 + $0xb4] sm:$0xf]
        %v8775 = vld [vmem:[#allocation5 + $0xb8] sm:$0xf]
        %v8776 = vld [vmem:[#allocation5 + $0xbc] sm:$0xf]
        %v8777 = vld [vmem:[#allocation5 + $0xc0] sm:$0xf]
        %v8778 = vld [vmem:[#allocation5 + $0xc4] sm:$0xf]
        %v8779 = vld [vmem:[#allocation5 + $0xc8] sm:$0xf]
        %v8780 = vld [vmem:[#allocation5 + $0xcc] sm:$0xf]
        %v8781 = vld [vmem:[#allocation5 + $0xd0] sm:$0xf]
        %v8782 = vld [vmem:[#allocation5 + $0xd4] sm:$0xf]
        %v8783 = vld [vmem:[#allocation5 + $0xd8] sm:$0xf]
        %v8784 = vld [vmem:[#allocation5 + $0xdc] sm:$0xf]
        %v8785 = vld [vmem:[#allocation5 + $0xe0] sm:$0xf]
        %v8786 = vld [vmem:[#allocation5 + $0xe4] sm:$0xf]
        %v8787 = vld [vmem:[#allocation5 + $0xe8] sm:$0xf]
        %v8788 = vld [vmem:[#allocation5 + $0xec] sm:$0xf]
        %v8789 = vld [vmem:[#allocation5 + $0xf0] sm:$0xf]
        %v8790 = vld [vmem:[#allocation5 + $0xf4] sm:$0xf]
        %v8791 = vld [vmem:[#allocation5 + $0xf8] sm:$0xf]
        %v8792 = vld [vmem:[#allocation5 + $0xfc] sm:$0xf]
        %v8793 = vld [vmem:[#allocation5 + $0x100] sm:$0xf]
        %v8794 = vld [vmem:[#allocation5 + $0x104] sm:$0xf]
        %v8795 = vld [vmem:[#allocation5 + $0x108] sm:$0xf]
        %v8796 = vld [vmem:[#allocation5 + $0x10c] sm:$0xf]
        %v8797 = vld [vmem:[#allocation5 + $0x110] sm:$0xf]
        %v8798 = vld [vmem:[#allocation5 + $0x114] sm:$0xf]
        %v8799 = vld [vmem:[#allocation5 + $0x118] sm:$0xf]
        %v8800 = vld [vmem:[#allocation5 + $0x11c] sm:$0xf]
        %v8801 = vld [vmem:[#allocation5 + $0x120] sm:$0xf]
        %v8802 = vld [vmem:[#allocation5 + $0x124] sm:$0xf]
        %v8803 = vld [vmem:[#allocation5 + $0x128] sm:$0xf]
        %v8804 = vld [vmem:[#allocation5 + $0x12c] sm:$0xf]
        %v8805 = vld [vmem:[#allocation5 + $0x130] sm:$0xf]
        %v8806 = vld [vmem:[#allocation5 + $0x134] sm:$0xf]
        %v8807 = vld [vmem:[#allocation5 + $0x138] sm:$0xf]
        %v8808 = vld [vmem:[#allocation5 + $0x13c] sm:$0xf]
        %v8809 = vld [vmem:[#allocation5 + $0x140] sm:$0xf]
        %v8810 = vld [vmem:[#allocation5 + $0x144] sm:$0xf]
        %v8811 = vld [vmem:[#allocation5 + $0x148] sm:$0xf]
        %v8812 = vld [vmem:[#allocation5 + $0x14c] sm:$0xf]
        %v8813 = vld [vmem:[#allocation5 + $0x150] sm:$0xf]
        %v8814 = vld [vmem:[#allocation5 + $0x154] sm:$0xf]
        %v8815 = vld [vmem:[#allocation5 + $0x158] sm:$0xf]
        %v8816 = vld [vmem:[#allocation5 + $0x15c] sm:$0xf]
        %v8817 = vld [vmem:[#allocation5 + $0x160] sm:$0xf]
        %v8818 = vld [vmem:[#allocation5 + $0x164] sm:$0xf]
        %v8819 = vld [vmem:[#allocation5 + $0x168] sm:$0xf]
        %v8820 = vld [vmem:[#allocation5 + $0x16c] sm:$0xf]
        %v8821 = vld [vmem:[#allocation5 + $0x170] sm:$0xf]
        %v8822 = vld [vmem:[#allocation5 + $0x174] sm:$0xf]
        %v8823 = vld [vmem:[#allocation5 + $0x178] sm:$0xf]
        %v8824 = vld [vmem:[#allocation5 + $0x17c] sm:$0xf]
        %v8825 = vld [vmem:[#allocation5 + $0x180] sm:$0xf]
        %v8826 = vld [vmem:[#allocation5 + $0x184] sm:$0xf]
        %v8827 = vld [vmem:[#allocation5 + $0x188] sm:$0xf]
        %v8828 = vld [vmem:[#allocation5 + $0x18c] sm:$0xf]
        %v8829 = vld [vmem:[#allocation5 + $0x190] sm:$0xf]
        %v8830 = vld [vmem:[#allocation5 + $0x194] sm:$0xf]
        %v8831 = vld [vmem:[#allocation5 + $0x198] sm:$0xf]
        %v8832 = vld [vmem:[#allocation5 + $0x19c] sm:$0xf]
        %v8833 = vld [vmem:[#allocation5 + $0x1a0] sm:$0xf]
        %v8834 = vld [vmem:[#allocation5 + $0x1a4] sm:$0xf]
        %v8835 = vld [vmem:[#allocation5 + $0x1a8] sm:$0xf]
        %v8836 = vld [vmem:[#allocation5 + $0x1ac] sm:$0xf]
        %v8837 = vld [vmem:[#allocation5 + $0x1b0] sm:$0xf]
        %v8838 = vld [vmem:[#allocation5 + $0x1b4] sm:$0xf]
        %v8839 = vld [vmem:[#allocation5 + $0x1b8] sm:$0xf]
        %v8840 = vld [vmem:[#allocation5 + $0x1bc] sm:$0xf]
        %v8841 = vld [vmem:[#allocation5 + $0x1c0] sm:$0xf]
        %v8842 = vld [vmem:[#allocation5 + $0x1c4] sm:$0xf]
        %v8843 = vld [vmem:[#allocation5 + $0x1c8] sm:$0xf]
        %v8844 = vld [vmem:[#allocation5 + $0x1cc] sm:$0xf]
        %v8845 = vld [vmem:[#allocation5 + $0x1d0] sm:$0xf]
        %v8846 = vld [vmem:[#allocation5 + $0x1d4] sm:$0xf]
        %v8847 = vld [vmem:[#allocation5 + $0x1d8] sm:$0xf]
        %v8848 = vld [vmem:[#allocation5 + $0x1dc] sm:$0xf]
        %v8849 = vld [vmem:[#allocation5 + $0x1e0] sm:$0xf]
        %v8850 = vld [vmem:[#allocation5 + $0x1e4] sm:$0xf]
        %v8851 = vld [vmem:[#allocation5 + $0x1e8] sm:$0xf]
        %v8852 = vld [vmem:[#allocation5 + $0x1ec] sm:$0xf]
        %v8853 = vld [vmem:[#allocation5 + $0x1f0] sm:$0xf]
        %v8854 = vld [vmem:[#allocation5 + $0x1f4] sm:$0xf]
        %v8855 = vld [vmem:[#allocation5 + $0x1f8] sm:$0xf]
        %v8856 = vld [vmem:[#allocation5 + $0x1fc] sm:$0xf]
        %v8857 = vld [vmem:[#allocation5 + $0x200] sm:$0xf]
        %v8858 = vld [vmem:[#allocation5 + $0x204] sm:$0xf]
        %v8859 = vld [vmem:[#allocation5 + $0x208] sm:$0xf]
        %v8860 = vld [vmem:[#allocation5 + $0x20c] sm:$0xf]
        %v8861 = vld [vmem:[#allocation5 + $0x210] sm:$0xf]
        %v8862 = vld [vmem:[#allocation5 + $0x214] sm:$0xf]
        %v8863 = vld [vmem:[#allocation5 + $0x218] sm:$0xf]
        %v8864 = vld [vmem:[#allocation5 + $0x21c] sm:$0xf]
        %v8865 = vld [vmem:[#allocation5 + $0x220] sm:$0xf]
        %v8866 = vld [vmem:[#allocation5 + $0x224] sm:$0xf]
        %v8867 = vld [vmem:[#allocation5 + $0x228] sm:$0xf]
        %v8868 = vld [vmem:[#allocation5 + $0x22c] sm:$0xf]
        %v8869 = vld [vmem:[#allocation5 + $0x230] sm:$0xf]
        %v8870 = vld [vmem:[#allocation5 + $0x234] sm:$0xf]
        %v8871 = vld [vmem:[#allocation5 + $0x238] sm:$0xf]
        %v8872 = vld [vmem:[#allocation5 + $0x23c] sm:$0xf]
        %v8873 = vld [vmem:[%s702] sm:$0xf]
        %v8874 = vld [vmem:[%s702 + $0x4] sm:$0xf]
        %v8875 = vld [vmem:[%s702 + $0x8] sm:$0x1]
        %v8876 = vld [vmem:[%s702 + $0xc] sm:$0xf]
        %v8877 = vld [vmem:[%s702 + $0x10] sm:$0xf]
        %v8878 = vld [vmem:[%s702 + $0x14] sm:$0x1]
        %v8879 = vld [vmem:[%s702 + $0x18] sm:$0xf]
        %v8880 = vld [vmem:[%s702 + $0x1c] sm:$0xf]
        %v8881 = vld [vmem:[%s702 + $0x20] sm:$0x1]
        %v8882 = vld [vmem:[%s702 + $0x24] sm:$0xf]
        %v8883 = vld [vmem:[%s702 + $0x28] sm:$0xf]
        %v8884 = vld [vmem:[%s702 + $0x2c] sm:$0x1]
        %v8885 = vld [vmem:[%s702 + $0x30] sm:$0xf]
        %v8886 = vld [vmem:[%s702 + $0x34] sm:$0xf]
        %v8887 = vld [vmem:[%s702 + $0x38] sm:$0x1]
        %v8888 = vld [vmem:[%s702 + $0x3c] sm:$0xf]
        %v8889 = vld [vmem:[%s702 + $0x40] sm:$0xf]
        %v8890 = vld [vmem:[%s702 + $0x44] sm:$0x1]
        %v8891 = vld [vmem:[%s702 + $0x48] sm:$0xf]
        %v8892 = vld [vmem:[%s702 + $0x4c] sm:$0xf]
        %v8893 = vld [vmem:[%s702 + $0x50] sm:$0x1]
        %v8894 = vld [vmem:[%s702 + $0x54] sm:$0xf]
        %v8895 = vld [vmem:[%s702 + $0x58] sm:$0xf]
        %v8896 = vld [vmem:[%s702 + $0x5c] sm:$0x1]
        %v8897 = vld [vmem:[%s702 + $0x60] sm:$0xf]
        %v8898 = vld [vmem:[%s702 + $0x64] sm:$0xf]
        %v8899 = vld [vmem:[%s702 + $0x68] sm:$0x1]
        %v8900 = vld [vmem:[%s702 + $0x6c] sm:$0xf]
        %v8901 = vld [vmem:[%s702 + $0x70] sm:$0xf]
        %v8902 = vld [vmem:[%s702 + $0x74] sm:$0x1]
        %v8903 = vld [vmem:[%s702 + $0x78] sm:$0xf]
        %v8904 = vld [vmem:[%s702 + $0x7c] sm:$0xf]
        %v8905 = vld [vmem:[%s702 + $0x80] sm:$0x1]
        %v8906 = vld [vmem:[%s702 + $0x84] sm:$0xf]
        %v8907 = vld [vmem:[%s702 + $0x88] sm:$0xf]
        %v8908 = vld [vmem:[%s702 + $0x8c] sm:$0x1]
        %v8909 = vld [vmem:[%s702 + $0x90] sm:$0xf]
        %v8910 = vld [vmem:[%s702 + $0x94] sm:$0xf]
        %v8911 = vld [vmem:[%s702 + $0x98] sm:$0x1]
        %v8912 = vld [vmem:[%s702 + $0x9c] sm:$0xf]
        %v8913 = vld [vmem:[%s702 + $0xa0] sm:$0xf]
        %v8914 = vld [vmem:[%s702 + $0xa4] sm:$0x1]
        %v8915 = vld [vmem:[%s702 + $0xa8] sm:$0xf]
        %v8916 = vld [vmem:[%s702 + $0xac] sm:$0xf]
        %v8917 = vld [vmem:[%s702 + $0xb0] sm:$0x1]
        %v8918 = vld [vmem:[%s702 + $0xb4] sm:$0xf]
        %v8919 = vld [vmem:[%s702 + $0xb8] sm:$0xf]
        %v8920 = vld [vmem:[%s702 + $0xbc] sm:$0x1]
        %v8922 = vshrl.u32 %v8873, 16
        %v8924 = vrot.slane %v8922, 4
        %v8925 = vshll.u32 %v8873, 16
        %v8927 = vrot.slane %v8925, 5
        %v8928 = vor.u32 %v8924, %v8927
        %v8929 = vrot.slane %v8928, 4
        %v8931 = vshll.u32 %v8874, 16
        %v8933 = vrot.slane %v8931, 5
        %v8934 = vsel %vm1014, %v8929, %v8933
        %v8935 = vshrl.u32 %v8874, 16
        %v8937 = vrot.slane %v8935, 4
        %v8938 = vor.u32 %v8937, %v8933
        %v8939 = vrot.slane %v8938, 4
        %v8941 = vshll.u32 %v8875, 16
        %v8943 = vrot.slane %v8941, 5
        %v8944 = vsel %vm1014, %v8939, %v8943
        %v8946 = vshrl.u32 %v8876, 16
        %v8948 = vrot.slane %v8946, 4
        %v8949 = vshll.u32 %v8876, 16
        %v8951 = vrot.slane %v8949, 5
        %v8952 = vor.u32 %v8948, %v8951
        %v8953 = vrot.slane %v8952, 4
        %v8955 = vshll.u32 %v8877, 16
        %v8957 = vrot.slane %v8955, 5
        %v8958 = vsel %vm1014, %v8953, %v8957
        %v8959 = vshrl.u32 %v8877, 16
        %v8961 = vrot.slane %v8959, 4
        %v8962 = vor.u32 %v8961, %v8957
        %v8963 = vrot.slane %v8962, 4
        %v8965 = vshll.u32 %v8878, 16
        %v8967 = vrot.slane %v8965, 5
        %v8968 = vsel %vm1014, %v8963, %v8967
        %v8970 = vshrl.u32 %v8879, 16
        %v8972 = vrot.slane %v8970, 4
        %v8973 = vshll.u32 %v8879, 16
        %v8975 = vrot.slane %v8973, 5
        %v8976 = vor.u32 %v8972, %v8975
        %v8977 = vrot.slane %v8976, 4
        %v8979 = vshll.u32 %v8880, 16
        %v8981 = vrot.slane %v8979, 5
        %v8982 = vsel %vm1014, %v8977, %v8981
        %v8983 = vshrl.u32 %v8880, 16
        %v8985 = vrot.slane %v8983, 4
        %v8986 = vor.u32 %v8985, %v8981
        %v8987 = vrot.slane %v8986, 4
        %v8989 = vshll.u32 %v8881, 16
        %v8991 = vrot.slane %v8989, 5
        %v8992 = vsel %vm1014, %v8987, %v8991
        %v8994 = vshrl.u32 %v8882, 16
        %v8996 = vrot.slane %v8994, 4
        %v8997 = vshll.u32 %v8882, 16
        %v8999 = vrot.slane %v8997, 5
        %v9000 = vor.u32 %v8996, %v8999
        %v9001 = vrot.slane %v9000, 4
        %v9003 = vshll.u32 %v8883, 16
        %v9005 = vrot.slane %v9003, 5
        %v9006 = vsel %vm1014, %v9001, %v9005
        %v9007 = vshrl.u32 %v8883, 16
        %v9009 = vrot.slane %v9007, 4
        %v9010 = vor.u32 %v9009, %v9005
        %v9011 = vrot.slane %v9010, 4
        %v9013 = vshll.u32 %v8884, 16
        %v9015 = vrot.slane %v9013, 5
        %v9016 = vsel %vm1014, %v9011, %v9015
        %v9018 = vshrl.u32 %v8885, 16
        %v9020 = vrot.slane %v9018, 4
        %v9021 = vshll.u32 %v8885, 16
        %v9023 = vrot.slane %v9021, 5
        %v9024 = vor.u32 %v9020, %v9023
        %v9025 = vrot.slane %v9024, 4
        %v9027 = vshll.u32 %v8886, 16
        %v9029 = vrot.slane %v9027, 5
        %v9030 = vsel %vm1014, %v9025, %v9029
        %v9031 = vshrl.u32 %v8886, 16
        %v9033 = vrot.slane %v9031, 4
        %v9034 = vor.u32 %v9033, %v9029
        %v9035 = vrot.slane %v9034, 4
        %v9037 = vshll.u32 %v8887, 16
        %v9039 = vrot.slane %v9037, 5
        %v9040 = vsel %vm1014, %v9035, %v9039
        %v9042 = vshrl.u32 %v8888, 16
        %v9044 = vrot.slane %v9042, 4
        %v9045 = vshll.u32 %v8888, 16
        %v9047 = vrot.slane %v9045, 5
        %v9048 = vor.u32 %v9044, %v9047
        %v9049 = vrot.slane %v9048, 4
        %v9051 = vshll.u32 %v8889, 16
        %v9053 = vrot.slane %v9051, 5
        %v9054 = vsel %vm1014, %v9049, %v9053
        %v9055 = vshrl.u32 %v8889, 16
        %v9057 = vrot.slane %v9055, 4
        %v9058 = vor.u32 %v9057, %v9053
        %v9059 = vrot.slane %v9058, 4
        %v9061 = vshll.u32 %v8890, 16
        %v9063 = vrot.slane %v9061, 5
        %v9064 = vsel %vm1014, %v9059, %v9063
        %v9066 = vshrl.u32 %v8891, 16
        %v9068 = vrot.slane %v9066, 4
        %v9069 = vshll.u32 %v8891, 16
        %v9071 = vrot.slane %v9069, 5
        %v9072 = vor.u32 %v9068, %v9071
        %v9073 = vrot.slane %v9072, 4
        %v9075 = vshll.u32 %v8892, 16
        %v9077 = vrot.slane %v9075, 5
        %v9078 = vsel %vm1014, %v9073, %v9077
        %v9079 = vshrl.u32 %v8892, 16
        %v9081 = vrot.slane %v9079, 4
        %v9082 = vor.u32 %v9081, %v9077
        %v9083 = vrot.slane %v9082, 4
        %v9085 = vshll.u32 %v8893, 16
        %v9087 = vrot.slane %v9085, 5
        %v9088 = vsel %vm1014, %v9083, %v9087
        %v9090 = vshrl.u32 %v8894, 16
        %v9092 = vrot.slane %v9090, 4
        %v9093 = vshll.u32 %v8894, 16
        %v9095 = vrot.slane %v9093, 5
        %v9096 = vor.u32 %v9092, %v9095
        %v9097 = vrot.slane %v9096, 4
        %v9099 = vshll.u32 %v8895, 16
        %v9101 = vrot.slane %v9099, 5
        %v9102 = vsel %vm1014, %v9097, %v9101
        %v9103 = vshrl.u32 %v8895, 16
        %v9105 = vrot.slane %v9103, 4
        %v9106 = vor.u32 %v9105, %v9101
        %v9107 = vrot.slane %v9106, 4
        %v9109 = vshll.u32 %v8896, 16
        %v9111 = vrot.slane %v9109, 5
        %v9112 = vsel %vm1014, %v9107, %v9111
        %v9114 = vshrl.u32 %v8897, 16
        %v9116 = vrot.slane %v9114, 4
        %v9117 = vshll.u32 %v8897, 16
        %v9119 = vrot.slane %v9117, 5
        %v9120 = vor.u32 %v9116, %v9119
        %v9121 = vrot.slane %v9120, 4
        %v9123 = vshll.u32 %v8898, 16
        %v9125 = vrot.slane %v9123, 5
        %v9126 = vsel %vm1014, %v9121, %v9125
        %v9127 = vshrl.u32 %v8898, 16
        %v9129 = vrot.slane %v9127, 4
        %v9130 = vor.u32 %v9129, %v9125
        %v9131 = vrot.slane %v9130, 4
        %v9133 = vshll.u32 %v8899, 16
        %v9135 = vrot.slane %v9133, 5
        %v9136 = vsel %vm1014, %v9131, %v9135
        %v9138 = vshrl.u32 %v8900, 16
        %v9140 = vrot.slane %v9138, 4
        %v9141 = vshll.u32 %v8900, 16
        %v9143 = vrot.slane %v9141, 5
        %v9144 = vor.u32 %v9140, %v9143
        %v9145 = vrot.slane %v9144, 4
        %v9147 = vshll.u32 %v8901, 16
        %v9149 = vrot.slane %v9147, 5
        %v9150 = vsel %vm1014, %v9145, %v9149
        %v9151 = vshrl.u32 %v8901, 16
        %v9153 = vrot.slane %v9151, 4
        %v9154 = vor.u32 %v9153, %v9149
        %v9155 = vrot.slane %v9154, 4
        %v9157 = vshll.u32 %v8902, 16
        %v9159 = vrot.slane %v9157, 5
        %v9160 = vsel %vm1014, %v9155, %v9159
        %v9162 = vshrl.u32 %v8903, 16
        %v9164 = vrot.slane %v9162, 4
        %v9165 = vshll.u32 %v8903, 16
        %v9167 = vrot.slane %v9165, 5
        %v9168 = vor.u32 %v9164, %v9167
        %v9169 = vrot.slane %v9168, 4
        %v9171 = vshll.u32 %v8904, 16
        %v9173 = vrot.slane %v9171, 5
        %v9174 = vsel %vm1014, %v9169, %v9173
        %v9175 = vshrl.u32 %v8904, 16
        %v9177 = vrot.slane %v9175, 4
        %v9178 = vor.u32 %v9177, %v9173
        %v9179 = vrot.slane %v9178, 4
        %v9181 = vshll.u32 %v8905, 16
        %v9183 = vrot.slane %v9181, 5
        %v9184 = vsel %vm1014, %v9179, %v9183
        %v9186 = vshrl.u32 %v8906, 16
        %v9188 = vrot.slane %v9186, 4
        %v9189 = vshll.u32 %v8906, 16
        %v9191 = vrot.slane %v9189, 5
        %v9192 = vor.u32 %v9188, %v9191
        %v9193 = vrot.slane %v9192, 4
        %v9195 = vshll.u32 %v8907, 16
        %v9197 = vrot.slane %v9195, 5
        %v9198 = vsel %vm1014, %v9193, %v9197
        %v9199 = vshrl.u32 %v8907, 16
        %v9201 = vrot.slane %v9199, 4
        %v9202 = vor.u32 %v9201, %v9197
        %v9203 = vrot.slane %v9202, 4
        %v9205 = vshll.u32 %v8908, 16
        %v9207 = vrot.slane %v9205, 5
        %v9208 = vsel %vm1014, %v9203, %v9207
        %v9210 = vshrl.u32 %v8909, 16
        %v9212 = vrot.slane %v9210, 4
        %v9213 = vshll.u32 %v8909, 16
        %v9215 = vrot.slane %v9213, 5
        %v9216 = vor.u32 %v9212, %v9215
        %v9217 = vrot.slane %v9216, 4
        %v9219 = vshll.u32 %v8910, 16
        %v9221 = vrot.slane %v9219, 5
        %v9222 = vsel %vm1014, %v9217, %v9221
        %v9223 = vshrl.u32 %v8910, 16
        %v9225 = vrot.slane %v9223, 4
        %v9226 = vor.u32 %v9225, %v9221
        %v9227 = vrot.slane %v9226, 4
        %v9229 = vshll.u32 %v8911, 16
        %v9231 = vrot.slane %v9229, 5
        %v9232 = vsel %vm1014, %v9227, %v9231
        %v9234 = vshrl.u32 %v8912, 16
        %v9236 = vrot.slane %v9234, 4
        %v9237 = vshll.u32 %v8912, 16
        %v9239 = vrot.slane %v9237, 5
        %v9240 = vor.u32 %v9236, %v9239
        %v9241 = vrot.slane %v9240, 4
        %v9243 = vshll.u32 %v8913, 16
        %v9245 = vrot.slane %v9243, 5
        %v9246 = vsel %vm1014, %v9241, %v9245
        %v9247 = vshrl.u32 %v8913, 16
        %v9249 = vrot.slane %v9247, 4
        %v9250 = vor.u32 %v9249, %v9245
        %v9251 = vrot.slane %v9250, 4
        %v9253 = vshll.u32 %v8914, 16
        %v9255 = vrot.slane %v9253, 5
        %v9256 = vsel %vm1014, %v9251, %v9255
        %v9258 = vshrl.u32 %v8915, 16
        %v9260 = vrot.slane %v9258, 4
        %v9261 = vshll.u32 %v8915, 16
        %v9263 = vrot.slane %v9261, 5
        %v9264 = vor.u32 %v9260, %v9263
        %v9265 = vrot.slane %v9264, 4
        %v9267 = vshll.u32 %v8916, 16
        %v9269 = vrot.slane %v9267, 5
        %v9270 = vsel %vm1014, %v9265, %v9269
        %v9271 = vshrl.u32 %v8916, 16
        %v9273 = vrot.slane %v9271, 4
        %v9274 = vor.u32 %v9273, %v9269
        %v9275 = vrot.slane %v9274, 4
        %v9277 = vshll.u32 %v8917, 16
        %v9279 = vrot.slane %v9277, 5
        %v9280 = vsel %vm1014, %v9275, %v9279
        %v9282 = vshrl.u32 %v8918, 16
        %v9284 = vrot.slane %v9282, 4
        %v9285 = vshll.u32 %v8918, 16
        %v9287 = vrot.slane %v9285, 5
        %v9288 = vor.u32 %v9284, %v9287
        %v9289 = vrot.slane %v9288, 4
        %v9291 = vshll.u32 %v8919, 16
        %v9293 = vrot.slane %v9291, 5
        %v9294 = vsel %vm1014, %v9289, %v9293
        %v9295 = vshrl.u32 %v8919, 16
        %v9297 = vrot.slane %v9295, 4
        %v9298 = vor.u32 %v9297, %v9293
        %v9299 = vrot.slane %v9298, 4
        %v9301 = vshll.u32 %v8920, 16
        %v9303 = vrot.slane %v9301, 5
        %v9304 = vsel %vm1014, %v9299, %v9303
        %v9337 = vld [vmem:[%s4] sm:$0x1]
        %v9339 = vlaneseq
        %v9340 = vshrl.u32 %v9339, 7
        %v9341 = vsub.s32 0, %v9340
        %v9342 = vrot.slane %v9337, %v9341
        %v9488 = vunpack.c.l.b16 %v8729
        %v9489 = vunpack.c.l.b16 %v8730
        %v9490 = vunpack.c.l.b16 %v8731
        %v9491 = vunpack.c.l.b16 %v8732
        %v9492 = vunpack.c.l.b16 %v8733
        %v9493 = vunpack.c.l.b16 %v8734
        %v9494 = vunpack.c.l.b16 %v8735
        %v9495 = vunpack.c.l.b16 %v8736
        %v9496 = vunpack.c.l.b16 %v8737
        %v9497 = vunpack.c.l.b16 %v8738
        %v9498 = vunpack.c.l.b16 %v8739
        %v9499 = vunpack.c.l.b16 %v8740
        %v9500 = vunpack.c.l.b16 %v8741
        %v9501 = vunpack.c.l.b16 %v8742
        %v9502 = vunpack.c.l.b16 %v8743
        %v9503 = vunpack.c.l.b16 %v8744
        %v9504 = vunpack.c.l.b16 %v8745
        %v9505 = vunpack.c.l.b16 %v8746
        %v9506 = vunpack.c.l.b16 %v8747
        %v9507 = vunpack.c.l.b16 %v8748
        %v9508 = vunpack.c.l.b16 %v8749
        %v9509 = vunpack.c.l.b16 %v8750
        %v9510 = vunpack.c.l.b16 %v8751
        %v9511 = vunpack.c.l.b16 %v8752
        %v9512 = vunpack.c.l.b16 %v8753
        %v9513 = vunpack.c.l.b16 %v8754
        %v9514 = vunpack.c.l.b16 %v8755
        %v9515 = vunpack.c.l.b16 %v8756
        %v9516 = vunpack.c.l.b16 %v8757
        %v9517 = vunpack.c.l.b16 %v8758
        %v9518 = vunpack.c.l.b16 %v8759
        %v9519 = vunpack.c.l.b16 %v8760
        %v9520 = vunpack.c.l.b16 %v8761
        %v9521 = vunpack.c.l.b16 %v8762
        %v9522 = vunpack.c.l.b16 %v8763
        %v9523 = vunpack.c.l.b16 %v8764
        %v9524 = vunpack.c.l.b16 %v8765
        %v9525 = vunpack.c.l.b16 %v8766
        %v9526 = vunpack.c.l.b16 %v8767
        %v9527 = vunpack.c.l.b16 %v8768
        %v9528 = vunpack.c.l.b16 %v8769
        %v9529 = vunpack.c.l.b16 %v8770
        %v9530 = vunpack.c.l.b16 %v8771
        %v9531 = vunpack.c.l.b16 %v8772
        %v9532 = vunpack.c.l.b16 %v8773
        %v9533 = vunpack.c.l.b16 %v8774
        %v9534 = vunpack.c.l.b16 %v8775
        %v9535 = vunpack.c.l.b16 %v8776
        %v9536 = vunpack.c.l.b16 %v8777
        %v9537 = vunpack.c.l.b16 %v8778
        %v9538 = vunpack.c.l.b16 %v8779
        %v9539 = vunpack.c.l.b16 %v8780
        %v9540 = vunpack.c.l.b16 %v8781
        %v9541 = vunpack.c.l.b16 %v8782
        %v9542 = vunpack.c.l.b16 %v8783
        %v9543 = vunpack.c.l.b16 %v8784
        %v9544 = vunpack.c.l.b16 %v8785
        %v9545 = vunpack.c.l.b16 %v8786
        %v9546 = vunpack.c.l.b16 %v8787
        %v9547 = vunpack.c.l.b16 %v8788
        %v9548 = vunpack.c.l.b16 %v8789
        %v9549 = vunpack.c.l.b16 %v8790
        %v9550 = vunpack.c.l.b16 %v8791
        %v9551 = vunpack.c.l.b16 %v8792
        %v9552 = vunpack.c.l.b16 %v8793
        %v9553 = vunpack.c.l.b16 %v8794
        %v9554 = vunpack.c.l.b16 %v8795
        %v9555 = vunpack.c.l.b16 %v8796
        %v9556 = vunpack.c.l.b16 %v8797
        %v9557 = vunpack.c.l.b16 %v8798
        %v9558 = vunpack.c.l.b16 %v8799
        %v9559 = vunpack.c.l.b16 %v8800
        %v9560 = vunpack.c.l.b16 %v8801
        %v9561 = vunpack.c.l.b16 %v8802
        %v9562 = vunpack.c.l.b16 %v8803
        %v9563 = vunpack.c.l.b16 %v8804
        %v9564 = vunpack.c.l.b16 %v8805
        %v9565 = vunpack.c.l.b16 %v8806
        %v9566 = vunpack.c.l.b16 %v8807
        %v9567 = vunpack.c.l.b16 %v8808
        %v9568 = vunpack.c.l.b16 %v8809
        %v9569 = vunpack.c.l.b16 %v8810
        %v9570 = vunpack.c.l.b16 %v8811
        %v9571 = vunpack.c.l.b16 %v8812
        %v9572 = vunpack.c.l.b16 %v8813
        %v9573 = vunpack.c.l.b16 %v8814
        %v9574 = vunpack.c.l.b16 %v8815
        %v9575 = vunpack.c.l.b16 %v8816
        %v9576 = vunpack.c.l.b16 %v8817
        %v9577 = vunpack.c.l.b16 %v8818
        %v9578 = vunpack.c.l.b16 %v8819
        %v9579 = vunpack.c.l.b16 %v8820
        %v9580 = vunpack.c.l.b16 %v8821
        %v9581 = vunpack.c.l.b16 %v8822
        %v9582 = vunpack.c.l.b16 %v8823
        %v9583 = vunpack.c.l.b16 %v8824
        %v9584 = vunpack.c.l.b16 %v8825
        %v9585 = vunpack.c.l.b16 %v8826
        %v9586 = vunpack.c.l.b16 %v8827
        %v9587 = vunpack.c.l.b16 %v8828
        %v9588 = vunpack.c.l.b16 %v8829
        %v9589 = vunpack.c.l.b16 %v8830
        %v9590 = vunpack.c.l.b16 %v8831
        %v9591 = vunpack.c.l.b16 %v8832
        %v9592 = vunpack.c.l.b16 %v8833
        %v9593 = vunpack.c.l.b16 %v8834
        %v9594 = vunpack.c.l.b16 %v8835
        %v9595 = vunpack.c.l.b16 %v8836
        %v9596 = vunpack.c.l.b16 %v8837
        %v9597 = vunpack.c.l.b16 %v8838
        %v9598 = vunpack.c.l.b16 %v8839
        %v9599 = vunpack.c.l.b16 %v8840
        %v9600 = vunpack.c.l.b16 %v8841
        %v9601 = vunpack.c.l.b16 %v8842
        %v9602 = vunpack.c.l.b16 %v8843
        %v9603 = vunpack.c.l.b16 %v8844
        %v9604 = vunpack.c.l.b16 %v8845
        %v9605 = vunpack.c.l.b16 %v8846
        %v9606 = vunpack.c.l.b16 %v8847
        %v9607 = vunpack.c.l.b16 %v8848
        %v9608 = vunpack.c.l.b16 %v8849
        %v9609 = vunpack.c.l.b16 %v8850
        %v9610 = vunpack.c.l.b16 %v8851
        %v9611 = vunpack.c.l.b16 %v8852
        %v9612 = vunpack.c.l.b16 %v8853
        %v9613 = vunpack.c.l.b16 %v8854
        %v9614 = vunpack.c.l.b16 %v8855
        %v9615 = vunpack.c.l.b16 %v8856
        %v9616 = vunpack.c.l.b16 %v8857
        %v9617 = vunpack.c.l.b16 %v8858
        %v9618 = vunpack.c.l.b16 %v8859
        %v9619 = vunpack.c.l.b16 %v8860
        %v9620 = vunpack.c.l.b16 %v8861
        %v9621 = vunpack.c.l.b16 %v8862
        %v9622 = vunpack.c.l.b16 %v8863
        %v9623 = vunpack.c.l.b16 %v8864
        %v9624 = vunpack.c.l.b16 %v8865
        %v9625 = vunpack.c.l.b16 %v8866
        %v9626 = vunpack.c.l.b16 %v8867
        %v9627 = vunpack.c.l.b16 %v8868
        %v9628 = vunpack.c.l.b16 %v8869
        %v9629 = vunpack.c.l.b16 %v8870
        %v9630 = vunpack.c.l.b16 %v8871
        %v9631 = vunpack.c.l.b16 %v8872
        %v9632 = vpack.c.b16 %v9489, %v9488
        %v9633 = vpack.c.b16 %v9491, %v9490
        %v9634 = vpack.c.b16 %v9493, %v9492
        %v9635 = vpack.c.b16 %v9495, %v9494
        %v9636 = vpack.c.b16 %v9497, %v9496
        %v9637 = vpack.c.b16 %v9499, %v9498
        %v9638 = vpack.c.b16 %v9501, %v9500
        %v9639 = vpack.c.b16 %v9503, %v9502
        %v9640 = vpack.c.b16 %v9505, %v9504
        %v9641 = vpack.c.b16 %v9507, %v9506
        %v9642 = vpack.c.b16 %v9509, %v9508
        %v9643 = vpack.c.b16 %v9511, %v9510
        %v9644 = vpack.c.b16 %v9513, %v9512
        %v9645 = vpack.c.b16 %v9515, %v9514
        %v9646 = vpack.c.b16 %v9517, %v9516
        %v9647 = vpack.c.b16 %v9519, %v9518
        %v9648 = vpack.c.b16 %v9521, %v9520
        %v9649 = vpack.c.b16 %v9523, %v9522
        %v9650 = vpack.c.b16 %v9525, %v9524
        %v9651 = vpack.c.b16 %v9527, %v9526
        %v9652 = vpack.c.b16 %v9529, %v9528
        %v9653 = vpack.c.b16 %v9531, %v9530
        %v9654 = vpack.c.b16 %v9533, %v9532
        %v9655 = vpack.c.b16 %v9535, %v9534
        %v9656 = vpack.c.b16 %v9537, %v9536
        %v9657 = vpack.c.b16 %v9539, %v9538
        %v9658 = vpack.c.b16 %v9541, %v9540
        %v9659 = vpack.c.b16 %v9543, %v9542
        %v9660 = vpack.c.b16 %v9545, %v9544
        %v9661 = vpack.c.b16 %v9547, %v9546
        %v9662 = vpack.c.b16 %v9549, %v9548
        %v9663 = vpack.c.b16 %v9551, %v9550
        %v9664 = vpack.c.b16 %v9553, %v9552
        %v9665 = vpack.c.b16 %v9555, %v9554
        %v9666 = vpack.c.b16 %v9557, %v9556
        %v9667 = vpack.c.b16 %v9559, %v9558
        %v9668 = vpack.c.b16 %v9561, %v9560
        %v9669 = vpack.c.b16 %v9563, %v9562
        %v9670 = vpack.c.b16 %v9565, %v9564
        %v9671 = vpack.c.b16 %v9567, %v9566
        %v9672 = vpack.c.b16 %v9569, %v9568
        %v9673 = vpack.c.b16 %v9571, %v9570
        %v9674 = vpack.c.b16 %v9573, %v9572
        %v9675 = vpack.c.b16 %v9575, %v9574
        %v9676 = vpack.c.b16 %v9577, %v9576
        %v9677 = vpack.c.b16 %v9579, %v9578
        %v9678 = vpack.c.b16 %v9581, %v9580
        %v9679 = vpack.c.b16 %v9583, %v9582
        %v9680 = vpack.c.b16 %v9585, %v9584
        %v9681 = vpack.c.b16 %v9587, %v9586
        %v9682 = vpack.c.b16 %v9589, %v9588
        %v9683 = vpack.c.b16 %v9591, %v9590
        %v9684 = vpack.c.b16 %v9593, %v9592
        %v9685 = vpack.c.b16 %v9595, %v9594
        %v9686 = vpack.c.b16 %v9597, %v9596
        %v9687 = vpack.c.b16 %v9599, %v9598
        %v9688 = vpack.c.b16 %v9601, %v9600
        %v9689 = vpack.c.b16 %v9603, %v9602
        %v9690 = vpack.c.b16 %v9605, %v9604
        %v9691 = vpack.c.b16 %v9607, %v9606
        %v9692 = vpack.c.b16 %v9609, %v9608
        %v9693 = vpack.c.b16 %v9611, %v9610
        %v9694 = vpack.c.b16 %v9613, %v9612
        %v9695 = vpack.c.b16 %v9615, %v9614
        %v9696 = vpack.c.b16 %v9617, %v9616
        %v9697 = vpack.c.b16 %v9619, %v9618
        %v9698 = vpack.c.b16 %v9621, %v9620
        %v9699 = vpack.c.b16 %v9623, %v9622
        %v9700 = vpack.c.b16 %v9625, %v9624
        %v9701 = vpack.c.b16 %v9627, %v9626
        %v9702 = vpack.c.b16 %v9629, %v9628
        %v9703 = vpack.c.b16 %v9631, %v9630
        %9776 = vmatprep.subr.bf16.mxu0 0
        %9777 = vmatpush1.bf16.msra.mxu0 %v9632
        %9778 = vmatprep.subr.bf16.mxu0 0
        %9779 = vmatpush1.bf16.msra.mxu0 %v9633
        %9780 = vmatprep.subr.bf16.mxu0 0
        %9781 = vmatpush1.bf16.msra.mxu0 %v9634
        %9782 = vmatprep.subr.bf16.mxu0 0
        %9783 = vmatpush1.bf16.msra.mxu0 %v9635
        %9784 = vmatprep.subr.bf16.mxu0 0
        %9785 = vmatpush1.bf16.msra.mxu0 %v9636
        %9786 = vmatprep.subr.bf16.mxu0 0
        %9787 = vmatpush1.bf16.msra.mxu0 %v9637
        %9788 = vmatprep.subr.bf16.mxu0 0
        %9789 = vmatpush1.bf16.msra.mxu0 %v9638
        %9790 = vmatprep.subr.bf16.mxu0 0
        %9791 = vmatpush1.bf16.msra.mxu0 %v9639
        %9792 = vmatprep.subr.bf16.mxu0 0
        %9793 = vmatpush1.bf16.msra.mxu0 %v9640
        %9794 = vmatprep.subr.bf16.mxu0 0
        %9795 = vmatpush1.bf16.msra.mxu0 %v9641
        %9796 = vmatprep.subr.bf16.mxu0 0
        %9797 = vmatpush1.bf16.msra.mxu0 %v9642
        %9798 = vmatprep.subr.bf16.mxu0 0
        %9799 = vmatpush1.bf16.msra.mxu0 %v9643
        %9800 = vmatprep.subr.bf16.mxu0 0
        %9801 = vmatpush1.bf16.msra.mxu0 %v9644
        %9802 = vmatprep.subr.bf16.mxu0 0
        %9803 = vmatpush1.bf16.msra.mxu0 %v9645
        %9804 = vmatprep.subr.bf16.mxu0 0
        %9805 = vmatpush1.bf16.msra.mxu0 %v9646
        %9806 = vmatprep.subr.bf16.mxu0 0
        %9807 = vmatpush1.bf16.msra.mxu0 %v9647
        %9808 = vmatprep.mubr.bf16.mxu0 %v8586
        %9809 = vmatmul.mubr.bf16.gmra.mrb[0].mxu0 %v8585
        %v9810 = vpop.f32.mrb[0].mxu0
        %v9811 = vadd.f32 %v9342, %v9810
        %v9812 = vpop.f32.mrb[0].mxu0
        %v9813 = vpop.f32.mrb[0].mxu0
        %v9814 = vadd.f32 %v9342, %v9813
        %v9815 = vpop.f32.mrb[0].mxu0
        %9816 = vmatprep.mubr.bf16.mxu0 %v8595
        %9817 = vmatmul.mubr.bf16.gmra.mrb[0].mxu0 %v8594
        %v9818 = vpop.f32.mrb[0].mxu0
        %v9819 = vadd.f32 %v9342, %v9818
        %v9820 = vpop.f32.mrb[0].mxu0
        %v9821 = vpop.f32.mrb[0].mxu0
        %v9822 = vadd.f32 %v9342, %v9821
        %v9823 = vpop.f32.mrb[0].mxu0
        %9824 = vmatprep.mubr.bf16.mxu0 %v8604
        %9825 = vmatmul.mubr.bf16.gmra.mrb[0].mxu0 %v8603
        %v9826 = vpop.f32.mrb[0].mxu0
        %v9827 = vadd.f32 %v9342, %v9826
        %v9828 = vpop.f32.mrb[0].mxu0
        %v9829 = vpop.f32.mrb[0].mxu0
        %v9830 = vadd.f32 %v9342, %v9829
        %v9831 = vpop.f32.mrb[0].mxu0
        %9832 = vmatprep.mubr.bf16.mxu0 %v8613
        %9833 = vmatmul.mubr.bf16.gmra.mrb[0].mxu0 %v8612
        %v9834 = vpop.f32.mrb[0].mxu0
        %v9835 = vadd.f32 %v9342, %v9834
        %v9836 = vpop.f32.mrb[0].mxu0
        %v9837 = vpop.f32.mrb[0].mxu0
        %v9838 = vadd.f32 %v9342, %v9837
        %v9839 = vpop.f32.mrb[0].mxu0
        %9840 = vmatprep.mubr.bf16.mxu0 %v8622
        %9841 = vmatmul.mubr.bf16.gmra.mrb[0].mxu0 %v8621
        %v9842 = vpop.f32.mrb[0].mxu0
        %v9843 = vadd.f32 %v9342, %v9842
        %v9844 = vpop.f32.mrb[0].mxu0
        %v9845 = vpop.f32.mrb[0].mxu0
        %v9846 = vadd.f32 %v9342, %v9845
        %v9847 = vpop.f32.mrb[0].mxu0
        %9848 = vmatprep.mubr.bf16.mxu0 %v8631
        %9849 = vmatmul.mubr.bf16.gmra.mrb[0].mxu0 %v8630
        %v9850 = vpop.f32.mrb[0].mxu0
        %v9851 = vadd.f32 %v9342, %v9850
        %v9852 = vpop.f32.mrb[0].mxu0
        %v9853 = vpop.f32.mrb[0].mxu0
        %v9854 = vadd.f32 %v9342, %v9853
        %v9855 = vpop.f32.mrb[0].mxu0
        %9856 = vmatprep.mubr.bf16.mxu0 %v8640
        %9857 = vmatmul.mubr.bf16.gmra.mrb[0].mxu0 %v8639
        %v9858 = vpop.f32.mrb[0].mxu0
        %v9859 = vadd.f32 %v9342, %v9858
        %v9860 = vpop.f32.mrb[0].mxu0
        %v9861 = vpop.f32.mrb[0].mxu0
        %v9862 = vadd.f32 %v9342, %v9861
        %v9863 = vpop.f32.mrb[0].mxu0
        %9864 = vmatprep.mubr.bf16.mxu0 %v8649
        %9865 = vmatmul.mubr.bf16.gmra.mrb[0].mxu0 %v8648
        %v9866 = vpop.f32.mrb[0].mxu0
        %v9867 = vadd.f32 %v9342, %v9866
        %v9868 = vpop.f32.mrb[0].mxu0
        %v9869 = vpop.f32.mrb[0].mxu0
        %v9870 = vadd.f32 %v9342, %v9869
        %v9871 = vpop.f32.mrb[0].mxu0
        %9872 = vmatprep.mubr.bf16.mxu0 %v8658
        %9873 = vmatmul.mubr.bf16.gmra.mrb[0].mxu0 %v8657
        %v9874 = vpop.f32.mrb[0].mxu0
        %v9875 = vadd.f32 %v9342, %v9874
        %v9876 = vpop.f32.mrb[0].mxu0
        %v9877 = vpop.f32.mrb[0].mxu0
        %v9878 = vadd.f32 %v9342, %v9877
        %v9879 = vpop.f32.mrb[0].mxu0
        %9880 = vmatprep.mubr.bf16.mxu0 %v8667
        %9881 = vmatmul.mubr.bf16.gmra.mrb[0].mxu0 %v8666
        %v9882 = vpop.f32.mrb[0].mxu0
        %v9883 = vadd.f32 %v9342, %v9882
        %v9884 = vpop.f32.mrb[0].mxu0
        %v9885 = vpop.f32.mrb[0].mxu0
        %v9886 = vadd.f32 %v9342, %v9885
        %v9887 = vpop.f32.mrb[0].mxu0
        %9888 = vmatprep.mubr.bf16.mxu0 %v8676
        %9889 = vmatmul.mubr.bf16.gmra.mrb[0].mxu0 %v8675
        %v9890 = vpop.f32.mrb[0].mxu0
        %v9891 = vadd.f32 %v9342, %v9890
        %v9892 = vpop.f32.mrb[0].mxu0
        %v9893 = vpop.f32.mrb[0].mxu0
        %v9894 = vadd.f32 %v9342, %v9893
        %v9895 = vpop.f32.mrb[0].mxu0
        %9896 = vmatprep.mubr.bf16.mxu0 %v8685
        %9897 = vmatmul.mubr.bf16.gmra.mrb[0].mxu0 %v8684
        %v9898 = vpop.f32.mrb[0].mxu0
        %v9899 = vadd.f32 %v9342, %v9898
        %v9900 = vpop.f32.mrb[0].mxu0
        %v9901 = vpop.f32.mrb[0].mxu0
        %v9902 = vadd.f32 %v9342, %v9901
        %v9903 = vpop.f32.mrb[0].mxu0
        %9904 = vmatprep.mubr.bf16.mxu0 %v8694
        %9905 = vmatmul.mubr.bf16.gmra.mrb[0].mxu0 %v8693
        %v9906 = vpop.f32.mrb[0].mxu0
        %v9907 = vadd.f32 %v9342, %v9906
        %v9908 = vpop.f32.mrb[0].mxu0
        %v9909 = vpop.f32.mrb[0].mxu0
        %v9910 = vadd.f32 %v9342, %v9909
        %v9911 = vpop.f32.mrb[0].mxu0
        %9912 = vmatprep.mubr.bf16.mxu0 %v8703
        %9913 = vmatmul.mubr.bf16.gmra.mrb[0].mxu0 %v8702
        %v9914 = vpop.f32.mrb[0].mxu0
        %v9915 = vadd.f32 %v9342, %v9914
        %v9916 = vpop.f32.mrb[0].mxu0
        %v9917 = vpop.f32.mrb[0].mxu0
        %v9918 = vadd.f32 %v9342, %v9917
        %v9919 = vpop.f32.mrb[0].mxu0
        %9920 = vmatprep.mubr.bf16.mxu0 %v8712
        %9921 = vmatmul.mubr.bf16.gmra.mrb[0].mxu0 %v8711
        %v9922 = vpop.f32.mrb[0].mxu0
        %v9923 = vadd.f32 %v9342, %v9922
        %v9924 = vpop.f32.mrb[0].mxu0
        %v9925 = vpop.f32.mrb[0].mxu0
        %v9926 = vadd.f32 %v9342, %v9925
        %v9927 = vpop.f32.mrb[0].mxu0
        %9928 = vmatprep.mubr.bf16.mxu0 %v8721
        %9929 = vmatmul.mubr.bf16.gmra.mrb[0].mxu0 %v8720
        %v9930 = vpop.f32.mrb[0].mxu0
        %v9931 = vadd.f32 %v9342, %v9930
        %v9932 = vpop.f32.mrb[0].mxu0
        %v9933 = vpop.f32.mrb[0].mxu0
        %v9934 = vadd.f32 %v9342, %v9933
        %v9935 = vpop.f32.mrb[0].mxu0
        %9936 = vdwg.mxu0
        %9937 = vmatprep.subr.bf16.mxu0 0
        %9938 = vmatpush1.bf16.msra.mxu0 %v9648
        %9939 = vmatprep.subr.bf16.mxu0 0
        %9940 = vmatpush1.bf16.msra.mxu0 %v9649
        %9941 = vmatprep.subr.bf16.mxu0 0
        %9942 = vmatpush1.bf16.msra.mxu0 %v9650
        %9943 = vmatprep.subr.bf16.mxu0 0
        %9944 = vmatpush1.bf16.msra.mxu0 %v9651
        %9945 = vmatprep.subr.bf16.mxu0 0
        %9946 = vmatpush1.bf16.msra.mxu0 %v9652
        %9947 = vmatprep.subr.bf16.mxu0 0
        %9948 = vmatpush1.bf16.msra.mxu0 %v9653
        %9949 = vmatprep.subr.bf16.mxu0 0
        %9950 = vmatpush1.bf16.msra.mxu0 %v9654
        %9951 = vmatprep.subr.bf16.mxu0 0
        %9952 = vmatpush1.bf16.msra.mxu0 %v9655
        %9953 = vmatprep.subr.bf16.mxu0 0
        %9954 = vmatpush1.bf16.msra.mxu0 %v9656
        %9955 = vmatprep.subr.bf16.mxu0 0
        %9956 = vmatpush1.bf16.msra.mxu0 %v9657
        %9957 = vmatprep.subr.bf16.mxu0 0
        %9958 = vmatpush1.bf16.msra.mxu0 %v9658
        %9959 = vmatprep.subr.bf16.mxu0 0
        %9960 = vmatpush1.bf16.msra.mxu0 %v9659
        %9961 = vmatprep.subr.bf16.mxu0 0
        %9962 = vmatpush1.bf16.msra.mxu0 %v9660
        %9963 = vmatprep.subr.bf16.mxu0 0
        %9964 = vmatpush1.bf16.msra.mxu0 %v9661
        %9965 = vmatprep.subr.bf16.mxu0 0
        %9966 = vmatpush1.bf16.msra.mxu0 %v9662
        %9967 = vmatprep.subr.bf16.mxu0 0
        %9968 = vmatpush1.bf16.msra.mxu0 %v9663
        %9969 = vmatprep.mubr.bf16.mxu0 %v8588
        %9970 = vmatmul.mubr.bf16.gmra.mrb[0].mxu0 %v8587
        %v9971 = vpop.f32.mrb[0].mxu0
        %v9972 = vadd.f32 %v9811, %v9971
        %v9973 = vpop.f32.mrb[0].mxu0
        %v9974 = vpop.f32.mrb[0].mxu0
        %v9975 = vadd.f32 %v9814, %v9974
        %v9976 = vpop.f32.mrb[0].mxu0
        %9977 = vmatprep.mubr.bf16.mxu0 %v8597
        %9978 = vmatmul.mubr.bf16.gmra.mrb[0].mxu0 %v8596
        %v9979 = vpop.f32.mrb[0].mxu0
        %v9980 = vadd.f32 %v9819, %v9979
        %v9981 = vpop.f32.mrb[0].mxu0
        %v9982 = vpop.f32.mrb[0].mxu0
        %v9983 = vadd.f32 %v9822, %v9982
        %v9984 = vpop.f32.mrb[0].mxu0
        %9985 = vmatprep.mubr.bf16.mxu0 %v8606
        %9986 = vmatmul.mubr.bf16.gmra.mrb[0].mxu0 %v8605
        %v9987 = vpop.f32.mrb[0].mxu0
        %v9988 = vadd.f32 %v9827, %v9987
        %v9989 = vpop.f32.mrb[0].mxu0
        %v9990 = vpop.f32.mrb[0].mxu0
        %v9991 = vadd.f32 %v9830, %v9990
        %v9992 = vpop.f32.mrb[0].mxu0
        %9993 = vmatprep.mubr.bf16.mxu0 %v8615
        %9994 = vmatmul.mubr.bf16.gmra.mrb[0].mxu0 %v8614
        %v9995 = vpop.f32.mrb[0].mxu0
        %v9996 = vadd.f32 %v9835, %v9995
        %v9997 = vpop.f32.mrb[0].mxu0
        %v9998 = vpop.f32.mrb[0].mxu0
        %v9999 = vadd.f32 %v9838, %v9998
        %v10000 = vpop.f32.mrb[0].mxu0
        %10001 = vmatprep.mubr.bf16.mxu0 %v8624
        %10002 = vmatmul.mubr.bf16.gmra.mrb[0].mxu0 %v8623
        %v10003 = vpop.f32.mrb[0].mxu0
        %v10004 = vadd.f32 %v9843, %v10003
        %v10005 = vpop.f32.mrb[0].mxu0
        %v10006 = vpop.f32.mrb[0].mxu0
        %v10007 = vadd.f32 %v9846, %v10006
        %v10008 = vpop.f32.mrb[0].mxu0
        %10009 = vmatprep.mubr.bf16.mxu0 %v8633
        %10010 = vmatmul.mubr.bf16.gmra.mrb[0].mxu0 %v8632
        %v10011 = vpop.f32.mrb[0].mxu0
        %v10012 = vadd.f32 %v9851, %v10011
        %v10013 = vpop.f32.mrb[0].mxu0
        %v10014 = vpop.f32.mrb[0].mxu0
        %v10015 = vadd.f32 %v9854, %v10014
        %v10016 = vpop.f32.mrb[0].mxu0
        %10017 = vmatprep.mubr.bf16.mxu0 %v8642
        %10018 = vmatmul.mubr.bf16.gmra.mrb[0].mxu0 %v8641
        %v10019 = vpop.f32.mrb[0].mxu0
        %v10020 = vadd.f32 %v9859, %v10019
        %v10021 = vpop.f32.mrb[0].mxu0
        %v10022 = vpop.f32.mrb[0].mxu0
        %v10023 = vadd.f32 %v9862, %v10022
        %v10024 = vpop.f32.mrb[0].mxu0
        %10025 = vmatprep.mubr.bf16.mxu0 %v8651
        %10026 = vmatmul.mubr.bf16.gmra.mrb[0].mxu0 %v8650
        %v10027 = vpop.f32.mrb[0].mxu0
        %v10028 = vadd.f32 %v9867, %v10027
        %v10029 = vpop.f32.mrb[0].mxu0
        %v10030 = vpop.f32.mrb[0].mxu0
        %v10031 = vadd.f32 %v9870, %v10030
        %v10032 = vpop.f32.mrb[0].mxu0
        %10033 = vmatprep.mubr.bf16.mxu0 %v8660
        %10034 = vmatmul.mubr.bf16.gmra.mrb[0].mxu0 %v8659
        %v10035 = vpop.f32.mrb[0].mxu0
        %v10036 = vadd.f32 %v9875, %v10035
        %v10037 = vpop.f32.mrb[0].mxu0
        %v10038 = vpop.f32.mrb[0].mxu0
        %v10039 = vadd.f32 %v9878, %v10038
        %v10040 = vpop.f32.mrb[0].mxu0
        %10041 = vmatprep.mubr.bf16.mxu0 %v8669
        %10042 = vmatmul.mubr.bf16.gmra.mrb[0].mxu0 %v8668
        %v10043 = vpop.f32.mrb[0].mxu0
        %v10044 = vadd.f32 %v9883, %v10043
        %v10045 = vpop.f32.mrb[0].mxu0
        %v10046 = vpop.f32.mrb[0].mxu0
        %v10047 = vadd.f32 %v9886, %v10046
        %v10048 = vpop.f32.mrb[0].mxu0
        %10049 = vmatprep.mubr.bf16.mxu0 %v8678
        %10050 = vmatmul.mubr.bf16.gmra.mrb[0].mxu0 %v8677
        %v10051 = vpop.f32.mrb[0].mxu0
        %v10052 = vadd.f32 %v9891, %v10051
        %v10053 = vpop.f32.mrb[0].mxu0
        %v10054 = vpop.f32.mrb[0].mxu0
        %v10055 = vadd.f32 %v9894, %v10054
        %v10056 = vpop.f32.mrb[0].mxu0
        %10057 = vmatprep.mubr.bf16.mxu0 %v8687
        %10058 = vmatmul.mubr.bf16.gmra.mrb[0].mxu0 %v8686
        %v10059 = vpop.f32.mrb[0].mxu0
        %v10060 = vadd.f32 %v9899, %v10059
        %v10061 = vpop.f32.mrb[0].mxu0
        %v10062 = vpop.f32.mrb[0].mxu0
        %v10063 = vadd.f32 %v9902, %v10062
        %v10064 = vpop.f32.mrb[0].mxu0
        %10065 = vmatprep.mubr.bf16.mxu0 %v8696
        %10066 = vmatmul.mubr.bf16.gmra.mrb[0].mxu0 %v8695
        %v10067 = vpop.f32.mrb[0].mxu0
        %v10068 = vadd.f32 %v9907, %v10067
        %v10069 = vpop.f32.mrb[0].mxu0
        %v10070 = vpop.f32.mrb[0].mxu0
        %v10071 = vadd.f32 %v9910, %v10070
        %v10072 = vpop.f32.mrb[0].mxu0
        %10073 = vmatprep.mubr.bf16.mxu0 %v8705
        %10074 = vmatmul.mubr.bf16.gmra.mrb[0].mxu0 %v8704
        %v10075 = vpop.f32.mrb[0].mxu0
        %v10076 = vadd.f32 %v9915, %v10075
        %v10077 = vpop.f32.mrb[0].mxu0
        %v10078 = vpop.f32.mrb[0].mxu0
        %v10079 = vadd.f32 %v9918, %v10078
        %v10080 = vpop.f32.mrb[0].mxu0
        %10081 = vmatprep.mubr.bf16.mxu0 %v8714
        %10082 = vmatmul.mubr.bf16.gmra.mrb[0].mxu0 %v8713
        %v10083 = vpop.f32.mrb[0].mxu0
        %v10084 = vadd.f32 %v9923, %v10083
        %v10085 = vpop.f32.mrb[0].mxu0
        %v10086 = vpop.f32.mrb[0].mxu0
        %v10087 = vadd.f32 %v9926, %v10086
        %v10088 = vpop.f32.mrb[0].mxu0
        %10089 = vmatprep.mubr.bf16.mxu0 %v8723
        %10090 = vmatmul.mubr.bf16.gmra.mrb[0].mxu0 %v8722
        %v10091 = vpop.f32.mrb[0].mxu0
        %v10092 = vadd.f32 %v9931, %v10091
        %v10093 = vpop.f32.mrb[0].mxu0
        %v10094 = vpop.f32.mrb[0].mxu0
        %v10095 = vadd.f32 %v9934, %v10094
        %v10096 = vpop.f32.mrb[0].mxu0
        %10097 = vdwg.mxu0
        %10098 = vmatprep.subr.bf16.mxu0 0
        %10099 = vmatpush1.bf16.msra.mxu0 %v9664
        %10100 = vmatprep.subr.bf16.mxu0 0
        %10101 = vmatpush1.bf16.msra.mxu0 %v9665
        %10102 = vmatprep.subr.bf16.mxu0 0
        %10103 = vmatpush1.bf16.msra.mxu0 %v9666
        %10104 = vmatprep.subr.bf16.mxu0 0
        %10105 = vmatpush1.bf16.msra.mxu0 %v9667
        %10106 = vmatprep.subr.bf16.mxu0 0
        %10107 = vmatpush1.bf16.msra.mxu0 %v9668
        %10108 = vmatprep.subr.bf16.mxu0 0
        %10109 = vmatpush1.bf16.msra.mxu0 %v9669
        %10110 = vmatprep.subr.bf16.mxu0 0
        %10111 = vmatpush1.bf16.msra.mxu0 %v9670
        %10112 = vmatprep.subr.bf16.mxu0 0
        %10113 = vmatpush1.bf16.msra.mxu0 %v9671
        %10114 = vmatprep.subr.bf16.mxu0 0
        %10115 = vmatpush1.bf16.msra.mxu0 %v9672
        %10116 = vmatprep.subr.bf16.mxu0 0
        %10117 = vmatpush1.bf16.msra.mxu0 %v9673
        %10118 = vmatprep.subr.bf16.mxu0 0
        %10119 = vmatpush1.bf16.msra.mxu0 %v9674
        %10120 = vmatprep.subr.bf16.mxu0 0
        %10121 = vmatpush1.bf16.msra.mxu0 %v9675
        %10122 = vmatprep.subr.bf16.mxu0 0
        %10123 = vmatpush1.bf16.msra.mxu0 %v9676
        %10124 = vmatprep.subr.bf16.mxu0 0
        %10125 = vmatpush1.bf16.msra.mxu0 %v9677
        %10126 = vmatprep.subr.bf16.mxu0 0
        %10127 = vmatpush1.bf16.msra.mxu0 %v9678
        %10128 = vmatprep.subr.bf16.mxu0 0
        %10129 = vmatpush1.bf16.msra.mxu0 %v9679
        %10130 = vmatprep.mubr.bf16.mxu0 %v8590
        %10131 = vmatmul.mubr.bf16.gmra.mrb[0].mxu0 %v8589
        %v10132 = vpop.f32.mrb[0].mxu0
        %v10133 = vadd.f32 %v9972, %v10132
        %v10134 = vpop.f32.mrb[0].mxu0
        %v10135 = vpop.f32.mrb[0].mxu0
        %v10136 = vadd.f32 %v9975, %v10135
        %v10137 = vpop.f32.mrb[0].mxu0
        %10138 = vmatprep.mubr.bf16.mxu0 %v8599
        %10139 = vmatmul.mubr.bf16.gmra.mrb[0].mxu0 %v8598
        %v10140 = vpop.f32.mrb[0].mxu0
        %v10141 = vadd.f32 %v9980, %v10140
        %v10142 = vpop.f32.mrb[0].mxu0
        %v10143 = vpop.f32.mrb[0].mxu0
        %v10144 = vadd.f32 %v9983, %v10143
        %v10145 = vpop.f32.mrb[0].mxu0
        %10146 = vmatprep.mubr.bf16.mxu0 %v8608
        %10147 = vmatmul.mubr.bf16.gmra.mrb[0].mxu0 %v8607
        %v10148 = vpop.f32.mrb[0].mxu0
        %v10149 = vadd.f32 %v9988, %v10148
        %v10150 = vpop.f32.mrb[0].mxu0
        %v10151 = vpop.f32.mrb[0].mxu0
        %v10152 = vadd.f32 %v9991, %v10151
        %v10153 = vpop.f32.mrb[0].mxu0
        %10154 = vmatprep.mubr.bf16.mxu0 %v8617
        %10155 = vmatmul.mubr.bf16.gmra.mrb[0].mxu0 %v8616
        %v10156 = vpop.f32.mrb[0].mxu0
        %v10157 = vadd.f32 %v9996, %v10156
        %v10158 = vpop.f32.mrb[0].mxu0
        %v10159 = vpop.f32.mrb[0].mxu0
        %v10160 = vadd.f32 %v9999, %v10159
        %v10161 = vpop.f32.mrb[0].mxu0
        %10162 = vmatprep.mubr.bf16.mxu0 %v8626
        %10163 = vmatmul.mubr.bf16.gmra.mrb[0].mxu0 %v8625
        %v10164 = vpop.f32.mrb[0].mxu0
        %v10165 = vadd.f32 %v10004, %v10164
        %v10166 = vpop.f32.mrb[0].mxu0
        %v10167 = vpop.f32.mrb[0].mxu0
        %v10168 = vadd.f32 %v10007, %v10167
        %v10169 = vpop.f32.mrb[0].mxu0
        %10170 = vmatprep.mubr.bf16.mxu0 %v8635
        %10171 = vmatmul.mubr.bf16.gmra.mrb[0].mxu0 %v8634
        %v10172 = vpop.f32.mrb[0].mxu0
        %v10173 = vadd.f32 %v10012, %v10172
        %v10174 = vpop.f32.mrb[0].mxu0
        %v10175 = vpop.f32.mrb[0].mxu0
        %v10176 = vadd.f32 %v10015, %v10175
        %v10177 = vpop.f32.mrb[0].mxu0
        %10178 = vmatprep.mubr.bf16.mxu0 %v8644
        %10179 = vmatmul.mubr.bf16.gmra.mrb[0].mxu0 %v8643
        %v10180 = vpop.f32.mrb[0].mxu0
        %v10181 = vadd.f32 %v10020, %v10180
        %v10182 = vpop.f32.mrb[0].mxu0
        %v10183 = vpop.f32.mrb[0].mxu0
        %v10184 = vadd.f32 %v10023, %v10183
        %v10185 = vpop.f32.mrb[0].mxu0
        %10186 = vmatprep.mubr.bf16.mxu0 %v8653
        %10187 = vmatmul.mubr.bf16.gmra.mrb[0].mxu0 %v8652
        %v10188 = vpop.f32.mrb[0].mxu0
        %v10189 = vadd.f32 %v10028, %v10188
        %v10190 = vpop.f32.mrb[0].mxu0
        %v10191 = vpop.f32.mrb[0].mxu0
        %v10192 = vadd.f32 %v10031, %v10191
        %v10193 = vpop.f32.mrb[0].mxu0
        %10194 = vmatprep.mubr.bf16.mxu0 %v8662
        %10195 = vmatmul.mubr.bf16.gmra.mrb[0].mxu0 %v8661
        %v10196 = vpop.f32.mrb[0].mxu0
        %v10197 = vadd.f32 %v10036, %v10196
        %v10198 = vpop.f32.mrb[0].mxu0
        %v10199 = vpop.f32.mrb[0].mxu0
        %v10200 = vadd.f32 %v10039, %v10199
        %v10201 = vpop.f32.mrb[0].mxu0
        %10202 = vmatprep.mubr.bf16.mxu0 %v8671
        %10203 = vmatmul.mubr.bf16.gmra.mrb[0].mxu0 %v8670
        %v10204 = vpop.f32.mrb[0].mxu0
        %v10205 = vadd.f32 %v10044, %v10204
        %v10206 = vpop.f32.mrb[0].mxu0
        %v10207 = vpop.f32.mrb[0].mxu0
        %v10208 = vadd.f32 %v10047, %v10207
        %v10209 = vpop.f32.mrb[0].mxu0
        %10210 = vmatprep.mubr.bf16.mxu0 %v8680
        %10211 = vmatmul.mubr.bf16.gmra.mrb[0].mxu0 %v8679
        %v10212 = vpop.f32.mrb[0].mxu0
        %v10213 = vadd.f32 %v10052, %v10212
        %v10214 = vpop.f32.mrb[0].mxu0
        %v10215 = vpop.f32.mrb[0].mxu0
        %v10216 = vadd.f32 %v10055, %v10215
        %v10217 = vpop.f32.mrb[0].mxu0
        %10218 = vmatprep.mubr.bf16.mxu0 %v8689
        %10219 = vmatmul.mubr.bf16.gmra.mrb[0].mxu0 %v8688
        %v10220 = vpop.f32.mrb[0].mxu0
        %v10221 = vadd.f32 %v10060, %v10220
        %v10222 = vpop.f32.mrb[0].mxu0
        %v10223 = vpop.f32.mrb[0].mxu0
        %v10224 = vadd.f32 %v10063, %v10223
        %v10225 = vpop.f32.mrb[0].mxu0
        %10226 = vmatprep.mubr.bf16.mxu0 %v8698
        %10227 = vmatmul.mubr.bf16.gmra.mrb[0].mxu0 %v8697
        %v10228 = vpop.f32.mrb[0].mxu0
        %v10229 = vadd.f32 %v10068, %v10228
        %v10230 = vpop.f32.mrb[0].mxu0
        %v10231 = vpop.f32.mrb[0].mxu0
        %v10232 = vadd.f32 %v10071, %v10231
        %v10233 = vpop.f32.mrb[0].mxu0
        %10234 = vmatprep.mubr.bf16.mxu0 %v8707
        %10235 = vmatmul.mubr.bf16.gmra.mrb[0].mxu0 %v8706
        %v10236 = vpop.f32.mrb[0].mxu0
        %v10237 = vadd.f32 %v10076, %v10236
        %v10238 = vpop.f32.mrb[0].mxu0
        %v10239 = vpop.f32.mrb[0].mxu0
        %v10240 = vadd.f32 %v10079, %v10239
        %v10241 = vpop.f32.mrb[0].mxu0
        %10242 = vmatprep.mubr.bf16.mxu0 %v8716
        %10243 = vmatmul.mubr.bf16.gmra.mrb[0].mxu0 %v8715
        %v10244 = vpop.f32.mrb[0].mxu0
        %v10245 = vadd.f32 %v10084, %v10244
        %v10246 = vpop.f32.mrb[0].mxu0
        %v10247 = vpop.f32.mrb[0].mxu0
        %v10248 = vadd.f32 %v10087, %v10247
        %v10249 = vpop.f32.mrb[0].mxu0
        %10250 = vmatprep.mubr.bf16.mxu0 %v8725
        %10251 = vmatmul.mubr.bf16.gmra.mrb[0].mxu0 %v8724
        %v10252 = vpop.f32.mrb[0].mxu0
        %v10253 = vadd.f32 %v10092, %v10252
        %v10254 = vpop.f32.mrb[0].mxu0
        %v10255 = vpop.f32.mrb[0].mxu0
        %v10256 = vadd.f32 %v10095, %v10255
        %v10257 = vpop.f32.mrb[0].mxu0
        %10258 = vdwg.mxu0
        %10259 = vmatprep.subr.bf16.mxu0 0
        %10260 = vmatpush1.bf16.msra.mxu0 %v9680
        %10261 = vmatprep.subr.bf16.mxu0 0
        %10262 = vmatpush1.bf16.msra.mxu0 %v9681
        %10263 = vmatprep.subr.bf16.mxu0 0
        %10264 = vmatpush1.bf16.msra.mxu0 %v9682
        %10265 = vmatprep.subr.bf16.mxu0 0
        %10266 = vmatpush1.bf16.msra.mxu0 %v9683
        %10267 = vmatprep.subr.bf16.mxu0 0
        %10268 = vmatpush1.bf16.msra.mxu0 %v9684
        %10269 = vmatprep.subr.bf16.mxu0 0
        %10270 = vmatpush1.bf16.msra.mxu0 %v9685
        %10271 = vmatprep.subr.bf16.mxu0 0
        %10272 = vmatpush1.bf16.msra.mxu0 %v9686
        %10273 = vmatprep.subr.bf16.mxu0 0
        %10274 = vmatpush1.bf16.msra.mxu0 %v9687
        %10275 = vmatprep.subr.bf16.mxu0 0
        %10276 = vmatpush1.bf16.msra.mxu0 %v9688
        %10277 = vmatprep.subr.bf16.mxu0 0
        %10278 = vmatpush1.bf16.msra.mxu0 %v9689
        %10279 = vmatprep.subr.bf16.mxu0 0
        %10280 = vmatpush1.bf16.msra.mxu0 %v9690
        %10281 = vmatprep.subr.bf16.mxu0 0
        %10282 = vmatpush1.bf16.msra.mxu0 %v9691
        %10283 = vmatprep.subr.bf16.mxu0 0
        %10284 = vmatpush1.bf16.msra.mxu0 %v9692
        %10285 = vmatprep.subr.bf16.mxu0 0
        %10286 = vmatpush1.bf16.msra.mxu0 %v9693
        %10287 = vmatprep.subr.bf16.mxu0 0
        %10288 = vmatpush1.bf16.msra.mxu0 %v9694
        %10289 = vmatprep.subr.bf16.mxu0 0
        %10290 = vmatpush1.bf16.msra.mxu0 %v9695
        %10291 = vmatprep.mubr.bf16.mxu0 %v8592
        %10292 = vmatmul.mubr.bf16.gmra.mrb[0].mxu0 %v8591
        %v10293 = vpop.f32.mrb[0].mxu0
        %v10294 = vadd.f32 %v10133, %v10293
        %v10295 = vpop.f32.mrb[0].mxu0
        %v10296 = vpop.f32.mrb[0].mxu0
        %v10297 = vadd.f32 %v10136, %v10296
        %v10298 = vpop.f32.mrb[0].mxu0
        %10299 = vmatprep.mubr.bf16.mxu0 %v8601
        %10300 = vmatmul.mubr.bf16.gmra.mrb[0].mxu0 %v8600
        %v10301 = vpop.f32.mrb[0].mxu0
        %v10302 = vadd.f32 %v10141, %v10301
        %v10303 = vpop.f32.mrb[0].mxu0
        %v10304 = vpop.f32.mrb[0].mxu0
        %v10305 = vadd.f32 %v10144, %v10304
        %v10306 = vpop.f32.mrb[0].mxu0
        %10307 = vmatprep.mubr.bf16.mxu0 %v8610
        %10308 = vmatmul.mubr.bf16.gmra.mrb[0].mxu0 %v8609
        %v10309 = vpop.f32.mrb[0].mxu0
        %v10310 = vadd.f32 %v10149, %v10309
        %v10311 = vpop.f32.mrb[0].mxu0
        %v10312 = vpop.f32.mrb[0].mxu0
        %v10313 = vadd.f32 %v10152, %v10312
        %v10314 = vpop.f32.mrb[0].mxu0
        %10315 = vmatprep.mubr.bf16.mxu0 %v8619
        %10316 = vmatmul.mubr.bf16.gmra.mrb[0].mxu0 %v8618
        %v10317 = vpop.f32.mrb[0].mxu0
        %v10318 = vadd.f32 %v10157, %v10317
        %v10319 = vpop.f32.mrb[0].mxu0
        %v10320 = vpop.f32.mrb[0].mxu0
        %v10321 = vadd.f32 %v10160, %v10320
        %v10322 = vpop.f32.mrb[0].mxu0
        %10323 = vmatprep.mubr.bf16.mxu0 %v8628
        %10324 = vmatmul.mubr.bf16.gmra.mrb[0].mxu0 %v8627
        %v10325 = vpop.f32.mrb[0].mxu0
        %v10326 = vadd.f32 %v10165, %v10325
        %v10327 = vpop.f32.mrb[0].mxu0
        %v10328 = vpop.f32.mrb[0].mxu0
        %v10329 = vadd.f32 %v10168, %v10328
        %v10330 = vpop.f32.mrb[0].mxu0
        %10331 = vmatprep.mubr.bf16.mxu0 %v8637
        %10332 = vmatmul.mubr.bf16.gmra.mrb[0].mxu0 %v8636
        %v10333 = vpop.f32.mrb[0].mxu0
        %v10334 = vadd.f32 %v10173, %v10333
        %v10335 = vpop.f32.mrb[0].mxu0
        %v10336 = vpop.f32.mrb[0].mxu0
        %v10337 = vadd.f32 %v10176, %v10336
        %v10338 = vpop.f32.mrb[0].mxu0
        %10339 = vmatprep.mubr.bf16.mxu0 %v8646
        %10340 = vmatmul.mubr.bf16.gmra.mrb[0].mxu0 %v8645
        %v10341 = vpop.f32.mrb[0].mxu0
        %v10342 = vadd.f32 %v10181, %v10341
        %v10343 = vpop.f32.mrb[0].mxu0
        %v10344 = vpop.f32.mrb[0].mxu0
        %v10345 = vadd.f32 %v10184, %v10344
        %v10346 = vpop.f32.mrb[0].mxu0
        %10347 = vmatprep.mubr.bf16.mxu0 %v8655
        %10348 = vmatmul.mubr.bf16.gmra.mrb[0].mxu0 %v8654
        %v10349 = vpop.f32.mrb[0].mxu0
        %v10350 = vadd.f32 %v10189, %v10349
        %v10351 = vpop.f32.mrb[0].mxu0
        %v10352 = vpop.f32.mrb[0].mxu0
        %v10353 = vadd.f32 %v10192, %v10352
        %v10354 = vpop.f32.mrb[0].mxu0
        %10355 = vmatprep.mubr.bf16.mxu0 %v8664
        %10356 = vmatmul.mubr.bf16.gmra.mrb[0].mxu0 %v8663
        %v10357 = vpop.f32.mrb[0].mxu0
        %v10358 = vadd.f32 %v10197, %v10357
        %v10359 = vpop.f32.mrb[0].mxu0
        %v10360 = vpop.f32.mrb[0].mxu0
        %v10361 = vadd.f32 %v10200, %v10360
        %v10362 = vpop.f32.mrb[0].mxu0
        %10363 = vmatprep.mubr.bf16.mxu0 %v8673
        %10364 = vmatmul.mubr.bf16.gmra.mrb[0].mxu0 %v8672
        %v10365 = vpop.f32.mrb[0].mxu0
        %v10366 = vadd.f32 %v10205, %v10365
        %v10367 = vpop.f32.mrb[0].mxu0
        %v10368 = vpop.f32.mrb[0].mxu0
        %v10369 = vadd.f32 %v10208, %v10368
        %v10370 = vpop.f32.mrb[0].mxu0
        %10371 = vmatprep.mubr.bf16.mxu0 %v8682
        %10372 = vmatmul.mubr.bf16.gmra.mrb[0].mxu0 %v8681
        %v10373 = vpop.f32.mrb[0].mxu0
        %v10374 = vadd.f32 %v10213, %v10373
        %v10375 = vpop.f32.mrb[0].mxu0
        %v10376 = vpop.f32.mrb[0].mxu0
        %v10377 = vadd.f32 %v10216, %v10376
        %v10378 = vpop.f32.mrb[0].mxu0
        %10379 = vmatprep.mubr.bf16.mxu0 %v8691
        %10380 = vmatmul.mubr.bf16.gmra.mrb[0].mxu0 %v8690
        %v10381 = vpop.f32.mrb[0].mxu0
        %v10382 = vadd.f32 %v10221, %v10381
        %v10383 = vpop.f32.mrb[0].mxu0
        %v10384 = vpop.f32.mrb[0].mxu0
        %v10385 = vadd.f32 %v10224, %v10384
        %v10386 = vpop.f32.mrb[0].mxu0
        %10387 = vmatprep.mubr.bf16.mxu0 %v8700
        %10388 = vmatmul.mubr.bf16.gmra.mrb[0].mxu0 %v8699
        %v10389 = vpop.f32.mrb[0].mxu0
        %v10390 = vadd.f32 %v10229, %v10389
        %v10391 = vpop.f32.mrb[0].mxu0
        %v10392 = vpop.f32.mrb[0].mxu0
        %v10393 = vadd.f32 %v10232, %v10392
        %v10394 = vpop.f32.mrb[0].mxu0
        %10395 = vmatprep.mubr.bf16.mxu0 %v8709
        %10396 = vmatmul.mubr.bf16.gmra.mrb[0].mxu0 %v8708
        %v10397 = vpop.f32.mrb[0].mxu0
        %v10398 = vadd.f32 %v10237, %v10397
        %v10399 = vpop.f32.mrb[0].mxu0
        %v10400 = vpop.f32.mrb[0].mxu0
        %v10401 = vadd.f32 %v10240, %v10400
        %v10402 = vpop.f32.mrb[0].mxu0
        %10403 = vmatprep.mubr.bf16.mxu0 %v8718
        %10404 = vmatmul.mubr.bf16.gmra.mrb[0].mxu0 %v8717
        %v10405 = vpop.f32.mrb[0].mxu0
        %v10406 = vadd.f32 %v10245, %v10405
        %v10407 = vpop.f32.mrb[0].mxu0
        %v10408 = vpop.f32.mrb[0].mxu0
        %v10409 = vadd.f32 %v10248, %v10408
        %v10410 = vpop.f32.mrb[0].mxu0
        %10411 = vmatprep.mubr.bf16.mxu0 %v8727
        %10412 = vmatmul.mubr.bf16.gmra.mrb[0].mxu0 %v8726
        %v10413 = vpop.f32.mrb[0].mxu0
        %v10414 = vadd.f32 %v10253, %v10413
        %v10415 = vpop.f32.mrb[0].mxu0
        %v10416 = vpop.f32.mrb[0].mxu0
        %v10417 = vadd.f32 %v10256, %v10416
        %v10418 = vpop.f32.mrb[0].mxu0
        %10419 = vdwg.mxu0
        %10420 = vmatprep.subr.bf16.mxu0 0
        %10421 = vmatpush1.bf16.msra.mxu0 %v9696
        %10422 = vmatprep.subr.bf16.mxu0 0
        %10423 = vmatpush1.bf16.msra.mxu0 %v9697
        %10424 = vmatprep.subr.bf16.mxu0 0
        %10425 = vmatpush1.bf16.msra.mxu0 %v9698
        %10426 = vmatprep.subr.bf16.mxu0 0
        %10427 = vmatpush1.bf16.msra.mxu0 %v9699
        %10428 = vmatprep.subr.bf16.mxu0 0
        %10429 = vmatpush1.bf16.msra.mxu0 %v9700
        %10430 = vmatprep.subr.bf16.mxu0 0
        %10431 = vmatpush1.bf16.msra.mxu0 %v9701
        %10432 = vmatprep.subr.bf16.mxu0 0
        %10433 = vmatpush1.bf16.msra.mxu0 %v9702
        %10434 = vmatprep.subr.bf16.mxu0 0
        %10435 = vmatpush1.bf16.msra.mxu0 %v9703
        %10436 = vmatprep.subr.bf16.mxu0 0
        %10437 = vmatpush1.bf16.msra.mxu0 0
        %10438 = vmatprep.subr.bf16.mxu0 0
        %10439 = vmatpush1.bf16.msra.mxu0 0
        %10440 = vmatprep.subr.bf16.mxu0 0
        %10441 = vmatpush1.bf16.msra.mxu0 0
        %10442 = vmatprep.subr.bf16.mxu0 0
        %10443 = vmatpush1.bf16.msra.mxu0 0
        %10444 = vmatprep.subr.bf16.mxu0 0
        %10445 = vmatpush1.bf16.msra.mxu0 0
        %10446 = vmatprep.subr.bf16.mxu0 0
        %10447 = vmatpush1.bf16.msra.mxu0 0
        %10448 = vmatprep.subr.bf16.mxu0 0
        %10449 = vmatpush1.bf16.msra.mxu0 0
        %10450 = vmatprep.subr.bf16.mxu0 0
        %10451 = vmatpush1.bf16.msra.mxu0 0
        %10452 = vmatprep.mubr.bf16.mxu0 0
        %10453 = vmatmul.mubr.bf16.gmra.mrb[0].mxu0 %v8593
        %v10454 = vpop.f32.mrb[0].mxu0
        %v10455 = vadd.f32 %v10294, %v10454
        %v10456 = vpop.f32.mrb[0].mxu0
        %v10457 = vpop.f32.mrb[0].mxu0
        %v10458 = vadd.f32 %v10297, %v10457
        %v10459 = vpop.f32.mrb[0].mxu0
        %10460 = vmatprep.mubr.bf16.mxu0 0
        %10461 = vmatmul.mubr.bf16.gmra.mrb[0].mxu0 %v8602
        %v10462 = vpop.f32.mrb[0].mxu0
        %v10463 = vadd.f32 %v10302, %v10462
        %v10464 = vpop.f32.mrb[0].mxu0
        %v10465 = vpop.f32.mrb[0].mxu0
        %v10466 = vadd.f32 %v10305, %v10465
        %v10467 = vpop.f32.mrb[0].mxu0
        %10468 = vmatprep.mubr.bf16.mxu0 0
        %10469 = vmatmul.mubr.bf16.gmra.mrb[0].mxu0 %v8611
        %v10470 = vpop.f32.mrb[0].mxu0
        %v10471 = vadd.f32 %v10310, %v10470
        %v10472 = vpop.f32.mrb[0].mxu0
        %v10473 = vpop.f32.mrb[0].mxu0
        %v10474 = vadd.f32 %v10313, %v10473
        %v10475 = vpop.f32.mrb[0].mxu0
        %10476 = vmatprep.mubr.bf16.mxu0 0
        %10477 = vmatmul.mubr.bf16.gmra.mrb[0].mxu0 %v8620
        %v10478 = vpop.f32.mrb[0].mxu0
        %v10479 = vadd.f32 %v10318, %v10478
        %v10480 = vpop.f32.mrb[0].mxu0
        %v10481 = vpop.f32.mrb[0].mxu0
        %v10482 = vadd.f32 %v10321, %v10481
        %v10483 = vpop.f32.mrb[0].mxu0
        %10484 = vmatprep.mubr.bf16.mxu0 0
        %10485 = vmatmul.mubr.bf16.gmra.mrb[0].mxu0 %v8629
        %v10486 = vpop.f32.mrb[0].mxu0
        %v10487 = vadd.f32 %v10326, %v10486
        %v10488 = vpop.f32.mrb[0].mxu0
        %v10489 = vpop.f32.mrb[0].mxu0
        %v10490 = vadd.f32 %v10329, %v10489
        %v10491 = vpop.f32.mrb[0].mxu0
        %10492 = vmatprep.mubr.bf16.mxu0 0
        %10493 = vmatmul.mubr.bf16.gmra.mrb[0].mxu0 %v8638
        %v10494 = vpop.f32.mrb[0].mxu0
        %v10495 = vadd.f32 %v10334, %v10494
        %v10496 = vpop.f32.mrb[0].mxu0
        %v10497 = vpop.f32.mrb[0].mxu0
        %v10498 = vadd.f32 %v10337, %v10497
        %v10499 = vpop.f32.mrb[0].mxu0
        %10500 = vmatprep.mubr.bf16.mxu0 0
        %10501 = vmatmul.mubr.bf16.gmra.mrb[0].mxu0 %v8647
        %v10502 = vpop.f32.mrb[0].mxu0
        %v10503 = vadd.f32 %v10342, %v10502
        %v10504 = vpop.f32.mrb[0].mxu0
        %v10505 = vpop.f32.mrb[0].mxu0
        %v10506 = vadd.f32 %v10345, %v10505
        %v10507 = vpop.f32.mrb[0].mxu0
        %10508 = vmatprep.mubr.bf16.mxu0 0
        %10509 = vmatmul.mubr.bf16.gmra.mrb[0].mxu0 %v8656
        %v10510 = vpop.f32.mrb[0].mxu0
        %v10511 = vadd.f32 %v10350, %v10510
        %v10512 = vpop.f32.mrb[0].mxu0
        %v10513 = vpop.f32.mrb[0].mxu0
        %v10514 = vadd.f32 %v10353, %v10513
        %v10515 = vpop.f32.mrb[0].mxu0
        %10516 = vmatprep.mubr.bf16.mxu0 0
        %10517 = vmatmul.mubr.bf16.gmra.mrb[0].mxu0 %v8665
        %v10518 = vpop.f32.mrb[0].mxu0
        %v10519 = vadd.f32 %v10358, %v10518
        %v10520 = vpop.f32.mrb[0].mxu0
        %v10521 = vpop.f32.mrb[0].mxu0
        %v10522 = vadd.f32 %v10361, %v10521
        %v10523 = vpop.f32.mrb[0].mxu0
        %10524 = vmatprep.mubr.bf16.mxu0 0
        %10525 = vmatmul.mubr.bf16.gmra.mrb[0].mxu0 %v8674
        %v10526 = vpop.f32.mrb[0].mxu0
        %v10527 = vadd.f32 %v10366, %v10526
        %v10528 = vpop.f32.mrb[0].mxu0
        %v10529 = vpop.f32.mrb[0].mxu0
        %v10530 = vadd.f32 %v10369, %v10529
        %v10531 = vpop.f32.mrb[0].mxu0
        %10532 = vmatprep.mubr.bf16.mxu0 0
        %10533 = vmatmul.mubr.bf16.gmra.mrb[0].mxu0 %v8683
        %v10534 = vpop.f32.mrb[0].mxu0
        %v10535 = vadd.f32 %v10374, %v10534
        %v10536 = vpop.f32.mrb[0].mxu0
        %v10537 = vpop.f32.mrb[0].mxu0
        %v10538 = vadd.f32 %v10377, %v10537
        %v10539 = vpop.f32.mrb[0].mxu0
        %10540 = vmatprep.mubr.bf16.mxu0 0
        %10541 = vmatmul.mubr.bf16.gmra.mrb[0].mxu0 %v8692
        %v10542 = vpop.f32.mrb[0].mxu0
        %v10543 = vadd.f32 %v10382, %v10542
        %v10544 = vpop.f32.mrb[0].mxu0
        %v10545 = vpop.f32.mrb[0].mxu0
        %v10546 = vadd.f32 %v10385, %v10545
        %v10547 = vpop.f32.mrb[0].mxu0
        %10548 = vmatprep.mubr.bf16.mxu0 0
        %10549 = vmatmul.mubr.bf16.gmra.mrb[0].mxu0 %v8701
        %v10550 = vpop.f32.mrb[0].mxu0
        %v10551 = vadd.f32 %v10390, %v10550
        %v10552 = vpop.f32.mrb[0].mxu0
        %v10553 = vpop.f32.mrb[0].mxu0
        %v10554 = vadd.f32 %v10393, %v10553
        %v10555 = vpop.f32.mrb[0].mxu0
        %10556 = vmatprep.mubr.bf16.mxu0 0
        %10557 = vmatmul.mubr.bf16.gmra.mrb[0].mxu0 %v8710
        %v10558 = vpop.f32.mrb[0].mxu0
        %v10559 = vadd.f32 %v10398, %v10558
        %v10560 = vpop.f32.mrb[0].mxu0
        %v10561 = vpop.f32.mrb[0].mxu0
        %v10562 = vadd.f32 %v10401, %v10561
        %v10563 = vpop.f32.mrb[0].mxu0
        %10564 = vmatprep.mubr.bf16.mxu0 0
        %10565 = vmatmul.mubr.bf16.gmra.mrb[0].mxu0 %v8719
        %v10566 = vpop.f32.mrb[0].mxu0
        %v10567 = vadd.f32 %v10406, %v10566
        %v10568 = vpop.f32.mrb[0].mxu0
        %v10569 = vpop.f32.mrb[0].mxu0
        %v10570 = vadd.f32 %v10409, %v10569
        %v10571 = vpop.f32.mrb[0].mxu0
        %10572 = vmatprep.mubr.bf16.mxu0 0
        %10573 = vmatmul.mubr.bf16.gmra.mrb[0].mxu0 %v8728
        %v10574 = vpop.f32.mrb[0].mxu0
        %v10575 = vadd.f32 %v10414, %v10574
        %v10576 = vpop.f32.mrb[0].mxu0
        %v10577 = vpop.f32.mrb[0].mxu0
        %v10578 = vadd.f32 %v10417, %v10577
        %v10579 = vpop.f32.mrb[0].mxu0
        %10580 = vdwg.mxu0
        %v10581 = vunpack.c.l.bf16 %v8934
        %v10582 = vunpack.c.l.bf16 %v8944
        %v10583 = vunpack.c.l.bf16 %v8958
        %v10584 = vunpack.c.l.bf16 %v8968
        %v10585 = vunpack.c.l.bf16 %v8982
        %v10586 = vunpack.c.l.bf16 %v8992
        %v10587 = vunpack.c.l.bf16 %v9006
        %v10588 = vunpack.c.l.bf16 %v9016
        %v10589 = vunpack.c.l.bf16 %v9030
        %v10590 = vunpack.c.l.bf16 %v9040
        %v10591 = vunpack.c.l.bf16 %v9054
        %v10592 = vunpack.c.l.bf16 %v9064
        %v10593 = vunpack.c.l.bf16 %v9078
        %v10594 = vunpack.c.l.bf16 %v9088
        %v10595 = vunpack.c.l.bf16 %v9102
        %v10596 = vunpack.c.l.bf16 %v9112
        %v10597 = vunpack.c.l.bf16 %v9126
        %v10598 = vunpack.c.l.bf16 %v9136
        %v10599 = vunpack.c.l.bf16 %v9150
        %v10600 = vunpack.c.l.bf16 %v9160
        %v10601 = vunpack.c.l.bf16 %v9174
        %v10602 = vunpack.c.l.bf16 %v9184
        %v10603 = vunpack.c.l.bf16 %v9198
        %v10604 = vunpack.c.l.bf16 %v9208
        %v10605 = vunpack.c.l.bf16 %v9222
        %v10606 = vunpack.c.l.bf16 %v9232
        %v10607 = vunpack.c.l.bf16 %v9246
        %v10608 = vunpack.c.l.bf16 %v9256
        %v10609 = vunpack.c.l.bf16 %v9270
        %v10610 = vunpack.c.l.bf16 %v9280
        %v10611 = vunpack.c.l.bf16 %v9294
        %v10612 = vunpack.c.l.bf16 %v9304
        %v10613 = vadd.f32 %v10455, %v10581
        %v10614 = vadd.f32 %v10458, %v10582
        %v10615 = vadd.f32 %v10463, %v10583
        %v10616 = vadd.f32 %v10466, %v10584
        %v10617 = vadd.f32 %v10471, %v10585
        %v10618 = vadd.f32 %v10474, %v10586
        %v10619 = vadd.f32 %v10479, %v10587
        %v10620 = vadd.f32 %v10482, %v10588
        %v10621 = vadd.f32 %v10487, %v10589
        %v10622 = vadd.f32 %v10490, %v10590
        %v10623 = vadd.f32 %v10495, %v10591
        %v10624 = vadd.f32 %v10498, %v10592
        %v10625 = vadd.f32 %v10503, %v10593
        %v10626 = vadd.f32 %v10506, %v10594
        %v10627 = vadd.f32 %v10511, %v10595
        %v10628 = vadd.f32 %v10514, %v10596
        %v10629 = vadd.f32 %v10519, %v10597
        %v10630 = vadd.f32 %v10522, %v10598
        %v10631 = vadd.f32 %v10527, %v10599
        %v10632 = vadd.f32 %v10530, %v10600
        %v10633 = vadd.f32 %v10535, %v10601
        %v10634 = vadd.f32 %v10538, %v10602
        %v10635 = vadd.f32 %v10543, %v10603
        %v10636 = vadd.f32 %v10546, %v10604
        %v10637 = vadd.f32 %v10551, %v10605
        %v10638 = vadd.f32 %v10554, %v10606
        %v10639 = vadd.f32 %v10559, %v10607
        %v10640 = vadd.f32 %v10562, %v10608
        %v10641 = vadd.f32 %v10567, %v10609
        %v10642 = vadd.f32 %v10570, %v10610
        %v10643 = vadd.f32 %v10575, %v10611
        %v10644 = vadd.f32 %v10578, %v10612
        %v10645 = vmax.f32 %v10613, 0.0
        %v10646 = vmax.f32 %v10614, 0.0
        %v10647 = vmax.f32 %v10615, 0.0
        %v10648 = vmax.f32 %v10616, 0.0
        %v10649 = vmax.f32 %v10617, 0.0
        %v10650 = vmax.f32 %v10618, 0.0
        %v10651 = vmax.f32 %v10619, 0.0
        %v10652 = vmax.f32 %v10620, 0.0
        %v10653 = vmax.f32 %v10621, 0.0
        %v10654 = vmax.f32 %v10622, 0.0
        %v10655 = vmax.f32 %v10623, 0.0
        %v10656 = vmax.f32 %v10624, 0.0
        %v10657 = vmax.f32 %v10625, 0.0
        %v10658 = vmax.f32 %v10626, 0.0
        %v10659 = vmax.f32 %v10627, 0.0
        %v10660 = vmax.f32 %v10628, 0.0
        %v10661 = vmax.f32 %v10629, 0.0
        %v10662 = vmax.f32 %v10630, 0.0
        %v10663 = vmax.f32 %v10631, 0.0
        %v10664 = vmax.f32 %v10632, 0.0
        %v10665 = vmax.f32 %v10633, 0.0
        %v10666 = vmax.f32 %v10634, 0.0
        %v10667 = vmax.f32 %v10635, 0.0
        %v10668 = vmax.f32 %v10636, 0.0
        %v10669 = vmax.f32 %v10637, 0.0
        %v10670 = vmax.f32 %v10638, 0.0
        %v10671 = vmax.f32 %v10639, 0.0
        %v10672 = vmax.f32 %v10640, 0.0
        %v10673 = vmax.f32 %v10641, 0.0
        %v10674 = vmax.f32 %v10642, 0.0
        %v10675 = vmax.f32 %v10643, 0.0
        %v10676 = vmax.f32 %v10644, 0.0
        %v10677 = vpack.c.bf16 %v10646, %v10645
        %v10678 = vpack.c.bf16 %v10648, %v10647
        %v10679 = vpack.c.bf16 %v10650, %v10649
        %v10680 = vpack.c.bf16 %v10652, %v10651
        %v10681 = vpack.c.bf16 %v10654, %v10653
        %v10682 = vpack.c.bf16 %v10656, %v10655
        %v10683 = vpack.c.bf16 %v10658, %v10657
        %v10684 = vpack.c.bf16 %v10660, %v10659
        %v10685 = vpack.c.bf16 %v10662, %v10661
        %v10686 = vpack.c.bf16 %v10664, %v10663
        %v10687 = vpack.c.bf16 %v10666, %v10665
        %v10688 = vpack.c.bf16 %v10668, %v10667
        %v10689 = vpack.c.bf16 %v10670, %v10669
        %v10690 = vpack.c.bf16 %v10672, %v10671
        %v10691 = vpack.c.bf16 %v10674, %v10673
        %v10692 = vpack.c.bf16 %v10676, %v10675
        %v10709 = vunpack.c.l.b16 %v10677
        %v10710 = vunpack.c.h.b16 %v10677
        %v10711 = vunpack.c.l.b16 %v10678
        %v10712 = vunpack.c.h.b16 %v10678
        %v10713 = vunpack.c.l.b16 %v10679
        %v10714 = vunpack.c.h.b16 %v10679
        %v10715 = vunpack.c.l.b16 %v10680
        %v10716 = vunpack.c.h.b16 %v10680
        %v10717 = vunpack.c.l.b16 %v10681
        %v10718 = vunpack.c.h.b16 %v10681
        %v10719 = vunpack.c.l.b16 %v10682
        %v10720 = vunpack.c.h.b16 %v10682
        %v10721 = vunpack.c.l.b16 %v10683
        %v10722 = vunpack.c.h.b16 %v10683
        %v10723 = vunpack.c.l.b16 %v10684
        %v10724 = vunpack.c.h.b16 %v10684
        %v10725 = vunpack.c.l.b16 %v10685
        %v10726 = vunpack.c.h.b16 %v10685
        %v10727 = vunpack.c.l.b16 %v10686
        %v10728 = vunpack.c.h.b16 %v10686
        %v10729 = vunpack.c.l.b16 %v10687
        %v10730 = vunpack.c.h.b16 %v10687
        %v10731 = vunpack.c.l.b16 %v10688
        %v10732 = vunpack.c.h.b16 %v10688
        %v10733 = vunpack.c.l.b16 %v10689
        %v10734 = vunpack.c.h.b16 %v10689
        %v10735 = vunpack.c.l.b16 %v10690
        %v10736 = vunpack.c.h.b16 %v10690
        %v10737 = vunpack.c.l.b16 %v10691
        %v10738 = vunpack.c.h.b16 %v10691
        %v10739 = vunpack.c.l.b16 %v10692
        %v10740 = vunpack.c.h.b16 %v10692
        %v10741 = vpack.c.b16 %v10709, %v10709
        %v10742 = vpack.c.b16 %v10710, %v10710
        %v10743 = vpack.c.b16 %v10711, %v10711
        %v10744 = vpack.c.b16 %v10712, %v10712
        %v10745 = vpack.c.b16 %v10713, %v10713
        %v10746 = vpack.c.b16 %v10714, %v10714
        %v10747 = vpack.c.b16 %v10715, %v10715
        %v10748 = vpack.c.b16 %v10716, %v10716
        %v10749 = vpack.c.b16 %v10717, %v10717
        %v10750 = vpack.c.b16 %v10718, %v10718
        %v10751 = vpack.c.b16 %v10719, %v10719
        %v10752 = vpack.c.b16 %v10720, %v10720
        %v10753 = vpack.c.b16 %v10721, %v10721
        %v10754 = vpack.c.b16 %v10722, %v10722
        %v10755 = vpack.c.b16 %v10723, %v10723
        %v10756 = vpack.c.b16 %v10724, %v10724
        %v10757 = vpack.c.b16 %v10725, %v10725
        %v10758 = vpack.c.b16 %v10726, %v10726
        %v10759 = vpack.c.b16 %v10727, %v10727
        %v10760 = vpack.c.b16 %v10728, %v10728
        %v10761 = vpack.c.b16 %v10729, %v10729
        %v10762 = vpack.c.b16 %v10730, %v10730
        %v10763 = vpack.c.b16 %v10731, %v10731
        %v10764 = vpack.c.b16 %v10732, %v10732
        %v10765 = vpack.c.b16 %v10733, %v10733
        %v10766 = vpack.c.b16 %v10734, %v10734
        %v10767 = vpack.c.b16 %v10735, %v10735
        %v10768 = vpack.c.b16 %v10736, %v10736
        %v10769 = vpack.c.b16 %v10737, %v10737
        %v10770 = vpack.c.b16 %v10738, %v10738
        %v10771 = vpack.c.b16 %v10739, %v10739
        %v10772 = vpack.c.b16 %v10740, %v10740
        %10805 = vst [vmem:[%s232] sm:$0xf] %v10741
        %10806 = vst [vmem:[%s232 + $0x4] sm:$0xf] %v10742
        %10807 = vst [vmem:[%s232 + $0x8] sm:$0xf] %v10743
        %10808 = vst [vmem:[%s232 + $0xc] sm:$0xf] %v10744
        %10809 = vst [vmem:[%s232 + $0x10] sm:$0xf] %v10745
        %10810 = vst [vmem:[%s232 + $0x14] sm:$0xf] %v10746
        %10811 = vst [vmem:[%s232 + $0x18] sm:$0xf] %v10747
        %10812 = vst [vmem:[%s232 + $0x1c] sm:$0xf] %v10748
        %10813 = vst [vmem:[%s232 + $0x20] sm:$0xf] %v10749
        %10814 = vst [vmem:[%s232 + $0x24] sm:$0xf] %v10750
        %10815 = vst [vmem:[%s232 + $0x28] sm:$0xf] %v10751
        %10816 = vst [vmem:[%s232 + $0x2c] sm:$0xf] %v10752
        %10817 = vst [vmem:[%s232 + $0x30] sm:$0xf] %v10753
        %10818 = vst [vmem:[%s232 + $0x34] sm:$0xf] %v10754
        %10819 = vst [vmem:[%s232 + $0x38] sm:$0xf] %v10755
        %10820 = vst [vmem:[%s232 + $0x3c] sm:$0xf] %v10756
        %10821 = vst [vmem:[%s232 + $0x40] sm:$0xf] %v10757
        %10822 = vst [vmem:[%s232 + $0x44] sm:$0xf] %v10758
        %10823 = vst [vmem:[%s232 + $0x48] sm:$0xf] %v10759
        %10824 = vst [vmem:[%s232 + $0x4c] sm:$0xf] %v10760
        %10825 = vst [vmem:[%s232 + $0x50] sm:$0xf] %v10761
        %10826 = vst [vmem:[%s232 + $0x54] sm:$0xf] %v10762
        %10827 = vst [vmem:[%s232 + $0x58] sm:$0xf] %v10763
        %10828 = vst [vmem:[%s232 + $0x5c] sm:$0xf] %v10764
        %10829 = vst [vmem:[%s232 + $0x60] sm:$0xf] %v10765
        %10830 = vst [vmem:[%s232 + $0x64] sm:$0xf] %v10766
        %10831 = vst [vmem:[%s232 + $0x68] sm:$0xf] %v10767
        %10832 = vst [vmem:[%s232 + $0x6c] sm:$0xf] %v10768
        %10833 = vst [vmem:[%s232 + $0x70] sm:$0xf] %v10769
        %10834 = vst [vmem:[%s232 + $0x74] sm:$0xf] %v10770
        %10835 = vst [vmem:[%s232 + $0x78] sm:$0xf] %v10771
        %10836 = vst [vmem:[%s232 + $0x7c] sm:$0xf] %v10772
        %s10837 = sand.u32 %s138, 1
        %s10838 = scalar_lea.sflag [#allocation7], %s10837
        %s10839 = sand.u32 %s138, 1
        %s10840 = smul.addr %s10839, 128
        %s10841 = scalar_lea.vmem [#allocation8], %s10840
        // Predicated region
        $region45: #{basic_block.1} parent=39 // pred_check
          %p10842 = pneg %p148
        $region46: #{basic_block.1} parent=39 // pred_check_branch
          %10844 = sbr.rel (%p10842) target = $region48
        $region47: #{basic_block.1} parent=39 // pred_region
          %s10846 = ssub.s32 2048, 2048
          %10847 = vsyncadd %s10838, %s10846
          %s10848 = smul.addr %s20, 32
          %s10849 = smul.addr %s10848, 64
          %s10850 = scalar_lea.hbm %s5, %s10849
          %s10851 = sshll.u32 %s10841, 4
          %s10852 = int_to_ptr.vmem [resolvable:$true] %s10851
          %10857 = dma.vmem_to_hbm [thread:$0]  %s10852, 2048, %s10850, %s10838, 64, 64, 4
        $region48: #{basic_block.1} parent=39 // pred_fallthru
          _
      $region40: #{basic_block.1} parent=5 // pred_fallthru
        _
      %p10858 = scmp.le.s32.totalorder 2, %s15
      // Predicated region
      $region49: #{basic_block.1} parent=5 // pred_check
        %p10859 = pneg %p10858
      $region50: #{basic_block.1} parent=5 // pred_check_branch
        %10861 = sbr.rel (%p10859) target = $region52
      $region51: #{basic_block.1} parent=5 // pred_region
        %s10862 = ssub.s32 %s15, 2
        // Predicated region
        $region53: #{basic_block.1} parent=51 // pred_check
          %p10863 = pneg %p154
        $region54: #{basic_block.1} parent=51 // pred_check_branch
          %10865 = sbr.rel (%p10863) target = $region56
        $region55: #{basic_block.1} parent=51 // pred_region
          %s10866 = sand.u32 %s139, 1
          %s10867 = scalar_lea.sflag [#allocation7], %s10866
          %s10868 = sand.u32 %s139, 1
          %s10869 = smul.addr %s10868, 128
          %s10870 = scalar_lea.vmem [#allocation8], %s10869
          %10871 = dma.done %s10867, 2048
        $region56: #{basic_block.1} parent=51 // pred_fallthru
          _
      $region52: #{basic_block.1} parent=5 // pred_fallthru
        _
    $region6: #{basic_block.1} parent=1 // loop_footer
      %s19 = sadd.s32 1, %s15
    $region7: #{basic_block.1} parent=1 // loop_footer_branch
      %14 = sbr.rel target = $region3
    $region8: #{basic_block.1} parent=1 // loop_exit
      _
    %10872 = vsyncpa [#allocation6], 1
    %s10873 = scalar_lea.sflag [#allocation6], 1
    %10874 = vsyncpa %s10873, 1
    %10875 = vsyncpa [#allocation7], 1
    %s10876 = scalar_lea.sflag [#allocation7], 1
    %10877 = vsyncpa %s10876, 1

</llo_original>
